<compile_context>
chip_gen: v5e
topology: v5e:2x2
jax: 0.10.0
libtpu: 0.0.40
codegen_flags: <defaults>
</compile_context>

<pallas_src>
import functools
import math

import jax
import jax.numpy as jnp
from jax.experimental import pallas as pl
from jax.experimental.pallas import tpu as pltpu

D_MODEL = 128          # embedding_size == hidden_size == 128
DFF = 2048             # PyTorch default dim_feedforward
N_ENC = 6              # PyTorch default num_encoder_layers
N_DEC = 6              # PyTorch default num_decoder_layers
LN_EPS = 1e-5

_MXU_DTYPE = jnp.bfloat16   # matmul-operand dtype (accumulation stays f32)
_VMEM_LIMIT = 32 * 1024 * 1024


# ------------------------- in-kernel helper math ----------------------------

def _mm(x_bf16, w_ref, b_ref):
    """x (M, K) bf16  @  pre-transposed weight ref (K, N) bf16  +  bias (1, N) f32."""
    return jnp.dot(x_bf16, w_ref[...],
                   preferred_element_type=jnp.float32) + b_ref[...]


def _layernorm(y, g_ref, b_ref):
    mu = jnp.mean(y, axis=-1, keepdims=True)
    var = jnp.mean(jnp.square(y - mu), axis=-1, keepdims=True)
    return (y - mu) * jax.lax.rsqrt(var + LN_EPS) * g_ref[...] + b_ref[...]


def _attention(q, k, v):
    """Single-head attention, batch-major: q (B, Tq, D), k/v (B, Tk, D).

    The 1/sqrt(D) scale is already folded into the Q projection weights.
    QK^T runs in bf16 on the MXU; softmax and the tiny PV contraction stay f32.
    """
    s = jnp.einsum("bqd,bkd->bqk", q.astype(_MXU_DTYPE), k.astype(_MXU_DTYPE),
                   preferred_element_type=jnp.float32)
    m = jnp.max(s, axis=-1, keepdims=True)
    p = jnp.exp(s - m)
    p = p * pl.reciprocal(jnp.sum(p, axis=-1, keepdims=True), approx=True)
    return jnp.einsum("bqk,bkd->bqd", p, v, preferred_element_type=jnp.float32)


# ----------------------------- fused stack kernels ---------------------------

def _enc_stack_kernel(x_ref,
                      wqkv_ref, bqkv_ref, wo_ref, bo_ref,
                      n1w_ref, n1b_ref,
                      w1_ref, b1_ref, w2_ref, b2_ref,
                      n2w_ref, n2b_ref,
                      fnw_ref, fnb_ref,
                      o_ref,
                      x_sc):
    l = pl.program_id(0)

    @pl.when(l == 0)
    def _():
        x_sc[...] = x_ref[...]

    nb, s, d = x_sc.shape
    x = x_sc[...].reshape(nb * s, d)
    xb = x.astype(_MXU_DTYPE)

    # --- self-attention (merged QKV projection, scale folded into Wq) ---
    qkv = _mm(xb, wqkv_ref, bqkv_ref)                      # (M, 3D)
    q = qkv[:, :d].reshape(nb, s, d)
    k = qkv[:, d:2 * d].reshape(nb, s, d)
    v = qkv[:, 2 * d:].reshape(nb, s, d)
    a = _attention(q, k, v).reshape(nb * s, d)
    a = _mm(a.astype(_MXU_DTYPE), wo_ref, bo_ref)
    x1 = _layernorm(x + a, n1w_ref, n1b_ref)
    x1b = x1.astype(_MXU_DTYPE)

    # --- feed-forward ---
    h = jnp.maximum(_mm(x1b, w1_ref, b1_ref), 0.0)
    h = _mm(h.astype(_MXU_DTYPE), w2_ref, b2_ref)
    x2 = _layernorm(x1 + h, n2w_ref, n2b_ref)

    x_sc[...] = x2.reshape(nb, s, d)

    @pl.when(l == pl.num_programs(0) - 1)
    def _():
        # final encoder LayerNorm fused into the last layer iteration
        o_ref[...] = _layernorm(x2, fnw_ref, fnb_ref).reshape(nb, s, d)


def _dec_stack_kernel(x_ref, mem_ref,
                      wqkv_ref, bqkv_ref, wos_ref, bos_ref,
                      n1w_ref, n1b_ref,
                      wqc_ref, bqc_ref, wkvc_ref, bkvc_ref, woc_ref, boc_ref,
                      n2w_ref, n2b_ref,
                      w1_ref, b1_ref, w2_ref, b2_ref,
                      n3w_ref, n3b_ref,
                      fnw_ref, fnb_ref, fcw_ref, fcb_ref,
                      o_ref,
                      x_sc):
    l = pl.program_id(0)

    @pl.when(l == 0)
    def _():
        x_sc[...] = x_ref[...]

    nb, t, d = x_sc.shape
    s = mem_ref.shape[1]
    x = x_sc[...].reshape(nb * t, d)
    xb = x.astype(_MXU_DTYPE)
    memb = mem_ref[...].reshape(nb * s, d).astype(_MXU_DTYPE)

    # --- self-attention ---
    qkv = _mm(xb, wqkv_ref, bqkv_ref)                      # (Mt, 3D)
    q = qkv[:, :d].reshape(nb, t, d)
    k = qkv[:, d:2 * d].reshape(nb, t, d)
    v = qkv[:, 2 * d:].reshape(nb, t, d)
    a = _attention(q, k, v).reshape(nb * t, d)
    a = _mm(a.astype(_MXU_DTYPE), wos_ref, bos_ref)
    x1 = _layernorm(x + a, n1w_ref, n1b_ref)
    x1b = x1.astype(_MXU_DTYPE)

    # --- cross-attention (queries from decoder, keys/values from memory) ---
    qc = _mm(x1b, wqc_ref, bqc_ref).reshape(nb, t, d)
    kvc = _mm(memb, wkvc_ref, bkvc_ref)                    # (Ms, 2D)
    kc = kvc[:, :d].reshape(nb, s, d)
    vc = kvc[:, d:].reshape(nb, s, d)
    c = _attention(qc, kc, vc).reshape(nb * t, d)
    c = _mm(c.astype(_MXU_DTYPE), woc_ref, boc_ref)
    x2 = _layernorm(x1 + c, n2w_ref, n2b_ref)
    x2b = x2.astype(_MXU_DTYPE)

    # --- feed-forward ---
    h = jnp.maximum(_mm(x2b, w1_ref, b1_ref), 0.0)
    h = _mm(h.astype(_MXU_DTYPE), w2_ref, b2_ref)
    x3 = _layernorm(x2 + h, n3w_ref, n3b_ref)

    x_sc[...] = x3.reshape(nb, t, d)

    @pl.when(l == pl.num_programs(0) - 1)
    def _():
        # final decoder LayerNorm + vocab projection (lane-dense padded V)
        y = _layernorm(x3, fnw_ref, fnb_ref)
        logits = _mm(y.astype(_MXU_DTYPE), fcw_ref, fcb_ref)
        o_ref[...] = logits.reshape(nb, t, o_ref.shape[-1])


# ----------------------------- kernel wrappers --------------------------------

def _stacked_spec(arr):
    # (L, a, b) array -> per-layer (a, b) block, layer axis squeezed.
    nrest = arr.ndim - 1
    return pl.BlockSpec((None,) + tuple(arr.shape[1:]),
                        lambda l, nrest=nrest: (l,) + (0,) * nrest)


def _const_spec(arr):
    # whole array, fetched once (block index constant across the layer grid).
    n = arr.ndim
    return pl.BlockSpec(tuple(arr.shape), lambda l, n=n: (0,) * n)


def _bytes(*arrays):
    return sum(int(a.size) * a.dtype.itemsize for a in arrays)


_ENC_KEYS = ("wqkv", "bqkv", "wo", "bo", "n1w", "n1b",
             "w1", "b1", "w2", "b2", "n2w", "n2b")

_DEC_KEYS = ("wqkv", "bqkv", "wos", "bos", "n1w", "n1b",
             "wqc", "bqc", "wkvc", "bkvc", "woc", "boc", "n2w", "n2b",
             "w1", "b1", "w2", "b2", "n3w", "n3b")


def encoder_stack(src_e, enc, norm_w, norm_b):
    nb, s, d = src_e.shape
    L = enc["wqkv"].shape[0]
    dff = enc["w1"].shape[-1]
    stacked = [enc[k] for k in _ENC_KEYS]

    act_spec = pl.BlockSpec((nb, s, d), lambda l: (0, 0, 0))
    in_specs = ([act_spec] + [_stacked_spec(a) for a in stacked]
                + [_const_spec(norm_w), _const_spec(norm_b)])

    M = nb * s
    per_layer_flops = (2 * M * d * 3 * d + 2 * M * d * d
                       + 4 * nb * s * s * d + 4 * M * d * dff)
    cost = pl.CostEstimate(
        flops=int(L * per_layer_flops + 2 * M * d),
        transcendentals=int(L * (nb * s * s + 3 * M)),
        bytes_accessed=int(_bytes(*stacked, norm_w, norm_b, src_e) + 4 * nb * s * d))

    return pl.pallas_call(
        _enc_stack_kernel,
        out_shape=jax.ShapeDtypeStruct((nb, s, d), jnp.float32),
        grid_spec=pltpu.PrefetchScalarGridSpec(
            num_scalar_prefetch=0,
            grid=(L,),
            in_specs=in_specs,
            out_specs=act_spec,
            scratch_shapes=[pltpu.VMEM((nb, s, d), jnp.float32)]),
        compiler_params=pltpu.CompilerParams(
            dimension_semantics=("arbitrary",),
            vmem_limit_bytes=_VMEM_LIMIT),
        cost_estimate=cost,
    )(src_e, *stacked, norm_w, norm_b)


def decoder_stack(tgt_e, memory, dec, norm_w, norm_b, fc_w, fc_b):
    nb, t, d = tgt_e.shape
    s = memory.shape[1]
    L = dec["wqkv"].shape[0]
    dff = dec["w1"].shape[-1]
    vpad = fc_w.shape[1]
    stacked = [dec[k] for k in _DEC_KEYS]

    act_spec = pl.BlockSpec((nb, t, d), lambda l: (0, 0, 0))
    mem_spec = pl.BlockSpec((nb, s, d), lambda l: (0, 0, 0))
    out_spec = pl.BlockSpec((nb, t, vpad), lambda l: (0, 0, 0))
    in_specs = ([act_spec, mem_spec] + [_stacked_spec(a) for a in stacked]
                + [_const_spec(norm_w), _const_spec(norm_b),
                   _const_spec(fc_w), _const_spec(fc_b)])

    Mt, Ms = nb * t, nb * s
    per_layer_flops = (2 * Mt * d * 3 * d + 2 * Mt * d * d + 4 * nb * t * t * d
                       + 2 * Mt * d * d + 2 * Ms * d * 2 * d + 2 * Mt * d * d
                       + 4 * nb * t * s * d
                       + 4 * Mt * d * dff)
    cost = pl.CostEstimate(
        flops=int(L * per_layer_flops + 2 * Mt * d * vpad),
        transcendentals=int(L * (nb * t * t + nb * t * s + 4 * Mt)),
        bytes_accessed=int(_bytes(*stacked, norm_w, norm_b, fc_w, fc_b,
                                  tgt_e, memory) + 4 * nb * t * vpad))

    return pl.pallas_call(
        _dec_stack_kernel,
        out_shape=jax.ShapeDtypeStruct((nb, t, vpad), jnp.float32),
        grid_spec=pltpu.PrefetchScalarGridSpec(
            num_scalar_prefetch=0,
            grid=(L,),
            in_specs=in_specs,
            out_specs=out_spec,
            scratch_shapes=[pltpu.VMEM((nb, t, d), jnp.float32)]),
        compiler_params=pltpu.CompilerParams(
            dimension_semantics=("arbitrary",),
            vmem_limit_bytes=_VMEM_LIMIT),
        cost_estimate=cost,
    )(tgt_e, memory, *stacked, norm_w, norm_b, fc_w, fc_b)


# ----------------------------- forward pass -----------------------------------

def dummy_gpt_forward(params, src, tgt, vocab_size):
    emb = params["embedding"]
    # TODO(synk): embedding gather stays in plain JAX (no clean Pallas gather here).
    src_e = jnp.take(emb, jnp.transpose(src), axis=0)   # (N, S, D) batch-major
    tgt_e = jnp.take(emb, jnp.transpose(tgt), axis=0)   # (N, T, D)

    mem = encoder_stack(src_e, params["enc"],
                        params["enc_norm_w"], params["enc_norm_b"])
    logits = decoder_stack(tgt_e, mem, params["dec"],
                           params["dec_norm_w"], params["dec_norm_b"],
                           params["fc_w"], params["fc_b"])       # (N, T, Vpad)

    # (T, N, V) output layout of the PyTorch module; pad columns sliced off.
    return jnp.transpose(logits, (1, 0, 2))[:, :, :vocab_size]


# ----------------------------- parameter init ----------------------------------

def _rand_w(key, shape, scale=0.02):
    return scale * jax.random.normal(key, shape, jnp.float32)


def _init_enc_stack(key, L, d, dff):
    k1, k2, k3, k4 = jax.random.split(key, 4)
    attn_scale = 1.0 / math.sqrt(d)
    wqkv = _rand_w(k1, (L, d, 3 * d))
    # fold the 1/sqrt(d) attention scale into the Q columns (biases are zero,
    # so no bias scaling is needed).
    wqkv = wqkv.at[:, :, :d].multiply(attn_scale)
    return {
        "wqkv": wqkv.astype(_MXU_DTYPE),
        "bqkv": jnp.zeros((L, 1, 3 * d), jnp.float32),
        "wo": _rand_w(k2, (L, d, d)).astype(_MXU_DTYPE),
        "bo": jnp.zeros((L, 1, d), jnp.float32),
        "n1w": jnp.ones((L, 1, d), jnp.float32),
        "n1b": jnp.zeros((L, 1, d), jnp.float32),
        "w1": _rand_w(k3, (L, d, dff)).astype(_MXU_DTYPE),
        "b1": jnp.zeros((L, 1, dff), jnp.float32),
        "w2": _rand_w(k4, (L, dff, d)).astype(_MXU_DTYPE),
        "b2": jnp.zeros((L, 1, d), jnp.float32),
        "n2w": jnp.ones((L, 1, d), jnp.float32),
        "n2b": jnp.zeros((L, 1, d), jnp.float32),
    }


def _init_dec_stack(key, L, d, dff):
    k1, k2, k3, k4, k5, k6, k7 = jax.random.split(key, 7)
    attn_scale = 1.0 / math.sqrt(d)
    wqkv = _rand_w(k1, (L, d, 3 * d))
    wqkv = wqkv.at[:, :, :d].multiply(attn_scale)         # self-attn Q scale
    wqc = _rand_w(k3, (L, d, d)) * attn_scale             # cross-attn Q scale
    return {
        # self-attention
        "wqkv": wqkv.astype(_MXU_DTYPE),
        "bqkv": jnp.zeros((L, 1, 3 * d), jnp.float32),
        "wos": _rand_w(k2, (L, d, d)).astype(_MXU_DTYPE),
        "bos": jnp.zeros((L, 1, d), jnp.float32),
        "n1w": jnp.ones((L, 1, d), jnp.float32),
        "n1b": jnp.zeros((L, 1, d), jnp.float32),
        # cross-attention
        "wqc": wqc.astype(_MXU_DTYPE),
        "bqc": jnp.zeros((L, 1, d), jnp.float32),
        "wkvc": _rand_w(k4, (L, d, 2 * d)).astype(_MXU_DTYPE),
        "bkvc": jnp.zeros((L, 1, 2 * d), jnp.float32),
        "woc": _rand_w(k5, (L, d, d)).astype(_MXU_DTYPE),
        "boc": jnp.zeros((L, 1, d), jnp.float32),
        "n2w": jnp.ones((L, 1, d), jnp.float32),
        "n2b": jnp.zeros((L, 1, d), jnp.float32),
        # feed-forward
        "w1": _rand_w(k6, (L, d, dff)).astype(_MXU_DTYPE),
        "b1": jnp.zeros((L, 1, dff), jnp.float32),
        "w2": _rand_w(k7, (L, dff, d)).astype(_MXU_DTYPE),
        "b2": jnp.zeros((L, 1, d), jnp.float32),
        "n3w": jnp.ones((L, 1, d), jnp.float32),
        "n3b": jnp.zeros((L, 1, d), jnp.float32),
    }


def init_params(key, vocab_size, d=D_MODEL, dff=DFF, n_enc=N_ENC, n_dec=N_DEC):
    kemb, kenc, kdec, kfc = jax.random.split(key, 4)
    vpad = ((vocab_size + 127) // 128) * 128     # lane-dense padded vocab
    fc_w = _rand_w(kfc, (d, vocab_size))
    fc_w = jnp.pad(fc_w, ((0, 0), (0, vpad - vocab_size))).astype(_MXU_DTYPE)
    return {
        "embedding": 0.02 * jax.random.normal(kemb, (vocab_size, d), jnp.float32),
        "enc": _init_enc_stack(kenc, n_enc, d, dff),
        "dec": _init_dec_stack(kdec, n_dec, d, dff),
        "enc_norm_w": jnp.ones((1, d), jnp.float32),
        "enc_norm_b": jnp.zeros((1, d), jnp.float32),
        "dec_norm_w": jnp.ones((1, d), jnp.float32),
        "dec_norm_b": jnp.zeros((1, d), jnp.float32),
        "fc_w": fc_w,
        "fc_b": jnp.zeros((1, vpad), jnp.float32),
    }


# --------------------------------- main ----------------------------------------

if __name__ == "__main__":
    # Original module has vocab_size = len({}) == 0 (degenerate); use a small
    # synthetic vocab so the forward is well-defined.
    V, S, T, N = 32, 8, 8, 2

    key = jax.random.PRNGKey(0)
    kp, ksrc, ktgt = jax.random.split(key, 3)

    params = init_params(kp, V)
    src = jax.random.randint(ksrc, (S, N), 0, V, dtype=jnp.int32)
    tgt = jax.random.randint(ktgt, (T, N), 0, V, dtype=jnp.int32)

    fwd = jax.jit(functools.partial(dummy_gpt_forward, vocab_size=V))
    out = fwd(params, src, tgt)
    out = jax.block_until_ready(out)
    assert out.shape == (T, N, V), out.shape
    assert jnp.all(jnp.isfinite(out))
    print("KERNEL_OK")
</pallas_src>

<mosaic_0001>
module attributes {stable_mosaic.version = 11 : i64} {
  func.func @_enc_stack_kernel(%arg0: i32, %arg1: memref<2x8x128xf32, #tpu.memory_space<vmem>>, %arg2: memref<1x128x384xbf16, #tpu.memory_space<vmem>>, %arg3: memref<1x1x384xf32, #tpu.memory_space<vmem>>, %arg4: memref<1x128x128xbf16, #tpu.memory_space<vmem>>, %arg5: memref<1x1x128xf32, #tpu.memory_space<vmem>>, %arg6: memref<1x1x128xf32, #tpu.memory_space<vmem>>, %arg7: memref<1x1x128xf32, #tpu.memory_space<vmem>>, %arg8: memref<1x128x2048xbf16, #tpu.memory_space<vmem>>, %arg9: memref<1x1x2048xf32, #tpu.memory_space<vmem>>, %arg10: memref<1x2048x128xbf16, #tpu.memory_space<vmem>>, %arg11: memref<1x1x128xf32, #tpu.memory_space<vmem>>, %arg12: memref<1x1x128xf32, #tpu.memory_space<vmem>>, %arg13: memref<1x1x128xf32, #tpu.memory_space<vmem>>, %arg14: memref<1x128xf32, #tpu.memory_space<vmem>>, %arg15: memref<1x128xf32, #tpu.memory_space<vmem>>, %arg16: memref<2x8x128xf32, #tpu.memory_space<vmem>>, %arg17: memref<2x8x128xf32, #tpu.memory_space<vmem>>) attributes {dimension_semantics = [#tpu.dimension_semantics<arbitrary>], iteration_bounds = array<i64: 6>, scalar_prefetch = 0 : i64, scratch_operands = 1 : i64, tpu.core_type = #tpu.core_type<tc>, window_params = [{pipeline_mode = #tpu.pipeline_mode<synchronous>, transform_indices = @transform_0, window_bounds = array<i64: 2, 8, 128>}, {transform_indices = @transform_1, window_bounds = array<i64: 1, 128, 384>}, {transform_indices = @transform_2, window_bounds = array<i64: 1, 1, 384>}, {transform_indices = @transform_3, window_bounds = array<i64: 1, 128, 128>}, {transform_indices = @transform_4, window_bounds = array<i64: 1, 1, 128>}, {transform_indices = @transform_5, window_bounds = array<i64: 1, 1, 128>}, {transform_indices = @transform_6, window_bounds = array<i64: 1, 1, 128>}, {transform_indices = @transform_7, window_bounds = array<i64: 1, 128, 2048>}, {transform_indices = @transform_8, window_bounds = array<i64: 1, 1, 2048>}, {transform_indices = @transform_9, window_bounds = array<i64: 1, 2048, 128>}, {transform_indices = @transform_10, window_bounds = array<i64: 1, 1, 128>}, {transform_indices = @transform_11, window_bounds = array<i64: 1, 1, 128>}, {transform_indices = @transform_12, window_bounds = array<i64: 1, 1, 128>}, {pipeline_mode = #tpu.pipeline_mode<synchronous>, transform_indices = @transform_13, window_bounds = array<i64: 1, 128>}, {pipeline_mode = #tpu.pipeline_mode<synchronous>, transform_indices = @transform_14, window_bounds = array<i64: 1, 128>}, {pipeline_mode = #tpu.pipeline_mode<synchronous>, transform_indices = @transform_15, window_bounds = array<i64: 2, 8, 128>}]} {
    %c0_i32 = arith.constant 0 : i32
    %0 = arith.cmpi eq, %arg0, %c0_i32 : i32
    %1 = arith.extui %0 : i1 to i32
    %c0_i32_0 = arith.constant 0 : i32
    %2 = arith.cmpi ne, %1, %c0_i32_0 : i32
    scf.if %2 {
      %c0_61 = arith.constant 0 : index
      %c0_62 = arith.constant 0 : index
      %c0_63 = arith.constant 0 : index
      %119 = vector.load %arg1[%c0_61, %c0_62, %c0_63] : memref<2x8x128xf32, #tpu.memory_space<vmem>>, vector<2x8x128xf32>
      %c0_64 = arith.constant 0 : index
      %c0_65 = arith.constant 0 : index
      %c0_66 = arith.constant 0 : index
      %120 = vector.load %arg17[%c0_64, %c0_65, %c0_66] : memref<2x8x128xf32, #tpu.memory_space<vmem>>, vector<2x8x128xf32>
      tpu.vector_store %arg17[%c0_64, %c0_65, %c0_66], %119 {strides = array<i32>} : memref<2x8x128xf32, #tpu.memory_space<vmem>>, vector<2x8x128xf32>,
    } else {
    }
    %c0 = arith.constant 0 : index
    %c0_1 = arith.constant 0 : index
    %c0_2 = arith.constant 0 : index
    %3 = vector.load %arg17[%c0, %c0_1, %c0_2] : memref<2x8x128xf32, #tpu.memory_space<vmem>>, vector<2x8x128xf32>
    %4 = vector.shape_cast %3 : vector<2x8x128xf32> to vector<16x128xf32>
    %5 = arith.truncf %4 : vector<16x128xf32> to vector<16x128xbf16>
    %c0_3 = arith.constant 0 : index
    %c0_4 = arith.constant 0 : index
    %c0_5 = arith.constant 0 : index
    %6 = vector.load %arg2[%c0_3, %c0_4, %c0_5] : memref<1x128x384xbf16, #tpu.memory_space<vmem>>, vector<1x128x384xbf16>
    %7 = vector.shape_cast %6 : vector<1x128x384xbf16> to vector<128x384xbf16>
    %cst = arith.constant dense<0.000000e+00> : vector<16x384xf32>
    %8 = tpu.matmul %5, %7, %cst {dimension_numbers = #tpu.dot_dimension_numbers<[1], [0], [0], [1], [0, 0, 1, 1], [], []>} : vector<16x128xbf16>, vector<128x384xbf16>, vector<16x384xf32> -> vector<16x384xf32>
    %c0_6 = arith.constant 0 : index
    %c0_7 = arith.constant 0 : index
    %c0_8 = arith.constant 0 : index
    %9 = vector.load %arg3[%c0_6, %c0_7, %c0_8] : memref<1x1x384xf32, #tpu.memory_space<vmem>>, vector<1x1x384xf32>
    %10 = vector.shape_cast %9 : vector<1x1x384xf32> to vector<1x384xf32>
    %11 = vector.broadcast %10 : vector<1x384xf32> to vector<16x384xf32>
    %12 = arith.addf %8, %11 : vector<16x384xf32>
    %13 = vector.extract_strided_slice %12 {offsets = [0, 0], sizes = [16, 128], strides = [1, 1]} : vector<16x384xf32> to vector<16x128xf32>
    %14 = vector.shape_cast %13 : vector<16x128xf32> to vector<2x8x128xf32>
    %15 = vector.extract_strided_slice %12 {offsets = [0, 128], sizes = [16, 128], strides = [1, 1]} : vector<16x384xf32> to vector<16x128xf32>
    %16 = vector.shape_cast %15 : vector<16x128xf32> to vector<2x8x128xf32>
    %17 = vector.extract_strided_slice %12 {offsets = [0, 256], sizes = [16, 128], strides = [1, 1]} : vector<16x384xf32> to vector<16x128xf32>
    %18 = vector.shape_cast %17 : vector<16x128xf32> to vector<2x8x128xf32>
    %19 = arith.truncf %14 : vector<2x8x128xf32> to vector<2x8x128xbf16>
    %20 = arith.truncf %16 : vector<2x8x128xf32> to vector<2x8x128xbf16>
    "tpu.trace_start"() <{level = 10 : i32, message = "bqd,bkd->bqk"}> : () -> ()
    %cst_9 = arith.constant dense<0.000000e+00> : vector<2x8x8xf32>
    %21 = tpu.matmul %19, %20, %cst_9 {dimension_numbers = #tpu.dot_dimension_numbers<[2], [2], [1], [1], [0, 0, 0, 1, 1, 1], [0], [0]>} : vector<2x8x128xbf16>, vector<2x8x128xbf16>, vector<2x8x8xf32> -> vector<2x8x8xf32>
    "tpu.trace_stop"() : () -> ()
    %cst_10 = arith.constant dense<0xFF800000> : vector<2x8xf32>
    %22 = vector.multi_reduction <maximumf>, %21, %cst_10 [2] : vector<2x8x8xf32> to vector<2x8xf32>
    %23 = vector.shape_cast %22 : vector<2x8xf32> to vector<2x8x1xf32>
    %24 = vector.broadcast %23 : vector<2x8x1xf32> to vector<2x8x8xf32>
    %25 = arith.subf %21, %24 : vector<2x8x8xf32>
    %26 = math.exp %25 : vector<2x8x8xf32>
    %cst_11 = arith.constant dense<0.000000e+00> : vector<2x8xf32>
    %27 = vector.multi_reduction <add>, %26, %cst_11 [2] : vector<2x8x8xf32> to vector<2x8xf32>
    %28 = vector.shape_cast %27 : vector<2x8xf32> to vector<2x8x1xf32>
    %29 = tpu.reciprocal %28 {approx = true} : vector<2x8x1xf32> -> vector<2x8x1xf32>
    %30 = vector.broadcast %29 : vector<2x8x1xf32> to vector<2x8x8xf32>
    %31 = arith.mulf %26, %30 : vector<2x8x8xf32>
    "tpu.trace_start"() <{level = 10 : i32, message = "bqk,bkd->bqd"}> : () -> ()
    %cst_12 = arith.constant dense<0.000000e+00> : vector<2x8x128xf32>
    %32 = tpu.matmul %31, %18, %cst_12 {dimension_numbers = #tpu.dot_dimension_numbers<[2], [1], [1], [2], [0, 0, 0, 1, 1, 2], [0], [0]>} : vector<2x8x8xf32>, vector<2x8x128xf32>, vector<2x8x128xf32> -> vector<2x8x128xf32>
    "tpu.trace_stop"() : () -> ()
    %33 = vector.shape_cast %32 : vector<2x8x128xf32> to vector<16x128xf32>
    %34 = arith.truncf %33 : vector<16x128xf32> to vector<16x128xbf16>
    %c0_13 = arith.constant 0 : index
    %c0_14 = arith.constant 0 : index
    %c0_15 = arith.constant 0 : index
    %35 = vector.load %arg4[%c0_13, %c0_14, %c0_15] : memref<1x128x128xbf16, #tpu.memory_space<vmem>>, vector<1x128x128xbf16>
    %36 = vector.shape_cast %35 : vector<1x128x128xbf16> to vector<128x128xbf16>
    %cst_16 = arith.constant dense<0.000000e+00> : vector<16x128xf32>
    %37 = tpu.matmul %34, %36, %cst_16 {dimension_numbers = #tpu.dot_dimension_numbers<[1], [0], [0], [1], [0, 0, 1, 1], [], []>} : vector<16x128xbf16>, vector<128x128xbf16>, vector<16x128xf32> -> vector<16x128xf32>
    %c0_17 = arith.constant 0 : index
    %c0_18 = arith.constant 0 : index
    %c0_19 = arith.constant 0 : index
    %38 = vector.load %arg5[%c0_17, %c0_18, %c0_19] : memref<1x1x128xf32, #tpu.memory_space<vmem>>, vector<1x1x128xf32>
    %39 = vector.shape_cast %38 : vector<1x1x128xf32> to vector<1x128xf32>
    %40 = vector.broadcast %39 : vector<1x128xf32> to vector<16x128xf32>
    %41 = arith.addf %37, %40 : vector<16x128xf32>
    %42 = arith.addf %4, %41 : vector<16x128xf32>
    %cst_20 = arith.constant dense<0.000000e+00> : vector<16xf32>
    %43 = vector.multi_reduction <add>, %42, %cst_20 [1] : vector<16x128xf32> to vector<16xf32>
    %44 = vector.shape_cast %43 : vector<16xf32> to vector<16x1xf32>
    %cst_21 = arith.constant 1.280000e+02 : f32
    %45 = vector.broadcast %cst_21 : f32 to vector<16x1xf32>
    %46 = arith.divf %44, %45 : vector<16x1xf32>
    %47 = vector.broadcast %46 : vector<16x1xf32> to vector<16x128xf32>
    %48 = arith.subf %42, %47 : vector<16x128xf32>
    %49 = arith.mulf %48, %48 : vector<16x128xf32>
    %cst_22 = arith.constant dense<0.000000e+00> : vector<16xf32>
    %50 = vector.multi_reduction <add>, %49, %cst_22 [1] : vector<16x128xf32> to vector<16xf32>
    %51 = vector.shape_cast %50 : vector<16xf32> to vector<16x1xf32>
    %cst_23 = arith.constant 1.280000e+02 : f32
    %52 = vector.broadcast %cst_23 : f32 to vector<16x1xf32>
    %53 = arith.divf %51, %52 : vector<16x1xf32>
    %54 = vector.broadcast %46 : vector<16x1xf32> to vector<16x128xf32>
    %55 = arith.subf %42, %54 : vector<16x128xf32>
    %cst_24 = arith.constant 9.99999974E-6 : f32
    %56 = vector.broadcast %cst_24 : f32 to vector<16x1xf32>
    %57 = arith.addf %53, %56 : vector<16x1xf32>
    %58 = math.rsqrt %57 : vector<16x1xf32>
    %59 = vector.broadcast %58 : vector<16x1xf32> to vector<16x128xf32>
    %60 = arith.mulf %55, %59 : vector<16x128xf32>
    %c0_25 = arith.constant 0 : index
    %c0_26 = arith.constant 0 : index
    %c0_27 = arith.constant 0 : index
    %61 = vector.load %arg6[%c0_25, %c0_26, %c0_27] : memref<1x1x128xf32, #tpu.memory_space<vmem>>, vector<1x1x128xf32>
    %62 = vector.shape_cast %61 : vector<1x1x128xf32> to vector<1x128xf32>
    %63 = vector.broadcast %62 : vector<1x128xf32> to vector<16x128xf32>
    %64 = arith.mulf %60, %63 : vector<16x128xf32>
    %c0_28 = arith.constant 0 : index
    %c0_29 = arith.constant 0 : index
    %c0_30 = arith.constant 0 : index
    %65 = vector.load %arg7[%c0_28, %c0_29, %c0_30] : memref<1x1x128xf32, #tpu.memory_space<vmem>>, vector<1x1x128xf32>
    %66 = vector.shape_cast %65 : vector<1x1x128xf32> to vector<1x128xf32>
    %67 = vector.broadcast %66 : vector<1x128xf32> to vector<16x128xf32>
    %68 = arith.addf %64, %67 : vector<16x128xf32>
    %69 = arith.truncf %68 : vector<16x128xf32> to vector<16x128xbf16>
    %c0_31 = arith.constant 0 : index
    %c0_32 = arith.constant 0 : index
    %c0_33 = arith.constant 0 : index
    %70 = vector.load %arg8[%c0_31, %c0_32, %c0_33] : memref<1x128x2048xbf16, #tpu.memory_space<vmem>>, vector<1x128x2048xbf16>
    %71 = vector.shape_cast %70 : vector<1x128x2048xbf16> to vector<128x2048xbf16>
    %cst_34 = arith.constant dense<0.000000e+00> : vector<16x2048xf32>
    %72 = tpu.matmul %69, %71, %cst_34 {dimension_numbers = #tpu.dot_dimension_numbers<[1], [0], [0], [1], [0, 0, 1, 1], [], []>} : vector<16x128xbf16>, vector<128x2048xbf16>, vector<16x2048xf32> -> vector<16x2048xf32>
    %c0_35 = arith.constant 0 : index
    %c0_36 = arith.constant 0 : index
    %c0_37 = arith.constant 0 : index
    %73 = vector.load %arg9[%c0_35, %c0_36, %c0_37] : memref<1x1x2048xf32, #tpu.memory_space<vmem>>, vector<1x1x2048xf32>
    %74 = vector.shape_cast %73 : vector<1x1x2048xf32> to vector<1x2048xf32>
    %75 = vector.broadcast %74 : vector<1x2048xf32> to vector<16x2048xf32>
    %76 = arith.addf %72, %75 : vector<16x2048xf32>
    %cst_38 = arith.constant 0.000000e+00 : f32
    %77 = vector.broadcast %cst_38 : f32 to vector<16x2048xf32>
    %78 = arith.maximumf %76, %77 : vector<16x2048xf32>
    %79 = arith.truncf %78 : vector<16x2048xf32> to vector<16x2048xbf16>
    %c0_39 = arith.constant 0 : index
    %c0_40 = arith.constant 0 : index
    %c0_41 = arith.constant 0 : index
    %80 = vector.load %arg10[%c0_39, %c0_40, %c0_41] : memref<1x2048x128xbf16, #tpu.memory_space<vmem>>, vector<1x2048x128xbf16>
    %81 = vector.shape_cast %80 : vector<1x2048x128xbf16> to vector<2048x128xbf16>
    %cst_42 = arith.constant dense<0.000000e+00> : vector<16x128xf32>
    %82 = tpu.matmul %79, %81, %cst_42 {dimension_numbers = #tpu.dot_dimension_numbers<[1], [0], [0], [1], [0, 0, 1, 1], [], []>} : vector<16x2048xbf16>, vector<2048x128xbf16>, vector<16x128xf32> -> vector<16x128xf32>
    %c0_43 = arith.constant 0 : index
    %c0_44 = arith.constant 0 : index
    %c0_45 = arith.constant 0 : index
    %83 = vector.load %arg11[%c0_43, %c0_44, %c0_45] : memref<1x1x128xf32, #tpu.memory_space<vmem>>, vector<1x1x128xf32>
    %84 = vector.shape_cast %83 : vector<1x1x128xf32> to vector<1x128xf32>
    %85 = vector.broadcast %84 : vector<1x128xf32> to vector<16x128xf32>
    %86 = arith.addf %82, %85 : vector<16x128xf32>
    %87 = arith.addf %68, %86 : vector<16x128xf32>
    %cst_46 = arith.constant dense<0.000000e+00> : vector<16xf32>
    %88 = vector.multi_reduction <add>, %87, %cst_46 [1] : vector<16x128xf32> to vector<16xf32>
    %89 = vector.shape_cast %88 : vector<16xf32> to vector<16x1xf32>
    %cst_47 = arith.constant 1.280000e+02 : f32
    %90 = vector.broadcast %cst_47 : f32 to vector<16x1xf32>
    %91 = arith.divf %89, %90 : vector<16x1xf32>
    %92 = vector.broadcast %91 : vector<16x1xf32> to vector<16x128xf32>
    %93 = arith.subf %87, %92 : vector<16x128xf32>
    %94 = arith.mulf %93, %93 : vector<16x128xf32>
    %cst_48 = arith.constant dense<0.000000e+00> : vector<16xf32>
    %95 = vector.multi_reduction <add>, %94, %cst_48 [1] : vector<16x128xf32> to vector<16xf32>
    %96 = vector.shape_cast %95 : vector<16xf32> to vector<16x1xf32>
    %cst_49 = arith.constant 1.280000e+02 : f32
    %97 = vector.broadcast %cst_49 : f32 to vector<16x1xf32>
    %98 = arith.divf %96, %97 : vector<16x1xf32>
    %99 = vector.broadcast %91 : vector<16x1xf32> to vector<16x128xf32>
    %100 = arith.subf %87, %99 : vector<16x128xf32>
    %cst_50 = arith.constant 9.99999974E-6 : f32
    %101 = vector.broadcast %cst_50 : f32 to vector<16x1xf32>
    %102 = arith.addf %98, %101 : vector<16x1xf32>
    %103 = math.rsqrt %102 : vector<16x1xf32>
    %104 = vector.broadcast %103 : vector<16x1xf32> to vector<16x128xf32>
    %105 = arith.mulf %100, %104 : vector<16x128xf32>
    %c0_51 = arith.constant 0 : index
    %c0_52 = arith.constant 0 : index
    %c0_53 = arith.constant 0 : index
    %106 = vector.load %arg12[%c0_51, %c0_52, %c0_53] : memref<1x1x128xf32, #tpu.memory_space<vmem>>, vector<1x1x128xf32>
    %107 = vector.shape_cast %106 : vector<1x1x128xf32> to vector<1x128xf32>
    %108 = vector.broadcast %107 : vector<1x128xf32> to vector<16x128xf32>
    %109 = arith.mulf %105, %108 : vector<16x128xf32>
    %c0_54 = arith.constant 0 : index
    %c0_55 = arith.constant 0 : index
    %c0_56 = arith.constant 0 : index
    %110 = vector.load %arg13[%c0_54, %c0_55, %c0_56] : memref<1x1x128xf32, #tpu.memory_space<vmem>>, vector<1x1x128xf32>
    %111 = vector.shape_cast %110 : vector<1x1x128xf32> to vector<1x128xf32>
    %112 = vector.broadcast %111 : vector<1x128xf32> to vector<16x128xf32>
    %113 = arith.addf %109, %112 : vector<16x128xf32>
    %114 = vector.shape_cast %113 : vector<16x128xf32> to vector<2x8x128xf32>
    %c0_57 = arith.constant 0 : index
    %c0_58 = arith.constant 0 : index
    %c0_59 = arith.constant 0 : index
    %115 = vector.load %arg17[%c0_57, %c0_58, %c0_59] : memref<2x8x128xf32, #tpu.memory_space<vmem>>, vector<2x8x128xf32>
    tpu.vector_store %arg17[%c0_57, %c0_58, %c0_59], %114 {strides = array<i32>} : memref<2x8x128xf32, #tpu.memory_space<vmem>>, vector<2x8x128xf32>,
    %c5_i32 = arith.constant 5 : i32
    %116 = arith.cmpi eq, %arg0, %c5_i32 : i32
    %117 = arith.extui %116 : i1 to i32
    %c0_i32_60 = arith.constant 0 : i32
    %118 = arith.cmpi ne, %117, %c0_i32_60 : i32
    scf.if %118 {
      %cst_61 = arith.constant dense<0.000000e+00> : vector<16xf32>
      %119 = vector.multi_reduction <add>, %113, %cst_61 [1] : vector<16x128xf32> to vector<16xf32>
      %120 = vector.shape_cast %119 : vector<16xf32> to vector<16x1xf32>
      %cst_62 = arith.constant 1.280000e+02 : f32
      %121 = vector.broadcast %cst_62 : f32 to vector<16x1xf32>
      %122 = arith.divf %120, %121 : vector<16x1xf32>
      %123 = vector.broadcast %122 : vector<16x1xf32> to vector<16x128xf32>
      %124 = arith.subf %113, %123 : vector<16x128xf32>
      %125 = arith.mulf %124, %124 : vector<16x128xf32>
      %cst_63 = arith.constant dense<0.000000e+00> : vector<16xf32>
      %126 = vector.multi_reduction <add>, %125, %cst_63 [1] : vector<16x128xf32> to vector<16xf32>
      %127 = vector.shape_cast %126 : vector<16xf32> to vector<16x1xf32>
      %cst_64 = arith.constant 1.280000e+02 : f32
      %128 = vector.broadcast %cst_64 : f32 to vector<16x1xf32>
      %129 = arith.divf %127, %128 : vector<16x1xf32>
      %130 = vector.broadcast %122 : vector<16x1xf32> to vector<16x128xf32>
      %131 = arith.subf %113, %130 : vector<16x128xf32>
      %cst_65 = arith.constant 9.99999974E-6 : f32
      %132 = vector.broadcast %cst_65 : f32 to vector<16x1xf32>
      %133 = arith.addf %129, %132 : vector<16x1xf32>
      %134 = math.rsqrt %133 : vector<16x1xf32>
      %135 = vector.broadcast %134 : vector<16x1xf32> to vector<16x128xf32>
      %136 = arith.mulf %131, %135 : vector<16x128xf32>
      %c0_66 = arith.constant 0 : index
      %c0_67 = arith.constant 0 : index
      %137 = vector.load %arg14[%c0_66, %c0_67] : memref<1x128xf32, #tpu.memory_space<vmem>>, vector<1x128xf32>
      %138 = vector.broadcast %137 : vector<1x128xf32> to vector<16x128xf32>
      %139 = arith.mulf %136, %138 : vector<16x128xf32>
      %c0_68 = arith.constant 0 : index
      %c0_69 = arith.constant 0 : index
      %140 = vector.load %arg15[%c0_68, %c0_69] : memref<1x128xf32, #tpu.memory_space<vmem>>, vector<1x128xf32>
      %141 = vector.broadcast %140 : vector<1x128xf32> to vector<16x128xf32>
      %142 = arith.addf %139, %141 : vector<16x128xf32>
      %143 = vector.shape_cast %142 : vector<16x128xf32> to vector<2x8x128xf32>
      %c0_70 = arith.constant 0 : index
      %c0_71 = arith.constant 0 : index
      %c0_72 = arith.constant 0 : index
      %144 = vector.load %arg16[%c0_70, %c0_71, %c0_72] : memref<2x8x128xf32, #tpu.memory_space<vmem>>, vector<2x8x128xf32>
      tpu.vector_store %arg16[%c0_70, %c0_71, %c0_72], %143 {strides = array<i32>} : memref<2x8x128xf32, #tpu.memory_space<vmem>>, vector<2x8x128xf32>,
    } else {
    }
    return
  }
  func.func @transform_0(%arg0: i32) -> (i32, i32, i32) {
    %c0_i32 = arith.constant 0 : i32
    %c0_i32_0 = arith.constant 0 : i32
    %c0_i32_1 = arith.constant 0 : i32
    %c0_i32_2 = arith.constant 0 : i32
    return %c0_i32, %c0_i32_0, %c0_i32_1 : i32, i32, i32
  }
  func.func @transform_1(%arg0: i32) -> (i32, i32, i32) {
    %c0_i32 = arith.constant 0 : i32
    %c0_i32_0 = arith.constant 0 : i32
    %c0_i32_1 = arith.constant 0 : i32
    return %arg0, %c0_i32, %c0_i32_0 : i32, i32, i32
  }
  func.func @transform_2(%arg0: i32) -> (i32, i32, i32) {
    %c0_i32 = arith.constant 0 : i32
    %c0_i32_0 = arith.constant 0 : i32
    %c0_i32_1 = arith.constant 0 : i32
    return %arg0, %c0_i32, %c0_i32_0 : i32, i32, i32
  }
  func.func @transform_3(%arg0: i32) -> (i32, i32, i32) {
    %c0_i32 = arith.constant 0 : i32
    %c0_i32_0 = arith.constant 0 : i32
    %c0_i32_1 = arith.constant 0 : i32
    return %arg0, %c0_i32, %c0_i32_0 : i32, i32, i32
  }
  func.func @transform_4(%arg0: i32) -> (i32, i32, i32) {
    %c0_i32 = arith.constant 0 : i32
    %c0_i32_0 = arith.constant 0 : i32
    %c0_i32_1 = arith.constant 0 : i32
    return %arg0, %c0_i32, %c0_i32_0 : i32, i32, i32
  }
  func.func @transform_5(%arg0: i32) -> (i32, i32, i32) {
    %c0_i32 = arith.constant 0 : i32
    %c0_i32_0 = arith.constant 0 : i32
    %c0_i32_1 = arith.constant 0 : i32
    return %arg0, %c0_i32, %c0_i32_0 : i32, i32, i32
  }
  func.func @transform_6(%arg0: i32) -> (i32, i32, i32) {
    %c0_i32 = arith.constant 0 : i32
    %c0_i32_0 = arith.constant 0 : i32
    %c0_i32_1 = arith.constant 0 : i32
    return %arg0, %c0_i32, %c0_i32_0 : i32, i32, i32
  }
  func.func @transform_7(%arg0: i32) -> (i32, i32, i32) {
    %c0_i32 = arith.constant 0 : i32
    %c0_i32_0 = arith.constant 0 : i32
    %c0_i32_1 = arith.constant 0 : i32
    return %arg0, %c0_i32, %c0_i32_0 : i32, i32, i32
  }
  func.func @transform_8(%arg0: i32) -> (i32, i32, i32) {
    %c0_i32 = arith.constant 0 : i32
    %c0_i32_0 = arith.constant 0 : i32
    %c0_i32_1 = arith.constant 0 : i32
    return %arg0, %c0_i32, %c0_i32_0 : i32, i32, i32
  }
  func.func @transform_9(%arg0: i32) -> (i32, i32, i32) {
    %c0_i32 = arith.constant 0 : i32
    %c0_i32_0 = arith.constant 0 : i32
    %c0_i32_1 = arith.constant 0 : i32
    return %arg0, %c0_i32, %c0_i32_0 : i32, i32, i32
  }
  func.func @transform_10(%arg0: i32) -> (i32, i32, i32) {
    %c0_i32 = arith.constant 0 : i32
    %c0_i32_0 = arith.constant 0 : i32
    %c0_i32_1 = arith.constant 0 : i32
    return %arg0, %c0_i32, %c0_i32_0 : i32, i32, i32
  }
  func.func @transform_11(%arg0: i32) -> (i32, i32, i32) {
    %c0_i32 = arith.constant 0 : i32
    %c0_i32_0 = arith.constant 0 : i32
    %c0_i32_1 = arith.constant 0 : i32
    return %arg0, %c0_i32, %c0_i32_0 : i32, i32, i32
  }
  func.func @transform_12(%arg0: i32) -> (i32, i32, i32) {
    %c0_i32 = arith.constant 0 : i32
    %c0_i32_0 = arith.constant 0 : i32
    %c0_i32_1 = arith.constant 0 : i32
    return %arg0, %c0_i32, %c0_i32_0 : i32, i32, i32
  }
  func.func @transform_13(%arg0: i32) -> (i32, i32) {
    %c0_i32 = arith.constant 0 : i32
    %c0_i32_0 = arith.constant 0 : i32
    %c0_i32_1 = arith.constant 0 : i32
    return %c0_i32, %c0_i32_0 : i32, i32
  }
  func.func @transform_14(%arg0: i32) -> (i32, i32) {
    %c0_i32 = arith.constant 0 : i32
    %c0_i32_0 = arith.constant 0 : i32
    %c0_i32_1 = arith.constant 0 : i32
    return %c0_i32, %c0_i32_0 : i32, i32
  }
  func.func @transform_15(%arg0: i32) -> (i32, i32, i32) {
    %c0_i32 = arith.constant 0 : i32
    %c0_i32_0 = arith.constant 0 : i32
    %c0_i32_1 = arith.constant 0 : i32
    %c0_i32_2 = arith.constant 0 : i32
    return %c0_i32, %c0_i32_0, %c0_i32_1 : i32, i32, i32
  }
}

module attributes {stable_mosaic.version = 11 : i64} {
  func.func @_dec_stack_kernel(%arg0: i32, %arg1: memref<2x8x128xf32, #tpu.memory_space<vmem>>, %arg2: memref<2x8x128xf32, #tpu.memory_space<vmem>>, %arg3: memref<1x128x384xbf16, #tpu.memory_space<vmem>>, %arg4: memref<1x1x384xf32, #tpu.memory_space<vmem>>, %arg5: memref<1x128x128xbf16, #tpu.memory_space<vmem>>, %arg6: memref<1x1x128xf32, #tpu.memory_space<vmem>>, %arg7: memref<1x1x128xf32, #tpu.memory_space<vmem>>, %arg8: memref<1x1x128xf32, #tpu.memory_space<vmem>>, %arg9: memref<1x128x128xbf16, #tpu.memory_space<vmem>>, %arg10: memref<1x1x128xf32, #tpu.memory_space<vmem>>, %arg11: memref<1x128x256xbf16, #tpu.memory_space<vmem>>, %arg12: memref<1x1x256xf32, #tpu.memory_space<vmem>>, %arg13: memref<1x128x128xbf16, #tpu.memory_space<vmem>>, %arg14: memref<1x1x128xf32, #tpu.memory_space<vmem>>, %arg15: memref<1x1x128xf32, #tpu.memory_space<vmem>>, %arg16: memref<1x1x128xf32, #tpu.memory_space<vmem>>, %arg17: memref<1x128x2048xbf16, #tpu.memory_space<vmem>>, %arg18: memref<1x1x2048xf32, #tpu.memory_space<vmem>>, %arg19: memref<1x2048x128xbf16, #tpu.memory_space<vmem>>, %arg20: memref<1x1x128xf32, #tpu.memory_space<vmem>>, %arg21: memref<1x1x128xf32, #tpu.memory_space<vmem>>, %arg22: memref<1x1x128xf32, #tpu.memory_space<vmem>>, %arg23: memref<1x128xf32, #tpu.memory_space<vmem>>, %arg24: memref<1x128xf32, #tpu.memory_space<vmem>>, %arg25: memref<128x128xbf16, #tpu.memory_space<vmem>>, %arg26: memref<1x128xf32, #tpu.memory_space<vmem>>, %arg27: memref<2x8x128xf32, #tpu.memory_space<vmem>>, %arg28: memref<2x8x128xf32, #tpu.memory_space<vmem>>) attributes {dimension_semantics = [#tpu.dimension_semantics<arbitrary>], iteration_bounds = array<i64: 6>, scalar_prefetch = 0 : i64, scratch_operands = 1 : i64, tpu.core_type = #tpu.core_type<tc>, window_params = [{pipeline_mode = #tpu.pipeline_mode<synchronous>, transform_indices = @transform_0, window_bounds = array<i64: 2, 8, 128>}, {pipeline_mode = #tpu.pipeline_mode<synchronous>, transform_indices = @transform_1, window_bounds = array<i64: 2, 8, 128>}, {transform_indices = @transform_2, window_bounds = array<i64: 1, 128, 384>}, {transform_indices = @transform_3, window_bounds = array<i64: 1, 1, 384>}, {transform_indices = @transform_4, window_bounds = array<i64: 1, 128, 128>}, {transform_indices = @transform_5, window_bounds = array<i64: 1, 1, 128>}, {transform_indices = @transform_6, window_bounds = array<i64: 1, 1, 128>}, {transform_indices = @transform_7, window_bounds = array<i64: 1, 1, 128>}, {transform_indices = @transform_8, window_bounds = array<i64: 1, 128, 128>}, {transform_indices = @transform_9, window_bounds = array<i64: 1, 1, 128>}, {transform_indices = @transform_10, window_bounds = array<i64: 1, 128, 256>}, {transform_indices = @transform_11, window_bounds = array<i64: 1, 1, 256>}, {transform_indices = @transform_12, window_bounds = array<i64: 1, 128, 128>}, {transform_indices = @transform_13, window_bounds = array<i64: 1, 1, 128>}, {transform_indices = @transform_14, window_bounds = array<i64: 1, 1, 128>}, {transform_indices = @transform_15, window_bounds = array<i64: 1, 1, 128>}, {transform_indices = @transform_16, window_bounds = array<i64: 1, 128, 2048>}, {transform_indices = @transform_17, window_bounds = array<i64: 1, 1, 2048>}, {transform_indices = @transform_18, window_bounds = array<i64: 1, 2048, 128>}, {transform_indices = @transform_19, window_bounds = array<i64: 1, 1, 128>}, {transform_indices = @transform_20, window_bounds = array<i64: 1, 1, 128>}, {transform_indices = @transform_21, window_bounds = array<i64: 1, 1, 128>}, {pipeline_mode = #tpu.pipeline_mode<synchronous>, transform_indices = @transform_22, window_bounds = array<i64: 1, 128>}, {pipeline_mode = #tpu.pipeline_mode<synchronous>, transform_indices = @transform_23, window_bounds = array<i64: 1, 128>}, {pipeline_mode = #tpu.pipeline_mode<synchronous>, transform_indices = @transform_24, window_bounds = array<i64: 128, 128>}, {pipeline_mode = #tpu.pipeline_mode<synchronous>, transform_indices = @transform_25, window_bounds = array<i64: 1, 128>}, {pipeline_mode = #tpu.pipeline_mode<synchronous>, transform_indices = @transform_26, window_bounds = array<i64: 2, 8, 128>}]} {
    %c0_i32 = arith.constant 0 : i32
    %0 = arith.cmpi eq, %arg0, %c0_i32 : i32
    %1 = arith.extui %0 : i1 to i32
    %c0_i32_0 = arith.constant 0 : i32
    %2 = arith.cmpi ne, %1, %c0_i32_0 : i32
    scf.if %2 {
      %c0_100 = arith.constant 0 : index
      %c0_101 = arith.constant 0 : index
      %c0_102 = arith.constant 0 : index
      %192 = vector.load %arg1[%c0_100, %c0_101, %c0_102] : memref<2x8x128xf32, #tpu.memory_space<vmem>>, vector<2x8x128xf32>
      %c0_103 = arith.constant 0 : index
      %c0_104 = arith.constant 0 : index
      %c0_105 = arith.constant 0 : index
      %193 = vector.load %arg28[%c0_103, %c0_104, %c0_105] : memref<2x8x128xf32, #tpu.memory_space<vmem>>, vector<2x8x128xf32>
      tpu.vector_store %arg28[%c0_103, %c0_104, %c0_105], %192 {strides = array<i32>} : memref<2x8x128xf32, #tpu.memory_space<vmem>>, vector<2x8x128xf32>,
    } else {
    }
    %c0 = arith.constant 0 : index
    %c0_1 = arith.constant 0 : index
    %c0_2 = arith.constant 0 : index
    %3 = vector.load %arg28[%c0, %c0_1, %c0_2] : memref<2x8x128xf32, #tpu.memory_space<vmem>>, vector<2x8x128xf32>
    %4 = vector.shape_cast %3 : vector<2x8x128xf32> to vector<16x128xf32>
    %5 = arith.truncf %4 : vector<16x128xf32> to vector<16x128xbf16>
    %c0_3 = arith.constant 0 : index
    %c0_4 = arith.constant 0 : index
    %c0_5 = arith.constant 0 : index
    %6 = vector.load %arg2[%c0_3, %c0_4, %c0_5] : memref<2x8x128xf32, #tpu.memory_space<vmem>>, vector<2x8x128xf32>
    %7 = vector.shape_cast %6 : vector<2x8x128xf32> to vector<16x128xf32>
    %8 = arith.truncf %7 : vector<16x128xf32> to vector<16x128xbf16>
    %c0_6 = arith.constant 0 : index
    %c0_7 = arith.constant 0 : index
    %c0_8 = arith.constant 0 : index
    %9 = vector.load %arg3[%c0_6, %c0_7, %c0_8] : memref<1x128x384xbf16, #tpu.memory_space<vmem>>, vector<1x128x384xbf16>
    %10 = vector.shape_cast %9 : vector<1x128x384xbf16> to vector<128x384xbf16>
    %cst = arith.constant dense<0.000000e+00> : vector<16x384xf32>
    %11 = tpu.matmul %5, %10, %cst {dimension_numbers = #tpu.dot_dimension_numbers<[1], [0], [0], [1], [0, 0, 1, 1], [], []>} : vector<16x128xbf16>, vector<128x384xbf16>, vector<16x384xf32> -> vector<16x384xf32>
    %c0_9 = arith.constant 0 : index
    %c0_10 = arith.constant 0 : index
    %c0_11 = arith.constant 0 : index
    %12 = vector.load %arg4[%c0_9, %c0_10, %c0_11] : memref<1x1x384xf32, #tpu.memory_space<vmem>>, vector<1x1x384xf32>
    %13 = vector.shape_cast %12 : vector<1x1x384xf32> to vector<1x384xf32>
    %14 = vector.broadcast %13 : vector<1x384xf32> to vector<16x384xf32>
    %15 = arith.addf %11, %14 : vector<16x384xf32>
    %16 = vector.extract_strided_slice %15 {offsets = [0, 0], sizes = [16, 128], strides = [1, 1]} : vector<16x384xf32> to vector<16x128xf32>
    %17 = vector.shape_cast %16 : vector<16x128xf32> to vector<2x8x128xf32>
    %18 = vector.extract_strided_slice %15 {offsets = [0, 128], sizes = [16, 128], strides = [1, 1]} : vector<16x384xf32> to vector<16x128xf32>
    %19 = vector.shape_cast %18 : vector<16x128xf32> to vector<2x8x128xf32>
    %20 = vector.extract_strided_slice %15 {offsets = [0, 256], sizes = [16, 128], strides = [1, 1]} : vector<16x384xf32> to vector<16x128xf32>
    %21 = vector.shape_cast %20 : vector<16x128xf32> to vector<2x8x128xf32>
    %22 = arith.truncf %17 : vector<2x8x128xf32> to vector<2x8x128xbf16>
    %23 = arith.truncf %19 : vector<2x8x128xf32> to vector<2x8x128xbf16>
    "tpu.trace_start"() <{level = 10 : i32, message = "bqd,bkd->bqk"}> : () -> ()
    %cst_12 = arith.constant dense<0.000000e+00> : vector<2x8x8xf32>
    %24 = tpu.matmul %22, %23, %cst_12 {dimension_numbers = #tpu.dot_dimension_numbers<[2], [2], [1], [1], [0, 0, 0, 1, 1, 1], [0], [0]>} : vector<2x8x128xbf16>, vector<2x8x128xbf16>, vector<2x8x8xf32> -> vector<2x8x8xf32>
    "tpu.trace_stop"() : () -> ()
    %cst_13 = arith.constant dense<0xFF800000> : vector<2x8xf32>
    %25 = vector.multi_reduction <maximumf>, %24, %cst_13 [2] : vector<2x8x8xf32> to vector<2x8xf32>
    %26 = vector.shape_cast %25 : vector<2x8xf32> to vector<2x8x1xf32>
    %27 = vector.broadcast %26 : vector<2x8x1xf32> to vector<2x8x8xf32>
    %28 = arith.subf %24, %27 : vector<2x8x8xf32>
    %29 = math.exp %28 : vector<2x8x8xf32>
    %cst_14 = arith.constant dense<0.000000e+00> : vector<2x8xf32>
    %30 = vector.multi_reduction <add>, %29, %cst_14 [2] : vector<2x8x8xf32> to vector<2x8xf32>
    %31 = vector.shape_cast %30 : vector<2x8xf32> to vector<2x8x1xf32>
    %32 = tpu.reciprocal %31 {approx = true} : vector<2x8x1xf32> -> vector<2x8x1xf32>
    %33 = vector.broadcast %32 : vector<2x8x1xf32> to vector<2x8x8xf32>
    %34 = arith.mulf %29, %33 : vector<2x8x8xf32>
    "tpu.trace_start"() <{level = 10 : i32, message = "bqk,bkd->bqd"}> : () -> ()
    %cst_15 = arith.constant dense<0.000000e+00> : vector<2x8x128xf32>
    %35 = tpu.matmul %34, %21, %cst_15 {dimension_numbers = #tpu.dot_dimension_numbers<[2], [1], [1], [2], [0, 0, 0, 1, 1, 2], [0], [0]>} : vector<2x8x8xf32>, vector<2x8x128xf32>, vector<2x8x128xf32> -> vector<2x8x128xf32>
    "tpu.trace_stop"() : () -> ()
    %36 = vector.shape_cast %35 : vector<2x8x128xf32> to vector<16x128xf32>
    %37 = arith.truncf %36 : vector<16x128xf32> to vector<16x128xbf16>
    %c0_16 = arith.constant 0 : index
    %c0_17 = arith.constant 0 : index
    %c0_18 = arith.constant 0 : index
    %38 = vector.load %arg5[%c0_16, %c0_17, %c0_18] : memref<1x128x128xbf16, #tpu.memory_space<vmem>>, vector<1x128x128xbf16>
    %39 = vector.shape_cast %38 : vector<1x128x128xbf16> to vector<128x128xbf16>
    %cst_19 = arith.constant dense<0.000000e+00> : vector<16x128xf32>
    %40 = tpu.matmul %37, %39, %cst_19 {dimension_numbers = #tpu.dot_dimension_numbers<[1], [0], [0], [1], [0, 0, 1, 1], [], []>} : vector<16x128xbf16>, vector<128x128xbf16>, vector<16x128xf32> -> vector<16x128xf32>
    %c0_20 = arith.constant 0 : index
    %c0_21 = arith.constant 0 : index
    %c0_22 = arith.constant 0 : index
    %41 = vector.load %arg6[%c0_20, %c0_21, %c0_22] : memref<1x1x128xf32, #tpu.memory_space<vmem>>, vector<1x1x128xf32>
    %42 = vector.shape_cast %41 : vector<1x1x128xf32> to vector<1x128xf32>
    %43 = vector.broadcast %42 : vector<1x128xf32> to vector<16x128xf32>
    %44 = arith.addf %40, %43 : vector<16x128xf32>
    %45 = arith.addf %4, %44 : vector<16x128xf32>
    %cst_23 = arith.constant dense<0.000000e+00> : vector<16xf32>
    %46 = vector.multi_reduction <add>, %45, %cst_23 [1] : vector<16x128xf32> to vector<16xf32>
    %47 = vector.shape_cast %46 : vector<16xf32> to vector<16x1xf32>
    %cst_24 = arith.constant 1.280000e+02 : f32
    %48 = vector.broadcast %cst_24 : f32 to vector<16x1xf32>
    %49 = arith.divf %47, %48 : vector<16x1xf32>
    %50 = vector.broadcast %49 : vector<16x1xf32> to vector<16x128xf32>
    %51 = arith.subf %45, %50 : vector<16x128xf32>
    %52 = arith.mulf %51, %51 : vector<16x128xf32>
    %cst_25 = arith.constant dense<0.000000e+00> : vector<16xf32>
    %53 = vector.multi_reduction <add>, %52, %cst_25 [1] : vector<16x128xf32> to vector<16xf32>
    %54 = vector.shape_cast %53 : vector<16xf32> to vector<16x1xf32>
    %cst_26 = arith.constant 1.280000e+02 : f32
    %55 = vector.broadcast %cst_26 : f32 to vector<16x1xf32>
    %56 = arith.divf %54, %55 : vector<16x1xf32>
    %57 = vector.broadcast %49 : vector<16x1xf32> to vector<16x128xf32>
    %58 = arith.subf %45, %57 : vector<16x128xf32>
    %cst_27 = arith.constant 9.99999974E-6 : f32
    %59 = vector.broadcast %cst_27 : f32 to vector<16x1xf32>
    %60 = arith.addf %56, %59 : vector<16x1xf32>
    %61 = math.rsqrt %60 : vector<16x1xf32>
    %62 = vector.broadcast %61 : vector<16x1xf32> to vector<16x128xf32>
    %63 = arith.mulf %58, %62 : vector<16x128xf32>
    %c0_28 = arith.constant 0 : index
    %c0_29 = arith.constant 0 : index
    %c0_30 = arith.constant 0 : index
    %64 = vector.load %arg7[%c0_28, %c0_29, %c0_30] : memref<1x1x128xf32, #tpu.memory_space<vmem>>, vector<1x1x128xf32>
    %65 = vector.shape_cast %64 : vector<1x1x128xf32> to vector<1x128xf32>
    %66 = vector.broadcast %65 : vector<1x128xf32> to vector<16x128xf32>
    %67 = arith.mulf %63, %66 : vector<16x128xf32>
    %c0_31 = arith.constant 0 : index
    %c0_32 = arith.constant 0 : index
    %c0_33 = arith.constant 0 : index
    %68 = vector.load %arg8[%c0_31, %c0_32, %c0_33] : memref<1x1x128xf32, #tpu.memory_space<vmem>>, vector<1x1x128xf32>
    %69 = vector.shape_cast %68 : vector<1x1x128xf32> to vector<1x128xf32>
    %70 = vector.broadcast %69 : vector<1x128xf32> to vector<16x128xf32>
    %71 = arith.addf %67, %70 : vector<16x128xf32>
    %72 = arith.truncf %71 : vector<16x128xf32> to vector<16x128xbf16>
    %c0_34 = arith.constant 0 : index
    %c0_35 = arith.constant 0 : index
    %c0_36 = arith.constant 0 : index
    %73 = vector.load %arg9[%c0_34, %c0_35, %c0_36] : memref<1x128x128xbf16, #tpu.memory_space<vmem>>, vector<1x128x128xbf16>
    %74 = vector.shape_cast %73 : vector<1x128x128xbf16> to vector<128x128xbf16>
    %cst_37 = arith.constant dense<0.000000e+00> : vector<16x128xf32>
    %75 = tpu.matmul %72, %74, %cst_37 {dimension_numbers = #tpu.dot_dimension_numbers<[1], [0], [0], [1], [0, 0, 1, 1], [], []>} : vector<16x128xbf16>, vector<128x128xbf16>, vector<16x128xf32> -> vector<16x128xf32>
    %c0_38 = arith.constant 0 : index
    %c0_39 = arith.constant 0 : index
    %c0_40 = arith.constant 0 : index
    %76 = vector.load %arg10[%c0_38, %c0_39, %c0_40] : memref<1x1x128xf32, #tpu.memory_space<vmem>>, vector<1x1x128xf32>
    %77 = vector.shape_cast %76 : vector<1x1x128xf32> to vector<1x128xf32>
    %78 = vector.broadcast %77 : vector<1x128xf32> to vector<16x128xf32>
    %79 = arith.addf %75, %78 : vector<16x128xf32>
    %80 = vector.shape_cast %79 : vector<16x128xf32> to vector<2x8x128xf32>
    %c0_41 = arith.constant 0 : index
    %c0_42 = arith.constant 0 : index
    %c0_43 = arith.constant 0 : index
    %81 = vector.load %arg11[%c0_41, %c0_42, %c0_43] : memref<1x128x256xbf16, #tpu.memory_space<vmem>>, vector<1x128x256xbf16>
    %82 = vector.shape_cast %81 : vector<1x128x256xbf16> to vector<128x256xbf16>
    %cst_44 = arith.constant dense<0.000000e+00> : vector<16x256xf32>
    %83 = tpu.matmul %8, %82, %cst_44 {dimension_numbers = #tpu.dot_dimension_numbers<[1], [0], [0], [1], [0, 0, 1, 1], [], []>} : vector<16x128xbf16>, vector<128x256xbf16>, vector<16x256xf32> -> vector<16x256xf32>
    %c0_45 = arith.constant 0 : index
    %c0_46 = arith.constant 0 : index
    %c0_47 = arith.constant 0 : index
    %84 = vector.load %arg12[%c0_45, %c0_46, %c0_47] : memref<1x1x256xf32, #tpu.memory_space<vmem>>, vector<1x1x256xf32>
    %85 = vector.shape_cast %84 : vector<1x1x256xf32> to vector<1x256xf32>
    %86 = vector.broadcast %85 : vector<1x256xf32> to vector<16x256xf32>
    %87 = arith.addf %83, %86 : vector<16x256xf32>
    %88 = vector.extract_strided_slice %87 {offsets = [0, 0], sizes = [16, 128], strides = [1, 1]} : vector<16x256xf32> to vector<16x128xf32>
    %89 = vector.shape_cast %88 : vector<16x128xf32> to vector<2x8x128xf32>
    %90 = vector.extract_strided_slice %87 {offsets = [0, 128], sizes = [16, 128], strides = [1, 1]} : vector<16x256xf32> to vector<16x128xf32>
    %91 = vector.shape_cast %90 : vector<16x128xf32> to vector<2x8x128xf32>
    %92 = arith.truncf %80 : vector<2x8x128xf32> to vector<2x8x128xbf16>
    %93 = arith.truncf %89 : vector<2x8x128xf32> to vector<2x8x128xbf16>
    "tpu.trace_start"() <{level = 10 : i32, message = "bqd,bkd->bqk"}> : () -> ()
    %cst_48 = arith.constant dense<0.000000e+00> : vector<2x8x8xf32>
    %94 = tpu.matmul %92, %93, %cst_48 {dimension_numbers = #tpu.dot_dimension_numbers<[2], [2], [1], [1], [0, 0, 0, 1, 1, 1], [0], [0]>} : vector<2x8x128xbf16>, vector<2x8x128xbf16>, vector<2x8x8xf32> -> vector<2x8x8xf32>
    "tpu.trace_stop"() : () -> ()
    %cst_49 = arith.constant dense<0xFF800000> : vector<2x8xf32>
    %95 = vector.multi_reduction <maximumf>, %94, %cst_49 [2] : vector<2x8x8xf32> to vector<2x8xf32>
    %96 = vector.shape_cast %95 : vector<2x8xf32> to vector<2x8x1xf32>
    %97 = vector.broadcast %96 : vector<2x8x1xf32> to vector<2x8x8xf32>
    %98 = arith.subf %94, %97 : vector<2x8x8xf32>
    %99 = math.exp %98 : vector<2x8x8xf32>
    %cst_50 = arith.constant dense<0.000000e+00> : vector<2x8xf32>
    %100 = vector.multi_reduction <add>, %99, %cst_50 [2] : vector<2x8x8xf32> to vector<2x8xf32>
    %101 = vector.shape_cast %100 : vector<2x8xf32> to vector<2x8x1xf32>
    %102 = tpu.reciprocal %101 {approx = true} : vector<2x8x1xf32> -> vector<2x8x1xf32>
    %103 = vector.broadcast %102 : vector<2x8x1xf32> to vector<2x8x8xf32>
    %104 = arith.mulf %99, %103 : vector<2x8x8xf32>
    "tpu.trace_start"() <{level = 10 : i32, message = "bqk,bkd->bqd"}> : () -> ()
    %cst_51 = arith.constant dense<0.000000e+00> : vector<2x8x128xf32>
    %105 = tpu.matmul %104, %91, %cst_51 {dimension_numbers = #tpu.dot_dimension_numbers<[2], [1], [1], [2], [0, 0, 0, 1, 1, 2], [0], [0]>} : vector<2x8x8xf32>, vector<2x8x128xf32>, vector<2x8x128xf32> -> vector<2x8x128xf32>
    "tpu.trace_stop"() : () -> ()
    %106 = vector.shape_cast %105 : vector<2x8x128xf32> to vector<16x128xf32>
    %107 = arith.truncf %106 : vector<16x128xf32> to vector<16x128xbf16>
    %c0_52 = arith.constant 0 : index
    %c0_53 = arith.constant 0 : index
    %c0_54 = arith.constant 0 : index
    %108 = vector.load %arg13[%c0_52, %c0_53, %c0_54] : memref<1x128x128xbf16, #tpu.memory_space<vmem>>, vector<1x128x128xbf16>
    %109 = vector.shape_cast %108 : vector<1x128x128xbf16> to vector<128x128xbf16>
    %cst_55 = arith.constant dense<0.000000e+00> : vector<16x128xf32>
    %110 = tpu.matmul %107, %109, %cst_55 {dimension_numbers = #tpu.dot_dimension_numbers<[1], [0], [0], [1], [0, 0, 1, 1], [], []>} : vector<16x128xbf16>, vector<128x128xbf16>, vector<16x128xf32> -> vector<16x128xf32>
    %c0_56 = arith.constant 0 : index
    %c0_57 = arith.constant 0 : index
    %c0_58 = arith.constant 0 : index
    %111 = vector.load %arg14[%c0_56, %c0_57, %c0_58] : memref<1x1x128xf32, #tpu.memory_space<vmem>>, vector<1x1x128xf32>
    %112 = vector.shape_cast %111 : vector<1x1x128xf32> to vector<1x128xf32>
    %113 = vector.broadcast %112 : vector<1x128xf32> to vector<16x128xf32>
    %114 = arith.addf %110, %113 : vector<16x128xf32>
    %115 = arith.addf %71, %114 : vector<16x128xf32>
    %cst_59 = arith.constant dense<0.000000e+00> : vector<16xf32>
    %116 = vector.multi_reduction <add>, %115, %cst_59 [1] : vector<16x128xf32> to vector<16xf32>
    %117 = vector.shape_cast %116 : vector<16xf32> to vector<16x1xf32>
    %cst_60 = arith.constant 1.280000e+02 : f32
    %118 = vector.broadcast %cst_60 : f32 to vector<16x1xf32>
    %119 = arith.divf %117, %118 : vector<16x1xf32>
    %120 = vector.broadcast %119 : vector<16x1xf32> to vector<16x128xf32>
    %121 = arith.subf %115, %120 : vector<16x128xf32>
    %122 = arith.mulf %121, %121 : vector<16x128xf32>
    %cst_61 = arith.constant dense<0.000000e+00> : vector<16xf32>
    %123 = vector.multi_reduction <add>, %122, %cst_61 [1] : vector<16x128xf32> to vector<16xf32>
    %124 = vector.shape_cast %123 : vector<16xf32> to vector<16x1xf32>
    %cst_62 = arith.constant 1.280000e+02 : f32
    %125 = vector.broadcast %cst_62 : f32 to vector<16x1xf32>
    %126 = arith.divf %124, %125 : vector<16x1xf32>
    %127 = vector.broadcast %119 : vector<16x1xf32> to vector<16x128xf32>
    %128 = arith.subf %115, %127 : vector<16x128xf32>
    %cst_63 = arith.constant 9.99999974E-6 : f32
    %129 = vector.broadcast %cst_63 : f32 to vector<16x1xf32>
    %130 = arith.addf %126, %129 : vector<16x1xf32>
    %131 = math.rsqrt %130 : vector<16x1xf32>
    %132 = vector.broadcast %131 : vector<16x1xf32> to vector<16x128xf32>
    %133 = arith.mulf %128, %132 : vector<16x128xf32>
    %c0_64 = arith.constant 0 : index
    %c0_65 = arith.constant 0 : index
    %c0_66 = arith.constant 0 : index
    %134 = vector.load %arg15[%c0_64, %c0_65, %c0_66] : memref<1x1x128xf32, #tpu.memory_space<vmem>>, vector<1x1x128xf32>
    %135 = vector.shape_cast %134 : vector<1x1x128xf32> to vector<1x128xf32>
    %136 = vector.broadcast %135 : vector<1x128xf32> to vector<16x128xf32>
    %137 = arith.mulf %133, %136 : vector<16x128xf32>
    %c0_67 = arith.constant 0 : index
    %c0_68 = arith.constant 0 : index
    %c0_69 = arith.constant 0 : index
    %138 = vector.load %arg16[%c0_67, %c0_68, %c0_69] : memref<1x1x128xf32, #tpu.memory_space<vmem>>, vector<1x1x128xf32>
    %139 = vector.shape_cast %138 : vector<1x1x128xf32> to vector<1x128xf32>
    %140 = vector.broadcast %139 : vector<1x128xf32> to vector<16x128xf32>
    %141 = arith.addf %137, %140 : vector<16x128xf32>
    %142 = arith.truncf %141 : vector<16x128xf32> to vector<16x128xbf16>
    %c0_70 = arith.constant 0 : index
    %c0_71 = arith.constant 0 : index
    %c0_72 = arith.constant 0 : index
    %143 = vector.load %arg17[%c0_70, %c0_71, %c0_72] : memref<1x128x2048xbf16, #tpu.memory_space<vmem>>, vector<1x128x2048xbf16>
    %144 = vector.shape_cast %143 : vector<1x128x2048xbf16> to vector<128x2048xbf16>
    %cst_73 = arith.constant dense<0.000000e+00> : vector<16x2048xf32>
    %145 = tpu.matmul %142, %144, %cst_73 {dimension_numbers = #tpu.dot_dimension_numbers<[1], [0], [0], [1], [0, 0, 1, 1], [], []>} : vector<16x128xbf16>, vector<128x2048xbf16>, vector<16x2048xf32> -> vector<16x2048xf32>
    %c0_74 = arith.constant 0 : index
    %c0_75 = arith.constant 0 : index
    %c0_76 = arith.constant 0 : index
    %146 = vector.load %arg18[%c0_74, %c0_75, %c0_76] : memref<1x1x2048xf32, #tpu.memory_space<vmem>>, vector<1x1x2048xf32>
    %147 = vector.shape_cast %146 : vector<1x1x2048xf32> to vector<1x2048xf32>
    %148 = vector.broadcast %147 : vector<1x2048xf32> to vector<16x2048xf32>
    %149 = arith.addf %145, %148 : vector<16x2048xf32>
    %cst_77 = arith.constant 0.000000e+00 : f32
    %150 = vector.broadcast %cst_77 : f32 to vector<16x2048xf32>
    %151 = arith.maximumf %149, %150 : vector<16x2048xf32>
    %152 = arith.truncf %151 : vector<16x2048xf32> to vector<16x2048xbf16>
    %c0_78 = arith.constant 0 : index
    %c0_79 = arith.constant 0 : index
    %c0_80 = arith.constant 0 : index
    %153 = vector.load %arg19[%c0_78, %c0_79, %c0_80] : memref<1x2048x128xbf16, #tpu.memory_space<vmem>>, vector<1x2048x128xbf16>
    %154 = vector.shape_cast %153 : vector<1x2048x128xbf16> to vector<2048x128xbf16>
    %cst_81 = arith.constant dense<0.000000e+00> : vector<16x128xf32>
    %155 = tpu.matmul %152, %154, %cst_81 {dimension_numbers = #tpu.dot_dimension_numbers<[1], [0], [0], [1], [0, 0, 1, 1], [], []>} : vector<16x2048xbf16>, vector<2048x128xbf16>, vector<16x128xf32> -> vector<16x128xf32>
    %c0_82 = arith.constant 0 : index
    %c0_83 = arith.constant 0 : index
    %c0_84 = arith.constant 0 : index
    %156 = vector.load %arg20[%c0_82, %c0_83, %c0_84] : memref<1x1x128xf32, #tpu.memory_space<vmem>>, vector<1x1x128xf32>
    %157 = vector.shape_cast %156 : vector<1x1x128xf32> to vector<1x128xf32>
    %158 = vector.broadcast %157 : vector<1x128xf32> to vector<16x128xf32>
    %159 = arith.addf %155, %158 : vector<16x128xf32>
    %160 = arith.addf %141, %159 : vector<16x128xf32>
    %cst_85 = arith.constant dense<0.000000e+00> : vector<16xf32>
    %161 = vector.multi_reduction <add>, %160, %cst_85 [1] : vector<16x128xf32> to vector<16xf32>
    %162 = vector.shape_cast %161 : vector<16xf32> to vector<16x1xf32>
    %cst_86 = arith.constant 1.280000e+02 : f32
    %163 = vector.broadcast %cst_86 : f32 to vector<16x1xf32>
    %164 = arith.divf %162, %163 : vector<16x1xf32>
    %165 = vector.broadcast %164 : vector<16x1xf32> to vector<16x128xf32>
    %166 = arith.subf %160, %165 : vector<16x128xf32>
    %167 = arith.mulf %166, %166 : vector<16x128xf32>
    %cst_87 = arith.constant dense<0.000000e+00> : vector<16xf32>
    %168 = vector.multi_reduction <add>, %167, %cst_87 [1] : vector<16x128xf32> to vector<16xf32>
    %169 = vector.shape_cast %168 : vector<16xf32> to vector<16x1xf32>
    %cst_88 = arith.constant 1.280000e+02 : f32
    %170 = vector.broadcast %cst_88 : f32 to vector<16x1xf32>
    %171 = arith.divf %169, %170 : vector<16x1xf32>
    %172 = vector.broadcast %164 : vector<16x1xf32> to vector<16x128xf32>
    %173 = arith.subf %160, %172 : vector<16x128xf32>
    %cst_89 = arith.constant 9.99999974E-6 : f32
    %174 = vector.broadcast %cst_89 : f32 to vector<16x1xf32>
    %175 = arith.addf %171, %174 : vector<16x1xf32>
    %176 = math.rsqrt %175 : vector<16x1xf32>
    %177 = vector.broadcast %176 : vector<16x1xf32> to vector<16x128xf32>
    %178 = arith.mulf %173, %177 : vector<16x128xf32>
    %c0_90 = arith.constant 0 : index
    %c0_91 = arith.constant 0 : index
    %c0_92 = arith.constant 0 : index
    %179 = vector.load %arg21[%c0_90, %c0_91, %c0_92] : memref<1x1x128xf32, #tpu.memory_space<vmem>>, vector<1x1x128xf32>
    %180 = vector.shape_cast %179 : vector<1x1x128xf32> to vector<1x128xf32>
    %181 = vector.broadcast %180 : vector<1x128xf32> to vector<16x128xf32>
    %182 = arith.mulf %178, %181 : vector<16x128xf32>
    %c0_93 = arith.constant 0 : index
    %c0_94 = arith.constant 0 : index
    %c0_95 = arith.constant 0 : index
    %183 = vector.load %arg22[%c0_93, %c0_94, %c0_95] : memref<1x1x128xf32, #tpu.memory_space<vmem>>, vector<1x1x128xf32>
    %184 = vector.shape_cast %183 : vector<1x1x128xf32> to vector<1x128xf32>
    %185 = vector.broadcast %184 : vector<1x128xf32> to vector<16x128xf32>
    %186 = arith.addf %182, %185 : vector<16x128xf32>
    %187 = vector.shape_cast %186 : vector<16x128xf32> to vector<2x8x128xf32>
    %c0_96 = arith.constant 0 : index
    %c0_97 = arith.constant 0 : index
    %c0_98 = arith.constant 0 : index
    %188 = vector.load %arg28[%c0_96, %c0_97, %c0_98] : memref<2x8x128xf32, #tpu.memory_space<vmem>>, vector<2x8x128xf32>
    tpu.vector_store %arg28[%c0_96, %c0_97, %c0_98], %187 {strides = array<i32>} : memref<2x8x128xf32, #tpu.memory_space<vmem>>, vector<2x8x128xf32>,
    %c5_i32 = arith.constant 5 : i32
    %189 = arith.cmpi eq, %arg0, %c5_i32 : i32
    %190 = arith.extui %189 : i1 to i32
    %c0_i32_99 = arith.constant 0 : i32
    %191 = arith.cmpi ne, %190, %c0_i32_99 : i32
    scf.if %191 {
      %cst_100 = arith.constant dense<0.000000e+00> : vector<16xf32>
      %192 = vector.multi_reduction <add>, %186, %cst_100 [1] : vector<16x128xf32> to vector<16xf32>
      %193 = vector.shape_cast %192 : vector<16xf32> to vector<16x1xf32>
      %cst_101 = arith.constant 1.280000e+02 : f32
      %194 = vector.broadcast %cst_101 : f32 to vector<16x1xf32>
      %195 = arith.divf %193, %194 : vector<16x1xf32>
      %196 = vector.broadcast %195 : vector<16x1xf32> to vector<16x128xf32>
      %197 = arith.subf %186, %196 : vector<16x128xf32>
      %198 = arith.mulf %197, %197 : vector<16x128xf32>
      %cst_102 = arith.constant dense<0.000000e+00> : vector<16xf32>
      %199 = vector.multi_reduction <add>, %198, %cst_102 [1] : vector<16x128xf32> to vector<16xf32>
      %200 = vector.shape_cast %199 : vector<16xf32> to vector<16x1xf32>
      %cst_103 = arith.constant 1.280000e+02 : f32
      %201 = vector.broadcast %cst_103 : f32 to vector<16x1xf32>
      %202 = arith.divf %200, %201 : vector<16x1xf32>
      %203 = vector.broadcast %195 : vector<16x1xf32> to vector<16x128xf32>
      %204 = arith.subf %186, %203 : vector<16x128xf32>
      %cst_104 = arith.constant 9.99999974E-6 : f32
      %205 = vector.broadcast %cst_104 : f32 to vector<16x1xf32>
      %206 = arith.addf %202, %205 : vector<16x1xf32>
      %207 = math.rsqrt %206 : vector<16x1xf32>
      %208 = vector.broadcast %207 : vector<16x1xf32> to vector<16x128xf32>
      %209 = arith.mulf %204, %208 : vector<16x128xf32>
      %c0_105 = arith.constant 0 : index
      %c0_106 = arith.constant 0 : index
      %210 = vector.load %arg23[%c0_105, %c0_106] : memref<1x128xf32, #tpu.memory_space<vmem>>, vector<1x128xf32>
      %211 = vector.broadcast %210 : vector<1x128xf32> to vector<16x128xf32>
      %212 = arith.mulf %209, %211 : vector<16x128xf32>
      %c0_107 = arith.constant 0 : index
      %c0_108 = arith.constant 0 : index
      %213 = vector.load %arg24[%c0_107, %c0_108] : memref<1x128xf32, #tpu.memory_space<vmem>>, vector<1x128xf32>
      %214 = vector.broadcast %213 : vector<1x128xf32> to vector<16x128xf32>
      %215 = arith.addf %212, %214 : vector<16x128xf32>
      %216 = arith.truncf %215 : vector<16x128xf32> to vector<16x128xbf16>
      %c0_109 = arith.constant 0 : index
      %c0_110 = arith.constant 0 : index
      %217 = vector.load %arg25[%c0_109, %c0_110] : memref<128x128xbf16, #tpu.memory_space<vmem>>, vector<128x128xbf16>
      %cst_111 = arith.constant dense<0.000000e+00> : vector<16x128xf32>
      %218 = tpu.matmul %216, %217, %cst_111 {dimension_numbers = #tpu.dot_dimension_numbers<[1], [0], [0], [1], [0, 0, 1, 1], [], []>} : vector<16x128xbf16>, vector<128x128xbf16>, vector<16x128xf32> -> vector<16x128xf32>
      %c0_112 = arith.constant 0 : index
      %c0_113 = arith.constant 0 : index
      %219 = vector.load %arg26[%c0_112, %c0_113] : memref<1x128xf32, #tpu.memory_space<vmem>>, vector<1x128xf32>
      %220 = vector.broadcast %219 : vector<1x128xf32> to vector<16x128xf32>
      %221 = arith.addf %218, %220 : vector<16x128xf32>
      %222 = vector.shape_cast %221 : vector<16x128xf32> to vector<2x8x128xf32>
      %c0_114 = arith.constant 0 : index
      %c0_115 = arith.constant 0 : index
      %c0_116 = arith.constant 0 : index
      %223 = vector.load %arg27[%c0_114, %c0_115, %c0_116] : memref<2x8x128xf32, #tpu.memory_space<vmem>>, vector<2x8x128xf32>
      tpu.vector_store %arg27[%c0_114, %c0_115, %c0_116], %222 {strides = array<i32>} : memref<2x8x128xf32, #tpu.memory_space<vmem>>, vector<2x8x128xf32>,
    } else {
    }
    return
  }
  func.func @transform_0(%arg0: i32) -> (i32, i32, i32) {
    %c0_i32 = arith.constant 0 : i32
    %c0_i32_0 = arith.constant 0 : i32
    %c0_i32_1 = arith.constant 0 : i32
    %c0_i32_2 = arith.constant 0 : i32
    return %c0_i32, %c0_i32_0, %c0_i32_1 : i32, i32, i32
  }
  func.func @transform_1(%arg0: i32) -> (i32, i32, i32) {
    %c0_i32 = arith.constant 0 : i32
    %c0_i32_0 = arith.constant 0 : i32
    %c0_i32_1 = arith.constant 0 : i32
    %c0_i32_2 = arith.constant 0 : i32
    return %c0_i32, %c0_i32_0, %c0_i32_1 : i32, i32, i32
  }
  func.func @transform_2(%arg0: i32) -> (i32, i32, i32) {
    %c0_i32 = arith.constant 0 : i32
    %c0_i32_0 = arith.constant 0 : i32
    %c0_i32_1 = arith.constant 0 : i32
    return %arg0, %c0_i32, %c0_i32_0 : i32, i32, i32
  }
  func.func @transform_3(%arg0: i32) -> (i32, i32, i32) {
    %c0_i32 = arith.constant 0 : i32
    %c0_i32_0 = arith.constant 0 : i32
    %c0_i32_1 = arith.constant 0 : i32
    return %arg0, %c0_i32, %c0_i32_0 : i32, i32, i32
  }
  func.func @transform_4(%arg0: i32) -> (i32, i32, i32) {
    %c0_i32 = arith.constant 0 : i32
    %c0_i32_0 = arith.constant 0 : i32
    %c0_i32_1 = arith.constant 0 : i32
    return %arg0, %c0_i32, %c0_i32_0 : i32, i32, i32
  }
  func.func @transform_5(%arg0: i32) -> (i32, i32, i32) {
    %c0_i32 = arith.constant 0 : i32
    %c0_i32_0 = arith.constant 0 : i32
    %c0_i32_1 = arith.constant 0 : i32
    return %arg0, %c0_i32, %c0_i32_0 : i32, i32, i32
  }
  func.func @transform_6(%arg0: i32) -> (i32, i32, i32) {
    %c0_i32 = arith.constant 0 : i32
    %c0_i32_0 = arith.constant 0 : i32
    %c0_i32_1 = arith.constant 0 : i32
    return %arg0, %c0_i32, %c0_i32_0 : i32, i32, i32
  }
  func.func @transform_7(%arg0: i32) -> (i32, i32, i32) {
    %c0_i32 = arith.constant 0 : i32
    %c0_i32_0 = arith.constant 0 : i32
    %c0_i32_1 = arith.constant 0 : i32
    return %arg0, %c0_i32, %c0_i32_0 : i32, i32, i32
  }
  func.func @transform_8(%arg0: i32) -> (i32, i32, i32) {
    %c0_i32 = arith.constant 0 : i32
    %c0_i32_0 = arith.constant 0 : i32
    %c0_i32_1 = arith.constant 0 : i32
    return %arg0, %c0_i32, %c0_i32_0 : i32, i32, i32
  }
  func.func @transform_9(%arg0: i32) -> (i32, i32, i32) {
    %c0_i32 = arith.constant 0 : i32
    %c0_i32_0 = arith.constant 0 : i32
    %c0_i32_1 = arith.constant 0 : i32
    return %arg0, %c0_i32, %c0_i32_0 : i32, i32, i32
  }
  func.func @transform_10(%arg0: i32) -> (i32, i32, i32) {
    %c0_i32 = arith.constant 0 : i32
    %c0_i32_0 = arith.constant 0 : i32
    %c0_i32_1 = arith.constant 0 : i32
    return %arg0, %c0_i32, %c0_i32_0 : i32, i32, i32
  }
  func.func @transform_11(%arg0: i32) -> (i32, i32, i32) {
    %c0_i32 = arith.constant 0 : i32
    %c0_i32_0 = arith.constant 0 : i32
    %c0_i32_1 = arith.constant 0 : i32
    return %arg0, %c0_i32, %c0_i32_0 : i32, i32, i32
  }
  func.func @transform_12(%arg0: i32) -> (i32, i32, i32) {
    %c0_i32 = arith.constant 0 : i32
    %c0_i32_0 = arith.constant 0 : i32
    %c0_i32_1 = arith.constant 0 : i32
    return %arg0, %c0_i32, %c0_i32_0 : i32, i32, i32
  }
  func.func @transform_13(%arg0: i32) -> (i32, i32, i32) {
    %c0_i32 = arith.constant 0 : i32
    %c0_i32_0 = arith.constant 0 : i32
    %c0_i32_1 = arith.constant 0 : i32
    return %arg0, %c0_i32, %c0_i32_0 : i32, i32, i32
  }
  func.func @transform_14(%arg0: i32) -> (i32, i32, i32) {
    %c0_i32 = arith.constant 0 : i32
    %c0_i32_0 = arith.constant 0 : i32
    %c0_i32_1 = arith.constant 0 : i32
    return %arg0, %c0_i32, %c0_i32_0 : i32, i32, i32
  }
  func.func @transform_15(%arg0: i32) -> (i32, i32, i32) {
    %c0_i32 = arith.constant 0 : i32
    %c0_i32_0 = arith.constant 0 : i32
    %c0_i32_1 = arith.constant 0 : i32
    return %arg0, %c0_i32, %c0_i32_0 : i32, i32, i32
  }
  func.func @transform_16(%arg0: i32) -> (i32, i32, i32) {
    %c0_i32 = arith.constant 0 : i32
    %c0_i32_0 = arith.constant 0 : i32
    %c0_i32_1 = arith.constant 0 : i32
    return %arg0, %c0_i32, %c0_i32_0 : i32, i32, i32
  }
  func.func @transform_17(%arg0: i32) -> (i32, i32, i32) {
    %c0_i32 = arith.constant 0 : i32
    %c0_i32_0 = arith.constant 0 : i32
    %c0_i32_1 = arith.constant 0 : i32
    return %arg0, %c0_i32, %c0_i32_0 : i32, i32, i32
  }
  func.func @transform_18(%arg0: i32) -> (i32, i32, i32) {
    %c0_i32 = arith.constant 0 : i32
    %c0_i32_0 = arith.constant 0 : i32
    %c0_i32_1 = arith.constant 0 : i32
    return %arg0, %c0_i32, %c0_i32_0 : i32, i32, i32
  }
  func.func @transform_19(%arg0: i32) -> (i32, i32, i32) {
    %c0_i32 = arith.constant 0 : i32
    %c0_i32_0 = arith.constant 0 : i32
    %c0_i32_1 = arith.constant 0 : i32
    return %arg0, %c0_i32, %c0_i32_0 : i32, i32, i32
  }
  func.func @transform_20(%arg0: i32) -> (i32, i32, i32) {
    %c0_i32 = arith.constant 0 : i32
    %c0_i32_0 = arith.constant 0 : i32
    %c0_i32_1 = arith.constant 0 : i32
    return %arg0, %c0_i32, %c0_i32_0 : i32, i32, i32
  }
  func.func @transform_21(%arg0: i32) -> (i32, i32, i32) {
    %c0_i32 = arith.constant 0 : i32
    %c0_i32_0 = arith.constant 0 : i32
    %c0_i32_1 = arith.constant 0 : i32
    return %arg0, %c0_i32, %c0_i32_0 : i32, i32, i32
  }
  func.func @transform_22(%arg0: i32) -> (i32, i32) {
    %c0_i32 = arith.constant 0 : i32
    %c0_i32_0 = arith.constant 0 : i32
    %c0_i32_1 = arith.constant 0 : i32
    return %c0_i32, %c0_i32_0 : i32, i32
  }
  func.func @transform_23(%arg0: i32) -> (i32, i32) {
    %c0_i32 = arith.constant 0 : i32
    %c0_i32_0 = arith.constant 0 : i32
    %c0_i32_1 = arith.constant 0 : i32
    return %c0_i32, %c0_i32_0 : i32, i32
  }
  func.func @transform_24(%arg0: i32) -> (i32, i32) {
    %c0_i32 = arith.constant 0 : i32
    %c0_i32_0 = arith.constant 0 : i32
    %c0_i32_1 = arith.constant 0 : i32
    return %c0_i32, %c0_i32_0 : i32, i32
  }
  func.func @transform_25(%arg0: i32) -> (i32, i32) {
    %c0_i32 = arith.constant 0 : i32
    %c0_i32_0 = arith.constant 0 : i32
    %c0_i32_1 = arith.constant 0 : i32
    return %c0_i32, %c0_i32_0 : i32, i32
  }
  func.func @transform_26(%arg0: i32) -> (i32, i32, i32) {
    %c0_i32 = arith.constant 0 : i32
    %c0_i32_0 = arith.constant 0 : i32
    %c0_i32_1 = arith.constant 0 : i32
    %c0_i32_2 = arith.constant 0 : i32
    return %c0_i32, %c0_i32_0, %c0_i32_1 : i32, i32, i32
  }
}

</mosaic_0001>

<llo_original>
// kernel: dummy_gpt_forward.3
$region0: #{dummy_gpt_forward.3}
  #allocation0 [shape = 'u32[]', space=smem, size = 0x4, offset = 0x4, fixed_abs, tag = 'smem constant byte address 0x4 - core index']
  #allocation1 [shape = 'u32[72,128]{1,0:T(1,128)}', space=vmem, size = 0x9000, scoped, tag = 'internal scratch']
  #allocation2 [shape = 'f32[2,8,128]{2,1,0:T(8,128)}', space=vmem, size = 0x2000, scoped, tag = 'scratch operand']
  %s0 = inlined_call_operand.vmem [shape: f32[2,8,128], index: 0, kind: input, shape index: {}]
  %s1 = inlined_call_operand.vmem [shape: f32[2,8,128], index: 1, kind: input, shape index: {}]
  %s2 = inlined_call_operand.vmem [shape: bf16[6,128,384], index: 2, kind: input, shape index: {}]
  %s3 = inlined_call_operand.vmem [shape: f32[6,1,384], index: 3, kind: input, shape index: {}]
  %s4 = inlined_call_operand.hbm [shape: bf16[6,128,128], index: 4, kind: input, shape index: {}]
  %s5 = inlined_call_operand.vmem [shape: f32[6,1,128], index: 5, kind: input, shape index: {}]
  %s6 = inlined_call_operand.vmem [shape: f32[6,1,128], index: 6, kind: input, shape index: {}]
  %s7 = inlined_call_operand.vmem [shape: f32[6,1,128], index: 7, kind: input, shape index: {}]
  %s8 = inlined_call_operand.hbm [shape: bf16[6,128,128], index: 8, kind: input, shape index: {}]
  %s9 = inlined_call_operand.vmem [shape: f32[6,1,128], index: 9, kind: input, shape index: {}]
  %s10 = inlined_call_operand.vmem [shape: bf16[6,128,256], index: 10, kind: input, shape index: {}]
  %s11 = inlined_call_operand.vmem [shape: f32[6,1,256], index: 11, kind: input, shape index: {}]
  %s12 = inlined_call_operand.hbm [shape: bf16[6,128,128], index: 12, kind: input, shape index: {}]
  %s13 = inlined_call_operand.vmem [shape: f32[6,1,128], index: 13, kind: input, shape index: {}]
  %s14 = inlined_call_operand.hbm [shape: f32[6,1,128], index: 14, kind: input, shape index: {}]
  %s15 = inlined_call_operand.hbm [shape: f32[6,1,128], index: 15, kind: input, shape index: {}]
  %s16 = inlined_call_operand.vmem [shape: bf16[6,128,2048], index: 16, kind: input, shape index: {}]
  %s17 = inlined_call_operand.vmem [shape: f32[6,1,2048], index: 17, kind: input, shape index: {}]
  %s18 = inlined_call_operand.vmem [shape: bf16[6,2048,128], index: 18, kind: input, shape index: {}]
  %s19 = inlined_call_operand.hbm [shape: f32[6,1,128], index: 19, kind: input, shape index: {}]
  %s20 = inlined_call_operand.hbm [shape: f32[6,1,128], index: 20, kind: input, shape index: {}]
  %s21 = inlined_call_operand.hbm [shape: f32[6,1,128], index: 21, kind: input, shape index: {}]
  %s22 = inlined_call_operand.vmem [shape: f32[1,128], index: 22, kind: input, shape index: {}]
  %s23 = inlined_call_operand.vmem [shape: f32[1,128], index: 23, kind: input, shape index: {}]
  %s24 = inlined_call_operand.hbm [shape: bf16[128,128], index: 24, kind: input, shape index: {}]
  %s25 = inlined_call_operand.hbm [shape: f32[1,128], index: 25, kind: input, shape index: {}]
  %s26 = inlined_call_operand.vmem [shape: f32[2,8,128], index: 26, kind: output, shape index: {}]
  %s27 = sld [smem:[#allocation0]]
  $region185: #{dummy_gpt_forward.3} parent=0
    _
  %s29 = ssub.s32 1, %s27
  %s30 = scalar_select 0, %s29, %s27
  $region1: #{dummy_gpt_forward.3} parent=0
    #allocation3 [shape = 'u8[65536]{0}', space=vmem, size = 0x10000, scoped, tag = 'input window, operand 4']
    #allocation4 [shape = 's32[2]{0}', space=sflag, size = 0x8, scoped, tag = 'scoped memory for dummy_gpt_forward.3']
    #allocation5 [shape = 'u8[65536]{0}', space=vmem, size = 0x10000, scoped, tag = 'input window, operand 8']
    #allocation6 [shape = 's32[2]{0}', space=sflag, size = 0x8, scoped, tag = 'scoped memory for dummy_gpt_forward.3']
    #allocation7 [shape = 'u8[65536]{0}', space=vmem, size = 0x10000, scoped, tag = 'input window, operand 12']
    #allocation8 [shape = 'u8[1024]{0}', space=vmem, size = 0x400, scoped, tag = 'input window, operand 14']
    #allocation9 [shape = 's32[2]{0}', space=sflag, size = 0x8, scoped, tag = 'scoped memory for dummy_gpt_forward.3']
    #allocation10 [shape = 'u8[1024]{0}', space=vmem, size = 0x400, scoped, tag = 'input window, operand 15']
    #allocation11 [shape = 'u8[1024]{0}', space=vmem, size = 0x400, scoped, tag = 'input window, operand 19']
    #allocation12 [shape = 's32[2]{0}', space=sflag, size = 0x8, scoped, tag = 'scoped memory for dummy_gpt_forward.3']
    #allocation13 [shape = 'u8[1024]{0}', space=vmem, size = 0x400, scoped, tag = 'input window, operand 20']
    #allocation14 [shape = 'u8[1024]{0}', space=vmem, size = 0x400, scoped, tag = 'input window, operand 21']
    #allocation15 [shape = 's32[2]{0}', space=sflag, size = 0x8, scoped, tag = 'scoped memory for dummy_gpt_forward.3']
    #allocation16 [shape = 'u8[32768]{0}', space=vmem, size = 0x8000, scoped, tag = 'input window, operand 24, single buffered']
    #allocation17 [shape = 'u8[512]{0}', space=vmem, size = 0x400, scoped, tag = 'input window, operand 25, single buffered']
    #allocation18 [shape = 's32[1]{0}', space=sflag, size = 0x4, scoped, tag = 'scoped memory for dummy_gpt_forward.3']
    %31 = vsyncpa [#allocation4], 0
    %s32 = scalar_lea.sflag [#allocation4], 1
    %33 = vsyncpa %s32, 0
    %34 = vsyncpa [#allocation6], 0
    %s35 = scalar_lea.sflag [#allocation6], 1
    %36 = vsyncpa %s35, 0
    %37 = vsyncpa [#allocation9], 0
    %s38 = scalar_lea.sflag [#allocation9], 1
    %39 = vsyncpa %s38, 0
    %40 = vsyncpa [#allocation12], 0
    %s41 = scalar_lea.sflag [#allocation12], 1
    %42 = vsyncpa %s41, 0
    %43 = vsyncpa [#allocation15], 0
    %s44 = scalar_lea.sflag [#allocation15], 1
    %45 = vsyncpa %s44, 0
    %46 = vsyncpa [#allocation18], 0
    loop: start=0, step=1, limit=8
    $region2: #{dummy_gpt_forward.3} parent=1 // loop_pre_header
      _
    $region3: #{dummy_gpt_forward.3} parent=1 // loop_header
      %s48 = sphi 0, %s52
      %p49 = scmp.ge.s32.totalorder %s48, 8
      %s56 = sphi 0, %s56
      %s58 = sphi 0, %s56
      %s59 = sphi 0, %s58
      %s73 = sphi 0, %s59
      %s77 = sphi 0, %s77
      %s79 = sphi 0, %s77
      %s80 = sphi 0, %s79
      %s94 = sphi 0, %s80
      %s100 = sphi 0, %s102
      %s103 = sphi 0, %s100
      %s104 = sphi 0, %s103
      %s120 = sphi 0, %s104
      %s126 = sphi 0, %s128
      %s129 = sphi 0, %s126
      %s130 = sphi 0, %s129
      %s146 = sphi 0, %s130
      %s152 = sphi 0, %s154
      %s155 = sphi 0, %s152
      %s156 = sphi 0, %s155
      %s172 = sphi 0, %s156
      %s178 = sphi 0, %s180
      %s181 = sphi 0, %s178
      %s182 = sphi 0, %s181
      %s198 = sphi 0, %s182
      %s204 = sphi 0, %s206
      %s207 = sphi 0, %s204
      %s208 = sphi 0, %s207
      %s224 = sphi 0, %s208
      %s230 = sphi 0, %s232
      %s233 = sphi 0, %s230
      %s234 = sphi 0, %s233
      %s250 = sphi 0, %s234
      %s256 = sphi 0, %s258
      %s259 = sphi 0, %s256
      %s260 = sphi 0, %s259
      %s276 = sphi 0, %s260
      %s282 = sphi 0, %s284
      %s285 = sphi 0, %s282
      %s286 = sphi 0, %s285
      %s302 = sphi 0, %s286
      %s308 = sphi 0, %s310
      %s311 = sphi 0, %s308
      %s312 = sphi 0, %s311
      %s328 = sphi 0, %s312
      %s334 = sphi 0, %s336
      %s337 = sphi 0, %s334
      %s338 = sphi 0, %s337
      %s354 = sphi 0, %s338
      %s360 = sphi 0, %s362
      %s363 = sphi 0, %s360
      %s364 = sphi 0, %s363
      %s380 = sphi 0, %s364
      %s386 = sphi 0, %s388
      %s389 = sphi 0, %s386
      %s390 = sphi 0, %s389
      %s406 = sphi 0, %s390
      %s412 = sphi 0, %s414
      %s415 = sphi 0, %s412
      %s416 = sphi 0, %s415
      %s432 = sphi 0, %s416
      %s438 = sphi 0, %s440
      %s441 = sphi 0, %s438
      %s442 = sphi 0, %s441
      %s458 = sphi 0, %s442
      %s464 = sphi 0, %s466
      %s467 = sphi 0, %s464
      %s468 = sphi 0, %s467
      %s484 = sphi 0, %s468
      %s490 = sphi 0, %s492
      %s493 = sphi 0, %s490
      %s494 = sphi 0, %s493
      %s510 = sphi 0, %s494
      %s516 = sphi 0, %s518
      %s519 = sphi 0, %s516
      %s520 = sphi 0, %s519
      %s536 = sphi 0, %s520
      %s542 = sphi 0, %s544
      %s545 = sphi 0, %s542
      %s546 = sphi 0, %s545
      %s562 = sphi 0, %s546
      %s568 = sphi 0, %s570
      %s571 = sphi 0, %s568
      %s572 = sphi 0, %s571
      %s588 = sphi 0, %s572
      %s594 = sphi 0, %s596
      %s597 = sphi 0, %s594
      %s598 = sphi 0, %s597
      %s614 = sphi 0, %s598
      %s618 = sphi 0, %s618
      %s620 = sphi 0, %s618
      %s621 = sphi 0, %s620
      %s635 = sphi 0, %s621
      %s639 = sphi 0, %s639
      %s641 = sphi 0, %s639
      %s642 = sphi 0, %s641
      %s656 = sphi 0, %s642
      %s660 = sphi 0, %s660
      %s662 = sphi 0, %s660
      %s663 = sphi 0, %s662
      %s677 = sphi 0, %s663
      %s681 = sphi 0, %s681
      %s683 = sphi 0, %s681
      %s684 = sphi 0, %s683
      %s698 = sphi 0, %s684
      %s702 = sphi 0, %s702
      %s704 = sphi 0, %s702
      %s705 = sphi 0, %s704
      %s719 = sphi 0, %s705
    $region4: #{dummy_gpt_forward.3} parent=1 // loop_header_branch
      %51 = sbr.rel (%p49) target = $region8
    $region5: #{dummy_gpt_forward.3} parent=1 // loop_body
      %s53 = ssub.s32 %s48, 1
      %s54 = ssub.s32 %s48, 2
      %s55 = sadd.s32 %s48, 1
      %s57 = sadd.s32 %s56, 1
      %p60 = scmp.eq.s32.totalorder %s48, 5
      %p61 = scmp.ne.s32.totalorder %s56, %s58
      %p62 = scmp.eq.s32.totalorder %s48, 0
      %p63 = por %p61, %p62
      %p64 = scmp.ne.s32.totalorder %s56, %s58
      %p65 = scmp.eq.s32.totalorder %s53, 5
      %p66 = por %p64, %p65
      %p67 = scmp.ne.s32.totalorder %s58, %s59
      %p68 = scmp.eq.s32.totalorder %s53, 0
      %p69 = por %p67, %p68
      %p70 = scmp.ne.s32.totalorder %s58, %s59
      %p71 = scmp.eq.s32.totalorder %s54, 5
      %p72 = por %p70, %p71
      %p74 = scmp.ne.s32.totalorder %s59, %s73
      %p75 = scmp.eq.s32.totalorder %s54, 0
      %p76 = por %p74, %p75
      %s78 = sadd.s32 %s77, 1
      %p81 = scmp.eq.s32.totalorder %s48, 5
      %p82 = scmp.ne.s32.totalorder %s77, %s79
      %p83 = scmp.eq.s32.totalorder %s48, 0
      %p84 = por %p82, %p83
      %p85 = scmp.ne.s32.totalorder %s77, %s79
      %p86 = scmp.eq.s32.totalorder %s53, 5
      %p87 = por %p85, %p86
      %p88 = scmp.ne.s32.totalorder %s79, %s80
      %p89 = scmp.eq.s32.totalorder %s53, 0
      %p90 = por %p88, %p89
      %p91 = scmp.ne.s32.totalorder %s79, %s80
      %p92 = scmp.eq.s32.totalorder %s54, 5
      %p93 = por %p91, %p92
      %p95 = scmp.ne.s32.totalorder %s80, %s94
      %p96 = scmp.eq.s32.totalorder %s54, 0
      %p97 = por %p95, %p96
      %s98 = ssub.s32 %s48, %s55
      %p99 = scmp.eq.s32.totalorder %s98, 0
      %s101 = sadd.s32 %s100, 1
      %s102 = scalar_select %p99, %s100, %s101
      %p105 = pneg %p99
      %p106 = scmp.eq.s32.totalorder %s48, 5
      %p107 = por %p105, %p106
      %p108 = scmp.ne.s32.totalorder %s100, %s103
      %p109 = scmp.eq.s32.totalorder %s48, 0
      %p110 = por %p108, %p109
      %p111 = scmp.ne.s32.totalorder %s100, %s103
      %p112 = scmp.eq.s32.totalorder %s53, 5
      %p113 = por %p111, %p112
      %p114 = scmp.ne.s32.totalorder %s103, %s104
      %p115 = scmp.eq.s32.totalorder %s53, 0
      %p116 = por %p114, %p115
      %p117 = scmp.ne.s32.totalorder %s103, %s104
      %p118 = scmp.eq.s32.totalorder %s54, 5
      %p119 = por %p117, %p118
      %p121 = scmp.ne.s32.totalorder %s104, %s120
      %p122 = scmp.eq.s32.totalorder %s54, 0
      %p123 = por %p121, %p122
      %s124 = ssub.s32 %s48, %s55
      %p125 = scmp.eq.s32.totalorder %s124, 0
      %s127 = sadd.s32 %s126, 1
      %s128 = scalar_select %p125, %s126, %s127
      %p131 = pneg %p125
      %p132 = scmp.eq.s32.totalorder %s48, 5
      %p133 = por %p131, %p132
      %p134 = scmp.ne.s32.totalorder %s126, %s129
      %p135 = scmp.eq.s32.totalorder %s48, 0
      %p136 = por %p134, %p135
      %p137 = scmp.ne.s32.totalorder %s126, %s129
      %p138 = scmp.eq.s32.totalorder %s53, 5
      %p139 = por %p137, %p138
      %p140 = scmp.ne.s32.totalorder %s129, %s130
      %p141 = scmp.eq.s32.totalorder %s53, 0
      %p142 = por %p140, %p141
      %p143 = scmp.ne.s32.totalorder %s129, %s130
      %p144 = scmp.eq.s32.totalorder %s54, 5
      %p145 = por %p143, %p144
      %p147 = scmp.ne.s32.totalorder %s130, %s146
      %p148 = scmp.eq.s32.totalorder %s54, 0
      %p149 = por %p147, %p148
      %s150 = ssub.s32 %s48, %s55
      %p151 = scmp.eq.s32.totalorder %s150, 0
      %s153 = sadd.s32 %s152, 1
      %s154 = scalar_select %p151, %s152, %s153
      %p157 = pneg %p151
      %p158 = scmp.eq.s32.totalorder %s48, 5
      %p159 = por %p157, %p158
      %p160 = scmp.ne.s32.totalorder %s152, %s155
      %p161 = scmp.eq.s32.totalorder %s48, 0
      %p162 = por %p160, %p161
      %p163 = scmp.ne.s32.totalorder %s152, %s155
      %p164 = scmp.eq.s32.totalorder %s53, 5
      %p165 = por %p163, %p164
      %p166 = scmp.ne.s32.totalorder %s155, %s156
      %p167 = scmp.eq.s32.totalorder %s53, 0
      %p168 = por %p166, %p167
      %p169 = scmp.ne.s32.totalorder %s155, %s156
      %p170 = scmp.eq.s32.totalorder %s54, 5
      %p171 = por %p169, %p170
      %p173 = scmp.ne.s32.totalorder %s156, %s172
      %p174 = scmp.eq.s32.totalorder %s54, 0
      %p175 = por %p173, %p174
      %s176 = ssub.s32 %s48, %s55
      %p177 = scmp.eq.s32.totalorder %s176, 0
      %s179 = sadd.s32 %s178, 1
      %s180 = scalar_select %p177, %s178, %s179
      %p183 = pneg %p177
      %p184 = scmp.eq.s32.totalorder %s48, 5
      %p185 = por %p183, %p184
      %p186 = scmp.ne.s32.totalorder %s178, %s181
      %p187 = scmp.eq.s32.totalorder %s48, 0
      %p188 = por %p186, %p187
      %p189 = scmp.ne.s32.totalorder %s178, %s181
      %p190 = scmp.eq.s32.totalorder %s53, 5
      %p191 = por %p189, %p190
      %p192 = scmp.ne.s32.totalorder %s181, %s182
      %p193 = scmp.eq.s32.totalorder %s53, 0
      %p194 = por %p192, %p193
      %p195 = scmp.ne.s32.totalorder %s181, %s182
      %p196 = scmp.eq.s32.totalorder %s54, 5
      %p197 = por %p195, %p196
      %p199 = scmp.ne.s32.totalorder %s182, %s198
      %p200 = scmp.eq.s32.totalorder %s54, 0
      %p201 = por %p199, %p200
      %s202 = ssub.s32 %s48, %s55
      %p203 = scmp.eq.s32.totalorder %s202, 0
      %s205 = sadd.s32 %s204, 1
      %s206 = scalar_select %p203, %s204, %s205
      %p209 = pneg %p203
      %p210 = scmp.eq.s32.totalorder %s48, 5
      %p211 = por %p209, %p210
      %p212 = scmp.ne.s32.totalorder %s204, %s207
      %p213 = scmp.eq.s32.totalorder %s48, 0
      %p214 = por %p212, %p213
      %p215 = scmp.ne.s32.totalorder %s204, %s207
      %p216 = scmp.eq.s32.totalorder %s53, 5
      %p217 = por %p215, %p216
      %p218 = scmp.ne.s32.totalorder %s207, %s208
      %p219 = scmp.eq.s32.totalorder %s53, 0
      %p220 = por %p218, %p219
      %p221 = scmp.ne.s32.totalorder %s207, %s208
      %p222 = scmp.eq.s32.totalorder %s54, 5
      %p223 = por %p221, %p222
      %p225 = scmp.ne.s32.totalorder %s208, %s224
      %p226 = scmp.eq.s32.totalorder %s54, 0
      %p227 = por %p225, %p226
      %s228 = ssub.s32 %s48, %s55
      %p229 = scmp.eq.s32.totalorder %s228, 0
      %s231 = sadd.s32 %s230, 1
      %s232 = scalar_select %p229, %s230, %s231
      %p235 = pneg %p229
      %p236 = scmp.eq.s32.totalorder %s48, 5
      %p237 = por %p235, %p236
      %p238 = scmp.ne.s32.totalorder %s230, %s233
      %p239 = scmp.eq.s32.totalorder %s48, 0
      %p240 = por %p238, %p239
      %p241 = scmp.ne.s32.totalorder %s230, %s233
      %p242 = scmp.eq.s32.totalorder %s53, 5
      %p243 = por %p241, %p242
      %p244 = scmp.ne.s32.totalorder %s233, %s234
      %p245 = scmp.eq.s32.totalorder %s53, 0
      %p246 = por %p244, %p245
      %p247 = scmp.ne.s32.totalorder %s233, %s234
      %p248 = scmp.eq.s32.totalorder %s54, 5
      %p249 = por %p247, %p248
      %p251 = scmp.ne.s32.totalorder %s234, %s250
      %p252 = scmp.eq.s32.totalorder %s54, 0
      %p253 = por %p251, %p252
      %s254 = ssub.s32 %s48, %s55
      %p255 = scmp.eq.s32.totalorder %s254, 0
      %s257 = sadd.s32 %s256, 1
      %s258 = scalar_select %p255, %s256, %s257
      %p261 = pneg %p255
      %p262 = scmp.eq.s32.totalorder %s48, 5
      %p263 = por %p261, %p262
      %p264 = scmp.ne.s32.totalorder %s256, %s259
      %p265 = scmp.eq.s32.totalorder %s48, 0
      %p266 = por %p264, %p265
      %p267 = scmp.ne.s32.totalorder %s256, %s259
      %p268 = scmp.eq.s32.totalorder %s53, 5
      %p269 = por %p267, %p268
      %p270 = scmp.ne.s32.totalorder %s259, %s260
      %p271 = scmp.eq.s32.totalorder %s53, 0
      %p272 = por %p270, %p271
      %p273 = scmp.ne.s32.totalorder %s259, %s260
      %p274 = scmp.eq.s32.totalorder %s54, 5
      %p275 = por %p273, %p274
      %p277 = scmp.ne.s32.totalorder %s260, %s276
      %p278 = scmp.eq.s32.totalorder %s54, 0
      %p279 = por %p277, %p278
      %s280 = ssub.s32 %s48, %s55
      %p281 = scmp.eq.s32.totalorder %s280, 0
      %s283 = sadd.s32 %s282, 1
      %s284 = scalar_select %p281, %s282, %s283
      %p287 = pneg %p281
      %p288 = scmp.eq.s32.totalorder %s48, 5
      %p289 = por %p287, %p288
      %p290 = scmp.ne.s32.totalorder %s282, %s285
      %p291 = scmp.eq.s32.totalorder %s48, 0
      %p292 = por %p290, %p291
      %p293 = scmp.ne.s32.totalorder %s282, %s285
      %p294 = scmp.eq.s32.totalorder %s53, 5
      %p295 = por %p293, %p294
      %p296 = scmp.ne.s32.totalorder %s285, %s286
      %p297 = scmp.eq.s32.totalorder %s53, 0
      %p298 = por %p296, %p297
      %p299 = scmp.ne.s32.totalorder %s285, %s286
      %p300 = scmp.eq.s32.totalorder %s54, 5
      %p301 = por %p299, %p300
      %p303 = scmp.ne.s32.totalorder %s286, %s302
      %p304 = scmp.eq.s32.totalorder %s54, 0
      %p305 = por %p303, %p304
      %s306 = ssub.s32 %s48, %s55
      %p307 = scmp.eq.s32.totalorder %s306, 0
      %s309 = sadd.s32 %s308, 1
      %s310 = scalar_select %p307, %s308, %s309
      %p313 = pneg %p307
      %p314 = scmp.eq.s32.totalorder %s48, 5
      %p315 = por %p313, %p314
      %p316 = scmp.ne.s32.totalorder %s308, %s311
      %p317 = scmp.eq.s32.totalorder %s48, 0
      %p318 = por %p316, %p317
      %p319 = scmp.ne.s32.totalorder %s308, %s311
      %p320 = scmp.eq.s32.totalorder %s53, 5
      %p321 = por %p319, %p320
      %p322 = scmp.ne.s32.totalorder %s311, %s312
      %p323 = scmp.eq.s32.totalorder %s53, 0
      %p324 = por %p322, %p323
      %p325 = scmp.ne.s32.totalorder %s311, %s312
      %p326 = scmp.eq.s32.totalorder %s54, 5
      %p327 = por %p325, %p326
      %p329 = scmp.ne.s32.totalorder %s312, %s328
      %p330 = scmp.eq.s32.totalorder %s54, 0
      %p331 = por %p329, %p330
      %s332 = ssub.s32 %s48, %s55
      %p333 = scmp.eq.s32.totalorder %s332, 0
      %s335 = sadd.s32 %s334, 1
      %s336 = scalar_select %p333, %s334, %s335
      %p339 = pneg %p333
      %p340 = scmp.eq.s32.totalorder %s48, 5
      %p341 = por %p339, %p340
      %p342 = scmp.ne.s32.totalorder %s334, %s337
      %p343 = scmp.eq.s32.totalorder %s48, 0
      %p344 = por %p342, %p343
      %p345 = scmp.ne.s32.totalorder %s334, %s337
      %p346 = scmp.eq.s32.totalorder %s53, 5
      %p347 = por %p345, %p346
      %p348 = scmp.ne.s32.totalorder %s337, %s338
      %p349 = scmp.eq.s32.totalorder %s53, 0
      %p350 = por %p348, %p349
      %p351 = scmp.ne.s32.totalorder %s337, %s338
      %p352 = scmp.eq.s32.totalorder %s54, 5
      %p353 = por %p351, %p352
      %p355 = scmp.ne.s32.totalorder %s338, %s354
      %p356 = scmp.eq.s32.totalorder %s54, 0
      %p357 = por %p355, %p356
      %s358 = ssub.s32 %s48, %s55
      %p359 = scmp.eq.s32.totalorder %s358, 0
      %s361 = sadd.s32 %s360, 1
      %s362 = scalar_select %p359, %s360, %s361
      %p365 = pneg %p359
      %p366 = scmp.eq.s32.totalorder %s48, 5
      %p367 = por %p365, %p366
      %p368 = scmp.ne.s32.totalorder %s360, %s363
      %p369 = scmp.eq.s32.totalorder %s48, 0
      %p370 = por %p368, %p369
      %p371 = scmp.ne.s32.totalorder %s360, %s363
      %p372 = scmp.eq.s32.totalorder %s53, 5
      %p373 = por %p371, %p372
      %p374 = scmp.ne.s32.totalorder %s363, %s364
      %p375 = scmp.eq.s32.totalorder %s53, 0
      %p376 = por %p374, %p375
      %p377 = scmp.ne.s32.totalorder %s363, %s364
      %p378 = scmp.eq.s32.totalorder %s54, 5
      %p379 = por %p377, %p378
      %p381 = scmp.ne.s32.totalorder %s364, %s380
      %p382 = scmp.eq.s32.totalorder %s54, 0
      %p383 = por %p381, %p382
      %s384 = ssub.s32 %s48, %s55
      %p385 = scmp.eq.s32.totalorder %s384, 0
      %s387 = sadd.s32 %s386, 1
      %s388 = scalar_select %p385, %s386, %s387
      %p391 = pneg %p385
      %p392 = scmp.eq.s32.totalorder %s48, 5
      %p393 = por %p391, %p392
      %p394 = scmp.ne.s32.totalorder %s386, %s389
      %p395 = scmp.eq.s32.totalorder %s48, 0
      %p396 = por %p394, %p395
      %p397 = scmp.ne.s32.totalorder %s386, %s389
      %p398 = scmp.eq.s32.totalorder %s53, 5
      %p399 = por %p397, %p398
      %p400 = scmp.ne.s32.totalorder %s389, %s390
      %p401 = scmp.eq.s32.totalorder %s53, 0
      %p402 = por %p400, %p401
      %p403 = scmp.ne.s32.totalorder %s389, %s390
      %p404 = scmp.eq.s32.totalorder %s54, 5
      %p405 = por %p403, %p404
      %p407 = scmp.ne.s32.totalorder %s390, %s406
      %p408 = scmp.eq.s32.totalorder %s54, 0
      %p409 = por %p407, %p408
      %s410 = ssub.s32 %s48, %s55
      %p411 = scmp.eq.s32.totalorder %s410, 0
      %s413 = sadd.s32 %s412, 1
      %s414 = scalar_select %p411, %s412, %s413
      %p417 = pneg %p411
      %p418 = scmp.eq.s32.totalorder %s48, 5
      %p419 = por %p417, %p418
      %p420 = scmp.ne.s32.totalorder %s412, %s415
      %p421 = scmp.eq.s32.totalorder %s48, 0
      %p422 = por %p420, %p421
      %p423 = scmp.ne.s32.totalorder %s412, %s415
      %p424 = scmp.eq.s32.totalorder %s53, 5
      %p425 = por %p423, %p424
      %p426 = scmp.ne.s32.totalorder %s415, %s416
      %p427 = scmp.eq.s32.totalorder %s53, 0
      %p428 = por %p426, %p427
      %p429 = scmp.ne.s32.totalorder %s415, %s416
      %p430 = scmp.eq.s32.totalorder %s54, 5
      %p431 = por %p429, %p430
      %p433 = scmp.ne.s32.totalorder %s416, %s432
      %p434 = scmp.eq.s32.totalorder %s54, 0
      %p435 = por %p433, %p434
      %s436 = ssub.s32 %s48, %s55
      %p437 = scmp.eq.s32.totalorder %s436, 0
      %s439 = sadd.s32 %s438, 1
      %s440 = scalar_select %p437, %s438, %s439
      %p443 = pneg %p437
      %p444 = scmp.eq.s32.totalorder %s48, 5
      %p445 = por %p443, %p444
      %p446 = scmp.ne.s32.totalorder %s438, %s441
      %p447 = scmp.eq.s32.totalorder %s48, 0
      %p448 = por %p446, %p447
      %p449 = scmp.ne.s32.totalorder %s438, %s441
      %p450 = scmp.eq.s32.totalorder %s53, 5
      %p451 = por %p449, %p450
      %p452 = scmp.ne.s32.totalorder %s441, %s442
      %p453 = scmp.eq.s32.totalorder %s53, 0
      %p454 = por %p452, %p453
      %p455 = scmp.ne.s32.totalorder %s441, %s442
      %p456 = scmp.eq.s32.totalorder %s54, 5
      %p457 = por %p455, %p456
      %p459 = scmp.ne.s32.totalorder %s442, %s458
      %p460 = scmp.eq.s32.totalorder %s54, 0
      %p461 = por %p459, %p460
      %s462 = ssub.s32 %s48, %s55
      %p463 = scmp.eq.s32.totalorder %s462, 0
      %s465 = sadd.s32 %s464, 1
      %s466 = scalar_select %p463, %s464, %s465
      %p469 = pneg %p463
      %p470 = scmp.eq.s32.totalorder %s48, 5
      %p471 = por %p469, %p470
      %p472 = scmp.ne.s32.totalorder %s464, %s467
      %p473 = scmp.eq.s32.totalorder %s48, 0
      %p474 = por %p472, %p473
      %p475 = scmp.ne.s32.totalorder %s464, %s467
      %p476 = scmp.eq.s32.totalorder %s53, 5
      %p477 = por %p475, %p476
      %p478 = scmp.ne.s32.totalorder %s467, %s468
      %p479 = scmp.eq.s32.totalorder %s53, 0
      %p480 = por %p478, %p479
      %p481 = scmp.ne.s32.totalorder %s467, %s468
      %p482 = scmp.eq.s32.totalorder %s54, 5
      %p483 = por %p481, %p482
      %p485 = scmp.ne.s32.totalorder %s468, %s484
      %p486 = scmp.eq.s32.totalorder %s54, 0
      %p487 = por %p485, %p486
      %s488 = ssub.s32 %s48, %s55
      %p489 = scmp.eq.s32.totalorder %s488, 0
      %s491 = sadd.s32 %s490, 1
      %s492 = scalar_select %p489, %s490, %s491
      %p495 = pneg %p489
      %p496 = scmp.eq.s32.totalorder %s48, 5
      %p497 = por %p495, %p496
      %p498 = scmp.ne.s32.totalorder %s490, %s493
      %p499 = scmp.eq.s32.totalorder %s48, 0
      %p500 = por %p498, %p499
      %p501 = scmp.ne.s32.totalorder %s490, %s493
      %p502 = scmp.eq.s32.totalorder %s53, 5
      %p503 = por %p501, %p502
      %p504 = scmp.ne.s32.totalorder %s493, %s494
      %p505 = scmp.eq.s32.totalorder %s53, 0
      %p506 = por %p504, %p505
      %p507 = scmp.ne.s32.totalorder %s493, %s494
      %p508 = scmp.eq.s32.totalorder %s54, 5
      %p509 = por %p507, %p508
      %p511 = scmp.ne.s32.totalorder %s494, %s510
      %p512 = scmp.eq.s32.totalorder %s54, 0
      %p513 = por %p511, %p512
      %s514 = ssub.s32 %s48, %s55
      %p515 = scmp.eq.s32.totalorder %s514, 0
      %s517 = sadd.s32 %s516, 1
      %s518 = scalar_select %p515, %s516, %s517
      %p521 = pneg %p515
      %p522 = scmp.eq.s32.totalorder %s48, 5
      %p523 = por %p521, %p522
      %p524 = scmp.ne.s32.totalorder %s516, %s519
      %p525 = scmp.eq.s32.totalorder %s48, 0
      %p526 = por %p524, %p525
      %p527 = scmp.ne.s32.totalorder %s516, %s519
      %p528 = scmp.eq.s32.totalorder %s53, 5
      %p529 = por %p527, %p528
      %p530 = scmp.ne.s32.totalorder %s519, %s520
      %p531 = scmp.eq.s32.totalorder %s53, 0
      %p532 = por %p530, %p531
      %p533 = scmp.ne.s32.totalorder %s519, %s520
      %p534 = scmp.eq.s32.totalorder %s54, 5
      %p535 = por %p533, %p534
      %p537 = scmp.ne.s32.totalorder %s520, %s536
      %p538 = scmp.eq.s32.totalorder %s54, 0
      %p539 = por %p537, %p538
      %s540 = ssub.s32 %s48, %s55
      %p541 = scmp.eq.s32.totalorder %s540, 0
      %s543 = sadd.s32 %s542, 1
      %s544 = scalar_select %p541, %s542, %s543
      %p547 = pneg %p541
      %p548 = scmp.eq.s32.totalorder %s48, 5
      %p549 = por %p547, %p548
      %p550 = scmp.ne.s32.totalorder %s542, %s545
      %p551 = scmp.eq.s32.totalorder %s48, 0
      %p552 = por %p550, %p551
      %p553 = scmp.ne.s32.totalorder %s542, %s545
      %p554 = scmp.eq.s32.totalorder %s53, 5
      %p555 = por %p553, %p554
      %p556 = scmp.ne.s32.totalorder %s545, %s546
      %p557 = scmp.eq.s32.totalorder %s53, 0
      %p558 = por %p556, %p557
      %p559 = scmp.ne.s32.totalorder %s545, %s546
      %p560 = scmp.eq.s32.totalorder %s54, 5
      %p561 = por %p559, %p560
      %p563 = scmp.ne.s32.totalorder %s546, %s562
      %p564 = scmp.eq.s32.totalorder %s54, 0
      %p565 = por %p563, %p564
      %s566 = ssub.s32 %s48, %s55
      %p567 = scmp.eq.s32.totalorder %s566, 0
      %s569 = sadd.s32 %s568, 1
      %s570 = scalar_select %p567, %s568, %s569
      %p573 = pneg %p567
      %p574 = scmp.eq.s32.totalorder %s48, 5
      %p575 = por %p573, %p574
      %p576 = scmp.ne.s32.totalorder %s568, %s571
      %p577 = scmp.eq.s32.totalorder %s48, 0
      %p578 = por %p576, %p577
      %p579 = scmp.ne.s32.totalorder %s568, %s571
      %p580 = scmp.eq.s32.totalorder %s53, 5
      %p581 = por %p579, %p580
      %p582 = scmp.ne.s32.totalorder %s571, %s572
      %p583 = scmp.eq.s32.totalorder %s53, 0
      %p584 = por %p582, %p583
      %p585 = scmp.ne.s32.totalorder %s571, %s572
      %p586 = scmp.eq.s32.totalorder %s54, 5
      %p587 = por %p585, %p586
      %p589 = scmp.ne.s32.totalorder %s572, %s588
      %p590 = scmp.eq.s32.totalorder %s54, 0
      %p591 = por %p589, %p590
      %s592 = ssub.s32 %s48, %s55
      %p593 = scmp.eq.s32.totalorder %s592, 0
      %s595 = sadd.s32 %s594, 1
      %s596 = scalar_select %p593, %s594, %s595
      %p599 = pneg %p593
      %p600 = scmp.eq.s32.totalorder %s48, 5
      %p601 = por %p599, %p600
      %p602 = scmp.ne.s32.totalorder %s594, %s597
      %p603 = scmp.eq.s32.totalorder %s48, 0
      %p604 = por %p602, %p603
      %p605 = scmp.ne.s32.totalorder %s594, %s597
      %p606 = scmp.eq.s32.totalorder %s53, 5
      %p607 = por %p605, %p606
      %p608 = scmp.ne.s32.totalorder %s597, %s598
      %p609 = scmp.eq.s32.totalorder %s53, 0
      %p610 = por %p608, %p609
      %p611 = scmp.ne.s32.totalorder %s597, %s598
      %p612 = scmp.eq.s32.totalorder %s54, 5
      %p613 = por %p611, %p612
      %p615 = scmp.ne.s32.totalorder %s598, %s614
      %p616 = scmp.eq.s32.totalorder %s54, 0
      %p617 = por %p615, %p616
      %s619 = sadd.s32 %s618, 1
      %p622 = scmp.eq.s32.totalorder %s48, 5
      %p623 = scmp.ne.s32.totalorder %s618, %s620
      %p624 = scmp.eq.s32.totalorder %s48, 0
      %p625 = por %p623, %p624
      %p626 = scmp.ne.s32.totalorder %s618, %s620
      %p627 = scmp.eq.s32.totalorder %s53, 5
      %p628 = por %p626, %p627
      %p629 = scmp.ne.s32.totalorder %s620, %s621
      %p630 = scmp.eq.s32.totalorder %s53, 0
      %p631 = por %p629, %p630
      %p632 = scmp.ne.s32.totalorder %s620, %s621
      %p633 = scmp.eq.s32.totalorder %s54, 5
      %p634 = por %p632, %p633
      %p636 = scmp.ne.s32.totalorder %s621, %s635
      %p637 = scmp.eq.s32.totalorder %s54, 0
      %p638 = por %p636, %p637
      %s640 = sadd.s32 %s639, 1
      %p643 = scmp.eq.s32.totalorder %s48, 5
      %p644 = scmp.ne.s32.totalorder %s639, %s641
      %p645 = scmp.eq.s32.totalorder %s48, 0
      %p646 = por %p644, %p645
      %p647 = scmp.ne.s32.totalorder %s639, %s641
      %p648 = scmp.eq.s32.totalorder %s53, 5
      %p649 = por %p647, %p648
      %p650 = scmp.ne.s32.totalorder %s641, %s642
      %p651 = scmp.eq.s32.totalorder %s53, 0
      %p652 = por %p650, %p651
      %p653 = scmp.ne.s32.totalorder %s641, %s642
      %p654 = scmp.eq.s32.totalorder %s54, 5
      %p655 = por %p653, %p654
      %p657 = scmp.ne.s32.totalorder %s642, %s656
      %p658 = scmp.eq.s32.totalorder %s54, 0
      %p659 = por %p657, %p658
      %s661 = sadd.s32 %s660, 1
      %p664 = scmp.eq.s32.totalorder %s48, 5
      %p665 = scmp.ne.s32.totalorder %s660, %s662
      %p666 = scmp.eq.s32.totalorder %s48, 0
      %p667 = por %p665, %p666
      %p668 = scmp.ne.s32.totalorder %s660, %s662
      %p669 = scmp.eq.s32.totalorder %s53, 5
      %p670 = por %p668, %p669
      %p671 = scmp.ne.s32.totalorder %s662, %s663
      %p672 = scmp.eq.s32.totalorder %s53, 0
      %p673 = por %p671, %p672
      %p674 = scmp.ne.s32.totalorder %s662, %s663
      %p675 = scmp.eq.s32.totalorder %s54, 5
      %p676 = por %p674, %p675
      %p678 = scmp.ne.s32.totalorder %s663, %s677
      %p679 = scmp.eq.s32.totalorder %s54, 0
      %p680 = por %p678, %p679
      %s682 = sadd.s32 %s681, 1
      %p685 = scmp.eq.s32.totalorder %s48, 5
      %p686 = scmp.ne.s32.totalorder %s681, %s683
      %p687 = scmp.eq.s32.totalorder %s48, 0
      %p688 = por %p686, %p687
      %p689 = scmp.ne.s32.totalorder %s681, %s683
      %p690 = scmp.eq.s32.totalorder %s53, 5
      %p691 = por %p689, %p690
      %p692 = scmp.ne.s32.totalorder %s683, %s684
      %p693 = scmp.eq.s32.totalorder %s53, 0
      %p694 = por %p692, %p693
      %p695 = scmp.ne.s32.totalorder %s683, %s684
      %p696 = scmp.eq.s32.totalorder %s54, 5
      %p697 = por %p695, %p696
      %p699 = scmp.ne.s32.totalorder %s684, %s698
      %p700 = scmp.eq.s32.totalorder %s54, 0
      %p701 = por %p699, %p700
      %s703 = sadd.s32 %s702, 1
      %p706 = scmp.eq.s32.totalorder %s48, 5
      %p707 = scmp.ne.s32.totalorder %s702, %s704
      %p708 = scmp.eq.s32.totalorder %s48, 0
      %p709 = por %p707, %p708
      %p710 = scmp.ne.s32.totalorder %s702, %s704
      %p711 = scmp.eq.s32.totalorder %s53, 5
      %p712 = por %p710, %p711
      %p713 = scmp.ne.s32.totalorder %s704, %s705
      %p714 = scmp.eq.s32.totalorder %s53, 0
      %p715 = por %p713, %p714
      %p716 = scmp.ne.s32.totalorder %s704, %s705
      %p717 = scmp.eq.s32.totalorder %s54, 5
      %p718 = por %p716, %p717
      %p720 = scmp.ne.s32.totalorder %s705, %s719
      %p721 = scmp.eq.s32.totalorder %s54, 0
      %p722 = por %p720, %p721
      %p723 = scmp.le.s32.totalorder 1, %s48
      %p724 = scmp.lt.s32.totalorder %s48, 7
      %p725 = pnand %p723, %p724
      %p726 = pneg %p725
      // Predicated region
      $region9: #{dummy_gpt_forward.3} parent=5 // pred_check
        _
      $region10: #{dummy_gpt_forward.3} parent=5 // pred_check_branch
        %728 = sbr.rel (%p725) target = $region12
      $region11: #{dummy_gpt_forward.3} parent=5 // pred_region
        %s729 = ssub.s32 %s48, 1
        // Predicated region
        $region13: #{dummy_gpt_forward.3} parent=11 // pred_check
          %p730 = pneg %p69
        $region14: #{dummy_gpt_forward.3} parent=11 // pred_check_branch
          %732 = sbr.rel (%p730) target = $region16
        $region15: #{dummy_gpt_forward.3} parent=11 // pred_region
          _
        $region16: #{dummy_gpt_forward.3} parent=11 // pred_fallthru
          _
        // Predicated region
        $region17: #{dummy_gpt_forward.3} parent=11 // pred_check
          %p733 = pneg %p90
        $region18: #{dummy_gpt_forward.3} parent=11 // pred_check_branch
          %735 = sbr.rel (%p733) target = $region20
        $region19: #{dummy_gpt_forward.3} parent=11 // pred_region
          _
        $region20: #{dummy_gpt_forward.3} parent=11 // pred_fallthru
          _
        // Predicated region
        $region21: #{dummy_gpt_forward.3} parent=11 // pred_check
          %p736 = pneg %p631
        $region22: #{dummy_gpt_forward.3} parent=11 // pred_check_branch
          %738 = sbr.rel (%p736) target = $region24
        $region23: #{dummy_gpt_forward.3} parent=11 // pred_region
          _
        $region24: #{dummy_gpt_forward.3} parent=11 // pred_fallthru
          _
        // Predicated region
        $region25: #{dummy_gpt_forward.3} parent=11 // pred_check
          %p739 = pneg %p652
        $region26: #{dummy_gpt_forward.3} parent=11 // pred_check_branch
          %741 = sbr.rel (%p739) target = $region28
        $region27: #{dummy_gpt_forward.3} parent=11 // pred_region
          _
        $region28: #{dummy_gpt_forward.3} parent=11 // pred_fallthru
          _
        // Predicated region
        $region29: #{dummy_gpt_forward.3} parent=11 // pred_check
          %p742 = pneg %p673
        $region30: #{dummy_gpt_forward.3} parent=11 // pred_check_branch
          %744 = sbr.rel (%p742) target = $region32
        $region31: #{dummy_gpt_forward.3} parent=11 // pred_region
          %746 = vsyncadd [#allocation15], 0
          %s747 = sshll.u32 %s24, 4
          %s748 = int_to_ptr.hbm [resolvable:$true] %s747
          %s749 = sshll.u32 [#allocation16], 4
          %s750 = int_to_ptr.vmem [resolvable:$true] %s749
          %755 = dma.hbm_to_vmem [thread:$0]  %s748, 1024, %s750, [#allocation15], 64, 64, 4
        $region32: #{dummy_gpt_forward.3} parent=11 // pred_fallthru
          _
        // Predicated region
        $region33: #{dummy_gpt_forward.3} parent=11 // pred_check
          %p756 = pneg %p694
        $region34: #{dummy_gpt_forward.3} parent=11 // pred_check_branch
          %758 = sbr.rel (%p756) target = $region36
        $region35: #{dummy_gpt_forward.3} parent=11 // pred_region
          %760 = vsyncadd [#allocation18], 0
          %s762 = sshll.u32 %s25, 4
          %s763 = int_to_ptr.hbm [resolvable:$true] %s762
          %s764 = sshll.u32 [#allocation17], 4
          %s765 = int_to_ptr.vmem [resolvable:$true] %s764
          %767 = dma.hbm_to_vmem [thread:$0]  %s763, 16, %s765, [#allocation18]
        $region36: #{dummy_gpt_forward.3} parent=11 // pred_fallthru
          _
      $region12: #{dummy_gpt_forward.3} parent=5 // pred_fallthru
        _
      %p768 = scmp.lt.s32.totalorder %s48, 6
      // Predicated region
      $region37: #{dummy_gpt_forward.3} parent=5 // pred_check
        %p769 = pneg %p768
      $region38: #{dummy_gpt_forward.3} parent=5 // pred_check_branch
        %771 = sbr.rel (%p769) target = $region40
      $region39: #{dummy_gpt_forward.3} parent=5 // pred_region
        // Predicated region
        $region41: #{dummy_gpt_forward.3} parent=39 // pred_check
          %p772 = pneg %p110
        $region42: #{dummy_gpt_forward.3} parent=39 // pred_check_branch
          %774 = sbr.rel (%p772) target = $region44
        $region43: #{dummy_gpt_forward.3} parent=39 // pred_region
          %p775 = scmp.lt.s32.totalorder %s48, 5
          %s776 = scalar_select %p775, %s48, 5
          %s777 = smul.addr %s776, 48
          %s778 = smul.addr %s777, 4
          %s779 = scalar_lea.vmem %s2, %s778
        $region44: #{dummy_gpt_forward.3} parent=39 // pred_fallthru
          _
        // Predicated region
        $region45: #{dummy_gpt_forward.3} parent=39 // pred_check
          %p780 = pneg %p136
        $region46: #{dummy_gpt_forward.3} parent=39 // pred_check_branch
          %782 = sbr.rel (%p780) target = $region48
        $region47: #{dummy_gpt_forward.3} parent=39 // pred_region
          %p783 = scmp.lt.s32.totalorder %s48, 5
          %s784 = scalar_select %p783, %s48, 5
          %s785 = smul.addr %s784, 3
          %s786 = scalar_lea.vmem %s3, %s785
        $region48: #{dummy_gpt_forward.3} parent=39 // pred_fallthru
          _
        // Predicated region
        $region49: #{dummy_gpt_forward.3} parent=39 // pred_check
          %p787 = pneg %p162
        $region50: #{dummy_gpt_forward.3} parent=39 // pred_check_branch
          %789 = sbr.rel (%p787) target = $region52
        $region51: #{dummy_gpt_forward.3} parent=39 // pred_region
          %s790 = sand.u32 %s152, 1
          %s791 = scalar_lea.sflag [#allocation4], %s790
          %s792 = sand.u32 %s152, 1
          %s793 = smul.addr %s792, 64
          %s794 = scalar_lea.vmem [#allocation3], %s793
          %796 = vsyncadd %s791, 0
          %s797 = smul.addr %s48, 16
          %s798 = smul.addr %s797, 4
          %s799 = scalar_lea.hbm %s4, %s798
          %s800 = sshll.u32 %s799, 4
          %s801 = int_to_ptr.hbm [resolvable:$true] %s800
          %s802 = sshll.u32 %s794, 4
          %s803 = int_to_ptr.vmem [resolvable:$true] %s802
          %808 = dma.hbm_to_vmem [thread:$0]  %s801, 1024, %s803, %s791, 64, 64, 4
        $region52: #{dummy_gpt_forward.3} parent=39 // pred_fallthru
          _
        // Predicated region
        $region53: #{dummy_gpt_forward.3} parent=39 // pred_check
          %p809 = pneg %p188
        $region54: #{dummy_gpt_forward.3} parent=39 // pred_check_branch
          %811 = sbr.rel (%p809) target = $region56
        $region55: #{dummy_gpt_forward.3} parent=39 // pred_region
          %p812 = scmp.lt.s32.totalorder %s48, 5
          %s813 = scalar_select %p812, %s48, 5
          %s814 = scalar_lea.vmem %s5, %s813
        $region56: #{dummy_gpt_forward.3} parent=39 // pred_fallthru
          _
        // Predicated region
        $region57: #{dummy_gpt_forward.3} parent=39 // pred_check
          %p815 = pneg %p214
        $region58: #{dummy_gpt_forward.3} parent=39 // pred_check_branch
          %817 = sbr.rel (%p815) target = $region60
        $region59: #{dummy_gpt_forward.3} parent=39 // pred_region
          %p818 = scmp.lt.s32.totalorder %s48, 5
          %s819 = scalar_select %p818, %s48, 5
          %s820 = scalar_lea.vmem %s6, %s819
        $region60: #{dummy_gpt_forward.3} parent=39 // pred_fallthru
          _
        // Predicated region
        $region61: #{dummy_gpt_forward.3} parent=39 // pred_check
          %p821 = pneg %p240
        $region62: #{dummy_gpt_forward.3} parent=39 // pred_check_branch
          %823 = sbr.rel (%p821) target = $region64
        $region63: #{dummy_gpt_forward.3} parent=39 // pred_region
          %p824 = scmp.lt.s32.totalorder %s48, 5
          %s825 = scalar_select %p824, %s48, 5
          %s826 = scalar_lea.vmem %s7, %s825
        $region64: #{dummy_gpt_forward.3} parent=39 // pred_fallthru
          _
        // Predicated region
        $region65: #{dummy_gpt_forward.3} parent=39 // pred_check
          %p827 = pneg %p266
        $region66: #{dummy_gpt_forward.3} parent=39 // pred_check_branch
          %829 = sbr.rel (%p827) target = $region68
        $region67: #{dummy_gpt_forward.3} parent=39 // pred_region
          %s830 = sand.u32 %s48, 1
          %s831 = scalar_lea.sflag [#allocation6], %s830
          %s832 = sand.u32 %s256, 1
          %s833 = smul.addr %s832, 64
          %s834 = scalar_lea.vmem [#allocation5], %s833
          %836 = vsyncadd %s831, 0
          %s837 = smul.addr %s48, 16
          %s838 = smul.addr %s837, 4
          %s839 = scalar_lea.hbm %s8, %s838
          %s840 = sshll.u32 %s839, 4
          %s841 = int_to_ptr.hbm [resolvable:$true] %s840
          %s842 = sshll.u32 %s834, 4
          %s843 = int_to_ptr.vmem [resolvable:$true] %s842
          %848 = dma.hbm_to_vmem [thread:$0]  %s841, 1024, %s843, %s831, 64, 64, 4
        $region68: #{dummy_gpt_forward.3} parent=39 // pred_fallthru
          _
        // Predicated region
        $region69: #{dummy_gpt_forward.3} parent=39 // pred_check
          %p849 = pneg %p292
        $region70: #{dummy_gpt_forward.3} parent=39 // pred_check_branch
          %851 = sbr.rel (%p849) target = $region72
        $region71: #{dummy_gpt_forward.3} parent=39 // pred_region
          %p852 = scmp.lt.s32.totalorder %s48, 5
          %s853 = scalar_select %p852, %s48, 5
          %s854 = scalar_lea.vmem %s9, %s853
        $region72: #{dummy_gpt_forward.3} parent=39 // pred_fallthru
          _
        // Predicated region
        $region73: #{dummy_gpt_forward.3} parent=39 // pred_check
          %p855 = pneg %p318
        $region74: #{dummy_gpt_forward.3} parent=39 // pred_check_branch
          %857 = sbr.rel (%p855) target = $region76
        $region75: #{dummy_gpt_forward.3} parent=39 // pred_region
          %p858 = scmp.lt.s32.totalorder %s48, 5
          %s859 = scalar_select %p858, %s48, 5
          %s860 = smul.addr %s859, 32
          %s861 = smul.addr %s860, 4
          %s862 = scalar_lea.vmem %s10, %s861
        $region76: #{dummy_gpt_forward.3} parent=39 // pred_fallthru
          _
        // Predicated region
        $region77: #{dummy_gpt_forward.3} parent=39 // pred_check
          %p863 = pneg %p344
        $region78: #{dummy_gpt_forward.3} parent=39 // pred_check_branch
          %865 = sbr.rel (%p863) target = $region80
        $region79: #{dummy_gpt_forward.3} parent=39 // pred_region
          %p866 = scmp.lt.s32.totalorder %s48, 5
          %s867 = scalar_select %p866, %s48, 5
          %s868 = smul.addr %s867, 2
          %s869 = scalar_lea.vmem %s11, %s868
        $region80: #{dummy_gpt_forward.3} parent=39 // pred_fallthru
          _
        // Predicated region
        $region81: #{dummy_gpt_forward.3} parent=39 // pred_check
          %p870 = pneg %p370
        $region82: #{dummy_gpt_forward.3} parent=39 // pred_check_branch
          %872 = sbr.rel (%p870) target = $region84
        $region83: #{dummy_gpt_forward.3} parent=39 // pred_region
          %s873 = sand.u32 %s48, 1
          %s874 = scalar_lea.sflag [#allocation6], %s873
          %s875 = sand.u32 %s360, 1
          %s876 = smul.addr %s875, 64
          %s877 = scalar_lea.vmem [#allocation7], %s876
          %879 = vsyncadd %s874, 0
          %s880 = smul.addr %s48, 16
          %s881 = smul.addr %s880, 4
          %s882 = scalar_lea.hbm %s12, %s881
          %s883 = sshll.u32 %s882, 4
          %s884 = int_to_ptr.hbm [resolvable:$true] %s883
          %s885 = sshll.u32 %s877, 4
          %s886 = int_to_ptr.vmem [resolvable:$true] %s885
          %891 = dma.hbm_to_vmem [thread:$0]  %s884, 1024, %s886, %s874, 64, 64, 4
        $region84: #{dummy_gpt_forward.3} parent=39 // pred_fallthru
          _
        // Predicated region
        $region85: #{dummy_gpt_forward.3} parent=39 // pred_check
          %p892 = pneg %p396
        $region86: #{dummy_gpt_forward.3} parent=39 // pred_check_branch
          %894 = sbr.rel (%p892) target = $region88
        $region87: #{dummy_gpt_forward.3} parent=39 // pred_region
          %p895 = scmp.lt.s32.totalorder %s48, 5
          %s896 = scalar_select %p895, %s48, 5
          %s897 = scalar_lea.vmem %s13, %s896
        $region88: #{dummy_gpt_forward.3} parent=39 // pred_fallthru
          _
        // Predicated region
        $region89: #{dummy_gpt_forward.3} parent=39 // pred_check
          %p898 = pneg %p422
        $region90: #{dummy_gpt_forward.3} parent=39 // pred_check_branch
          %900 = sbr.rel (%p898) target = $region92
        $region91: #{dummy_gpt_forward.3} parent=39 // pred_region
          %s901 = sand.u32 %s48, 1
          %s902 = scalar_lea.sflag [#allocation9], %s901
          %s903 = sand.u32 %s412, 1
          %s904 = scalar_lea.vmem [#allocation8], %s903
          %906 = vsyncadd %s902, 0
          %s907 = scalar_lea.hbm %s14, %s48
          %s909 = sshll.u32 %s907, 4
          %s910 = int_to_ptr.hbm [resolvable:$true] %s909
          %s911 = sshll.u32 %s904, 4
          %s912 = int_to_ptr.vmem [resolvable:$true] %s911
          %914 = dma.hbm_to_vmem [thread:$0]  %s910, 16, %s912, %s902
        $region92: #{dummy_gpt_forward.3} parent=39 // pred_fallthru
          _
        // Predicated region
        $region93: #{dummy_gpt_forward.3} parent=39 // pred_check
          %p915 = pneg %p448
        $region94: #{dummy_gpt_forward.3} parent=39 // pred_check_branch
          %917 = sbr.rel (%p915) target = $region96
        $region95: #{dummy_gpt_forward.3} parent=39 // pred_region
          %s918 = sand.u32 %s48, 1
          %s919 = scalar_lea.sflag [#allocation9], %s918
          %s920 = sand.u32 %s438, 1
          %s921 = scalar_lea.vmem [#allocation10], %s920
          %923 = vsyncadd %s919, 0
          %s924 = scalar_lea.hbm %s15, %s48
          %s926 = sshll.u32 %s924, 4
          %s927 = int_to_ptr.hbm [resolvable:$true] %s926
          %s928 = sshll.u32 %s921, 4
          %s929 = int_to_ptr.vmem [resolvable:$true] %s928
          %931 = dma.hbm_to_vmem [thread:$0]  %s927, 16, %s929, %s919
        $region96: #{dummy_gpt_forward.3} parent=39 // pred_fallthru
          _
        // Predicated region
        $region97: #{dummy_gpt_forward.3} parent=39 // pred_check
          %p932 = pneg %p474
        $region98: #{dummy_gpt_forward.3} parent=39 // pred_check_branch
          %934 = sbr.rel (%p932) target = $region100
        $region99: #{dummy_gpt_forward.3} parent=39 // pred_region
          %p935 = scmp.lt.s32.totalorder %s48, 5
          %s936 = scalar_select %p935, %s48, 5
          %s937 = smul.addr %s936, 256
          %s938 = smul.addr %s937, 4
          %s939 = scalar_lea.vmem %s16, %s938
        $region100: #{dummy_gpt_forward.3} parent=39 // pred_fallthru
          _
        // Predicated region
        $region101: #{dummy_gpt_forward.3} parent=39 // pred_check
          %p940 = pneg %p500
        $region102: #{dummy_gpt_forward.3} parent=39 // pred_check_branch
          %942 = sbr.rel (%p940) target = $region104
        $region103: #{dummy_gpt_forward.3} parent=39 // pred_region
          %p943 = scmp.lt.s32.totalorder %s48, 5
          %s944 = scalar_select %p943, %s48, 5
          %s945 = smul.addr %s944, 16
          %s946 = scalar_lea.vmem %s17, %s945
        $region104: #{dummy_gpt_forward.3} parent=39 // pred_fallthru
          _
        // Predicated region
        $region105: #{dummy_gpt_forward.3} parent=39 // pred_check
          %p947 = pneg %p526
        $region106: #{dummy_gpt_forward.3} parent=39 // pred_check_branch
          %949 = sbr.rel (%p947) target = $region108
        $region107: #{dummy_gpt_forward.3} parent=39 // pred_region
          %p950 = scmp.lt.s32.totalorder %s48, 5
          %s951 = scalar_select %p950, %s48, 5
          %s952 = smul.addr %s951, 256
          %s953 = smul.addr %s952, 4
          %s954 = scalar_lea.vmem %s18, %s953
        $region108: #{dummy_gpt_forward.3} parent=39 // pred_fallthru
          _
        // Predicated region
        $region109: #{dummy_gpt_forward.3} parent=39 // pred_check
          %p955 = pneg %p552
        $region110: #{dummy_gpt_forward.3} parent=39 // pred_check_branch
          %957 = sbr.rel (%p955) target = $region112
        $region111: #{dummy_gpt_forward.3} parent=39 // pred_region
          %s958 = sand.u32 %s48, 1
          %s959 = scalar_lea.sflag [#allocation12], %s958
          %s960 = sand.u32 %s542, 1
          %s961 = scalar_lea.vmem [#allocation11], %s960
          %963 = vsyncadd %s959, 0
          %s964 = scalar_lea.hbm %s19, %s48
          %s966 = sshll.u32 %s964, 4
          %s967 = int_to_ptr.hbm [resolvable:$true] %s966
          %s968 = sshll.u32 %s961, 4
          %s969 = int_to_ptr.vmem [resolvable:$true] %s968
          %971 = dma.hbm_to_vmem [thread:$0]  %s967, 16, %s969, %s959
        $region112: #{dummy_gpt_forward.3} parent=39 // pred_fallthru
          _
        // Predicated region
        $region113: #{dummy_gpt_forward.3} parent=39 // pred_check
          %p972 = pneg %p578
        $region114: #{dummy_gpt_forward.3} parent=39 // pred_check_branch
          %974 = sbr.rel (%p972) target = $region116
        $region115: #{dummy_gpt_forward.3} parent=39 // pred_region
          %s975 = sand.u32 %s48, 1
          %s976 = scalar_lea.sflag [#allocation12], %s975
          %s977 = sand.u32 %s568, 1
          %s978 = scalar_lea.vmem [#allocation13], %s977
          %980 = vsyncadd %s976, 0
          %s981 = scalar_lea.hbm %s20, %s48
          %s983 = sshll.u32 %s981, 4
          %s984 = int_to_ptr.hbm [resolvable:$true] %s983
          %s985 = sshll.u32 %s978, 4
          %s986 = int_to_ptr.vmem [resolvable:$true] %s985
          %988 = dma.hbm_to_vmem [thread:$0]  %s984, 16, %s986, %s976
        $region116: #{dummy_gpt_forward.3} parent=39 // pred_fallthru
          _
        // Predicated region
        $region117: #{dummy_gpt_forward.3} parent=39 // pred_check
          %p989 = pneg %p604
        $region118: #{dummy_gpt_forward.3} parent=39 // pred_check_branch
          %991 = sbr.rel (%p989) target = $region120
        $region119: #{dummy_gpt_forward.3} parent=39 // pred_region
          %s992 = sand.u32 %s48, 1
          %s993 = scalar_lea.sflag [#allocation15], %s992
          %s994 = sand.u32 %s594, 1
          %s995 = scalar_lea.vmem [#allocation14], %s994
          %997 = vsyncadd %s993, 0
          %s998 = scalar_lea.hbm %s21, %s48
          %s1000 = sshll.u32 %s998, 4
          %s1001 = int_to_ptr.hbm [resolvable:$true] %s1000
          %s1002 = sshll.u32 %s995, 4
          %s1003 = int_to_ptr.vmem [resolvable:$true] %s1002
          %1005 = dma.hbm_to_vmem [thread:$0]  %s1001, 16, %s1003, %s993
        $region120: #{dummy_gpt_forward.3} parent=39 // pred_fallthru
          _
      $region40: #{dummy_gpt_forward.3} parent=5 // pred_fallthru
        _
      %p1006 = scmp.le.s32.totalorder 1, %s48
      %p1007 = scmp.lt.s32.totalorder %s48, 7
      %p1008 = pnand %p1006, %p1007
      %p1009 = pneg %p1008
      // Predicated region
      $region121: #{dummy_gpt_forward.3} parent=5 // pred_check
        _
      $region122: #{dummy_gpt_forward.3} parent=5 // pred_check_branch
        %1011 = sbr.rel (%p1008) target = $region124
      $region123: #{dummy_gpt_forward.3} parent=5 // pred_region
        %s1012 = ssub.s32 %s48, 1
        %s1013 = sand.u32 %s155, 1
        %s1014 = scalar_lea.sflag [#allocation4], %s1013
        %s1015 = sand.u32 %s155, 1
        %s1016 = smul.addr %s1015, 64
        %s1017 = scalar_lea.vmem [#allocation3], %s1016
        // Predicated region
        $region125: #{dummy_gpt_forward.3} parent=123 // pred_check
          %p1018 = pneg %p168
        $region126: #{dummy_gpt_forward.3} parent=123 // pred_check_branch
          %1020 = sbr.rel (%p1018) target = $region128
        $region127: #{dummy_gpt_forward.3} parent=123 // pred_region
          %1022 = dma.done %s1014, 1024
        $region128: #{dummy_gpt_forward.3} parent=123 // pred_fallthru
          _
        %s1023 = sand.u32 %s53, 1
        %s1024 = scalar_lea.sflag [#allocation6], %s1023
        %s1025 = sand.u32 %s259, 1
        %s1026 = smul.addr %s1025, 64
        %s1027 = scalar_lea.vmem [#allocation5], %s1026
        // Predicated region
        $region129: #{dummy_gpt_forward.3} parent=123 // pred_check
          %p1028 = pneg %p272
        $region130: #{dummy_gpt_forward.3} parent=123 // pred_check_branch
          %1030 = sbr.rel (%p1028) target = $region132
        $region131: #{dummy_gpt_forward.3} parent=123 // pred_region
          %1032 = dma.done %s1024, 1024
        $region132: #{dummy_gpt_forward.3} parent=123 // pred_fallthru
          _
        %s1033 = sand.u32 %s53, 1
        %s1034 = scalar_lea.sflag [#allocation6], %s1033
        %s1035 = sand.u32 %s363, 1
        %s1036 = smul.addr %s1035, 64
        %s1037 = scalar_lea.vmem [#allocation7], %s1036
        // Predicated region
        $region133: #{dummy_gpt_forward.3} parent=123 // pred_check
          %p1038 = pneg %p376
        $region134: #{dummy_gpt_forward.3} parent=123 // pred_check_branch
          %1040 = sbr.rel (%p1038) target = $region136
        $region135: #{dummy_gpt_forward.3} parent=123 // pred_region
          %1042 = dma.done %s1034, 1024
        $region136: #{dummy_gpt_forward.3} parent=123 // pred_fallthru
          _
        %s1043 = sand.u32 %s53, 1
        %s1044 = scalar_lea.sflag [#allocation9], %s1043
        %s1045 = sand.u32 %s415, 1
        %s1046 = scalar_lea.vmem [#allocation8], %s1045
        // Predicated region
        $region137: #{dummy_gpt_forward.3} parent=123 // pred_check
          %p1047 = pneg %p428
        $region138: #{dummy_gpt_forward.3} parent=123 // pred_check_branch
          %1049 = sbr.rel (%p1047) target = $region140
        $region139: #{dummy_gpt_forward.3} parent=123 // pred_region
          %1051 = dma.done %s1044, 16
        $region140: #{dummy_gpt_forward.3} parent=123 // pred_fallthru
          _
        %s1052 = sand.u32 %s53, 1
        %s1053 = scalar_lea.sflag [#allocation9], %s1052
        %s1054 = sand.u32 %s441, 1
        %s1055 = scalar_lea.vmem [#allocation10], %s1054
        // Predicated region
        $region141: #{dummy_gpt_forward.3} parent=123 // pred_check
          %p1056 = pneg %p454
        $region142: #{dummy_gpt_forward.3} parent=123 // pred_check_branch
          %1058 = sbr.rel (%p1056) target = $region144
        $region143: #{dummy_gpt_forward.3} parent=123 // pred_region
          %1060 = dma.done %s1053, 16
        $region144: #{dummy_gpt_forward.3} parent=123 // pred_fallthru
          _
        %s1061 = sand.u32 %s53, 1
        %s1062 = scalar_lea.sflag [#allocation12], %s1061
        %s1063 = sand.u32 %s545, 1
        %s1064 = scalar_lea.vmem [#allocation11], %s1063
        // Predicated region
        $region145: #{dummy_gpt_forward.3} parent=123 // pred_check
          %p1065 = pneg %p558
        $region146: #{dummy_gpt_forward.3} parent=123 // pred_check_branch
          %1067 = sbr.rel (%p1065) target = $region148
        $region147: #{dummy_gpt_forward.3} parent=123 // pred_region
          %1069 = dma.done %s1062, 16
        $region148: #{dummy_gpt_forward.3} parent=123 // pred_fallthru
          _
        %s1070 = sand.u32 %s53, 1
        %s1071 = scalar_lea.sflag [#allocation12], %s1070
        %s1072 = sand.u32 %s571, 1
        %s1073 = scalar_lea.vmem [#allocation13], %s1072
        // Predicated region
        $region149: #{dummy_gpt_forward.3} parent=123 // pred_check
          %p1074 = pneg %p584
        $region150: #{dummy_gpt_forward.3} parent=123 // pred_check_branch
          %1076 = sbr.rel (%p1074) target = $region152
        $region151: #{dummy_gpt_forward.3} parent=123 // pred_region
          %1078 = dma.done %s1071, 16
        $region152: #{dummy_gpt_forward.3} parent=123 // pred_fallthru
          _
        %s1079 = sand.u32 %s53, 1
        %s1080 = scalar_lea.sflag [#allocation15], %s1079
        %s1081 = sand.u32 %s597, 1
        %s1082 = scalar_lea.vmem [#allocation14], %s1081
        // Predicated region
        $region153: #{dummy_gpt_forward.3} parent=123 // pred_check
          %p1083 = pneg %p610
        $region154: #{dummy_gpt_forward.3} parent=123 // pred_check_branch
          %1085 = sbr.rel (%p1083) target = $region156
        $region155: #{dummy_gpt_forward.3} parent=123 // pred_region
          %1087 = dma.done %s1080, 16
        $region156: #{dummy_gpt_forward.3} parent=123 // pred_fallthru
          _
        // Predicated region
        $region157: #{dummy_gpt_forward.3} parent=123 // pred_check
          %p1088 = pneg %p673
        $region158: #{dummy_gpt_forward.3} parent=123 // pred_check_branch
          %1090 = sbr.rel (%p1088) target = $region160
        $region159: #{dummy_gpt_forward.3} parent=123 // pred_region
          %1092 = dma.done [#allocation15], 1024
        $region160: #{dummy_gpt_forward.3} parent=123 // pred_fallthru
          _
        // Predicated region
        $region161: #{dummy_gpt_forward.3} parent=123 // pred_check
          %p1093 = pneg %p694
        $region162: #{dummy_gpt_forward.3} parent=123 // pred_check_branch
          %1095 = sbr.rel (%p1093) target = $region164
        $region163: #{dummy_gpt_forward.3} parent=123 // pred_region
          %1097 = dma.done [#allocation18], 16
        $region164: #{dummy_gpt_forward.3} parent=123 // pred_fallthru
          _
        %p1098 = pneg %p69
        %p1099 = pneg %p66
        %p1100 = pneg %p90
        %p1101 = pneg %p87
        %p1102 = scmp.lt.s32.totalorder %s53, 5
        %s1103 = scalar_select %p1102, %s53, 5
        %s1104 = smul.addr %s1103, 48
        %s1105 = smul.addr %s1104, 4
        %s1106 = scalar_lea.vmem %s2, %s1105
        %p1107 = pneg %p116
        %p1108 = pneg %p113
        %p1109 = scmp.lt.s32.totalorder %s53, 5
        %s1110 = scalar_select %p1109, %s53, 5
        %s1111 = smul.addr %s1110, 3
        %s1112 = scalar_lea.vmem %s3, %s1111
        %p1113 = pneg %p142
        %p1114 = pneg %p139
        %s1115 = sand.u32 %s155, 1
        %s1116 = scalar_lea.sflag [#allocation4], %s1115
        %s1117 = sand.u32 %s155, 1
        %s1118 = smul.addr %s1117, 64
        %s1119 = scalar_lea.vmem [#allocation3], %s1118
        %p1120 = pneg %p168
        %p1121 = pneg %p165
        %p1122 = scmp.lt.s32.totalorder %s53, 5
        %s1123 = scalar_select %p1122, %s53, 5
        %s1124 = scalar_lea.vmem %s5, %s1123
        %p1125 = pneg %p194
        %p1126 = pneg %p191
        %p1127 = scmp.lt.s32.totalorder %s53, 5
        %s1128 = scalar_select %p1127, %s53, 5
        %s1129 = scalar_lea.vmem %s6, %s1128
        %p1130 = pneg %p220
        %p1131 = pneg %p217
        %p1132 = scmp.lt.s32.totalorder %s53, 5
        %s1133 = scalar_select %p1132, %s53, 5
        %s1134 = scalar_lea.vmem %s7, %s1133
        %p1135 = pneg %p246
        %p1136 = pneg %p243
        %s1137 = sand.u32 %s53, 1
        %s1138 = scalar_lea.sflag [#allocation6], %s1137
        %s1139 = sand.u32 %s259, 1
        %s1140 = smul.addr %s1139, 64
        %s1141 = scalar_lea.vmem [#allocation5], %s1140
        %p1142 = pneg %p272
        %p1143 = pneg %p269
        %p1144 = scmp.lt.s32.totalorder %s53, 5
        %s1145 = scalar_select %p1144, %s53, 5
        %s1146 = scalar_lea.vmem %s9, %s1145
        %p1147 = pneg %p298
        %p1148 = pneg %p295
        %p1149 = scmp.lt.s32.totalorder %s53, 5
        %s1150 = scalar_select %p1149, %s53, 5
        %s1151 = smul.addr %s1150, 32
        %s1152 = smul.addr %s1151, 4
        %s1153 = scalar_lea.vmem %s10, %s1152
        %p1154 = pneg %p324
        %p1155 = pneg %p321
        %p1156 = scmp.lt.s32.totalorder %s53, 5
        %s1157 = scalar_select %p1156, %s53, 5
        %s1158 = smul.addr %s1157, 2
        %s1159 = scalar_lea.vmem %s11, %s1158
        %p1160 = pneg %p350
        %p1161 = pneg %p347
        %s1162 = sand.u32 %s53, 1
        %s1163 = scalar_lea.sflag [#allocation6], %s1162
        %s1164 = sand.u32 %s363, 1
        %s1165 = smul.addr %s1164, 64
        %s1166 = scalar_lea.vmem [#allocation7], %s1165
        %p1167 = pneg %p376
        %p1168 = pneg %p373
        %p1169 = scmp.lt.s32.totalorder %s53, 5
        %s1170 = scalar_select %p1169, %s53, 5
        %s1171 = scalar_lea.vmem %s13, %s1170
        %p1172 = pneg %p402
        %p1173 = pneg %p399
        %s1174 = sand.u32 %s53, 1
        %s1175 = scalar_lea.sflag [#allocation9], %s1174
        %s1176 = sand.u32 %s415, 1
        %s1177 = scalar_lea.vmem [#allocation8], %s1176
        %p1178 = pneg %p428
        %p1179 = pneg %p425
        %s1180 = sand.u32 %s53, 1
        %s1181 = scalar_lea.sflag [#allocation9], %s1180
        %s1182 = sand.u32 %s441, 1
        %s1183 = scalar_lea.vmem [#allocation10], %s1182
        %p1184 = pneg %p454
        %p1185 = pneg %p451
        %p1186 = scmp.lt.s32.totalorder %s53, 5
        %s1187 = scalar_select %p1186, %s53, 5
        %s1188 = smul.addr %s1187, 256
        %s1189 = smul.addr %s1188, 4
        %s1190 = scalar_lea.vmem %s16, %s1189
        %p1191 = pneg %p480
        %p1192 = pneg %p477
        %p1193 = scmp.lt.s32.totalorder %s53, 5
        %s1194 = scalar_select %p1193, %s53, 5
        %s1195 = smul.addr %s1194, 16
        %s1196 = scalar_lea.vmem %s17, %s1195
        %p1197 = pneg %p506
        %p1198 = pneg %p503
        %p1199 = scmp.lt.s32.totalorder %s53, 5
        %s1200 = scalar_select %p1199, %s53, 5
        %s1201 = smul.addr %s1200, 256
        %s1202 = smul.addr %s1201, 4
        %s1203 = scalar_lea.vmem %s18, %s1202
        %p1204 = pneg %p532
        %p1205 = pneg %p529
        %s1206 = sand.u32 %s53, 1
        %s1207 = scalar_lea.sflag [#allocation12], %s1206
        %s1208 = sand.u32 %s545, 1
        %s1209 = scalar_lea.vmem [#allocation11], %s1208
        %p1210 = pneg %p558
        %p1211 = pneg %p555
        %s1212 = sand.u32 %s53, 1
        %s1213 = scalar_lea.sflag [#allocation12], %s1212
        %s1214 = sand.u32 %s571, 1
        %s1215 = scalar_lea.vmem [#allocation13], %s1214
        %p1216 = pneg %p584
        %p1217 = pneg %p581
        %s1218 = sand.u32 %s53, 1
        %s1219 = scalar_lea.sflag [#allocation15], %s1218
        %s1220 = sand.u32 %s597, 1
        %s1221 = scalar_lea.vmem [#allocation14], %s1220
        %p1222 = pneg %p610
        %p1223 = pneg %p607
        %p1224 = pneg %p631
        %p1225 = pneg %p628
        %p1226 = pneg %p652
        %p1227 = pneg %p649
        %p1228 = pneg %p673
        %p1229 = pneg %p670
        %p1230 = pneg %p694
        %p1231 = pneg %p691
        %p1232 = pneg %p715
        %p1233 = pneg %p712
        %p1234 = scmp.lt.s32.totalorder %s53, 5
        %s1235 = scalar_select %p1234, %s53, 5
        %s1236 = smul.addr %s1235, 48
        %s1237 = smul.addr %s1236, 4
        %s1238 = scalar_lea.vmem %s2, %s1237
        %p1239 = scmp.lt.s32.totalorder %s53, 5
        %s1240 = scalar_select %p1239, %s53, 5
        %s1241 = smul.addr %s1240, 3
        %s1242 = scalar_lea.vmem %s3, %s1241
        %p1243 = scmp.lt.s32.totalorder %s53, 5
        %s1244 = scalar_select %p1243, %s53, 5
        %s1245 = scalar_lea.vmem %s5, %s1244
        %p1246 = scmp.lt.s32.totalorder %s53, 5
        %s1247 = scalar_select %p1246, %s53, 5
        %s1248 = scalar_lea.vmem %s6, %s1247
        %p1249 = scmp.lt.s32.totalorder %s53, 5
        %s1250 = scalar_select %p1249, %s53, 5
        %s1251 = scalar_lea.vmem %s7, %s1250
        %p1252 = scmp.lt.s32.totalorder %s53, 5
        %s1253 = scalar_select %p1252, %s53, 5
        %s1254 = scalar_lea.vmem %s9, %s1253
        %p1255 = scmp.lt.s32.totalorder %s53, 5
        %s1256 = scalar_select %p1255, %s53, 5
        %s1257 = smul.addr %s1256, 32
        %s1258 = smul.addr %s1257, 4
        %s1259 = scalar_lea.vmem %s10, %s1258
        %p1260 = scmp.lt.s32.totalorder %s53, 5
        %s1261 = scalar_select %p1260, %s53, 5
        %s1262 = smul.addr %s1261, 2
        %s1263 = scalar_lea.vmem %s11, %s1262
        %p1264 = scmp.lt.s32.totalorder %s53, 5
        %s1265 = scalar_select %p1264, %s53, 5
        %s1266 = scalar_lea.vmem %s13, %s1265
        %p1267 = scmp.lt.s32.totalorder %s53, 5
        %s1268 = scalar_select %p1267, %s53, 5
        %s1269 = smul.addr %s1268, 256
        %s1270 = smul.addr %s1269, 4
        %s1271 = scalar_lea.vmem %s16, %s1270
        %p1272 = scmp.lt.s32.totalorder %s53, 5
        %s1273 = scalar_select %p1272, %s53, 5
        %s1274 = smul.addr %s1273, 16
        %s1275 = scalar_lea.vmem %s17, %s1274
        %p1276 = scmp.lt.s32.totalorder %s53, 5
        %s1277 = scalar_select %p1276, %s53, 5
        %s1278 = smul.addr %s1277, 256
        %s1279 = smul.addr %s1278, 4
        %s1280 = scalar_lea.vmem %s18, %s1279
        %p1282 = scmp.eq.s32.totalorder %s53, 0
        // Predicated region
        $region165: #{dummy_gpt_forward.3} parent=123 // pred_check
          %p1283 = pneg %p1282
        $region166: #{dummy_gpt_forward.3} parent=123 // pred_check_branch
          %1285 = sbr.rel (%p1283) target = $region168
        $region167: #{dummy_gpt_forward.3} parent=123 // pred_region
          %v1286 = vld [vmem:[%s0] sm:$0xff]
          %v1287 = vld [vmem:[%s0 + $0x8] sm:$0xff]
          %1288 = vst [vmem:[#allocation2] sm:$0xff] %v1286
          %1289 = vst [vmem:[#allocation2 + $0x8] sm:$0xff] %v1287
        $region168: #{dummy_gpt_forward.3} parent=123 // pred_fallthru
          _
        %v1290 = vld [vmem:[#allocation2] sm:$0xff]
        %v1291 = vld [vmem:[#allocation2 + $0x8] sm:$0xff]
        %v1292 = vpack.c.bf16 %v1291, %v1290
        %v1293 = vld [vmem:[%s1] sm:$0xff]
        %v1294 = vld [vmem:[%s1 + $0x8] sm:$0xff]
        %v1295 = vpack.c.bf16 %v1294, %v1293
        %v1296 = vld [vmem:[%s1238] sm:$0xff]
        %v1297 = vld [vmem:[%s1238 + $0x8] sm:$0xf]
        %v1298 = vld [vmem:[%s1238 + $0xc] sm:$0xff]
        %v1299 = vld [vmem:[%s1238 + $0x14] sm:$0xf]
        %v1300 = vld [vmem:[%s1238 + $0x18] sm:$0xff]
        %v1301 = vld [vmem:[%s1238 + $0x20] sm:$0xf]
        %v1302 = vld [vmem:[%s1238 + $0x24] sm:$0xff]
        %v1303 = vld [vmem:[%s1238 + $0x2c] sm:$0xf]
        %v1304 = vld [vmem:[%s1238 + $0x30] sm:$0xff]
        %v1305 = vld [vmem:[%s1238 + $0x38] sm:$0xf]
        %v1306 = vld [vmem:[%s1238 + $0x3c] sm:$0xff]
        %v1307 = vld [vmem:[%s1238 + $0x44] sm:$0xf]
        %v1308 = vld [vmem:[%s1238 + $0x48] sm:$0xff]
        %v1309 = vld [vmem:[%s1238 + $0x50] sm:$0xf]
        %v1310 = vld [vmem:[%s1238 + $0x54] sm:$0xff]
        %v1311 = vld [vmem:[%s1238 + $0x5c] sm:$0xf]
        %v1312 = vld [vmem:[%s1238 + $0x60] sm:$0xff]
        %v1313 = vld [vmem:[%s1238 + $0x68] sm:$0xf]
        %v1314 = vld [vmem:[%s1238 + $0x6c] sm:$0xff]
        %v1315 = vld [vmem:[%s1238 + $0x74] sm:$0xf]
        %v1316 = vld [vmem:[%s1238 + $0x78] sm:$0xff]
        %v1317 = vld [vmem:[%s1238 + $0x80] sm:$0xf]
        %v1318 = vld [vmem:[%s1238 + $0x84] sm:$0xff]
        %v1319 = vld [vmem:[%s1238 + $0x8c] sm:$0xf]
        %v1320 = vld [vmem:[%s1238 + $0x90] sm:$0xff]
        %v1321 = vld [vmem:[%s1238 + $0x98] sm:$0xf]
        %v1322 = vld [vmem:[%s1238 + $0x9c] sm:$0xff]
        %v1323 = vld [vmem:[%s1238 + $0xa4] sm:$0xf]
        %v1324 = vld [vmem:[%s1238 + $0xa8] sm:$0xff]
        %v1325 = vld [vmem:[%s1238 + $0xb0] sm:$0xf]
        %v1326 = vld [vmem:[%s1238 + $0xb4] sm:$0xff]
        %v1327 = vld [vmem:[%s1238 + $0xbc] sm:$0xf]
        %v1328 = vld [vmem:[%s1242] sm:$0x7]
        %v1330 = vperm.slane %v1328, 0
        %v1331 = vperm.slane %v1328, 1
        %v1332 = vperm.slane %v1328, 2
        %v1368 = vunpack.c.l.b16 %v1296
        %v1369 = vunpack.c.h.b16 %v1296
        %v1370 = vunpack.c.l.b16 %v1297
        %v1371 = vunpack.c.l.b16 %v1298
        %v1372 = vunpack.c.h.b16 %v1298
        %v1373 = vunpack.c.l.b16 %v1299
        %v1374 = vunpack.c.l.b16 %v1300
        %v1375 = vunpack.c.h.b16 %v1300
        %v1376 = vunpack.c.l.b16 %v1301
        %v1377 = vunpack.c.l.b16 %v1302
        %v1378 = vunpack.c.h.b16 %v1302
        %v1379 = vunpack.c.l.b16 %v1303
        %v1380 = vunpack.c.l.b16 %v1304
        %v1381 = vunpack.c.h.b16 %v1304
        %v1382 = vunpack.c.l.b16 %v1305
        %v1383 = vunpack.c.l.b16 %v1306
        %v1384 = vunpack.c.h.b16 %v1306
        %v1385 = vunpack.c.l.b16 %v1307
        %v1386 = vunpack.c.l.b16 %v1308
        %v1387 = vunpack.c.h.b16 %v1308
        %v1388 = vunpack.c.l.b16 %v1309
        %v1389 = vunpack.c.l.b16 %v1310
        %v1390 = vunpack.c.h.b16 %v1310
        %v1391 = vunpack.c.l.b16 %v1311
        %v1392 = vunpack.c.l.b16 %v1312
        %v1393 = vunpack.c.h.b16 %v1312
        %v1394 = vunpack.c.l.b16 %v1313
        %v1395 = vunpack.c.l.b16 %v1314
        %v1396 = vunpack.c.h.b16 %v1314
        %v1397 = vunpack.c.l.b16 %v1315
        %v1398 = vunpack.c.l.b16 %v1316
        %v1399 = vunpack.c.h.b16 %v1316
        %v1400 = vunpack.c.l.b16 %v1317
        %v1401 = vunpack.c.l.b16 %v1318
        %v1402 = vunpack.c.h.b16 %v1318
        %v1403 = vunpack.c.l.b16 %v1319
        %v1404 = vunpack.c.l.b16 %v1320
        %v1405 = vunpack.c.h.b16 %v1320
        %v1406 = vunpack.c.l.b16 %v1321
        %v1407 = vunpack.c.l.b16 %v1322
        %v1408 = vunpack.c.h.b16 %v1322
        %v1409 = vunpack.c.l.b16 %v1323
        %v1410 = vunpack.c.l.b16 %v1324
        %v1411 = vunpack.c.h.b16 %v1324
        %v1412 = vunpack.c.l.b16 %v1325
        %v1413 = vunpack.c.l.b16 %v1326
        %v1414 = vunpack.c.h.b16 %v1326
        %v1415 = vunpack.c.l.b16 %v1327
        %v1416 = vpack.c.b16 %v1371, %v1368
        %v1417 = vpack.c.b16 %v1372, %v1369
        %v1418 = vpack.c.b16 %v1373, %v1370
        %v1419 = vpack.c.b16 %v1377, %v1374
        %v1420 = vpack.c.b16 %v1378, %v1375
        %v1421 = vpack.c.b16 %v1379, %v1376
        %v1422 = vpack.c.b16 %v1383, %v1380
        %v1423 = vpack.c.b16 %v1384, %v1381
        %v1424 = vpack.c.b16 %v1385, %v1382
        %v1425 = vpack.c.b16 %v1389, %v1386
        %v1426 = vpack.c.b16 %v1390, %v1387
        %v1427 = vpack.c.b16 %v1391, %v1388
        %v1428 = vpack.c.b16 %v1395, %v1392
        %v1429 = vpack.c.b16 %v1396, %v1393
        %v1430 = vpack.c.b16 %v1397, %v1394
        %v1431 = vpack.c.b16 %v1401, %v1398
        %v1432 = vpack.c.b16 %v1402, %v1399
        %v1433 = vpack.c.b16 %v1403, %v1400
        %v1434 = vpack.c.b16 %v1407, %v1404
        %v1435 = vpack.c.b16 %v1408, %v1405
        %v1436 = vpack.c.b16 %v1409, %v1406
        %v1437 = vpack.c.b16 %v1413, %v1410
        %v1438 = vpack.c.b16 %v1414, %v1411
        %v1439 = vpack.c.b16 %v1415, %v1412
        %1464 = vmatpush.bf16.msra.mxu0 %v1437
        %1465 = vmatpush.bf16.msra.mxu0 %v1434
        %1466 = vmatpush.bf16.msra.mxu0 %v1431
        %1467 = vmatpush.bf16.msra.mxu0 %v1428
        %1468 = vmatpush.bf16.msra.mxu0 %v1425
        %1469 = vmatpush.bf16.msra.mxu0 %v1422
        %1470 = vmatpush.bf16.msra.mxu0 %v1419
        %1471 = vmatpush.bf16.msra.mxu0 %v1416
        %1472 = vmatmul.bf16.gmra.mxu0 %v1292
        %v1473 = vpop.f32.mrf.mxu0
        %v1474 = vadd.f32 %v1330, %v1473
        %v1475 = vpop.f32.mrf.mxu0
        %v1476 = vadd.f32 %v1330, %v1475
        %1477 = vdwg.mxu0
        %1478 = vmatpush.bf16.msra.mxu0 %v1438
        %1479 = vmatpush.bf16.msra.mxu0 %v1435
        %1480 = vmatpush.bf16.msra.mxu0 %v1432
        %1481 = vmatpush.bf16.msra.mxu0 %v1429
        %1482 = vmatpush.bf16.msra.mxu0 %v1426
        %1483 = vmatpush.bf16.msra.mxu0 %v1423
        %1484 = vmatpush.bf16.msra.mxu0 %v1420
        %1485 = vmatpush.bf16.msra.mxu0 %v1417
        %1486 = vmatmul.bf16.gmra.mxu0 %v1292
        %v1487 = vpop.f32.mrf.mxu0
        %v1488 = vadd.f32 %v1331, %v1487
        %v1489 = vpop.f32.mrf.mxu0
        %v1490 = vadd.f32 %v1331, %v1489
        %1491 = vdwg.mxu0
        %1492 = vmatpush.bf16.msra.mxu0 %v1439
        %1493 = vmatpush.bf16.msra.mxu0 %v1436
        %1494 = vmatpush.bf16.msra.mxu0 %v1433
        %1495 = vmatpush.bf16.msra.mxu0 %v1430
        %1496 = vmatpush.bf16.msra.mxu0 %v1427
        %1497 = vmatpush.bf16.msra.mxu0 %v1424
        %1498 = vmatpush.bf16.msra.mxu0 %v1421
        %1499 = vmatpush.bf16.msra.mxu0 %v1418
        %1500 = vmatmul.bf16.gmra.mxu0 %v1292
        %v1501 = vpop.f32.mrf.mxu0
        %v1502 = vadd.f32 %v1332, %v1501
        %v1503 = vpop.f32.mrf.mxu0
        %v1504 = vadd.f32 %v1332, %v1503
        %1505 = vdwg.mxu0
        %v1506 = vpack.c.bf16 %v1474, %v1474
        %v1507 = vpack.c.bf16 %v1476, %v1476
        %v1508 = vpack.c.bf16 %v1488, %v1488
        %v1509 = vpack.c.bf16 %v1490, %v1490
        %1510 = vmatpush.bf16.xpose.msra.mxu0 0
        %1511 = vmatpush.bf16.xpose.msra.mxu0 0
        %1512 = vmatpush.bf16.xpose.msra.mxu0 0
        %1513 = vmatpush.bf16.xpose.msra.mxu0 0
        %1514 = vmatpush.bf16.xpose.msra.mxu0 0
        %1515 = vmatpush.bf16.xpose.msra.mxu0 0
        %1516 = vmatpush.bf16.xpose.msra.mxu0 0
        %1517 = vmatpush.bf16.xpose.msra.mxu0 %v1508
        %1518 = vmatmul.bf16.gmra.mxu0 %v1506
        %v1519 = vpop.f32.mrf.mxu0
        %v1520 = vadd.f32 0.0, %v1519
        %v1521 = vpop.f32.mrf.mxu0
        %1522 = vdwg.mxu0
        %1523 = vmatpush.bf16.xpose.msra.mxu0 0
        %1524 = vmatpush.bf16.xpose.msra.mxu0 0
        %1525 = vmatpush.bf16.xpose.msra.mxu0 0
        %1526 = vmatpush.bf16.xpose.msra.mxu0 0
        %1527 = vmatpush.bf16.xpose.msra.mxu0 0
        %1528 = vmatpush.bf16.xpose.msra.mxu0 0
        %1529 = vmatpush.bf16.xpose.msra.mxu0 0
        %1530 = vmatpush.bf16.xpose.msra.mxu0 %v1509
        %1531 = vmatmul.bf16.gmra.mxu0 %v1507
        %v1532 = vpop.f32.mrf.mxu0
        %v1533 = vadd.f32 0.0, %v1532
        %v1534 = vpop.f32.mrf.mxu0
        %1535 = vdwg.mxu0
        %vm1536 = vcmask 64512
        %v1537 = vsel %vm1536, %v1520, -inf
        %1538 = vmax.xlane.f32.xlu0 %v1537
        %v1539 = vpop.xlane.xlu0 %1538
        %v1540 = vsel %vm1536, %v1533, -inf
        %1541 = vmax.xlane.f32.xlu0 %v1540
        %v1542 = vpop.xlane.xlu0 %1541
        %v1543 = vsub.f32 %v1520, %v1539
        %v1544 = vsub.f32 %v1533, %v1542
        %v1545 = vmul.f32 %v1543, 1.442695
        %v1546 = vpow.pop %v1545
        %v1547 = vmul.f32 %v1544, 1.442695
        %v1548 = vpow.pop %v1547
        %v1549 = vsel %vm1536, %v1546, 0.0
        %1550 = vadd.xlane.f32.xlu0 %v1549
        %v1551 = vpop.xlane.xlu0 %1550
        %v1552 = vsel %vm1536, %v1548, 0.0
        %1553 = vadd.xlane.f32.xlu0 %v1552
        %v1554 = vpop.xlane.xlu0 %1553
        %v1555 = vrcp.pop %v1551
        %v1556 = vrcp.pop %v1554
        %v1557 = vmul.f32 %v1546, %v1555
        %v1558 = vmul.f32 %v1548, %v1556
        %v1560 = vsel %vm1536, %v1557, 0
        %1562 = vmatpush.msra.mxu0 0.0
        %1563 = vmatpush.msra.mxu0 0.0
        %1564 = vmatpush.msra.mxu0 0.0
        %1565 = vmatpush.msra.mxu0 0.0
        %1566 = vmatpush.msra.mxu0 0.0
        %1567 = vmatpush.msra.mxu0 0.0
        %1568 = vmatpush.msra.mxu0 0.0
        %1569 = vmatpush.msra.mxu0 0.0
        %1570 = vmatpush.msra.mxu0 0.0
        %1571 = vmatpush.msra.mxu0 0.0
        %1572 = vmatpush.msra.mxu0 0.0
        %1573 = vmatpush.msra.mxu0 0.0
        %1574 = vmatpush.msra.mxu0 0.0
        %1575 = vmatpush.msra.mxu0 0.0
        %1576 = vmatpush.msra.mxu0 0.0
        %1577 = vmatpush.msra.mxu0 %v1502
        %1578 = vmatmul.f32.gmra.mxu0 %v1560
        %v1579 = vpop.f32.mrf.mxu0
        %v1580 = vadd.f32 0.0, %v1579
        %1581 = vdwg.mxu0
        %v1583 = vsel %vm1536, %v1558, 0
        %1585 = vmatpush.msra.mxu0 0.0
        %1586 = vmatpush.msra.mxu0 0.0
        %1587 = vmatpush.msra.mxu0 0.0
        %1588 = vmatpush.msra.mxu0 0.0
        %1589 = vmatpush.msra.mxu0 0.0
        %1590 = vmatpush.msra.mxu0 0.0
        %1591 = vmatpush.msra.mxu0 0.0
        %1592 = vmatpush.msra.mxu0 0.0
        %1593 = vmatpush.msra.mxu0 0.0
        %1594 = vmatpush.msra.mxu0 0.0
        %1595 = vmatpush.msra.mxu0 0.0
        %1596 = vmatpush.msra.mxu0 0.0
        %1597 = vmatpush.msra.mxu0 0.0
        %1598 = vmatpush.msra.mxu0 0.0
        %1599 = vmatpush.msra.mxu0 0.0
        %1600 = vmatpush.msra.mxu0 %v1504
        %1601 = vmatmul.f32.gmra.mxu0 %v1583
        %v1602 = vpop.f32.mrf.mxu0
        %v1603 = vadd.f32 0.0, %v1602
        %1604 = vdwg.mxu0
        %v1605 = vpack.c.bf16 %v1603, %v1580
        %v1606 = vld [vmem:[%s1017] sm:$0xf]
        %v1607 = vld [vmem:[%s1017 + $0x4] sm:$0xf]
        %v1608 = vld [vmem:[%s1017 + $0x8] sm:$0xf]
        %v1609 = vld [vmem:[%s1017 + $0xc] sm:$0xf]
        %v1610 = vld [vmem:[%s1017 + $0x10] sm:$0xf]
        %v1611 = vld [vmem:[%s1017 + $0x14] sm:$0xf]
        %v1612 = vld [vmem:[%s1017 + $0x18] sm:$0xf]
        %v1613 = vld [vmem:[%s1017 + $0x1c] sm:$0xf]
        %v1614 = vld [vmem:[%s1017 + $0x20] sm:$0xf]
        %v1615 = vld [vmem:[%s1017 + $0x24] sm:$0xf]
        %v1616 = vld [vmem:[%s1017 + $0x28] sm:$0xf]
        %v1617 = vld [vmem:[%s1017 + $0x2c] sm:$0xf]
        %v1618 = vld [vmem:[%s1017 + $0x30] sm:$0xf]
        %v1619 = vld [vmem:[%s1017 + $0x34] sm:$0xf]
        %v1620 = vld [vmem:[%s1017 + $0x38] sm:$0xf]
        %v1621 = vld [vmem:[%s1017 + $0x3c] sm:$0xf]
        %v1622 = vld [vmem:[%s1245] sm:$0x1]
        %v1624 = vperm.slane %v1622, 0
        %v1642 = vunpack.c.l.b16 %v1606
        %v1643 = vunpack.c.l.b16 %v1607
        %v1644 = vunpack.c.l.b16 %v1608
        %v1645 = vunpack.c.l.b16 %v1609
        %v1646 = vunpack.c.l.b16 %v1610
        %v1647 = vunpack.c.l.b16 %v1611
        %v1648 = vunpack.c.l.b16 %v1612
        %v1649 = vunpack.c.l.b16 %v1613
        %v1650 = vunpack.c.l.b16 %v1614
        %v1651 = vunpack.c.l.b16 %v1615
        %v1652 = vunpack.c.l.b16 %v1616
        %v1653 = vunpack.c.l.b16 %v1617
        %v1654 = vunpack.c.l.b16 %v1618
        %v1655 = vunpack.c.l.b16 %v1619
        %v1656 = vunpack.c.l.b16 %v1620
        %v1657 = vunpack.c.l.b16 %v1621
        %v1658 = vpack.c.b16 %v1643, %v1642
        %v1659 = vpack.c.b16 %v1645, %v1644
        %v1660 = vpack.c.b16 %v1647, %v1646
        %v1661 = vpack.c.b16 %v1649, %v1648
        %v1662 = vpack.c.b16 %v1651, %v1650
        %v1663 = vpack.c.b16 %v1653, %v1652
        %v1664 = vpack.c.b16 %v1655, %v1654
        %v1665 = vpack.c.b16 %v1657, %v1656
        %1674 = vmatpush.bf16.msra.mxu0 %v1665
        %1675 = vmatpush.bf16.msra.mxu0 %v1664
        %1676 = vmatpush.bf16.msra.mxu0 %v1663
        %1677 = vmatpush.bf16.msra.mxu0 %v1662
        %1678 = vmatpush.bf16.msra.mxu0 %v1661
        %1679 = vmatpush.bf16.msra.mxu0 %v1660
        %1680 = vmatpush.bf16.msra.mxu0 %v1659
        %1681 = vmatpush.bf16.msra.mxu0 %v1658
        %1682 = vmatmul.bf16.gmra.mxu0 %v1605
        %v1683 = vpop.f32.mrf.mxu0
        %v1684 = vadd.f32 %v1624, %v1683
        %v1685 = vpop.f32.mrf.mxu0
        %v1686 = vadd.f32 %v1624, %v1685
        %1687 = vdwg.mxu0
        %v1688 = vadd.f32 %v1290, %v1684
        %v1689 = vadd.f32 %v1291, %v1686
        %1690 = vadd.xlane.f32.xlu0 %v1688
        %v1691 = vpop.xlane.xlu0 %1690
        %1692 = vadd.xlane.f32.xlu0 %v1689
        %v1693 = vpop.xlane.xlu0 %1692
        %v1694 = vrcp.pop 128.0
        %v1695 = vmul.f32 128.0, %v1694
        %v1696 = vsub.f32 1.0, %v1695
        %v1697 = vmul.f32 %v1694, %v1696
        %v1698 = vadd.f32 %v1694, %v1697
        %vm1699 = vweird.f32 %v1694
        %v1700 = vsel %vm1699, %v1694, %v1698
        %v1701 = vmul.f32 %v1691, %v1700
        %v1702 = vmul.f32 %v1693, %v1700
        %v1703 = vsub.f32 %v1688, %v1701
        %v1704 = vsub.f32 %v1689, %v1702
        %v1705 = vmul.f32 %v1703, %v1703
        %v1706 = vmul.f32 %v1704, %v1704
        %1707 = vadd.xlane.f32.xlu0 %v1705
        %v1708 = vpop.xlane.xlu0 %1707
        %1709 = vadd.xlane.f32.xlu0 %v1706
        %v1710 = vpop.xlane.xlu0 %1709
        %v1711 = vmul.f32 %v1708, %v1700
        %v1712 = vmul.f32 %v1710, %v1700
        %v1713 = vadd.f32 %v1711, 1e-05
        %v1714 = vadd.f32 %v1712, 1e-05
        %v1715 = vrsqrt.pop %v1713
        %v1716 = vmul.f32 %v1715, %v1713
        %v1717 = vmul.f32 %v1716, %v1715
        %v1718 = vmul.f32 0.5, %v1717
        %v1719 = vsub.f32 1.5, %v1718
        %v1720 = vmul.f32 %v1715, %v1719
        %vm1721 = vweird.f32 %v1713
        %vm1722 = vweird.f32 %v1715
        %vm1723 = vmor %vm1721, %vm1722
        %v1724 = vsel %vm1723, %v1715, %v1720
        %v1725 = vrsqrt.pop %v1714
        %v1726 = vmul.f32 %v1725, %v1714
        %v1727 = vmul.f32 %v1726, %v1725
        %v1728 = vmul.f32 0.5, %v1727
        %v1729 = vsub.f32 1.5, %v1728
        %v1730 = vmul.f32 %v1725, %v1729
        %vm1731 = vweird.f32 %v1714
        %vm1732 = vweird.f32 %v1725
        %vm1733 = vmor %vm1731, %vm1732
        %v1734 = vsel %vm1733, %v1725, %v1730
        %v1735 = vmul.f32 %v1703, %v1724
        %v1736 = vmul.f32 %v1704, %v1734
        %v1737 = vld [vmem:[%s1248] sm:$0x1]
        %v1739 = vperm.slane %v1737, 0
        %v1741 = vmul.f32 %v1735, %v1739
        %v1742 = vmul.f32 %v1736, %v1739
        %v1743 = vld [vmem:[%s1251] sm:$0x1]
        %v1745 = vperm.slane %v1743, 0
        %v1747 = vadd.f32 %v1741, %v1745
        %v1748 = vadd.f32 %v1742, %v1745
        %v1749 = vpack.c.bf16 %v1748, %v1747
        %v1750 = vld [vmem:[%s1027] sm:$0xf]
        %v1751 = vld [vmem:[%s1027 + $0x4] sm:$0xf]
        %v1752 = vld [vmem:[%s1027 + $0x8] sm:$0xf]
        %v1753 = vld [vmem:[%s1027 + $0xc] sm:$0xf]
        %v1754 = vld [vmem:[%s1027 + $0x10] sm:$0xf]
        %v1755 = vld [vmem:[%s1027 + $0x14] sm:$0xf]
        %v1756 = vld [vmem:[%s1027 + $0x18] sm:$0xf]
        %v1757 = vld [vmem:[%s1027 + $0x1c] sm:$0xf]
        %v1758 = vld [vmem:[%s1027 + $0x20] sm:$0xf]
        %v1759 = vld [vmem:[%s1027 + $0x24] sm:$0xf]
        %v1760 = vld [vmem:[%s1027 + $0x28] sm:$0xf]
        %v1761 = vld [vmem:[%s1027 + $0x2c] sm:$0xf]
        %v1762 = vld [vmem:[%s1027 + $0x30] sm:$0xf]
        %v1763 = vld [vmem:[%s1027 + $0x34] sm:$0xf]
        %v1764 = vld [vmem:[%s1027 + $0x38] sm:$0xf]
        %v1765 = vld [vmem:[%s1027 + $0x3c] sm:$0xf]
        %v1766 = vld [vmem:[%s1254] sm:$0x1]
        %v1768 = vperm.slane %v1766, 0
        %v1786 = vunpack.c.l.b16 %v1750
        %v1787 = vunpack.c.l.b16 %v1751
        %v1788 = vunpack.c.l.b16 %v1752
        %v1789 = vunpack.c.l.b16 %v1753
        %v1790 = vunpack.c.l.b16 %v1754
        %v1791 = vunpack.c.l.b16 %v1755
        %v1792 = vunpack.c.l.b16 %v1756
        %v1793 = vunpack.c.l.b16 %v1757
        %v1794 = vunpack.c.l.b16 %v1758
        %v1795 = vunpack.c.l.b16 %v1759
        %v1796 = vunpack.c.l.b16 %v1760
        %v1797 = vunpack.c.l.b16 %v1761
        %v1798 = vunpack.c.l.b16 %v1762
        %v1799 = vunpack.c.l.b16 %v1763
        %v1800 = vunpack.c.l.b16 %v1764
        %v1801 = vunpack.c.l.b16 %v1765
        %v1802 = vpack.c.b16 %v1787, %v1786
        %v1803 = vpack.c.b16 %v1789, %v1788
        %v1804 = vpack.c.b16 %v1791, %v1790
        %v1805 = vpack.c.b16 %v1793, %v1792
        %v1806 = vpack.c.b16 %v1795, %v1794
        %v1807 = vpack.c.b16 %v1797, %v1796
        %v1808 = vpack.c.b16 %v1799, %v1798
        %v1809 = vpack.c.b16 %v1801, %v1800
        %1818 = vmatpush.bf16.msra.mxu0 %v1809
        %1819 = vmatpush.bf16.msra.mxu0 %v1808
        %1820 = vmatpush.bf16.msra.mxu0 %v1807
        %1821 = vmatpush.bf16.msra.mxu0 %v1806
        %1822 = vmatpush.bf16.msra.mxu0 %v1805
        %1823 = vmatpush.bf16.msra.mxu0 %v1804
        %1824 = vmatpush.bf16.msra.mxu0 %v1803
        %1825 = vmatpush.bf16.msra.mxu0 %v1802
        %1826 = vmatmul.bf16.gmra.mxu0 %v1749
        %v1827 = vpop.f32.mrf.mxu0
        %v1828 = vadd.f32 %v1768, %v1827
        %v1829 = vpop.f32.mrf.mxu0
        %v1830 = vadd.f32 %v1768, %v1829
        %1831 = vdwg.mxu0
        %v1832 = vld [vmem:[%s1259] sm:$0xff]
        %v1833 = vld [vmem:[%s1259 + $0x8] sm:$0xff]
        %v1834 = vld [vmem:[%s1259 + $0x10] sm:$0xff]
        %v1835 = vld [vmem:[%s1259 + $0x18] sm:$0xff]
        %v1836 = vld [vmem:[%s1259 + $0x20] sm:$0xff]
        %v1837 = vld [vmem:[%s1259 + $0x28] sm:$0xff]
        %v1838 = vld [vmem:[%s1259 + $0x30] sm:$0xff]
        %v1839 = vld [vmem:[%s1259 + $0x38] sm:$0xff]
        %v1840 = vld [vmem:[%s1259 + $0x40] sm:$0xff]
        %v1841 = vld [vmem:[%s1259 + $0x48] sm:$0xff]
        %v1842 = vld [vmem:[%s1259 + $0x50] sm:$0xff]
        %v1843 = vld [vmem:[%s1259 + $0x58] sm:$0xff]
        %v1844 = vld [vmem:[%s1259 + $0x60] sm:$0xff]
        %v1845 = vld [vmem:[%s1259 + $0x68] sm:$0xff]
        %v1846 = vld [vmem:[%s1259 + $0x70] sm:$0xff]
        %v1847 = vld [vmem:[%s1259 + $0x78] sm:$0xff]
        %v1848 = vld [vmem:[%s1263] sm:$0x3]
        %v1850 = vperm.slane %v1848, 0
        %v1851 = vperm.slane %v1848, 1
        %v1870 = vunpack.c.l.b16 %v1832
        %v1871 = vunpack.c.h.b16 %v1832
        %v1872 = vunpack.c.l.b16 %v1833
        %v1873 = vunpack.c.h.b16 %v1833
        %v1874 = vunpack.c.l.b16 %v1834
        %v1875 = vunpack.c.h.b16 %v1834
        %v1876 = vunpack.c.l.b16 %v1835
        %v1877 = vunpack.c.h.b16 %v1835
        %v1878 = vunpack.c.l.b16 %v1836
        %v1879 = vunpack.c.h.b16 %v1836
        %v1880 = vunpack.c.l.b16 %v1837
        %v1881 = vunpack.c.h.b16 %v1837
        %v1882 = vunpack.c.l.b16 %v1838
        %v1883 = vunpack.c.h.b16 %v1838
        %v1884 = vunpack.c.l.b16 %v1839
        %v1885 = vunpack.c.h.b16 %v1839
        %v1886 = vunpack.c.l.b16 %v1840
        %v1887 = vunpack.c.h.b16 %v1840
        %v1888 = vunpack.c.l.b16 %v1841
        %v1889 = vunpack.c.h.b16 %v1841
        %v1890 = vunpack.c.l.b16 %v1842
        %v1891 = vunpack.c.h.b16 %v1842
        %v1892 = vunpack.c.l.b16 %v1843
        %v1893 = vunpack.c.h.b16 %v1843
        %v1894 = vunpack.c.l.b16 %v1844
        %v1895 = vunpack.c.h.b16 %v1844
        %v1896 = vunpack.c.l.b16 %v1845
        %v1897 = vunpack.c.h.b16 %v1845
        %v1898 = vunpack.c.l.b16 %v1846
        %v1899 = vunpack.c.h.b16 %v1846
        %v1900 = vunpack.c.l.b16 %v1847
        %v1901 = vunpack.c.h.b16 %v1847
        %v1902 = vpack.c.b16 %v1872, %v1870
        %v1903 = vpack.c.b16 %v1873, %v1871
        %v1904 = vpack.c.b16 %v1876, %v1874
        %v1905 = vpack.c.b16 %v1877, %v1875
        %v1906 = vpack.c.b16 %v1880, %v1878
        %v1907 = vpack.c.b16 %v1881, %v1879
        %v1908 = vpack.c.b16 %v1884, %v1882
        %v1909 = vpack.c.b16 %v1885, %v1883
        %v1910 = vpack.c.b16 %v1888, %v1886
        %v1911 = vpack.c.b16 %v1889, %v1887
        %v1912 = vpack.c.b16 %v1892, %v1890
        %v1913 = vpack.c.b16 %v1893, %v1891
        %v1914 = vpack.c.b16 %v1896, %v1894
        %v1915 = vpack.c.b16 %v1897, %v1895
        %v1916 = vpack.c.b16 %v1900, %v1898
        %v1917 = vpack.c.b16 %v1901, %v1899
        %1934 = vmatpush.bf16.msra.mxu0 %v1916
        %1935 = vmatpush.bf16.msra.mxu0 %v1914
        %1936 = vmatpush.bf16.msra.mxu0 %v1912
        %1937 = vmatpush.bf16.msra.mxu0 %v1910
        %1938 = vmatpush.bf16.msra.mxu0 %v1908
        %1939 = vmatpush.bf16.msra.mxu0 %v1906
        %1940 = vmatpush.bf16.msra.mxu0 %v1904
        %1941 = vmatpush.bf16.msra.mxu0 %v1902
        %1942 = vmatmul.bf16.gmra.mxu0 %v1295
        %v1943 = vpop.f32.mrf.mxu0
        %v1944 = vadd.f32 %v1850, %v1943
        %v1945 = vpop.f32.mrf.mxu0
        %v1946 = vadd.f32 %v1850, %v1945
        %1947 = vdwg.mxu0
        %1948 = vmatpush.bf16.msra.mxu0 %v1917
        %1949 = vmatpush.bf16.msra.mxu0 %v1915
        %1950 = vmatpush.bf16.msra.mxu0 %v1913
        %1951 = vmatpush.bf16.msra.mxu0 %v1911
        %1952 = vmatpush.bf16.msra.mxu0 %v1909
        %1953 = vmatpush.bf16.msra.mxu0 %v1907
        %1954 = vmatpush.bf16.msra.mxu0 %v1905
        %1955 = vmatpush.bf16.msra.mxu0 %v1903
        %1956 = vmatmul.bf16.gmra.mxu0 %v1295
        %v1957 = vpop.f32.mrf.mxu0
        %v1958 = vadd.f32 %v1851, %v1957
        %v1959 = vpop.f32.mrf.mxu0
        %v1960 = vadd.f32 %v1851, %v1959
        %1961 = vdwg.mxu0
        %v1962 = vpack.c.bf16 %v1828, %v1828
        %v1963 = vpack.c.bf16 %v1830, %v1830
        %v1964 = vpack.c.bf16 %v1944, %v1944
        %v1965 = vpack.c.bf16 %v1946, %v1946
        %1966 = vmatpush.bf16.xpose.msra.mxu0 0
        %1967 = vmatpush.bf16.xpose.msra.mxu0 0
        %1968 = vmatpush.bf16.xpose.msra.mxu0 0
        %1969 = vmatpush.bf16.xpose.msra.mxu0 0
        %1970 = vmatpush.bf16.xpose.msra.mxu0 0
        %1971 = vmatpush.bf16.xpose.msra.mxu0 0
        %1972 = vmatpush.bf16.xpose.msra.mxu0 0
        %1973 = vmatpush.bf16.xpose.msra.mxu0 %v1964
        %1974 = vmatmul.bf16.gmra.mxu0 %v1962
        %v1975 = vpop.f32.mrf.mxu0
        %v1976 = vadd.f32 0.0, %v1975
        %v1977 = vpop.f32.mrf.mxu0
        %1978 = vdwg.mxu0
        %1979 = vmatpush.bf16.xpose.msra.mxu0 0
        %1980 = vmatpush.bf16.xpose.msra.mxu0 0
        %1981 = vmatpush.bf16.xpose.msra.mxu0 0
        %1982 = vmatpush.bf16.xpose.msra.mxu0 0
        %1983 = vmatpush.bf16.xpose.msra.mxu0 0
        %1984 = vmatpush.bf16.xpose.msra.mxu0 0
        %1985 = vmatpush.bf16.xpose.msra.mxu0 0
        %1986 = vmatpush.bf16.xpose.msra.mxu0 %v1965
        %1987 = vmatmul.bf16.gmra.mxu0 %v1963
        %v1988 = vpop.f32.mrf.mxu0
        %v1989 = vadd.f32 0.0, %v1988
        %v1990 = vpop.f32.mrf.mxu0
        %1991 = vdwg.mxu0
        %v1992 = vsel %vm1536, %v1976, -inf
        %1993 = vmax.xlane.f32.xlu0 %v1992
        %v1994 = vpop.xlane.xlu0 %1993
        %v1995 = vsel %vm1536, %v1989, -inf
        %1996 = vmax.xlane.f32.xlu0 %v1995
        %v1997 = vpop.xlane.xlu0 %1996
        %v1998 = vsub.f32 %v1976, %v1994
        %v1999 = vsub.f32 %v1989, %v1997
        %v2000 = vmul.f32 %v1998, 1.442695
        %v2001 = vpow.pop %v2000
        %v2002 = vmul.f32 %v1999, 1.442695
        %v2003 = vpow.pop %v2002
        %v2004 = vsel %vm1536, %v2001, 0.0
        %2005 = vadd.xlane.f32.xlu0 %v2004
        %v2006 = vpop.xlane.xlu0 %2005
        %v2007 = vsel %vm1536, %v2003, 0.0
        %2008 = vadd.xlane.f32.xlu0 %v2007
        %v2009 = vpop.xlane.xlu0 %2008
        %v2010 = vrcp.pop %v2006
        %v2011 = vrcp.pop %v2009
        %v2012 = vmul.f32 %v2001, %v2010
        %v2013 = vmul.f32 %v2003, %v2011
        %v2015 = vsel %vm1536, %v2012, 0
        %2017 = vmatpush.msra.mxu0 0.0
        %2018 = vmatpush.msra.mxu0 0.0
        %2019 = vmatpush.msra.mxu0 0.0
        %2020 = vmatpush.msra.mxu0 0.0
        %2021 = vmatpush.msra.mxu0 0.0
        %2022 = vmatpush.msra.mxu0 0.0
        %2023 = vmatpush.msra.mxu0 0.0
        %2024 = vmatpush.msra.mxu0 0.0
        %2025 = vmatpush.msra.mxu0 0.0
        %2026 = vmatpush.msra.mxu0 0.0
        %2027 = vmatpush.msra.mxu0 0.0
        %2028 = vmatpush.msra.mxu0 0.0
        %2029 = vmatpush.msra.mxu0 0.0
        %2030 = vmatpush.msra.mxu0 0.0
        %2031 = vmatpush.msra.mxu0 0.0
        %2032 = vmatpush.msra.mxu0 %v1958
        %2033 = vmatmul.f32.gmra.mxu0 %v2015
        %v2034 = vpop.f32.mrf.mxu0
        %v2035 = vadd.f32 0.0, %v2034
        %2036 = vdwg.mxu0
        %v2038 = vsel %vm1536, %v2013, 0
        %2040 = vmatpush.msra.mxu0 0.0
        %2041 = vmatpush.msra.mxu0 0.0
        %2042 = vmatpush.msra.mxu0 0.0
        %2043 = vmatpush.msra.mxu0 0.0
        %2044 = vmatpush.msra.mxu0 0.0
        %2045 = vmatpush.msra.mxu0 0.0
        %2046 = vmatpush.msra.mxu0 0.0
        %2047 = vmatpush.msra.mxu0 0.0
        %2048 = vmatpush.msra.mxu0 0.0
        %2049 = vmatpush.msra.mxu0 0.0
        %2050 = vmatpush.msra.mxu0 0.0
        %2051 = vmatpush.msra.mxu0 0.0
        %2052 = vmatpush.msra.mxu0 0.0
        %2053 = vmatpush.msra.mxu0 0.0
        %2054 = vmatpush.msra.mxu0 0.0
        %2055 = vmatpush.msra.mxu0 %v1960
        %2056 = vmatmul.f32.gmra.mxu0 %v2038
        %v2057 = vpop.f32.mrf.mxu0
        %v2058 = vadd.f32 0.0, %v2057
        %2059 = vdwg.mxu0
        %v2060 = vpack.c.bf16 %v2058, %v2035
        %v2061 = vld [vmem:[%s1037] sm:$0xf]
        %v2062 = vld [vmem:[%s1037 + $0x4] sm:$0xf]
        %v2063 = vld [vmem:[%s1037 + $0x8] sm:$0xf]
        %v2064 = vld [vmem:[%s1037 + $0xc] sm:$0xf]
        %v2065 = vld [vmem:[%s1037 + $0x10] sm:$0xf]
        %v2066 = vld [vmem:[%s1037 + $0x14] sm:$0xf]
        %v2067 = vld [vmem:[%s1037 + $0x18] sm:$0xf]
        %v2068 = vld [vmem:[%s1037 + $0x1c] sm:$0xf]
        %v2069 = vld [vmem:[%s1037 + $0x20] sm:$0xf]
        %v2070 = vld [vmem:[%s1037 + $0x24] sm:$0xf]
        %v2071 = vld [vmem:[%s1037 + $0x28] sm:$0xf]
        %v2072 = vld [vmem:[%s1037 + $0x2c] sm:$0xf]
        %v2073 = vld [vmem:[%s1037 + $0x30] sm:$0xf]
        %v2074 = vld [vmem:[%s1037 + $0x34] sm:$0xf]
        %v2075 = vld [vmem:[%s1037 + $0x38] sm:$0xf]
        %v2076 = vld [vmem:[%s1037 + $0x3c] sm:$0xf]
        %v2077 = vld [vmem:[%s1266] sm:$0x1]
        %v2079 = vperm.slane %v2077, 0
        %v2097 = vunpack.c.l.b16 %v2061
        %v2098 = vunpack.c.l.b16 %v2062
        %v2099 = vunpack.c.l.b16 %v2063
        %v2100 = vunpack.c.l.b16 %v2064
        %v2101 = vunpack.c.l.b16 %v2065
        %v2102 = vunpack.c.l.b16 %v2066
        %v2103 = vunpack.c.l.b16 %v2067
        %v2104 = vunpack.c.l.b16 %v2068
        %v2105 = vunpack.c.l.b16 %v2069
        %v2106 = vunpack.c.l.b16 %v2070
        %v2107 = vunpack.c.l.b16 %v2071
        %v2108 = vunpack.c.l.b16 %v2072
        %v2109 = vunpack.c.l.b16 %v2073
        %v2110 = vunpack.c.l.b16 %v2074
        %v2111 = vunpack.c.l.b16 %v2075
        %v2112 = vunpack.c.l.b16 %v2076
        %v2113 = vpack.c.b16 %v2098, %v2097
        %v2114 = vpack.c.b16 %v2100, %v2099
        %v2115 = vpack.c.b16 %v2102, %v2101
        %v2116 = vpack.c.b16 %v2104, %v2103
        %v2117 = vpack.c.b16 %v2106, %v2105
        %v2118 = vpack.c.b16 %v2108, %v2107
        %v2119 = vpack.c.b16 %v2110, %v2109
        %v2120 = vpack.c.b16 %v2112, %v2111
        %2129 = vmatpush.bf16.msra.mxu0 %v2120
        %2130 = vmatpush.bf16.msra.mxu0 %v2119
        %2131 = vmatpush.bf16.msra.mxu0 %v2118
        %2132 = vmatpush.bf16.msra.mxu0 %v2117
        %2133 = vmatpush.bf16.msra.mxu0 %v2116
        %2134 = vmatpush.bf16.msra.mxu0 %v2115
        %2135 = vmatpush.bf16.msra.mxu0 %v2114
        %2136 = vmatpush.bf16.msra.mxu0 %v2113
        %2137 = vmatmul.bf16.gmra.mxu0 %v2060
        %v2138 = vpop.f32.mrf.mxu0
        %v2139 = vadd.f32 %v2079, %v2138
        %v2140 = vpop.f32.mrf.mxu0
        %v2141 = vadd.f32 %v2079, %v2140
        %2142 = vdwg.mxu0
        %v2143 = vadd.f32 %v1747, %v2139
        %v2144 = vadd.f32 %v1748, %v2141
        %2145 = vadd.xlane.f32.xlu0 %v2143
        %v2146 = vpop.xlane.xlu0 %2145
        %2147 = vadd.xlane.f32.xlu0 %v2144
        %v2148 = vpop.xlane.xlu0 %2147
        %v2149 = vmul.f32 %v2146, %v1700
        %v2150 = vmul.f32 %v2148, %v1700
        %v2151 = vsub.f32 %v2143, %v2149
        %v2152 = vsub.f32 %v2144, %v2150
        %v2153 = vmul.f32 %v2151, %v2151
        %v2154 = vmul.f32 %v2152, %v2152
        %2155 = vadd.xlane.f32.xlu0 %v2153
        %v2156 = vpop.xlane.xlu0 %2155
        %2157 = vadd.xlane.f32.xlu0 %v2154
        %v2158 = vpop.xlane.xlu0 %2157
        %v2159 = vmul.f32 %v2156, %v1700
        %v2160 = vmul.f32 %v2158, %v1700
        %v2161 = vadd.f32 %v2159, 1e-05
        %v2162 = vadd.f32 %v2160, 1e-05
        %v2163 = vrsqrt.pop %v2161
        %v2164 = vmul.f32 %v2163, %v2161
        %v2165 = vmul.f32 %v2164, %v2163
        %v2166 = vmul.f32 0.5, %v2165
        %v2167 = vsub.f32 1.5, %v2166
        %v2168 = vmul.f32 %v2163, %v2167
        %vm2169 = vweird.f32 %v2161
        %vm2170 = vweird.f32 %v2163
        %vm2171 = vmor %vm2169, %vm2170
        %v2172 = vsel %vm2171, %v2163, %v2168
        %v2173 = vrsqrt.pop %v2162
        %v2174 = vmul.f32 %v2173, %v2162
        %v2175 = vmul.f32 %v2174, %v2173
        %v2176 = vmul.f32 0.5, %v2175
        %v2177 = vsub.f32 1.5, %v2176
        %v2178 = vmul.f32 %v2173, %v2177
        %vm2179 = vweird.f32 %v2162
        %vm2180 = vweird.f32 %v2173
        %vm2181 = vmor %vm2179, %vm2180
        %v2182 = vsel %vm2181, %v2173, %v2178
        %v2183 = vmul.f32 %v2151, %v2172
        %v2184 = vmul.f32 %v2152, %v2182
        %v2185 = vld [vmem:[%s1046] sm:$0x1]
        %v2187 = vperm.slane %v2185, 0
        %v2189 = vmul.f32 %v2183, %v2187
        %v2190 = vmul.f32 %v2184, %v2187
        %v2191 = vld [vmem:[%s1055] sm:$0x1]
        %v2193 = vperm.slane %v2191, 0
        %v2195 = vadd.f32 %v2189, %v2193
        %v2196 = vadd.f32 %v2190, %v2193
        %v2197 = vpack.c.bf16 %v2196, %v2195
        %v2198 = vld [vmem:[%s1271] sm:$0xff]
        %v2199 = vld [vmem:[%s1271 + $0x8] sm:$0xff]
        %v2200 = vld [vmem:[%s1271 + $0x10] sm:$0xff]
        %v2201 = vld [vmem:[%s1271 + $0x18] sm:$0xff]
        %v2202 = vld [vmem:[%s1271 + $0x20] sm:$0xff]
        %v2203 = vld [vmem:[%s1271 + $0x28] sm:$0xff]
        %v2204 = vld [vmem:[%s1271 + $0x30] sm:$0xff]
        %v2205 = vld [vmem:[%s1271 + $0x38] sm:$0xff]
        %v2206 = vld [vmem:[%s1271 + $0x40] sm:$0xff]
        %v2207 = vld [vmem:[%s1271 + $0x48] sm:$0xff]
        %v2208 = vld [vmem:[%s1271 + $0x50] sm:$0xff]
        %v2209 = vld [vmem:[%s1271 + $0x58] sm:$0xff]
        %v2210 = vld [vmem:[%s1271 + $0x60] sm:$0xff]
        %v2211 = vld [vmem:[%s1271 + $0x68] sm:$0xff]
        %v2212 = vld [vmem:[%s1271 + $0x70] sm:$0xff]
        %v2213 = vld [vmem:[%s1271 + $0x78] sm:$0xff]
        %v2214 = vld [vmem:[%s1271 + $0x80] sm:$0xff]
        %v2215 = vld [vmem:[%s1271 + $0x88] sm:$0xff]
        %v2216 = vld [vmem:[%s1271 + $0x90] sm:$0xff]
        %v2217 = vld [vmem:[%s1271 + $0x98] sm:$0xff]
        %v2218 = vld [vmem:[%s1271 + $0xa0] sm:$0xff]
        %v2219 = vld [vmem:[%s1271 + $0xa8] sm:$0xff]
        %v2220 = vld [vmem:[%s1271 + $0xb0] sm:$0xff]
        %v2221 = vld [vmem:[%s1271 + $0xb8] sm:$0xff]
        %v2222 = vld [vmem:[%s1271 + $0xc0] sm:$0xff]
        %v2223 = vld [vmem:[%s1271 + $0xc8] sm:$0xff]
        %v2224 = vld [vmem:[%s1271 + $0xd0] sm:$0xff]
        %v2225 = vld [vmem:[%s1271 + $0xd8] sm:$0xff]
        %v2226 = vld [vmem:[%s1271 + $0xe0] sm:$0xff]
        %v2227 = vld [vmem:[%s1271 + $0xe8] sm:$0xff]
        %v2228 = vld [vmem:[%s1271 + $0xf0] sm:$0xff]
        %v2229 = vld [vmem:[%s1271 + $0xf8] sm:$0xff]
        %v2230 = vld [vmem:[%s1271 + $0x100] sm:$0xff]
        %v2231 = vld [vmem:[%s1271 + $0x108] sm:$0xff]
        %v2232 = vld [vmem:[%s1271 + $0x110] sm:$0xff]
        %v2233 = vld [vmem:[%s1271 + $0x118] sm:$0xff]
        %v2234 = vld [vmem:[%s1271 + $0x120] sm:$0xff]
        %v2235 = vld [vmem:[%s1271 + $0x128] sm:$0xff]
        %v2236 = vld [vmem:[%s1271 + $0x130] sm:$0xff]
        %v2237 = vld [vmem:[%s1271 + $0x138] sm:$0xff]
        %v2238 = vld [vmem:[%s1271 + $0x140] sm:$0xff]
        %v2239 = vld [vmem:[%s1271 + $0x148] sm:$0xff]
        %v2240 = vld [vmem:[%s1271 + $0x150] sm:$0xff]
        %v2241 = vld [vmem:[%s1271 + $0x158] sm:$0xff]
        %v2242 = vld [vmem:[%s1271 + $0x160] sm:$0xff]
        %v2243 = vld [vmem:[%s1271 + $0x168] sm:$0xff]
        %v2244 = vld [vmem:[%s1271 + $0x170] sm:$0xff]
        %v2245 = vld [vmem:[%s1271 + $0x178] sm:$0xff]
        %v2246 = vld [vmem:[%s1271 + $0x180] sm:$0xff]
        %v2247 = vld [vmem:[%s1271 + $0x188] sm:$0xff]
        %v2248 = vld [vmem:[%s1271 + $0x190] sm:$0xff]
        %v2249 = vld [vmem:[%s1271 + $0x198] sm:$0xff]
        %v2250 = vld [vmem:[%s1271 + $0x1a0] sm:$0xff]
        %v2251 = vld [vmem:[%s1271 + $0x1a8] sm:$0xff]
        %v2252 = vld [vmem:[%s1271 + $0x1b0] sm:$0xff]
        %v2253 = vld [vmem:[%s1271 + $0x1b8] sm:$0xff]
        %v2254 = vld [vmem:[%s1271 + $0x1c0] sm:$0xff]
        %v2255 = vld [vmem:[%s1271 + $0x1c8] sm:$0xff]
        %v2256 = vld [vmem:[%s1271 + $0x1d0] sm:$0xff]
        %v2257 = vld [vmem:[%s1271 + $0x1d8] sm:$0xff]
        %v2258 = vld [vmem:[%s1271 + $0x1e0] sm:$0xff]
        %v2259 = vld [vmem:[%s1271 + $0x1e8] sm:$0xff]
        %v2260 = vld [vmem:[%s1271 + $0x1f0] sm:$0xff]
        %v2261 = vld [vmem:[%s1271 + $0x1f8] sm:$0xff]
        %v2262 = vld [vmem:[%s1271 + $0x200] sm:$0xff]
        %v2263 = vld [vmem:[%s1271 + $0x208] sm:$0xff]
        %v2264 = vld [vmem:[%s1271 + $0x210] sm:$0xff]
        %v2265 = vld [vmem:[%s1271 + $0x218] sm:$0xff]
        %v2266 = vld [vmem:[%s1271 + $0x220] sm:$0xff]
        %v2267 = vld [vmem:[%s1271 + $0x228] sm:$0xff]
        %v2268 = vld [vmem:[%s1271 + $0x230] sm:$0xff]
        %v2269 = vld [vmem:[%s1271 + $0x238] sm:$0xff]
        %v2270 = vld [vmem:[%s1271 + $0x240] sm:$0xff]
        %v2271 = vld [vmem:[%s1271 + $0x248] sm:$0xff]
        %v2272 = vld [vmem:[%s1271 + $0x250] sm:$0xff]
        %v2273 = vld [vmem:[%s1271 + $0x258] sm:$0xff]
        %v2274 = vld [vmem:[%s1271 + $0x260] sm:$0xff]
        %v2275 = vld [vmem:[%s1271 + $0x268] sm:$0xff]
        %v2276 = vld [vmem:[%s1271 + $0x270] sm:$0xff]
        %v2277 = vld [vmem:[%s1271 + $0x278] sm:$0xff]
        %v2278 = vld [vmem:[%s1271 + $0x280] sm:$0xff]
        %v2279 = vld [vmem:[%s1271 + $0x288] sm:$0xff]
        %v2280 = vld [vmem:[%s1271 + $0x290] sm:$0xff]
        %v2281 = vld [vmem:[%s1271 + $0x298] sm:$0xff]
        %v2282 = vld [vmem:[%s1271 + $0x2a0] sm:$0xff]
        %v2283 = vld [vmem:[%s1271 + $0x2a8] sm:$0xff]
        %v2284 = vld [vmem:[%s1271 + $0x2b0] sm:$0xff]
        %v2285 = vld [vmem:[%s1271 + $0x2b8] sm:$0xff]
        %v2286 = vld [vmem:[%s1271 + $0x2c0] sm:$0xff]
        %v2287 = vld [vmem:[%s1271 + $0x2c8] sm:$0xff]
        %v2288 = vld [vmem:[%s1271 + $0x2d0] sm:$0xff]
        %v2289 = vld [vmem:[%s1271 + $0x2d8] sm:$0xff]
        %v2290 = vld [vmem:[%s1271 + $0x2e0] sm:$0xff]
        %v2291 = vld [vmem:[%s1271 + $0x2e8] sm:$0xff]
        %v2292 = vld [vmem:[%s1271 + $0x2f0] sm:$0xff]
        %v2293 = vld [vmem:[%s1271 + $0x2f8] sm:$0xff]
        %v2294 = vld [vmem:[%s1271 + $0x300] sm:$0xff]
        %v2295 = vld [vmem:[%s1271 + $0x308] sm:$0xff]
        %v2296 = vld [vmem:[%s1271 + $0x310] sm:$0xff]
        %v2297 = vld [vmem:[%s1271 + $0x318] sm:$0xff]
        %v2298 = vld [vmem:[%s1271 + $0x320] sm:$0xff]
        %v2299 = vld [vmem:[%s1271 + $0x328] sm:$0xff]
        %v2300 = vld [vmem:[%s1271 + $0x330] sm:$0xff]
        %v2301 = vld [vmem:[%s1271 + $0x338] sm:$0xff]
        %v2302 = vld [vmem:[%s1271 + $0x340] sm:$0xff]
        %v2303 = vld [vmem:[%s1271 + $0x348] sm:$0xff]
        %v2304 = vld [vmem:[%s1271 + $0x350] sm:$0xff]
        %v2305 = vld [vmem:[%s1271 + $0x358] sm:$0xff]
        %v2306 = vld [vmem:[%s1271 + $0x360] sm:$0xff]
        %v2307 = vld [vmem:[%s1271 + $0x368] sm:$0xff]
        %v2308 = vld [vmem:[%s1271 + $0x370] sm:$0xff]
        %v2309 = vld [vmem:[%s1271 + $0x378] sm:$0xff]
        %v2310 = vld [vmem:[%s1271 + $0x380] sm:$0xff]
        %v2311 = vld [vmem:[%s1271 + $0x388] sm:$0xff]
        %v2312 = vld [vmem:[%s1271 + $0x390] sm:$0xff]
        %v2313 = vld [vmem:[%s1271 + $0x398] sm:$0xff]
        %v2314 = vld [vmem:[%s1271 + $0x3a0] sm:$0xff]
        %v2315 = vld [vmem:[%s1271 + $0x3a8] sm:$0xff]
        %v2316 = vld [vmem:[%s1271 + $0x3b0] sm:$0xff]
        %v2317 = vld [vmem:[%s1271 + $0x3b8] sm:$0xff]
        %v2318 = vld [vmem:[%s1271 + $0x3c0] sm:$0xff]
        %v2319 = vld [vmem:[%s1271 + $0x3c8] sm:$0xff]
        %v2320 = vld [vmem:[%s1271 + $0x3d0] sm:$0xff]
        %v2321 = vld [vmem:[%s1271 + $0x3d8] sm:$0xff]
        %v2322 = vld [vmem:[%s1271 + $0x3e0] sm:$0xff]
        %v2323 = vld [vmem:[%s1271 + $0x3e8] sm:$0xff]
        %v2324 = vld [vmem:[%s1271 + $0x3f0] sm:$0xff]
        %v2325 = vld [vmem:[%s1271 + $0x3f8] sm:$0xff]
        %v2326 = vld [vmem:[%s1275] sm:$0xff]
        %v2327 = vld [vmem:[%s1275 + $0x8] sm:$0xff]
        %v2330 = vperm.slane %v2326, 0
        %v2331 = vperm.slane %v2326, 1
        %v2332 = vperm.slane %v2326, 2
        %v2333 = vperm.slane %v2326, 3
        %v2334 = vperm.slane %v2326, 4
        %v2335 = vperm.slane %v2326, 5
        %v2336 = vperm.slane %v2326, 6
        %v2337 = vperm.slane %v2326, 7
        %v2338 = vperm.slane %v2327, 0
        %v2339 = vperm.slane %v2327, 1
        %v2340 = vperm.slane %v2327, 2
        %v2341 = vperm.slane %v2327, 3
        %v2342 = vperm.slane %v2327, 4
        %v2343 = vperm.slane %v2327, 5
        %v2344 = vperm.slane %v2327, 6
        %v2345 = vperm.slane %v2327, 7
        %v2490 = vunpack.c.l.b16 %v2198
        %v2491 = vunpack.c.h.b16 %v2198
        %v2492 = vunpack.c.l.b16 %v2199
        %v2493 = vunpack.c.h.b16 %v2199
        %v2494 = vunpack.c.l.b16 %v2200
        %v2495 = vunpack.c.h.b16 %v2200
        %v2496 = vunpack.c.l.b16 %v2201
        %v2497 = vunpack.c.h.b16 %v2201
        %v2498 = vunpack.c.l.b16 %v2202
        %v2499 = vunpack.c.h.b16 %v2202
        %v2500 = vunpack.c.l.b16 %v2203
        %v2501 = vunpack.c.h.b16 %v2203
        %v2502 = vunpack.c.l.b16 %v2204
        %v2503 = vunpack.c.h.b16 %v2204
        %v2504 = vunpack.c.l.b16 %v2205
        %v2505 = vunpack.c.h.b16 %v2205
        %v2506 = vunpack.c.l.b16 %v2206
        %v2507 = vunpack.c.h.b16 %v2206
        %v2508 = vunpack.c.l.b16 %v2207
        %v2509 = vunpack.c.h.b16 %v2207
        %v2510 = vunpack.c.l.b16 %v2208
        %v2511 = vunpack.c.h.b16 %v2208
        %v2512 = vunpack.c.l.b16 %v2209
        %v2513 = vunpack.c.h.b16 %v2209
        %v2514 = vunpack.c.l.b16 %v2210
        %v2515 = vunpack.c.h.b16 %v2210
        %v2516 = vunpack.c.l.b16 %v2211
        %v2517 = vunpack.c.h.b16 %v2211
        %v2518 = vunpack.c.l.b16 %v2212
        %v2519 = vunpack.c.h.b16 %v2212
        %v2520 = vunpack.c.l.b16 %v2213
        %v2521 = vunpack.c.h.b16 %v2213
        %v2522 = vunpack.c.l.b16 %v2214
        %v2523 = vunpack.c.h.b16 %v2214
        %v2524 = vunpack.c.l.b16 %v2215
        %v2525 = vunpack.c.h.b16 %v2215
        %v2526 = vunpack.c.l.b16 %v2216
        %v2527 = vunpack.c.h.b16 %v2216
        %v2528 = vunpack.c.l.b16 %v2217
        %v2529 = vunpack.c.h.b16 %v2217
        %v2530 = vunpack.c.l.b16 %v2218
        %v2531 = vunpack.c.h.b16 %v2218
        %v2532 = vunpack.c.l.b16 %v2219
        %v2533 = vunpack.c.h.b16 %v2219
        %v2534 = vunpack.c.l.b16 %v2220
        %v2535 = vunpack.c.h.b16 %v2220
        %v2536 = vunpack.c.l.b16 %v2221
        %v2537 = vunpack.c.h.b16 %v2221
        %v2538 = vunpack.c.l.b16 %v2222
        %v2539 = vunpack.c.h.b16 %v2222
        %v2540 = vunpack.c.l.b16 %v2223
        %v2541 = vunpack.c.h.b16 %v2223
        %v2542 = vunpack.c.l.b16 %v2224
        %v2543 = vunpack.c.h.b16 %v2224
        %v2544 = vunpack.c.l.b16 %v2225
        %v2545 = vunpack.c.h.b16 %v2225
        %v2546 = vunpack.c.l.b16 %v2226
        %v2547 = vunpack.c.h.b16 %v2226
        %v2548 = vunpack.c.l.b16 %v2227
        %v2549 = vunpack.c.h.b16 %v2227
        %v2550 = vunpack.c.l.b16 %v2228
        %v2551 = vunpack.c.h.b16 %v2228
        %v2552 = vunpack.c.l.b16 %v2229
        %v2553 = vunpack.c.h.b16 %v2229
        %v2554 = vunpack.c.l.b16 %v2230
        %v2555 = vunpack.c.h.b16 %v2230
        %v2556 = vunpack.c.l.b16 %v2231
        %v2557 = vunpack.c.h.b16 %v2231
        %v2558 = vunpack.c.l.b16 %v2232
        %v2559 = vunpack.c.h.b16 %v2232
        %v2560 = vunpack.c.l.b16 %v2233
        %v2561 = vunpack.c.h.b16 %v2233
        %v2562 = vunpack.c.l.b16 %v2234
        %v2563 = vunpack.c.h.b16 %v2234
        %v2564 = vunpack.c.l.b16 %v2235
        %v2565 = vunpack.c.h.b16 %v2235
        %v2566 = vunpack.c.l.b16 %v2236
        %v2567 = vunpack.c.h.b16 %v2236
        %v2568 = vunpack.c.l.b16 %v2237
        %v2569 = vunpack.c.h.b16 %v2237
        %v2570 = vunpack.c.l.b16 %v2238
        %v2571 = vunpack.c.h.b16 %v2238
        %v2572 = vunpack.c.l.b16 %v2239
        %v2573 = vunpack.c.h.b16 %v2239
        %v2574 = vunpack.c.l.b16 %v2240
        %v2575 = vunpack.c.h.b16 %v2240
        %v2576 = vunpack.c.l.b16 %v2241
        %v2577 = vunpack.c.h.b16 %v2241
        %v2578 = vunpack.c.l.b16 %v2242
        %v2579 = vunpack.c.h.b16 %v2242
        %v2580 = vunpack.c.l.b16 %v2243
        %v2581 = vunpack.c.h.b16 %v2243
        %v2582 = vunpack.c.l.b16 %v2244
        %v2583 = vunpack.c.h.b16 %v2244
        %v2584 = vunpack.c.l.b16 %v2245
        %v2585 = vunpack.c.h.b16 %v2245
        %v2586 = vunpack.c.l.b16 %v2246
        %v2587 = vunpack.c.h.b16 %v2246
        %v2588 = vunpack.c.l.b16 %v2247
        %v2589 = vunpack.c.h.b16 %v2247
        %v2590 = vunpack.c.l.b16 %v2248
        %v2591 = vunpack.c.h.b16 %v2248
        %v2592 = vunpack.c.l.b16 %v2249
        %v2593 = vunpack.c.h.b16 %v2249
        %v2594 = vunpack.c.l.b16 %v2250
        %v2595 = vunpack.c.h.b16 %v2250
        %v2596 = vunpack.c.l.b16 %v2251
        %v2597 = vunpack.c.h.b16 %v2251
        %v2598 = vunpack.c.l.b16 %v2252
        %v2599 = vunpack.c.h.b16 %v2252
        %v2600 = vunpack.c.l.b16 %v2253
        %v2601 = vunpack.c.h.b16 %v2253
        %v2602 = vunpack.c.l.b16 %v2254
        %v2603 = vunpack.c.h.b16 %v2254
        %v2604 = vunpack.c.l.b16 %v2255
        %v2605 = vunpack.c.h.b16 %v2255
        %v2606 = vunpack.c.l.b16 %v2256
        %v2607 = vunpack.c.h.b16 %v2256
        %v2608 = vunpack.c.l.b16 %v2257
        %v2609 = vunpack.c.h.b16 %v2257
        %v2610 = vunpack.c.l.b16 %v2258
        %v2611 = vunpack.c.h.b16 %v2258
        %v2612 = vunpack.c.l.b16 %v2259
        %v2613 = vunpack.c.h.b16 %v2259
        %v2614 = vunpack.c.l.b16 %v2260
        %v2615 = vunpack.c.h.b16 %v2260
        %v2616 = vunpack.c.l.b16 %v2261
        %v2617 = vunpack.c.h.b16 %v2261
        %v2618 = vunpack.c.l.b16 %v2262
        %v2619 = vunpack.c.h.b16 %v2262
        %v2620 = vunpack.c.l.b16 %v2263
        %v2621 = vunpack.c.h.b16 %v2263
        %v2622 = vunpack.c.l.b16 %v2264
        %v2623 = vunpack.c.h.b16 %v2264
        %v2624 = vunpack.c.l.b16 %v2265
        %v2625 = vunpack.c.h.b16 %v2265
        %v2626 = vunpack.c.l.b16 %v2266
        %v2627 = vunpack.c.h.b16 %v2266
        %v2628 = vunpack.c.l.b16 %v2267
        %v2629 = vunpack.c.h.b16 %v2267
        %v2630 = vunpack.c.l.b16 %v2268
        %v2631 = vunpack.c.h.b16 %v2268
        %v2632 = vunpack.c.l.b16 %v2269
        %v2633 = vunpack.c.h.b16 %v2269
        %v2634 = vunpack.c.l.b16 %v2270
        %v2635 = vunpack.c.h.b16 %v2270
        %v2636 = vunpack.c.l.b16 %v2271
        %v2637 = vunpack.c.h.b16 %v2271
        %v2638 = vunpack.c.l.b16 %v2272
        %v2639 = vunpack.c.h.b16 %v2272
        %v2640 = vunpack.c.l.b16 %v2273
        %v2641 = vunpack.c.h.b16 %v2273
        %v2642 = vunpack.c.l.b16 %v2274
        %v2643 = vunpack.c.h.b16 %v2274
        %v2644 = vunpack.c.l.b16 %v2275
        %v2645 = vunpack.c.h.b16 %v2275
        %v2646 = vunpack.c.l.b16 %v2276
        %v2647 = vunpack.c.h.b16 %v2276
        %v2648 = vunpack.c.l.b16 %v2277
        %v2649 = vunpack.c.h.b16 %v2277
        %v2650 = vunpack.c.l.b16 %v2278
        %v2651 = vunpack.c.h.b16 %v2278
        %v2652 = vunpack.c.l.b16 %v2279
        %v2653 = vunpack.c.h.b16 %v2279
        %v2654 = vunpack.c.l.b16 %v2280
        %v2655 = vunpack.c.h.b16 %v2280
        %v2656 = vunpack.c.l.b16 %v2281
        %v2657 = vunpack.c.h.b16 %v2281
        %v2658 = vunpack.c.l.b16 %v2282
        %v2659 = vunpack.c.h.b16 %v2282
        %v2660 = vunpack.c.l.b16 %v2283
        %v2661 = vunpack.c.h.b16 %v2283
        %v2662 = vunpack.c.l.b16 %v2284
        %v2663 = vunpack.c.h.b16 %v2284
        %v2664 = vunpack.c.l.b16 %v2285
        %v2665 = vunpack.c.h.b16 %v2285
        %v2666 = vunpack.c.l.b16 %v2286
        %v2667 = vunpack.c.h.b16 %v2286
        %v2668 = vunpack.c.l.b16 %v2287
        %v2669 = vunpack.c.h.b16 %v2287
        %v2670 = vunpack.c.l.b16 %v2288
        %v2671 = vunpack.c.h.b16 %v2288
        %v2672 = vunpack.c.l.b16 %v2289
        %v2673 = vunpack.c.h.b16 %v2289
        %v2674 = vunpack.c.l.b16 %v2290
        %v2675 = vunpack.c.h.b16 %v2290
        %v2676 = vunpack.c.l.b16 %v2291
        %v2677 = vunpack.c.h.b16 %v2291
        %v2678 = vunpack.c.l.b16 %v2292
        %v2679 = vunpack.c.h.b16 %v2292
        %v2680 = vunpack.c.l.b16 %v2293
        %v2681 = vunpack.c.h.b16 %v2293
        %v2682 = vunpack.c.l.b16 %v2294
        %v2683 = vunpack.c.h.b16 %v2294
        %v2684 = vunpack.c.l.b16 %v2295
        %v2685 = vunpack.c.h.b16 %v2295
        %v2686 = vunpack.c.l.b16 %v2296
        %v2687 = vunpack.c.h.b16 %v2296
        %v2688 = vunpack.c.l.b16 %v2297
        %v2689 = vunpack.c.h.b16 %v2297
        %v2690 = vunpack.c.l.b16 %v2298
        %v2691 = vunpack.c.h.b16 %v2298
        %v2692 = vunpack.c.l.b16 %v2299
        %v2693 = vunpack.c.h.b16 %v2299
        %v2694 = vunpack.c.l.b16 %v2300
        %v2695 = vunpack.c.h.b16 %v2300
        %v2696 = vunpack.c.l.b16 %v2301
        %v2697 = vunpack.c.h.b16 %v2301
        %v2698 = vunpack.c.l.b16 %v2302
        %v2699 = vunpack.c.h.b16 %v2302
        %v2700 = vunpack.c.l.b16 %v2303
        %v2701 = vunpack.c.h.b16 %v2303
        %v2702 = vunpack.c.l.b16 %v2304
        %v2703 = vunpack.c.h.b16 %v2304
        %v2704 = vunpack.c.l.b16 %v2305
        %v2705 = vunpack.c.h.b16 %v2305
        %v2706 = vunpack.c.l.b16 %v2306
        %v2707 = vunpack.c.h.b16 %v2306
        %v2708 = vunpack.c.l.b16 %v2307
        %v2709 = vunpack.c.h.b16 %v2307
        %v2710 = vunpack.c.l.b16 %v2308
        %v2711 = vunpack.c.h.b16 %v2308
        %v2712 = vunpack.c.l.b16 %v2309
        %v2713 = vunpack.c.h.b16 %v2309
        %v2714 = vunpack.c.l.b16 %v2310
        %v2715 = vunpack.c.h.b16 %v2310
        %v2716 = vunpack.c.l.b16 %v2311
        %v2717 = vunpack.c.h.b16 %v2311
        %v2718 = vunpack.c.l.b16 %v2312
        %v2719 = vunpack.c.h.b16 %v2312
        %v2720 = vunpack.c.l.b16 %v2313
        %v2721 = vunpack.c.h.b16 %v2313
        %v2722 = vunpack.c.l.b16 %v2314
        %v2723 = vunpack.c.h.b16 %v2314
        %v2724 = vunpack.c.l.b16 %v2315
        %v2725 = vunpack.c.h.b16 %v2315
        %v2726 = vunpack.c.l.b16 %v2316
        %v2727 = vunpack.c.h.b16 %v2316
        %v2728 = vunpack.c.l.b16 %v2317
        %v2729 = vunpack.c.h.b16 %v2317
        %v2730 = vunpack.c.l.b16 %v2318
        %v2731 = vunpack.c.h.b16 %v2318
        %v2732 = vunpack.c.l.b16 %v2319
        %v2733 = vunpack.c.h.b16 %v2319
        %v2734 = vunpack.c.l.b16 %v2320
        %v2735 = vunpack.c.h.b16 %v2320
        %v2736 = vunpack.c.l.b16 %v2321
        %v2737 = vunpack.c.h.b16 %v2321
        %v2738 = vunpack.c.l.b16 %v2322
        %v2739 = vunpack.c.h.b16 %v2322
        %v2740 = vunpack.c.l.b16 %v2323
        %v2741 = vunpack.c.h.b16 %v2323
        %v2742 = vunpack.c.l.b16 %v2324
        %v2743 = vunpack.c.h.b16 %v2324
        %v2744 = vunpack.c.l.b16 %v2325
        %v2745 = vunpack.c.h.b16 %v2325
        %v2746 = vpack.c.b16 %v2506, %v2490
        %v2747 = vpack.c.b16 %v2507, %v2491
        %v2748 = vpack.c.b16 %v2508, %v2492
        %v2749 = vpack.c.b16 %v2509, %v2493
        %v2750 = vpack.c.b16 %v2510, %v2494
        %v2751 = vpack.c.b16 %v2511, %v2495
        %v2752 = vpack.c.b16 %v2512, %v2496
        %v2753 = vpack.c.b16 %v2513, %v2497
        %v2754 = vpack.c.b16 %v2514, %v2498
        %v2755 = vpack.c.b16 %v2515, %v2499
        %v2756 = vpack.c.b16 %v2516, %v2500
        %v2757 = vpack.c.b16 %v2517, %v2501
        %v2758 = vpack.c.b16 %v2518, %v2502
        %v2759 = vpack.c.b16 %v2519, %v2503
        %v2760 = vpack.c.b16 %v2520, %v2504
        %v2761 = vpack.c.b16 %v2521, %v2505
        %v2762 = vpack.c.b16 %v2538, %v2522
        %v2763 = vpack.c.b16 %v2539, %v2523
        %v2764 = vpack.c.b16 %v2540, %v2524
        %v2765 = vpack.c.b16 %v2541, %v2525
        %v2766 = vpack.c.b16 %v2542, %v2526
        %v2767 = vpack.c.b16 %v2543, %v2527
        %v2768 = vpack.c.b16 %v2544, %v2528
        %v2769 = vpack.c.b16 %v2545, %v2529
        %v2770 = vpack.c.b16 %v2546, %v2530
        %v2771 = vpack.c.b16 %v2547, %v2531
        %v2772 = vpack.c.b16 %v2548, %v2532
        %v2773 = vpack.c.b16 %v2549, %v2533
        %v2774 = vpack.c.b16 %v2550, %v2534
        %v2775 = vpack.c.b16 %v2551, %v2535
        %v2776 = vpack.c.b16 %v2552, %v2536
        %v2777 = vpack.c.b16 %v2553, %v2537
        %v2778 = vpack.c.b16 %v2570, %v2554
        %v2779 = vpack.c.b16 %v2571, %v2555
        %v2780 = vpack.c.b16 %v2572, %v2556
        %v2781 = vpack.c.b16 %v2573, %v2557
        %v2782 = vpack.c.b16 %v2574, %v2558
        %v2783 = vpack.c.b16 %v2575, %v2559
        %v2784 = vpack.c.b16 %v2576, %v2560
        %v2785 = vpack.c.b16 %v2577, %v2561
        %v2786 = vpack.c.b16 %v2578, %v2562
        %v2787 = vpack.c.b16 %v2579, %v2563
        %v2788 = vpack.c.b16 %v2580, %v2564
        %v2789 = vpack.c.b16 %v2581, %v2565
        %v2790 = vpack.c.b16 %v2582, %v2566
        %v2791 = vpack.c.b16 %v2583, %v2567
        %v2792 = vpack.c.b16 %v2584, %v2568
        %v2793 = vpack.c.b16 %v2585, %v2569
        %v2794 = vpack.c.b16 %v2602, %v2586
        %v2795 = vpack.c.b16 %v2603, %v2587
        %v2796 = vpack.c.b16 %v2604, %v2588
        %v2797 = vpack.c.b16 %v2605, %v2589
        %v2798 = vpack.c.b16 %v2606, %v2590
        %v2799 = vpack.c.b16 %v2607, %v2591
        %v2800 = vpack.c.b16 %v2608, %v2592
        %v2801 = vpack.c.b16 %v2609, %v2593
        %v2802 = vpack.c.b16 %v2610, %v2594
        %v2803 = vpack.c.b16 %v2611, %v2595
        %v2804 = vpack.c.b16 %v2612, %v2596
        %v2805 = vpack.c.b16 %v2613, %v2597
        %v2806 = vpack.c.b16 %v2614, %v2598
        %v2807 = vpack.c.b16 %v2615, %v2599
        %v2808 = vpack.c.b16 %v2616, %v2600
        %v2809 = vpack.c.b16 %v2617, %v2601
        %v2810 = vpack.c.b16 %v2634, %v2618
        %v2811 = vpack.c.b16 %v2635, %v2619
        %v2812 = vpack.c.b16 %v2636, %v2620
        %v2813 = vpack.c.b16 %v2637, %v2621
        %v2814 = vpack.c.b16 %v2638, %v2622
        %v2815 = vpack.c.b16 %v2639, %v2623
        %v2816 = vpack.c.b16 %v2640, %v2624
        %v2817 = vpack.c.b16 %v2641, %v2625
        %v2818 = vpack.c.b16 %v2642, %v2626
        %v2819 = vpack.c.b16 %v2643, %v2627
        %v2820 = vpack.c.b16 %v2644, %v2628
        %v2821 = vpack.c.b16 %v2645, %v2629
        %v2822 = vpack.c.b16 %v2646, %v2630
        %v2823 = vpack.c.b16 %v2647, %v2631
        %v2824 = vpack.c.b16 %v2648, %v2632
        %v2825 = vpack.c.b16 %v2649, %v2633
        %v2826 = vpack.c.b16 %v2666, %v2650
        %v2827 = vpack.c.b16 %v2667, %v2651
        %v2828 = vpack.c.b16 %v2668, %v2652
        %v2829 = vpack.c.b16 %v2669, %v2653
        %v2830 = vpack.c.b16 %v2670, %v2654
        %v2831 = vpack.c.b16 %v2671, %v2655
        %v2832 = vpack.c.b16 %v2672, %v2656
        %v2833 = vpack.c.b16 %v2673, %v2657
        %v2834 = vpack.c.b16 %v2674, %v2658
        %v2835 = vpack.c.b16 %v2675, %v2659
        %v2836 = vpack.c.b16 %v2676, %v2660
        %v2837 = vpack.c.b16 %v2677, %v2661
        %v2838 = vpack.c.b16 %v2678, %v2662
        %v2839 = vpack.c.b16 %v2679, %v2663
        %v2840 = vpack.c.b16 %v2680, %v2664
        %v2841 = vpack.c.b16 %v2681, %v2665
        %v2842 = vpack.c.b16 %v2698, %v2682
        %v2843 = vpack.c.b16 %v2699, %v2683
        %v2844 = vpack.c.b16 %v2700, %v2684
        %v2845 = vpack.c.b16 %v2701, %v2685
        %v2846 = vpack.c.b16 %v2702, %v2686
        %v2847 = vpack.c.b16 %v2703, %v2687
        %v2848 = vpack.c.b16 %v2704, %v2688
        %v2849 = vpack.c.b16 %v2705, %v2689
        %v2850 = vpack.c.b16 %v2706, %v2690
        %v2851 = vpack.c.b16 %v2707, %v2691
        %v2852 = vpack.c.b16 %v2708, %v2692
        %v2853 = vpack.c.b16 %v2709, %v2693
        %v2854 = vpack.c.b16 %v2710, %v2694
        %v2855 = vpack.c.b16 %v2711, %v2695
        %v2856 = vpack.c.b16 %v2712, %v2696
        %v2857 = vpack.c.b16 %v2713, %v2697
        %v2858 = vpack.c.b16 %v2730, %v2714
        %v2859 = vpack.c.b16 %v2731, %v2715
        %v2860 = vpack.c.b16 %v2732, %v2716
        %v2861 = vpack.c.b16 %v2733, %v2717
        %v2862 = vpack.c.b16 %v2734, %v2718
        %v2863 = vpack.c.b16 %v2735, %v2719
        %v2864 = vpack.c.b16 %v2736, %v2720
        %v2865 = vpack.c.b16 %v2737, %v2721
        %v2866 = vpack.c.b16 %v2738, %v2722
        %v2867 = vpack.c.b16 %v2739, %v2723
        %v2868 = vpack.c.b16 %v2740, %v2724
        %v2869 = vpack.c.b16 %v2741, %v2725
        %v2870 = vpack.c.b16 %v2742, %v2726
        %v2871 = vpack.c.b16 %v2743, %v2727
        %v2872 = vpack.c.b16 %v2744, %v2728
        %v2873 = vpack.c.b16 %v2745, %v2729
        %3002 = vmatpush.bf16.msra.mxu0 %v2858
        %3003 = vmatpush.bf16.msra.mxu0 %v2842
        %3004 = vmatpush.bf16.msra.mxu0 %v2826
        %3005 = vmatpush.bf16.msra.mxu0 %v2810
        %3006 = vmatpush.bf16.msra.mxu0 %v2794
        %3007 = vmatpush.bf16.msra.mxu0 %v2778
        %3008 = vmatpush.bf16.msra.mxu0 %v2762
        %3009 = vmatpush.bf16.msra.mxu0 %v2746
        %3010 = vmatmul.bf16.gmra.mxu0 %v2197
        %v3011 = vpop.f32.mrf.mxu0
        %v3012 = vadd.f32 %v2330, %v3011
        %v3013 = vpop.f32.mrf.mxu0
        %v3014 = vadd.f32 %v2330, %v3013
        %3015 = vdwg.mxu0
        %3016 = vmatpush.bf16.msra.mxu0 %v2859
        %3017 = vmatpush.bf16.msra.mxu0 %v2843
        %3018 = vmatpush.bf16.msra.mxu0 %v2827
        %3019 = vmatpush.bf16.msra.mxu0 %v2811
        %3020 = vmatpush.bf16.msra.mxu0 %v2795
        %3021 = vmatpush.bf16.msra.mxu0 %v2779
        %3022 = vmatpush.bf16.msra.mxu0 %v2763
        %3023 = vmatpush.bf16.msra.mxu0 %v2747
        %3024 = vmatmul.bf16.gmra.mxu0 %v2197
        %v3025 = vpop.f32.mrf.mxu0
        %v3026 = vadd.f32 %v2331, %v3025
        %v3027 = vpop.f32.mrf.mxu0
        %v3028 = vadd.f32 %v2331, %v3027
        %3029 = vdwg.mxu0
        %3030 = vmatpush.bf16.msra.mxu0 %v2860
        %3031 = vmatpush.bf16.msra.mxu0 %v2844
        %3032 = vmatpush.bf16.msra.mxu0 %v2828
        %3033 = vmatpush.bf16.msra.mxu0 %v2812
        %3034 = vmatpush.bf16.msra.mxu0 %v2796
        %3035 = vmatpush.bf16.msra.mxu0 %v2780
        %3036 = vmatpush.bf16.msra.mxu0 %v2764
        %3037 = vmatpush.bf16.msra.mxu0 %v2748
        %3038 = vmatmul.bf16.gmra.mxu0 %v2197
        %v3039 = vpop.f32.mrf.mxu0
        %v3040 = vadd.f32 %v2332, %v3039
        %v3041 = vpop.f32.mrf.mxu0
        %v3042 = vadd.f32 %v2332, %v3041
        %3043 = vdwg.mxu0
        %3044 = vmatpush.bf16.msra.mxu0 %v2861
        %3045 = vmatpush.bf16.msra.mxu0 %v2845
        %3046 = vmatpush.bf16.msra.mxu0 %v2829
        %3047 = vmatpush.bf16.msra.mxu0 %v2813
        %3048 = vmatpush.bf16.msra.mxu0 %v2797
        %3049 = vmatpush.bf16.msra.mxu0 %v2781
        %3050 = vmatpush.bf16.msra.mxu0 %v2765
        %3051 = vmatpush.bf16.msra.mxu0 %v2749
        %3052 = vmatmul.bf16.gmra.mxu0 %v2197
        %v3053 = vpop.f32.mrf.mxu0
        %v3054 = vadd.f32 %v2333, %v3053
        %v3055 = vpop.f32.mrf.mxu0
        %v3056 = vadd.f32 %v2333, %v3055
        %3057 = vdwg.mxu0
        %3058 = vmatpush.bf16.msra.mxu0 %v2862
        %3059 = vmatpush.bf16.msra.mxu0 %v2846
        %3060 = vmatpush.bf16.msra.mxu0 %v2830
        %3061 = vmatpush.bf16.msra.mxu0 %v2814
        %3062 = vmatpush.bf16.msra.mxu0 %v2798
        %3063 = vmatpush.bf16.msra.mxu0 %v2782
        %3064 = vmatpush.bf16.msra.mxu0 %v2766
        %3065 = vmatpush.bf16.msra.mxu0 %v2750
        %3066 = vmatmul.bf16.gmra.mxu0 %v2197
        %v3067 = vpop.f32.mrf.mxu0
        %v3068 = vadd.f32 %v2334, %v3067
        %v3069 = vpop.f32.mrf.mxu0
        %v3070 = vadd.f32 %v2334, %v3069
        %3071 = vdwg.mxu0
        %3072 = vmatpush.bf16.msra.mxu0 %v2863
        %3073 = vmatpush.bf16.msra.mxu0 %v2847
        %3074 = vmatpush.bf16.msra.mxu0 %v2831
        %3075 = vmatpush.bf16.msra.mxu0 %v2815
        %3076 = vmatpush.bf16.msra.mxu0 %v2799
        %3077 = vmatpush.bf16.msra.mxu0 %v2783
        %3078 = vmatpush.bf16.msra.mxu0 %v2767
        %3079 = vmatpush.bf16.msra.mxu0 %v2751
        %3080 = vmatmul.bf16.gmra.mxu0 %v2197
        %v3081 = vpop.f32.mrf.mxu0
        %v3082 = vadd.f32 %v2335, %v3081
        %v3083 = vpop.f32.mrf.mxu0
        %v3084 = vadd.f32 %v2335, %v3083
        %3085 = vdwg.mxu0
        %3086 = vmatpush.bf16.msra.mxu0 %v2864
        %3087 = vmatpush.bf16.msra.mxu0 %v2848
        %3088 = vmatpush.bf16.msra.mxu0 %v2832
        %3089 = vmatpush.bf16.msra.mxu0 %v2816
        %3090 = vmatpush.bf16.msra.mxu0 %v2800
        %3091 = vmatpush.bf16.msra.mxu0 %v2784
        %3092 = vmatpush.bf16.msra.mxu0 %v2768
        %3093 = vmatpush.bf16.msra.mxu0 %v2752
        %3094 = vmatmul.bf16.gmra.mxu0 %v2197
        %v3095 = vpop.f32.mrf.mxu0
        %v3096 = vadd.f32 %v2336, %v3095
        %v3097 = vpop.f32.mrf.mxu0
        %v3098 = vadd.f32 %v2336, %v3097
        %3099 = vdwg.mxu0
        %3100 = vmatpush.bf16.msra.mxu0 %v2865
        %3101 = vmatpush.bf16.msra.mxu0 %v2849
        %3102 = vmatpush.bf16.msra.mxu0 %v2833
        %3103 = vmatpush.bf16.msra.mxu0 %v2817
        %3104 = vmatpush.bf16.msra.mxu0 %v2801
        %3105 = vmatpush.bf16.msra.mxu0 %v2785
        %3106 = vmatpush.bf16.msra.mxu0 %v2769
        %3107 = vmatpush.bf16.msra.mxu0 %v2753
        %3108 = vmatmul.bf16.gmra.mxu0 %v2197
        %v3109 = vpop.f32.mrf.mxu0
        %v3110 = vadd.f32 %v2337, %v3109
        %v3111 = vpop.f32.mrf.mxu0
        %v3112 = vadd.f32 %v2337, %v3111
        %3113 = vdwg.mxu0
        %3114 = vmatpush.bf16.msra.mxu0 %v2866
        %3115 = vmatpush.bf16.msra.mxu0 %v2850
        %3116 = vmatpush.bf16.msra.mxu0 %v2834
        %3117 = vmatpush.bf16.msra.mxu0 %v2818
        %3118 = vmatpush.bf16.msra.mxu0 %v2802
        %3119 = vmatpush.bf16.msra.mxu0 %v2786
        %3120 = vmatpush.bf16.msra.mxu0 %v2770
        %3121 = vmatpush.bf16.msra.mxu0 %v2754
        %3122 = vmatmul.bf16.gmra.mxu0 %v2197
        %v3123 = vpop.f32.mrf.mxu0
        %v3124 = vadd.f32 %v2338, %v3123
        %v3125 = vpop.f32.mrf.mxu0
        %v3126 = vadd.f32 %v2338, %v3125
        %3127 = vdwg.mxu0
        %3128 = vmatpush.bf16.msra.mxu0 %v2867
        %3129 = vmatpush.bf16.msra.mxu0 %v2851
        %3130 = vmatpush.bf16.msra.mxu0 %v2835
        %3131 = vmatpush.bf16.msra.mxu0 %v2819
        %3132 = vmatpush.bf16.msra.mxu0 %v2803
        %3133 = vmatpush.bf16.msra.mxu0 %v2787
        %3134 = vmatpush.bf16.msra.mxu0 %v2771
        %3135 = vmatpush.bf16.msra.mxu0 %v2755
        %3136 = vmatmul.bf16.gmra.mxu0 %v2197
        %v3137 = vpop.f32.mrf.mxu0
        %v3138 = vadd.f32 %v2339, %v3137
        %v3139 = vpop.f32.mrf.mxu0
        %v3140 = vadd.f32 %v2339, %v3139
        %3141 = vdwg.mxu0
        %3142 = vmatpush.bf16.msra.mxu0 %v2868
        %3143 = vmatpush.bf16.msra.mxu0 %v2852
        %3144 = vmatpush.bf16.msra.mxu0 %v2836
        %3145 = vmatpush.bf16.msra.mxu0 %v2820
        %3146 = vmatpush.bf16.msra.mxu0 %v2804
        %3147 = vmatpush.bf16.msra.mxu0 %v2788
        %3148 = vmatpush.bf16.msra.mxu0 %v2772
        %3149 = vmatpush.bf16.msra.mxu0 %v2756
        %3150 = vmatmul.bf16.gmra.mxu0 %v2197
        %v3151 = vpop.f32.mrf.mxu0
        %v3152 = vadd.f32 %v2340, %v3151
        %v3153 = vpop.f32.mrf.mxu0
        %v3154 = vadd.f32 %v2340, %v3153
        %3155 = vdwg.mxu0
        %3156 = vmatpush.bf16.msra.mxu0 %v2869
        %3157 = vmatpush.bf16.msra.mxu0 %v2853
        %3158 = vmatpush.bf16.msra.mxu0 %v2837
        %3159 = vmatpush.bf16.msra.mxu0 %v2821
        %3160 = vmatpush.bf16.msra.mxu0 %v2805
        %3161 = vmatpush.bf16.msra.mxu0 %v2789
        %3162 = vmatpush.bf16.msra.mxu0 %v2773
        %3163 = vmatpush.bf16.msra.mxu0 %v2757
        %3164 = vmatmul.bf16.gmra.mxu0 %v2197
        %v3165 = vpop.f32.mrf.mxu0
        %v3166 = vadd.f32 %v2341, %v3165
        %v3167 = vpop.f32.mrf.mxu0
        %v3168 = vadd.f32 %v2341, %v3167
        %3169 = vdwg.mxu0
        %3170 = vmatpush.bf16.msra.mxu0 %v2870
        %3171 = vmatpush.bf16.msra.mxu0 %v2854
        %3172 = vmatpush.bf16.msra.mxu0 %v2838
        %3173 = vmatpush.bf16.msra.mxu0 %v2822
        %3174 = vmatpush.bf16.msra.mxu0 %v2806
        %3175 = vmatpush.bf16.msra.mxu0 %v2790
        %3176 = vmatpush.bf16.msra.mxu0 %v2774
        %3177 = vmatpush.bf16.msra.mxu0 %v2758
        %3178 = vmatmul.bf16.gmra.mxu0 %v2197
        %v3179 = vpop.f32.mrf.mxu0
        %v3180 = vadd.f32 %v2342, %v3179
        %v3181 = vpop.f32.mrf.mxu0
        %v3182 = vadd.f32 %v2342, %v3181
        %3183 = vdwg.mxu0
        %3184 = vmatpush.bf16.msra.mxu0 %v2871
        %3185 = vmatpush.bf16.msra.mxu0 %v2855
        %3186 = vmatpush.bf16.msra.mxu0 %v2839
        %3187 = vmatpush.bf16.msra.mxu0 %v2823
        %3188 = vmatpush.bf16.msra.mxu0 %v2807
        %3189 = vmatpush.bf16.msra.mxu0 %v2791
        %3190 = vmatpush.bf16.msra.mxu0 %v2775
        %3191 = vmatpush.bf16.msra.mxu0 %v2759
        %3192 = vmatmul.bf16.gmra.mxu0 %v2197
        %v3193 = vpop.f32.mrf.mxu0
        %v3194 = vadd.f32 %v2343, %v3193
        %v3195 = vpop.f32.mrf.mxu0
        %v3196 = vadd.f32 %v2343, %v3195
        %3197 = vdwg.mxu0
        %3198 = vmatpush.bf16.msra.mxu0 %v2872
        %3199 = vmatpush.bf16.msra.mxu0 %v2856
        %3200 = vmatpush.bf16.msra.mxu0 %v2840
        %3201 = vmatpush.bf16.msra.mxu0 %v2824
        %3202 = vmatpush.bf16.msra.mxu0 %v2808
        %3203 = vmatpush.bf16.msra.mxu0 %v2792
        %3204 = vmatpush.bf16.msra.mxu0 %v2776
        %3205 = vmatpush.bf16.msra.mxu0 %v2760
        %3206 = vmatmul.bf16.gmra.mxu0 %v2197
        %v3207 = vpop.f32.mrf.mxu0
        %v3208 = vadd.f32 %v2344, %v3207
        %v3209 = vpop.f32.mrf.mxu0
        %v3210 = vadd.f32 %v2344, %v3209
        %3211 = vdwg.mxu0
        %3212 = vmatpush.bf16.msra.mxu0 %v2873
        %3213 = vmatpush.bf16.msra.mxu0 %v2857
        %3214 = vmatpush.bf16.msra.mxu0 %v2841
        %3215 = vmatpush.bf16.msra.mxu0 %v2825
        %3216 = vmatpush.bf16.msra.mxu0 %v2809
        %3217 = vmatpush.bf16.msra.mxu0 %v2793
        %3218 = vmatpush.bf16.msra.mxu0 %v2777
        %3219 = vmatpush.bf16.msra.mxu0 %v2761
        %3220 = vmatmul.bf16.gmra.mxu0 %v2197
        %v3221 = vpop.f32.mrf.mxu0
        %v3222 = vadd.f32 %v2345, %v3221
        %v3223 = vpop.f32.mrf.mxu0
        %v3224 = vadd.f32 %v2345, %v3223
        %3225 = vdwg.mxu0
        %v3226 = vmax.f32 %v3012, 0.0
        %v3227 = vmax.f32 %v3026, 0.0
        %v3228 = vmax.f32 %v3040, 0.0
        %v3229 = vmax.f32 %v3054, 0.0
        %v3230 = vmax.f32 %v3068, 0.0
        %v3231 = vmax.f32 %v3082, 0.0
        %v3232 = vmax.f32 %v3096, 0.0
        %v3233 = vmax.f32 %v3110, 0.0
        %v3234 = vmax.f32 %v3124, 0.0
        %v3235 = vmax.f32 %v3138, 0.0
        %v3236 = vmax.f32 %v3152, 0.0
        %v3237 = vmax.f32 %v3166, 0.0
        %v3238 = vmax.f32 %v3180, 0.0
        %v3239 = vmax.f32 %v3194, 0.0
        %v3240 = vmax.f32 %v3208, 0.0
        %v3241 = vmax.f32 %v3222, 0.0
        %v3242 = vmax.f32 %v3014, 0.0
        %v3243 = vmax.f32 %v3028, 0.0
        %v3244 = vmax.f32 %v3042, 0.0
        %v3245 = vmax.f32 %v3056, 0.0
        %v3246 = vmax.f32 %v3070, 0.0
        %v3247 = vmax.f32 %v3084, 0.0
        %v3248 = vmax.f32 %v3098, 0.0
        %v3249 = vmax.f32 %v3112, 0.0
        %v3250 = vmax.f32 %v3126, 0.0
        %v3251 = vmax.f32 %v3140, 0.0
        %v3252 = vmax.f32 %v3154, 0.0
        %v3253 = vmax.f32 %v3168, 0.0
        %v3254 = vmax.f32 %v3182, 0.0
        %v3255 = vmax.f32 %v3196, 0.0
        %v3256 = vmax.f32 %v3210, 0.0
        %v3257 = vmax.f32 %v3224, 0.0
        %v3258 = vpack.c.bf16 %v3242, %v3226
        %v3259 = vpack.c.bf16 %v3243, %v3227
        %v3260 = vpack.c.bf16 %v3244, %v3228
        %v3261 = vpack.c.bf16 %v3245, %v3229
        %v3262 = vpack.c.bf16 %v3246, %v3230
        %v3263 = vpack.c.bf16 %v3247, %v3231
        %v3264 = vpack.c.bf16 %v3248, %v3232
        %v3265 = vpack.c.bf16 %v3249, %v3233
        %v3266 = vpack.c.bf16 %v3250, %v3234
        %v3267 = vpack.c.bf16 %v3251, %v3235
        %v3268 = vpack.c.bf16 %v3252, %v3236
        %v3269 = vpack.c.bf16 %v3253, %v3237
        %v3270 = vpack.c.bf16 %v3254, %v3238
        %v3271 = vpack.c.bf16 %v3255, %v3239
        %v3272 = vpack.c.bf16 %v3256, %v3240
        %v3273 = vpack.c.bf16 %v3257, %v3241
        %v3274 = vld [vmem:[%s1280] sm:$0xf]
        %v3275 = vld [vmem:[%s1280 + $0x4] sm:$0xf]
        %v3276 = vld [vmem:[%s1280 + $0x8] sm:$0xf]
        %v3277 = vld [vmem:[%s1280 + $0xc] sm:$0xf]
        %v3278 = vld [vmem:[%s1280 + $0x10] sm:$0xf]
        %v3279 = vld [vmem:[%s1280 + $0x14] sm:$0xf]
        %v3280 = vld [vmem:[%s1280 + $0x18] sm:$0xf]
        %v3281 = vld [vmem:[%s1280 + $0x1c] sm:$0xf]
        %v3282 = vld [vmem:[%s1280 + $0x20] sm:$0xf]
        %v3283 = vld [vmem:[%s1280 + $0x24] sm:$0xf]
        %v3284 = vld [vmem:[%s1280 + $0x28] sm:$0xf]
        %v3285 = vld [vmem:[%s1280 + $0x2c] sm:$0xf]
        %v3286 = vld [vmem:[%s1280 + $0x30] sm:$0xf]
        %v3287 = vld [vmem:[%s1280 + $0x34] sm:$0xf]
        %v3288 = vld [vmem:[%s1280 + $0x38] sm:$0xf]
        %v3289 = vld [vmem:[%s1280 + $0x3c] sm:$0xf]
        %v3290 = vld [vmem:[%s1280 + $0x40] sm:$0xf]
        %v3291 = vld [vmem:[%s1280 + $0x44] sm:$0xf]
        %v3292 = vld [vmem:[%s1280 + $0x48] sm:$0xf]
        %v3293 = vld [vmem:[%s1280 + $0x4c] sm:$0xf]
        %v3294 = vld [vmem:[%s1280 + $0x50] sm:$0xf]
        %v3295 = vld [vmem:[%s1280 + $0x54] sm:$0xf]
        %v3296 = vld [vmem:[%s1280 + $0x58] sm:$0xf]
        %v3297 = vld [vmem:[%s1280 + $0x5c] sm:$0xf]
        %v3298 = vld [vmem:[%s1280 + $0x60] sm:$0xf]
        %v3299 = vld [vmem:[%s1280 + $0x64] sm:$0xf]
        %v3300 = vld [vmem:[%s1280 + $0x68] sm:$0xf]
        %v3301 = vld [vmem:[%s1280 + $0x6c] sm:$0xf]
        %v3302 = vld [vmem:[%s1280 + $0x70] sm:$0xf]
        %v3303 = vld [vmem:[%s1280 + $0x74] sm:$0xf]
        %v3304 = vld [vmem:[%s1280 + $0x78] sm:$0xf]
        %v3305 = vld [vmem:[%s1280 + $0x7c] sm:$0xf]
        %v3306 = vld [vmem:[%s1280 + $0x80] sm:$0xf]
        %v3307 = vld [vmem:[%s1280 + $0x84] sm:$0xf]
        %v3308 = vld [vmem:[%s1280 + $0x88] sm:$0xf]
        %v3309 = vld [vmem:[%s1280 + $0x8c] sm:$0xf]
        %v3310 = vld [vmem:[%s1280 + $0x90] sm:$0xf]
        %v3311 = vld [vmem:[%s1280 + $0x94] sm:$0xf]
        %v3312 = vld [vmem:[%s1280 + $0x98] sm:$0xf]
        %v3313 = vld [vmem:[%s1280 + $0x9c] sm:$0xf]
        %v3314 = vld [vmem:[%s1280 + $0xa0] sm:$0xf]
        %v3315 = vld [vmem:[%s1280 + $0xa4] sm:$0xf]
        %v3316 = vld [vmem:[%s1280 + $0xa8] sm:$0xf]
        %v3317 = vld [vmem:[%s1280 + $0xac] sm:$0xf]
        %v3318 = vld [vmem:[%s1280 + $0xb0] sm:$0xf]
        %v3319 = vld [vmem:[%s1280 + $0xb4] sm:$0xf]
        %v3320 = vld [vmem:[%s1280 + $0xb8] sm:$0xf]
        %v3321 = vld [vmem:[%s1280 + $0xbc] sm:$0xf]
        %v3322 = vld [vmem:[%s1280 + $0xc0] sm:$0xf]
        %v3323 = vld [vmem:[%s1280 + $0xc4] sm:$0xf]
        %v3324 = vld [vmem:[%s1280 + $0xc8] sm:$0xf]
        %v3325 = vld [vmem:[%s1280 + $0xcc] sm:$0xf]
        %v3326 = vld [vmem:[%s1280 + $0xd0] sm:$0xf]
        %v3327 = vld [vmem:[%s1280 + $0xd4] sm:$0xf]
        %v3328 = vld [vmem:[%s1280 + $0xd8] sm:$0xf]
        %v3329 = vld [vmem:[%s1280 + $0xdc] sm:$0xf]
        %v3330 = vld [vmem:[%s1280 + $0xe0] sm:$0xf]
        %v3331 = vld [vmem:[%s1280 + $0xe4] sm:$0xf]
        %v3332 = vld [vmem:[%s1280 + $0xe8] sm:$0xf]
        %v3333 = vld [vmem:[%s1280 + $0xec] sm:$0xf]
        %v3334 = vld [vmem:[%s1280 + $0xf0] sm:$0xf]
        %v3335 = vld [vmem:[%s1280 + $0xf4] sm:$0xf]
        %v3336 = vld [vmem:[%s1280 + $0xf8] sm:$0xf]
        %v3337 = vld [vmem:[%s1280 + $0xfc] sm:$0xf]
        %v3338 = vld [vmem:[%s1280 + $0x100] sm:$0xf]
        %v3339 = vld [vmem:[%s1280 + $0x104] sm:$0xf]
        %v3340 = vld [vmem:[%s1280 + $0x108] sm:$0xf]
        %v3341 = vld [vmem:[%s1280 + $0x10c] sm:$0xf]
        %v3342 = vld [vmem:[%s1280 + $0x110] sm:$0xf]
        %v3343 = vld [vmem:[%s1280 + $0x114] sm:$0xf]
        %v3344 = vld [vmem:[%s1280 + $0x118] sm:$0xf]
        %v3345 = vld [vmem:[%s1280 + $0x11c] sm:$0xf]
        %v3346 = vld [vmem:[%s1280 + $0x120] sm:$0xf]
        %v3347 = vld [vmem:[%s1280 + $0x124] sm:$0xf]
        %v3348 = vld [vmem:[%s1280 + $0x128] sm:$0xf]
        %v3349 = vld [vmem:[%s1280 + $0x12c] sm:$0xf]
        %v3350 = vld [vmem:[%s1280 + $0x130] sm:$0xf]
        %v3351 = vld [vmem:[%s1280 + $0x134] sm:$0xf]
        %v3352 = vld [vmem:[%s1280 + $0x138] sm:$0xf]
        %v3353 = vld [vmem:[%s1280 + $0x13c] sm:$0xf]
        %v3354 = vld [vmem:[%s1280 + $0x140] sm:$0xf]
        %v3355 = vld [vmem:[%s1280 + $0x144] sm:$0xf]
        %v3356 = vld [vmem:[%s1280 + $0x148] sm:$0xf]
        %v3357 = vld [vmem:[%s1280 + $0x14c] sm:$0xf]
        %v3358 = vld [vmem:[%s1280 + $0x150] sm:$0xf]
        %v3359 = vld [vmem:[%s1280 + $0x154] sm:$0xf]
        %v3360 = vld [vmem:[%s1280 + $0x158] sm:$0xf]
        %v3361 = vld [vmem:[%s1280 + $0x15c] sm:$0xf]
        %v3362 = vld [vmem:[%s1280 + $0x160] sm:$0xf]
        %v3363 = vld [vmem:[%s1280 + $0x164] sm:$0xf]
        %v3364 = vld [vmem:[%s1280 + $0x168] sm:$0xf]
        %v3365 = vld [vmem:[%s1280 + $0x16c] sm:$0xf]
        %v3366 = vld [vmem:[%s1280 + $0x170] sm:$0xf]
        %v3367 = vld [vmem:[%s1280 + $0x174] sm:$0xf]
        %v3368 = vld [vmem:[%s1280 + $0x178] sm:$0xf]
        %v3369 = vld [vmem:[%s1280 + $0x17c] sm:$0xf]
        %v3370 = vld [vmem:[%s1280 + $0x180] sm:$0xf]
        %v3371 = vld [vmem:[%s1280 + $0x184] sm:$0xf]
        %v3372 = vld [vmem:[%s1280 + $0x188] sm:$0xf]
        %v3373 = vld [vmem:[%s1280 + $0x18c] sm:$0xf]
        %v3374 = vld [vmem:[%s1280 + $0x190] sm:$0xf]
        %v3375 = vld [vmem:[%s1280 + $0x194] sm:$0xf]
        %v3376 = vld [vmem:[%s1280 + $0x198] sm:$0xf]
        %v3377 = vld [vmem:[%s1280 + $0x19c] sm:$0xf]
        %v3378 = vld [vmem:[%s1280 + $0x1a0] sm:$0xf]
        %v3379 = vld [vmem:[%s1280 + $0x1a4] sm:$0xf]
        %v3380 = vld [vmem:[%s1280 + $0x1a8] sm:$0xf]
        %v3381 = vld [vmem:[%s1280 + $0x1ac] sm:$0xf]
        %v3382 = vld [vmem:[%s1280 + $0x1b0] sm:$0xf]
        %v3383 = vld [vmem:[%s1280 + $0x1b4] sm:$0xf]
        %v3384 = vld [vmem:[%s1280 + $0x1b8] sm:$0xf]
        %v3385 = vld [vmem:[%s1280 + $0x1bc] sm:$0xf]
        %v3386 = vld [vmem:[%s1280 + $0x1c0] sm:$0xf]
        %v3387 = vld [vmem:[%s1280 + $0x1c4] sm:$0xf]
        %v3388 = vld [vmem:[%s1280 + $0x1c8] sm:$0xf]
        %v3389 = vld [vmem:[%s1280 + $0x1cc] sm:$0xf]
        %v3390 = vld [vmem:[%s1280 + $0x1d0] sm:$0xf]
        %v3391 = vld [vmem:[%s1280 + $0x1d4] sm:$0xf]
        %v3392 = vld [vmem:[%s1280 + $0x1d8] sm:$0xf]
        %v3393 = vld [vmem:[%s1280 + $0x1dc] sm:$0xf]
        %v3394 = vld [vmem:[%s1280 + $0x1e0] sm:$0xf]
        %v3395 = vld [vmem:[%s1280 + $0x1e4] sm:$0xf]
        %v3396 = vld [vmem:[%s1280 + $0x1e8] sm:$0xf]
        %v3397 = vld [vmem:[%s1280 + $0x1ec] sm:$0xf]
        %v3398 = vld [vmem:[%s1280 + $0x1f0] sm:$0xf]
        %v3399 = vld [vmem:[%s1280 + $0x1f4] sm:$0xf]
        %v3400 = vld [vmem:[%s1280 + $0x1f8] sm:$0xf]
        %v3401 = vld [vmem:[%s1280 + $0x1fc] sm:$0xf]
        %v3402 = vld [vmem:[%s1280 + $0x200] sm:$0xf]
        %v3403 = vld [vmem:[%s1280 + $0x204] sm:$0xf]
        %v3404 = vld [vmem:[%s1280 + $0x208] sm:$0xf]
        %v3405 = vld [vmem:[%s1280 + $0x20c] sm:$0xf]
        %v3406 = vld [vmem:[%s1280 + $0x210] sm:$0xf]
        %v3407 = vld [vmem:[%s1280 + $0x214] sm:$0xf]
        %v3408 = vld [vmem:[%s1280 + $0x218] sm:$0xf]
        %v3409 = vld [vmem:[%s1280 + $0x21c] sm:$0xf]
        %v3410 = vld [vmem:[%s1280 + $0x220] sm:$0xf]
        %v3411 = vld [vmem:[%s1280 + $0x224] sm:$0xf]
        %v3412 = vld [vmem:[%s1280 + $0x228] sm:$0xf]
        %v3413 = vld [vmem:[%s1280 + $0x22c] sm:$0xf]
        %v3414 = vld [vmem:[%s1280 + $0x230] sm:$0xf]
        %v3415 = vld [vmem:[%s1280 + $0x234] sm:$0xf]
        %v3416 = vld [vmem:[%s1280 + $0x238] sm:$0xf]
        %v3417 = vld [vmem:[%s1280 + $0x23c] sm:$0xf]
        %v3418 = vld [vmem:[%s1280 + $0x240] sm:$0xf]
        %v3419 = vld [vmem:[%s1280 + $0x244] sm:$0xf]
        %v3420 = vld [vmem:[%s1280 + $0x248] sm:$0xf]
        %v3421 = vld [vmem:[%s1280 + $0x24c] sm:$0xf]
        %v3422 = vld [vmem:[%s1280 + $0x250] sm:$0xf]
        %v3423 = vld [vmem:[%s1280 + $0x254] sm:$0xf]
        %v3424 = vld [vmem:[%s1280 + $0x258] sm:$0xf]
        %v3425 = vld [vmem:[%s1280 + $0x25c] sm:$0xf]
        %v3426 = vld [vmem:[%s1280 + $0x260] sm:$0xf]
        %v3427 = vld [vmem:[%s1280 + $0x264] sm:$0xf]
        %v3428 = vld [vmem:[%s1280 + $0x268] sm:$0xf]
        %v3429 = vld [vmem:[%s1280 + $0x26c] sm:$0xf]
        %v3430 = vld [vmem:[%s1280 + $0x270] sm:$0xf]
        %v3431 = vld [vmem:[%s1280 + $0x274] sm:$0xf]
        %v3432 = vld [vmem:[%s1280 + $0x278] sm:$0xf]
        %v3433 = vld [vmem:[%s1280 + $0x27c] sm:$0xf]
        %v3434 = vld [vmem:[%s1280 + $0x280] sm:$0xf]
        %v3435 = vld [vmem:[%s1280 + $0x284] sm:$0xf]
        %v3436 = vld [vmem:[%s1280 + $0x288] sm:$0xf]
        %v3437 = vld [vmem:[%s1280 + $0x28c] sm:$0xf]
        %v3438 = vld [vmem:[%s1280 + $0x290] sm:$0xf]
        %v3439 = vld [vmem:[%s1280 + $0x294] sm:$0xf]
        %v3440 = vld [vmem:[%s1280 + $0x298] sm:$0xf]
        %v3441 = vld [vmem:[%s1280 + $0x29c] sm:$0xf]
        %v3442 = vld [vmem:[%s1280 + $0x2a0] sm:$0xf]
        %v3443 = vld [vmem:[%s1280 + $0x2a4] sm:$0xf]
        %v3444 = vld [vmem:[%s1280 + $0x2a8] sm:$0xf]
        %v3445 = vld [vmem:[%s1280 + $0x2ac] sm:$0xf]
        %v3446 = vld [vmem:[%s1280 + $0x2b0] sm:$0xf]
        %v3447 = vld [vmem:[%s1280 + $0x2b4] sm:$0xf]
        %v3448 = vld [vmem:[%s1280 + $0x2b8] sm:$0xf]
        %v3449 = vld [vmem:[%s1280 + $0x2bc] sm:$0xf]
        %v3450 = vld [vmem:[%s1280 + $0x2c0] sm:$0xf]
        %v3451 = vld [vmem:[%s1280 + $0x2c4] sm:$0xf]
        %v3452 = vld [vmem:[%s1280 + $0x2c8] sm:$0xf]
        %v3453 = vld [vmem:[%s1280 + $0x2cc] sm:$0xf]
        %v3454 = vld [vmem:[%s1280 + $0x2d0] sm:$0xf]
        %v3455 = vld [vmem:[%s1280 + $0x2d4] sm:$0xf]
        %v3456 = vld [vmem:[%s1280 + $0x2d8] sm:$0xf]
        %v3457 = vld [vmem:[%s1280 + $0x2dc] sm:$0xf]
        %v3458 = vld [vmem:[%s1280 + $0x2e0] sm:$0xf]
        %v3459 = vld [vmem:[%s1280 + $0x2e4] sm:$0xf]
        %v3460 = vld [vmem:[%s1280 + $0x2e8] sm:$0xf]
        %v3461 = vld [vmem:[%s1280 + $0x2ec] sm:$0xf]
        %v3462 = vld [vmem:[%s1280 + $0x2f0] sm:$0xf]
        %v3463 = vld [vmem:[%s1280 + $0x2f4] sm:$0xf]
        %v3464 = vld [vmem:[%s1280 + $0x2f8] sm:$0xf]
        %v3465 = vld [vmem:[%s1280 + $0x2fc] sm:$0xf]
        %v3466 = vld [vmem:[%s1280 + $0x300] sm:$0xf]
        %v3467 = vld [vmem:[%s1280 + $0x304] sm:$0xf]
        %v3468 = vld [vmem:[%s1280 + $0x308] sm:$0xf]
        %v3469 = vld [vmem:[%s1280 + $0x30c] sm:$0xf]
        %v3470 = vld [vmem:[%s1280 + $0x310] sm:$0xf]
        %v3471 = vld [vmem:[%s1280 + $0x314] sm:$0xf]
        %v3472 = vld [vmem:[%s1280 + $0x318] sm:$0xf]
        %v3473 = vld [vmem:[%s1280 + $0x31c] sm:$0xf]
        %v3474 = vld [vmem:[%s1280 + $0x320] sm:$0xf]
        %v3475 = vld [vmem:[%s1280 + $0x324] sm:$0xf]
        %v3476 = vld [vmem:[%s1280 + $0x328] sm:$0xf]
        %v3477 = vld [vmem:[%s1280 + $0x32c] sm:$0xf]
        %v3478 = vld [vmem:[%s1280 + $0x330] sm:$0xf]
        %v3479 = vld [vmem:[%s1280 + $0x334] sm:$0xf]
        %v3480 = vld [vmem:[%s1280 + $0x338] sm:$0xf]
        %v3481 = vld [vmem:[%s1280 + $0x33c] sm:$0xf]
        %v3482 = vld [vmem:[%s1280 + $0x340] sm:$0xf]
        %v3483 = vld [vmem:[%s1280 + $0x344] sm:$0xf]
        %v3484 = vld [vmem:[%s1280 + $0x348] sm:$0xf]
        %v3485 = vld [vmem:[%s1280 + $0x34c] sm:$0xf]
        %v3486 = vld [vmem:[%s1280 + $0x350] sm:$0xf]
        %v3487 = vld [vmem:[%s1280 + $0x354] sm:$0xf]
        %v3488 = vld [vmem:[%s1280 + $0x358] sm:$0xf]
        %v3489 = vld [vmem:[%s1280 + $0x35c] sm:$0xf]
        %v3490 = vld [vmem:[%s1280 + $0x360] sm:$0xf]
        %v3491 = vld [vmem:[%s1280 + $0x364] sm:$0xf]
        %v3492 = vld [vmem:[%s1280 + $0x368] sm:$0xf]
        %v3493 = vld [vmem:[%s1280 + $0x36c] sm:$0xf]
        %v3494 = vld [vmem:[%s1280 + $0x370] sm:$0xf]
        %v3495 = vld [vmem:[%s1280 + $0x374] sm:$0xf]
        %v3496 = vld [vmem:[%s1280 + $0x378] sm:$0xf]
        %v3497 = vld [vmem:[%s1280 + $0x37c] sm:$0xf]
        %v3498 = vld [vmem:[%s1280 + $0x380] sm:$0xf]
        %v3499 = vld [vmem:[%s1280 + $0x384] sm:$0xf]
        %v3500 = vld [vmem:[%s1280 + $0x388] sm:$0xf]
        %v3501 = vld [vmem:[%s1280 + $0x38c] sm:$0xf]
        %v3502 = vld [vmem:[%s1280 + $0x390] sm:$0xf]
        %v3503 = vld [vmem:[%s1280 + $0x394] sm:$0xf]
        %v3504 = vld [vmem:[%s1280 + $0x398] sm:$0xf]
        %v3505 = vld [vmem:[%s1280 + $0x39c] sm:$0xf]
        %v3506 = vld [vmem:[%s1280 + $0x3a0] sm:$0xf]
        %v3507 = vld [vmem:[%s1280 + $0x3a4] sm:$0xf]
        %v3508 = vld [vmem:[%s1280 + $0x3a8] sm:$0xf]
        %v3509 = vld [vmem:[%s1280 + $0x3ac] sm:$0xf]
        %v3510 = vld [vmem:[%s1280 + $0x3b0] sm:$0xf]
        %v3511 = vld [vmem:[%s1280 + $0x3b4] sm:$0xf]
        %v3512 = vld [vmem:[%s1280 + $0x3b8] sm:$0xf]
        %v3513 = vld [vmem:[%s1280 + $0x3bc] sm:$0xf]
        %v3514 = vld [vmem:[%s1280 + $0x3c0] sm:$0xf]
        %v3515 = vld [vmem:[%s1280 + $0x3c4] sm:$0xf]
        %v3516 = vld [vmem:[%s1280 + $0x3c8] sm:$0xf]
        %v3517 = vld [vmem:[%s1280 + $0x3cc] sm:$0xf]
        %v3518 = vld [vmem:[%s1280 + $0x3d0] sm:$0xf]
        %v3519 = vld [vmem:[%s1280 + $0x3d4] sm:$0xf]
        %v3520 = vld [vmem:[%s1280 + $0x3d8] sm:$0xf]
        %v3521 = vld [vmem:[%s1280 + $0x3dc] sm:$0xf]
        %v3522 = vld [vmem:[%s1280 + $0x3e0] sm:$0xf]
        %v3523 = vld [vmem:[%s1280 + $0x3e4] sm:$0xf]
        %v3524 = vld [vmem:[%s1280 + $0x3e8] sm:$0xf]
        %v3525 = vld [vmem:[%s1280 + $0x3ec] sm:$0xf]
        %v3526 = vld [vmem:[%s1280 + $0x3f0] sm:$0xf]
        %v3527 = vld [vmem:[%s1280 + $0x3f4] sm:$0xf]
        %v3528 = vld [vmem:[%s1280 + $0x3f8] sm:$0xf]
        %v3529 = vld [vmem:[%s1280 + $0x3fc] sm:$0xf]
        %v3530 = vld [vmem:[%s1064] sm:$0x1]
        %v3532 = vperm.slane %v3530, 0
        %v3790 = vunpack.c.l.b16 %v3274
        %v3791 = vunpack.c.l.b16 %v3275
        %v3792 = vunpack.c.l.b16 %v3276
        %v3793 = vunpack.c.l.b16 %v3277
        %v3794 = vunpack.c.l.b16 %v3278
        %v3795 = vunpack.c.l.b16 %v3279
        %v3796 = vunpack.c.l.b16 %v3280
        %v3797 = vunpack.c.l.b16 %v3281
        %v3798 = vunpack.c.l.b16 %v3282
        %v3799 = vunpack.c.l.b16 %v3283
        %v3800 = vunpack.c.l.b16 %v3284
        %v3801 = vunpack.c.l.b16 %v3285
        %v3802 = vunpack.c.l.b16 %v3286
        %v3803 = vunpack.c.l.b16 %v3287
        %v3804 = vunpack.c.l.b16 %v3288
        %v3805 = vunpack.c.l.b16 %v3289
        %v3806 = vunpack.c.l.b16 %v3290
        %v3807 = vunpack.c.l.b16 %v3291
        %v3808 = vunpack.c.l.b16 %v3292
        %v3809 = vunpack.c.l.b16 %v3293
        %v3810 = vunpack.c.l.b16 %v3294
        %v3811 = vunpack.c.l.b16 %v3295
        %v3812 = vunpack.c.l.b16 %v3296
        %v3813 = vunpack.c.l.b16 %v3297
        %v3814 = vunpack.c.l.b16 %v3298
        %v3815 = vunpack.c.l.b16 %v3299
        %v3816 = vunpack.c.l.b16 %v3300
        %v3817 = vunpack.c.l.b16 %v3301
        %v3818 = vunpack.c.l.b16 %v3302
        %v3819 = vunpack.c.l.b16 %v3303
        %v3820 = vunpack.c.l.b16 %v3304
        %v3821 = vunpack.c.l.b16 %v3305
        %v3822 = vunpack.c.l.b16 %v3306
        %v3823 = vunpack.c.l.b16 %v3307
        %v3824 = vunpack.c.l.b16 %v3308
        %v3825 = vunpack.c.l.b16 %v3309
        %v3826 = vunpack.c.l.b16 %v3310
        %v3827 = vunpack.c.l.b16 %v3311
        %v3828 = vunpack.c.l.b16 %v3312
        %v3829 = vunpack.c.l.b16 %v3313
        %v3830 = vunpack.c.l.b16 %v3314
        %v3831 = vunpack.c.l.b16 %v3315
        %v3832 = vunpack.c.l.b16 %v3316
        %v3833 = vunpack.c.l.b16 %v3317
        %v3834 = vunpack.c.l.b16 %v3318
        %v3835 = vunpack.c.l.b16 %v3319
        %v3836 = vunpack.c.l.b16 %v3320
        %v3837 = vunpack.c.l.b16 %v3321
        %v3838 = vunpack.c.l.b16 %v3322
        %v3839 = vunpack.c.l.b16 %v3323
        %v3840 = vunpack.c.l.b16 %v3324
        %v3841 = vunpack.c.l.b16 %v3325
        %v3842 = vunpack.c.l.b16 %v3326
        %v3843 = vunpack.c.l.b16 %v3327
        %v3844 = vunpack.c.l.b16 %v3328
        %v3845 = vunpack.c.l.b16 %v3329
        %v3846 = vunpack.c.l.b16 %v3330
        %v3847 = vunpack.c.l.b16 %v3331
        %v3848 = vunpack.c.l.b16 %v3332
        %v3849 = vunpack.c.l.b16 %v3333
        %v3850 = vunpack.c.l.b16 %v3334
        %v3851 = vunpack.c.l.b16 %v3335
        %v3852 = vunpack.c.l.b16 %v3336
        %v3853 = vunpack.c.l.b16 %v3337
        %v3854 = vunpack.c.l.b16 %v3338
        %v3855 = vunpack.c.l.b16 %v3339
        %v3856 = vunpack.c.l.b16 %v3340
        %v3857 = vunpack.c.l.b16 %v3341
        %v3858 = vunpack.c.l.b16 %v3342
        %v3859 = vunpack.c.l.b16 %v3343
        %v3860 = vunpack.c.l.b16 %v3344
        %v3861 = vunpack.c.l.b16 %v3345
        %v3862 = vunpack.c.l.b16 %v3346
        %v3863 = vunpack.c.l.b16 %v3347
        %v3864 = vunpack.c.l.b16 %v3348
        %v3865 = vunpack.c.l.b16 %v3349
        %v3866 = vunpack.c.l.b16 %v3350
        %v3867 = vunpack.c.l.b16 %v3351
        %v3868 = vunpack.c.l.b16 %v3352
        %v3869 = vunpack.c.l.b16 %v3353
        %v3870 = vunpack.c.l.b16 %v3354
        %v3871 = vunpack.c.l.b16 %v3355
        %v3872 = vunpack.c.l.b16 %v3356
        %v3873 = vunpack.c.l.b16 %v3357
        %v3874 = vunpack.c.l.b16 %v3358
        %v3875 = vunpack.c.l.b16 %v3359
        %v3876 = vunpack.c.l.b16 %v3360
        %v3877 = vunpack.c.l.b16 %v3361
        %v3878 = vunpack.c.l.b16 %v3362
        %v3879 = vunpack.c.l.b16 %v3363
        %v3880 = vunpack.c.l.b16 %v3364
        %v3881 = vunpack.c.l.b16 %v3365
        %v3882 = vunpack.c.l.b16 %v3366
        %v3883 = vunpack.c.l.b16 %v3367
        %v3884 = vunpack.c.l.b16 %v3368
        %v3885 = vunpack.c.l.b16 %v3369
        %v3886 = vunpack.c.l.b16 %v3370
        %v3887 = vunpack.c.l.b16 %v3371
        %v3888 = vunpack.c.l.b16 %v3372
        %v3889 = vunpack.c.l.b16 %v3373
        %v3890 = vunpack.c.l.b16 %v3374
        %v3891 = vunpack.c.l.b16 %v3375
        %v3892 = vunpack.c.l.b16 %v3376
        %v3893 = vunpack.c.l.b16 %v3377
        %v3894 = vunpack.c.l.b16 %v3378
        %v3895 = vunpack.c.l.b16 %v3379
        %v3896 = vunpack.c.l.b16 %v3380
        %v3897 = vunpack.c.l.b16 %v3381
        %v3898 = vunpack.c.l.b16 %v3382
        %v3899 = vunpack.c.l.b16 %v3383
        %v3900 = vunpack.c.l.b16 %v3384
        %v3901 = vunpack.c.l.b16 %v3385
        %v3902 = vunpack.c.l.b16 %v3386
        %v3903 = vunpack.c.l.b16 %v3387
        %v3904 = vunpack.c.l.b16 %v3388
        %v3905 = vunpack.c.l.b16 %v3389
        %v3906 = vunpack.c.l.b16 %v3390
        %v3907 = vunpack.c.l.b16 %v3391
        %v3908 = vunpack.c.l.b16 %v3392
        %v3909 = vunpack.c.l.b16 %v3393
        %v3910 = vunpack.c.l.b16 %v3394
        %v3911 = vunpack.c.l.b16 %v3395
        %v3912 = vunpack.c.l.b16 %v3396
        %v3913 = vunpack.c.l.b16 %v3397
        %v3914 = vunpack.c.l.b16 %v3398
        %v3915 = vunpack.c.l.b16 %v3399
        %v3916 = vunpack.c.l.b16 %v3400
        %v3917 = vunpack.c.l.b16 %v3401
        %v3918 = vunpack.c.l.b16 %v3402
        %v3919 = vunpack.c.l.b16 %v3403
        %v3920 = vunpack.c.l.b16 %v3404
        %v3921 = vunpack.c.l.b16 %v3405
        %v3922 = vunpack.c.l.b16 %v3406
        %v3923 = vunpack.c.l.b16 %v3407
        %v3924 = vunpack.c.l.b16 %v3408
        %v3925 = vunpack.c.l.b16 %v3409
        %v3926 = vunpack.c.l.b16 %v3410
        %v3927 = vunpack.c.l.b16 %v3411
        %v3928 = vunpack.c.l.b16 %v3412
        %v3929 = vunpack.c.l.b16 %v3413
        %v3930 = vunpack.c.l.b16 %v3414
        %v3931 = vunpack.c.l.b16 %v3415
        %v3932 = vunpack.c.l.b16 %v3416
        %v3933 = vunpack.c.l.b16 %v3417
        %v3934 = vunpack.c.l.b16 %v3418
        %v3935 = vunpack.c.l.b16 %v3419
        %v3936 = vunpack.c.l.b16 %v3420
        %v3937 = vunpack.c.l.b16 %v3421
        %v3938 = vunpack.c.l.b16 %v3422
        %v3939 = vunpack.c.l.b16 %v3423
        %v3940 = vunpack.c.l.b16 %v3424
        %v3941 = vunpack.c.l.b16 %v3425
        %v3942 = vunpack.c.l.b16 %v3426
        %v3943 = vunpack.c.l.b16 %v3427
        %v3944 = vunpack.c.l.b16 %v3428
        %v3945 = vunpack.c.l.b16 %v3429
        %v3946 = vunpack.c.l.b16 %v3430
        %v3947 = vunpack.c.l.b16 %v3431
        %v3948 = vunpack.c.l.b16 %v3432
        %v3949 = vunpack.c.l.b16 %v3433
        %v3950 = vunpack.c.l.b16 %v3434
        %v3951 = vunpack.c.l.b16 %v3435
        %v3952 = vunpack.c.l.b16 %v3436
        %v3953 = vunpack.c.l.b16 %v3437
        %v3954 = vunpack.c.l.b16 %v3438
        %v3955 = vunpack.c.l.b16 %v3439
        %v3956 = vunpack.c.l.b16 %v3440
        %v3957 = vunpack.c.l.b16 %v3441
        %v3958 = vunpack.c.l.b16 %v3442
        %v3959 = vunpack.c.l.b16 %v3443
        %v3960 = vunpack.c.l.b16 %v3444
        %v3961 = vunpack.c.l.b16 %v3445
        %v3962 = vunpack.c.l.b16 %v3446
        %v3963 = vunpack.c.l.b16 %v3447
        %v3964 = vunpack.c.l.b16 %v3448
        %v3965 = vunpack.c.l.b16 %v3449
        %v3966 = vunpack.c.l.b16 %v3450
        %v3967 = vunpack.c.l.b16 %v3451
        %v3968 = vunpack.c.l.b16 %v3452
        %v3969 = vunpack.c.l.b16 %v3453
        %v3970 = vunpack.c.l.b16 %v3454
        %v3971 = vunpack.c.l.b16 %v3455
        %v3972 = vunpack.c.l.b16 %v3456
        %v3973 = vunpack.c.l.b16 %v3457
        %v3974 = vunpack.c.l.b16 %v3458
        %v3975 = vunpack.c.l.b16 %v3459
        %v3976 = vunpack.c.l.b16 %v3460
        %v3977 = vunpack.c.l.b16 %v3461
        %v3978 = vunpack.c.l.b16 %v3462
        %v3979 = vunpack.c.l.b16 %v3463
        %v3980 = vunpack.c.l.b16 %v3464
        %v3981 = vunpack.c.l.b16 %v3465
        %v3982 = vunpack.c.l.b16 %v3466
        %v3983 = vunpack.c.l.b16 %v3467
        %v3984 = vunpack.c.l.b16 %v3468
        %v3985 = vunpack.c.l.b16 %v3469
        %v3986 = vunpack.c.l.b16 %v3470
        %v3987 = vunpack.c.l.b16 %v3471
        %v3988 = vunpack.c.l.b16 %v3472
        %v3989 = vunpack.c.l.b16 %v3473
        %v3990 = vunpack.c.l.b16 %v3474
        %v3991 = vunpack.c.l.b16 %v3475
        %v3992 = vunpack.c.l.b16 %v3476
        %v3993 = vunpack.c.l.b16 %v3477
        %v3994 = vunpack.c.l.b16 %v3478
        %v3995 = vunpack.c.l.b16 %v3479
        %v3996 = vunpack.c.l.b16 %v3480
        %v3997 = vunpack.c.l.b16 %v3481
        %v3998 = vunpack.c.l.b16 %v3482
        %v3999 = vunpack.c.l.b16 %v3483
        %v4000 = vunpack.c.l.b16 %v3484
        %v4001 = vunpack.c.l.b16 %v3485
        %v4002 = vunpack.c.l.b16 %v3486
        %v4003 = vunpack.c.l.b16 %v3487
        %v4004 = vunpack.c.l.b16 %v3488
        %v4005 = vunpack.c.l.b16 %v3489
        %v4006 = vunpack.c.l.b16 %v3490
        %v4007 = vunpack.c.l.b16 %v3491
        %v4008 = vunpack.c.l.b16 %v3492
        %v4009 = vunpack.c.l.b16 %v3493
        %v4010 = vunpack.c.l.b16 %v3494
        %v4011 = vunpack.c.l.b16 %v3495
        %v4012 = vunpack.c.l.b16 %v3496
        %v4013 = vunpack.c.l.b16 %v3497
        %v4014 = vunpack.c.l.b16 %v3498
        %v4015 = vunpack.c.l.b16 %v3499
        %v4016 = vunpack.c.l.b16 %v3500
        %v4017 = vunpack.c.l.b16 %v3501
        %v4018 = vunpack.c.l.b16 %v3502
        %v4019 = vunpack.c.l.b16 %v3503
        %v4020 = vunpack.c.l.b16 %v3504
        %v4021 = vunpack.c.l.b16 %v3505
        %v4022 = vunpack.c.l.b16 %v3506
        %v4023 = vunpack.c.l.b16 %v3507
        %v4024 = vunpack.c.l.b16 %v3508
        %v4025 = vunpack.c.l.b16 %v3509
        %v4026 = vunpack.c.l.b16 %v3510
        %v4027 = vunpack.c.l.b16 %v3511
        %v4028 = vunpack.c.l.b16 %v3512
        %v4029 = vunpack.c.l.b16 %v3513
        %v4030 = vunpack.c.l.b16 %v3514
        %v4031 = vunpack.c.l.b16 %v3515
        %v4032 = vunpack.c.l.b16 %v3516
        %v4033 = vunpack.c.l.b16 %v3517
        %v4034 = vunpack.c.l.b16 %v3518
        %v4035 = vunpack.c.l.b16 %v3519
        %v4036 = vunpack.c.l.b16 %v3520
        %v4037 = vunpack.c.l.b16 %v3521
        %v4038 = vunpack.c.l.b16 %v3522
        %v4039 = vunpack.c.l.b16 %v3523
        %v4040 = vunpack.c.l.b16 %v3524
        %v4041 = vunpack.c.l.b16 %v3525
        %v4042 = vunpack.c.l.b16 %v3526
        %v4043 = vunpack.c.l.b16 %v3527
        %v4044 = vunpack.c.l.b16 %v3528
        %v4045 = vunpack.c.l.b16 %v3529
        %v4046 = vpack.c.b16 %v3791, %v3790
        %v4047 = vpack.c.b16 %v3793, %v3792
        %v4048 = vpack.c.b16 %v3795, %v3794
        %v4049 = vpack.c.b16 %v3797, %v3796
        %v4050 = vpack.c.b16 %v3799, %v3798
        %v4051 = vpack.c.b16 %v3801, %v3800
        %v4052 = vpack.c.b16 %v3803, %v3802
        %v4053 = vpack.c.b16 %v3805, %v3804
        %v4054 = vpack.c.b16 %v3807, %v3806
        %v4055 = vpack.c.b16 %v3809, %v3808
        %v4056 = vpack.c.b16 %v3811, %v3810
        %v4057 = vpack.c.b16 %v3813, %v3812
        %v4058 = vpack.c.b16 %v3815, %v3814
        %v4059 = vpack.c.b16 %v3817, %v3816
        %v4060 = vpack.c.b16 %v3819, %v3818
        %v4061 = vpack.c.b16 %v3821, %v3820
        %v4062 = vpack.c.b16 %v3823, %v3822
        %v4063 = vpack.c.b16 %v3825, %v3824
        %v4064 = vpack.c.b16 %v3827, %v3826
        %v4065 = vpack.c.b16 %v3829, %v3828
        %v4066 = vpack.c.b16 %v3831, %v3830
        %v4067 = vpack.c.b16 %v3833, %v3832
        %v4068 = vpack.c.b16 %v3835, %v3834
        %v4069 = vpack.c.b16 %v3837, %v3836
        %v4070 = vpack.c.b16 %v3839, %v3838
        %v4071 = vpack.c.b16 %v3841, %v3840
        %v4072 = vpack.c.b16 %v3843, %v3842
        %v4073 = vpack.c.b16 %v3845, %v3844
        %v4074 = vpack.c.b16 %v3847, %v3846
        %v4075 = vpack.c.b16 %v3849, %v3848
        %v4076 = vpack.c.b16 %v3851, %v3850
        %v4077 = vpack.c.b16 %v3853, %v3852
        %v4078 = vpack.c.b16 %v3855, %v3854
        %v4079 = vpack.c.b16 %v3857, %v3856
        %v4080 = vpack.c.b16 %v3859, %v3858
        %v4081 = vpack.c.b16 %v3861, %v3860
        %v4082 = vpack.c.b16 %v3863, %v3862
        %v4083 = vpack.c.b16 %v3865, %v3864
        %v4084 = vpack.c.b16 %v3867, %v3866
        %v4085 = vpack.c.b16 %v3869, %v3868
        %v4086 = vpack.c.b16 %v3871, %v3870
        %v4087 = vpack.c.b16 %v3873, %v3872
        %v4088 = vpack.c.b16 %v3875, %v3874
        %v4089 = vpack.c.b16 %v3877, %v3876
        %v4090 = vpack.c.b16 %v3879, %v3878
        %v4091 = vpack.c.b16 %v3881, %v3880
        %v4092 = vpack.c.b16 %v3883, %v3882
        %v4093 = vpack.c.b16 %v3885, %v3884
        %v4094 = vpack.c.b16 %v3887, %v3886
        %v4095 = vpack.c.b16 %v3889, %v3888
        %v4096 = vpack.c.b16 %v3891, %v3890
        %v4097 = vpack.c.b16 %v3893, %v3892
        %v4098 = vpack.c.b16 %v3895, %v3894
        %v4099 = vpack.c.b16 %v3897, %v3896
        %v4100 = vpack.c.b16 %v3899, %v3898
        %v4101 = vpack.c.b16 %v3901, %v3900
        %v4102 = vpack.c.b16 %v3903, %v3902
        %v4103 = vpack.c.b16 %v3905, %v3904
        %v4104 = vpack.c.b16 %v3907, %v3906
        %v4105 = vpack.c.b16 %v3909, %v3908
        %v4106 = vpack.c.b16 %v3911, %v3910
        %v4107 = vpack.c.b16 %v3913, %v3912
        %v4108 = vpack.c.b16 %v3915, %v3914
        %v4109 = vpack.c.b16 %v3917, %v3916
        %v4110 = vpack.c.b16 %v3919, %v3918
        %v4111 = vpack.c.b16 %v3921, %v3920
        %v4112 = vpack.c.b16 %v3923, %v3922
        %v4113 = vpack.c.b16 %v3925, %v3924
        %v4114 = vpack.c.b16 %v3927, %v3926
        %v4115 = vpack.c.b16 %v3929, %v3928
        %v4116 = vpack.c.b16 %v3931, %v3930
        %v4117 = vpack.c.b16 %v3933, %v3932
        %v4118 = vpack.c.b16 %v3935, %v3934
        %v4119 = vpack.c.b16 %v3937, %v3936
        %v4120 = vpack.c.b16 %v3939, %v3938
        %v4121 = vpack.c.b16 %v3941, %v3940
        %v4122 = vpack.c.b16 %v3943, %v3942
        %v4123 = vpack.c.b16 %v3945, %v3944
        %v4124 = vpack.c.b16 %v3947, %v3946
        %v4125 = vpack.c.b16 %v3949, %v3948
        %v4126 = vpack.c.b16 %v3951, %v3950
        %v4127 = vpack.c.b16 %v3953, %v3952
        %v4128 = vpack.c.b16 %v3955, %v3954
        %v4129 = vpack.c.b16 %v3957, %v3956
        %v4130 = vpack.c.b16 %v3959, %v3958
        %v4131 = vpack.c.b16 %v3961, %v3960
        %v4132 = vpack.c.b16 %v3963, %v3962
        %v4133 = vpack.c.b16 %v3965, %v3964
        %v4134 = vpack.c.b16 %v3967, %v3966
        %v4135 = vpack.c.b16 %v3969, %v3968
        %v4136 = vpack.c.b16 %v3971, %v3970
        %v4137 = vpack.c.b16 %v3973, %v3972
        %v4138 = vpack.c.b16 %v3975, %v3974
        %v4139 = vpack.c.b16 %v3977, %v3976
        %v4140 = vpack.c.b16 %v3979, %v3978
        %v4141 = vpack.c.b16 %v3981, %v3980
        %v4142 = vpack.c.b16 %v3983, %v3982
        %v4143 = vpack.c.b16 %v3985, %v3984
        %v4144 = vpack.c.b16 %v3987, %v3986
        %v4145 = vpack.c.b16 %v3989, %v3988
        %v4146 = vpack.c.b16 %v3991, %v3990
        %v4147 = vpack.c.b16 %v3993, %v3992
        %v4148 = vpack.c.b16 %v3995, %v3994
        %v4149 = vpack.c.b16 %v3997, %v3996
        %v4150 = vpack.c.b16 %v3999, %v3998
        %v4151 = vpack.c.b16 %v4001, %v4000
        %v4152 = vpack.c.b16 %v4003, %v4002
        %v4153 = vpack.c.b16 %v4005, %v4004
        %v4154 = vpack.c.b16 %v4007, %v4006
        %v4155 = vpack.c.b16 %v4009, %v4008
        %v4156 = vpack.c.b16 %v4011, %v4010
        %v4157 = vpack.c.b16 %v4013, %v4012
        %v4158 = vpack.c.b16 %v4015, %v4014
        %v4159 = vpack.c.b16 %v4017, %v4016
        %v4160 = vpack.c.b16 %v4019, %v4018
        %v4161 = vpack.c.b16 %v4021, %v4020
        %v4162 = vpack.c.b16 %v4023, %v4022
        %v4163 = vpack.c.b16 %v4025, %v4024
        %v4164 = vpack.c.b16 %v4027, %v4026
        %v4165 = vpack.c.b16 %v4029, %v4028
        %v4166 = vpack.c.b16 %v4031, %v4030
        %v4167 = vpack.c.b16 %v4033, %v4032
        %v4168 = vpack.c.b16 %v4035, %v4034
        %v4169 = vpack.c.b16 %v4037, %v4036
        %v4170 = vpack.c.b16 %v4039, %v4038
        %v4171 = vpack.c.b16 %v4041, %v4040
        %v4172 = vpack.c.b16 %v4043, %v4042
        %v4173 = vpack.c.b16 %v4045, %v4044
        %4302 = vmatpush.bf16.msra.mxu0 %v4053
        %4303 = vmatpush.bf16.msra.mxu0 %v4052
        %4304 = vmatpush.bf16.msra.mxu0 %v4051
        %4305 = vmatpush.bf16.msra.mxu0 %v4050
        %4306 = vmatpush.bf16.msra.mxu0 %v4049
        %4307 = vmatpush.bf16.msra.mxu0 %v4048
        %4308 = vmatpush.bf16.msra.mxu0 %v4047
        %4309 = vmatpush.bf16.msra.mxu0 %v4046
        %4310 = vmatmul.bf16.gmra.mxu0 %v3258
        %v4311 = vpop.f32.mrf.mxu0
        %v4312 = vadd.f32 %v3532, %v4311
        %v4313 = vpop.f32.mrf.mxu0
        %v4314 = vadd.f32 %v3532, %v4313
        %4315 = vdwg.mxu0
        %4316 = vmatpush.bf16.msra.mxu0 %v4061
        %4317 = vmatpush.bf16.msra.mxu0 %v4060
        %4318 = vmatpush.bf16.msra.mxu0 %v4059
        %4319 = vmatpush.bf16.msra.mxu0 %v4058
        %4320 = vmatpush.bf16.msra.mxu0 %v4057
        %4321 = vmatpush.bf16.msra.mxu0 %v4056
        %4322 = vmatpush.bf16.msra.mxu0 %v4055
        %4323 = vmatpush.bf16.msra.mxu0 %v4054
        %4324 = vmatmul.bf16.gmra.mxu0 %v3259
        %v4325 = vpop.f32.mrf.mxu0
        %v4326 = vadd.f32 %v4312, %v4325
        %v4327 = vpop.f32.mrf.mxu0
        %v4328 = vadd.f32 %v4314, %v4327
        %4329 = vdwg.mxu0
        %4330 = vmatpush.bf16.msra.mxu0 %v4069
        %4331 = vmatpush.bf16.msra.mxu0 %v4068
        %4332 = vmatpush.bf16.msra.mxu0 %v4067
        %4333 = vmatpush.bf16.msra.mxu0 %v4066
        %4334 = vmatpush.bf16.msra.mxu0 %v4065
        %4335 = vmatpush.bf16.msra.mxu0 %v4064
        %4336 = vmatpush.bf16.msra.mxu0 %v4063
        %4337 = vmatpush.bf16.msra.mxu0 %v4062
        %4338 = vmatmul.bf16.gmra.mxu0 %v3260
        %v4339 = vpop.f32.mrf.mxu0
        %v4340 = vadd.f32 %v4326, %v4339
        %v4341 = vpop.f32.mrf.mxu0
        %v4342 = vadd.f32 %v4328, %v4341
        %4343 = vdwg.mxu0
        %4344 = vmatpush.bf16.msra.mxu0 %v4077
        %4345 = vmatpush.bf16.msra.mxu0 %v4076
        %4346 = vmatpush.bf16.msra.mxu0 %v4075
        %4347 = vmatpush.bf16.msra.mxu0 %v4074
        %4348 = vmatpush.bf16.msra.mxu0 %v4073
        %4349 = vmatpush.bf16.msra.mxu0 %v4072
        %4350 = vmatpush.bf16.msra.mxu0 %v4071
        %4351 = vmatpush.bf16.msra.mxu0 %v4070
        %4352 = vmatmul.bf16.gmra.mxu0 %v3261
        %v4353 = vpop.f32.mrf.mxu0
        %v4354 = vadd.f32 %v4340, %v4353
        %v4355 = vpop.f32.mrf.mxu0
        %v4356 = vadd.f32 %v4342, %v4355
        %4357 = vdwg.mxu0
        %4358 = vmatpush.bf16.msra.mxu0 %v4085
        %4359 = vmatpush.bf16.msra.mxu0 %v4084
        %4360 = vmatpush.bf16.msra.mxu0 %v4083
        %4361 = vmatpush.bf16.msra.mxu0 %v4082
        %4362 = vmatpush.bf16.msra.mxu0 %v4081
        %4363 = vmatpush.bf16.msra.mxu0 %v4080
        %4364 = vmatpush.bf16.msra.mxu0 %v4079
        %4365 = vmatpush.bf16.msra.mxu0 %v4078
        %4366 = vmatmul.bf16.gmra.mxu0 %v3262
        %v4367 = vpop.f32.mrf.mxu0
        %v4368 = vadd.f32 %v4354, %v4367
        %v4369 = vpop.f32.mrf.mxu0
        %v4370 = vadd.f32 %v4356, %v4369
        %4371 = vdwg.mxu0
        %4372 = vmatpush.bf16.msra.mxu0 %v4093
        %4373 = vmatpush.bf16.msra.mxu0 %v4092
        %4374 = vmatpush.bf16.msra.mxu0 %v4091
        %4375 = vmatpush.bf16.msra.mxu0 %v4090
        %4376 = vmatpush.bf16.msra.mxu0 %v4089
        %4377 = vmatpush.bf16.msra.mxu0 %v4088
        %4378 = vmatpush.bf16.msra.mxu0 %v4087
        %4379 = vmatpush.bf16.msra.mxu0 %v4086
        %4380 = vmatmul.bf16.gmra.mxu0 %v3263
        %v4381 = vpop.f32.mrf.mxu0
        %v4382 = vadd.f32 %v4368, %v4381
        %v4383 = vpop.f32.mrf.mxu0
        %v4384 = vadd.f32 %v4370, %v4383
        %4385 = vdwg.mxu0
        %4386 = vmatpush.bf16.msra.mxu0 %v4101
        %4387 = vmatpush.bf16.msra.mxu0 %v4100
        %4388 = vmatpush.bf16.msra.mxu0 %v4099
        %4389 = vmatpush.bf16.msra.mxu0 %v4098
        %4390 = vmatpush.bf16.msra.mxu0 %v4097
        %4391 = vmatpush.bf16.msra.mxu0 %v4096
        %4392 = vmatpush.bf16.msra.mxu0 %v4095
        %4393 = vmatpush.bf16.msra.mxu0 %v4094
        %4394 = vmatmul.bf16.gmra.mxu0 %v3264
        %v4395 = vpop.f32.mrf.mxu0
        %v4396 = vadd.f32 %v4382, %v4395
        %v4397 = vpop.f32.mrf.mxu0
        %v4398 = vadd.f32 %v4384, %v4397
        %4399 = vdwg.mxu0
        %4400 = vmatpush.bf16.msra.mxu0 %v4109
        %4401 = vmatpush.bf16.msra.mxu0 %v4108
        %4402 = vmatpush.bf16.msra.mxu0 %v4107
        %4403 = vmatpush.bf16.msra.mxu0 %v4106
        %4404 = vmatpush.bf16.msra.mxu0 %v4105
        %4405 = vmatpush.bf16.msra.mxu0 %v4104
        %4406 = vmatpush.bf16.msra.mxu0 %v4103
        %4407 = vmatpush.bf16.msra.mxu0 %v4102
        %4408 = vmatmul.bf16.gmra.mxu0 %v3265
        %v4409 = vpop.f32.mrf.mxu0
        %v4410 = vadd.f32 %v4396, %v4409
        %v4411 = vpop.f32.mrf.mxu0
        %v4412 = vadd.f32 %v4398, %v4411
        %4413 = vdwg.mxu0
        %4414 = vmatpush.bf16.msra.mxu0 %v4117
        %4415 = vmatpush.bf16.msra.mxu0 %v4116
        %4416 = vmatpush.bf16.msra.mxu0 %v4115
        %4417 = vmatpush.bf16.msra.mxu0 %v4114
        %4418 = vmatpush.bf16.msra.mxu0 %v4113
        %4419 = vmatpush.bf16.msra.mxu0 %v4112
        %4420 = vmatpush.bf16.msra.mxu0 %v4111
        %4421 = vmatpush.bf16.msra.mxu0 %v4110
        %4422 = vmatmul.bf16.gmra.mxu0 %v3266
        %v4423 = vpop.f32.mrf.mxu0
        %v4424 = vadd.f32 %v4410, %v4423
        %v4425 = vpop.f32.mrf.mxu0
        %v4426 = vadd.f32 %v4412, %v4425
        %4427 = vdwg.mxu0
        %4428 = vmatpush.bf16.msra.mxu0 %v4125
        %4429 = vmatpush.bf16.msra.mxu0 %v4124
        %4430 = vmatpush.bf16.msra.mxu0 %v4123
        %4431 = vmatpush.bf16.msra.mxu0 %v4122
        %4432 = vmatpush.bf16.msra.mxu0 %v4121
        %4433 = vmatpush.bf16.msra.mxu0 %v4120
        %4434 = vmatpush.bf16.msra.mxu0 %v4119
        %4435 = vmatpush.bf16.msra.mxu0 %v4118
        %4436 = vmatmul.bf16.gmra.mxu0 %v3267
        %v4437 = vpop.f32.mrf.mxu0
        %v4438 = vadd.f32 %v4424, %v4437
        %v4439 = vpop.f32.mrf.mxu0
        %v4440 = vadd.f32 %v4426, %v4439
        %4441 = vdwg.mxu0
        %4442 = vmatpush.bf16.msra.mxu0 %v4133
        %4443 = vmatpush.bf16.msra.mxu0 %v4132
        %4444 = vmatpush.bf16.msra.mxu0 %v4131
        %4445 = vmatpush.bf16.msra.mxu0 %v4130
        %4446 = vmatpush.bf16.msra.mxu0 %v4129
        %4447 = vmatpush.bf16.msra.mxu0 %v4128
        %4448 = vmatpush.bf16.msra.mxu0 %v4127
        %4449 = vmatpush.bf16.msra.mxu0 %v4126
        %4450 = vmatmul.bf16.gmra.mxu0 %v3268
        %v4451 = vpop.f32.mrf.mxu0
        %v4452 = vadd.f32 %v4438, %v4451
        %v4453 = vpop.f32.mrf.mxu0
        %v4454 = vadd.f32 %v4440, %v4453
        %4455 = vdwg.mxu0
        %4456 = vmatpush.bf16.msra.mxu0 %v4141
        %4457 = vmatpush.bf16.msra.mxu0 %v4140
        %4458 = vmatpush.bf16.msra.mxu0 %v4139
        %4459 = vmatpush.bf16.msra.mxu0 %v4138
        %4460 = vmatpush.bf16.msra.mxu0 %v4137
        %4461 = vmatpush.bf16.msra.mxu0 %v4136
        %4462 = vmatpush.bf16.msra.mxu0 %v4135
        %4463 = vmatpush.bf16.msra.mxu0 %v4134
        %4464 = vmatmul.bf16.gmra.mxu0 %v3269
        %v4465 = vpop.f32.mrf.mxu0
        %v4466 = vadd.f32 %v4452, %v4465
        %v4467 = vpop.f32.mrf.mxu0
        %v4468 = vadd.f32 %v4454, %v4467
        %4469 = vdwg.mxu0
        %4470 = vmatpush.bf16.msra.mxu0 %v4149
        %4471 = vmatpush.bf16.msra.mxu0 %v4148
        %4472 = vmatpush.bf16.msra.mxu0 %v4147
        %4473 = vmatpush.bf16.msra.mxu0 %v4146
        %4474 = vmatpush.bf16.msra.mxu0 %v4145
        %4475 = vmatpush.bf16.msra.mxu0 %v4144
        %4476 = vmatpush.bf16.msra.mxu0 %v4143
        %4477 = vmatpush.bf16.msra.mxu0 %v4142
        %4478 = vmatmul.bf16.gmra.mxu0 %v3270
        %v4479 = vpop.f32.mrf.mxu0
        %v4480 = vadd.f32 %v4466, %v4479
        %v4481 = vpop.f32.mrf.mxu0
        %v4482 = vadd.f32 %v4468, %v4481
        %4483 = vdwg.mxu0
        %4484 = vmatpush.bf16.msra.mxu0 %v4157
        %4485 = vmatpush.bf16.msra.mxu0 %v4156
        %4486 = vmatpush.bf16.msra.mxu0 %v4155
        %4487 = vmatpush.bf16.msra.mxu0 %v4154
        %4488 = vmatpush.bf16.msra.mxu0 %v4153
        %4489 = vmatpush.bf16.msra.mxu0 %v4152
        %4490 = vmatpush.bf16.msra.mxu0 %v4151
        %4491 = vmatpush.bf16.msra.mxu0 %v4150
        %4492 = vmatmul.bf16.gmra.mxu0 %v3271
        %v4493 = vpop.f32.mrf.mxu0
        %v4494 = vadd.f32 %v4480, %v4493
        %v4495 = vpop.f32.mrf.mxu0
        %v4496 = vadd.f32 %v4482, %v4495
        %4497 = vdwg.mxu0
        %4498 = vmatpush.bf16.msra.mxu0 %v4165
        %4499 = vmatpush.bf16.msra.mxu0 %v4164
        %4500 = vmatpush.bf16.msra.mxu0 %v4163
        %4501 = vmatpush.bf16.msra.mxu0 %v4162
        %4502 = vmatpush.bf16.msra.mxu0 %v4161
        %4503 = vmatpush.bf16.msra.mxu0 %v4160
        %4504 = vmatpush.bf16.msra.mxu0 %v4159
        %4505 = vmatpush.bf16.msra.mxu0 %v4158
        %4506 = vmatmul.bf16.gmra.mxu0 %v3272
        %v4507 = vpop.f32.mrf.mxu0
        %v4508 = vadd.f32 %v4494, %v4507
        %v4509 = vpop.f32.mrf.mxu0
        %v4510 = vadd.f32 %v4496, %v4509
        %4511 = vdwg.mxu0
        %4512 = vmatpush.bf16.msra.mxu0 %v4173
        %4513 = vmatpush.bf16.msra.mxu0 %v4172
        %4514 = vmatpush.bf16.msra.mxu0 %v4171
        %4515 = vmatpush.bf16.msra.mxu0 %v4170
        %4516 = vmatpush.bf16.msra.mxu0 %v4169
        %4517 = vmatpush.bf16.msra.mxu0 %v4168
        %4518 = vmatpush.bf16.msra.mxu0 %v4167
        %4519 = vmatpush.bf16.msra.mxu0 %v4166
        %4520 = vmatmul.bf16.gmra.mxu0 %v3273
        %v4521 = vpop.f32.mrf.mxu0
        %v4522 = vadd.f32 %v4508, %v4521
        %v4523 = vpop.f32.mrf.mxu0
        %v4524 = vadd.f32 %v4510, %v4523
        %4525 = vdwg.mxu0
        %v4526 = vadd.f32 %v2195, %v4522
        %v4527 = vadd.f32 %v2196, %v4524
        %4528 = vadd.xlane.f32.xlu0 %v4526
        %v4529 = vpop.xlane.xlu0 %4528
        %4530 = vadd.xlane.f32.xlu0 %v4527
        %v4531 = vpop.xlane.xlu0 %4530
        %v4532 = vmul.f32 %v4529, %v1700
        %v4533 = vmul.f32 %v4531, %v1700
        %v4534 = vsub.f32 %v4526, %v4532
        %v4535 = vsub.f32 %v4527, %v4533
        %v4536 = vmul.f32 %v4534, %v4534
        %v4537 = vmul.f32 %v4535, %v4535
        %4538 = vadd.xlane.f32.xlu0 %v4536
        %v4539 = vpop.xlane.xlu0 %4538
        %4540 = vadd.xlane.f32.xlu0 %v4537
        %v4541 = vpop.xlane.xlu0 %4540
        %v4542 = vmul.f32 %v4539, %v1700
        %v4543 = vmul.f32 %v4541, %v1700
        %v4544 = vadd.f32 %v4542, 1e-05
        %v4545 = vadd.f32 %v4543, 1e-05
        %v4546 = vrsqrt.pop %v4544
        %v4547 = vmul.f32 %v4546, %v4544
        %v4548 = vmul.f32 %v4547, %v4546
        %v4549 = vmul.f32 0.5, %v4548
        %v4550 = vsub.f32 1.5, %v4549
        %v4551 = vmul.f32 %v4546, %v4550
        %vm4552 = vweird.f32 %v4544
        %vm4553 = vweird.f32 %v4546
        %vm4554 = vmor %vm4552, %vm4553
        %v4555 = vsel %vm4554, %v4546, %v4551
        %v4556 = vrsqrt.pop %v4545
        %v4557 = vmul.f32 %v4556, %v4545
        %v4558 = vmul.f32 %v4557, %v4556
        %v4559 = vmul.f32 0.5, %v4558
        %v4560 = vsub.f32 1.5, %v4559
        %v4561 = vmul.f32 %v4556, %v4560
        %vm4562 = vweird.f32 %v4545
        %vm4563 = vweird.f32 %v4556
        %vm4564 = vmor %vm4562, %vm4563
        %v4565 = vsel %vm4564, %v4556, %v4561
        %v4566 = vmul.f32 %v4534, %v4555
        %v4567 = vmul.f32 %v4535, %v4565
        %v4568 = vld [vmem:[%s1073] sm:$0x1]
        %v4570 = vperm.slane %v4568, 0
        %v4572 = vmul.f32 %v4566, %v4570
        %v4573 = vmul.f32 %v4567, %v4570
        %v4574 = vld [vmem:[%s1082] sm:$0x1]
        %v4576 = vperm.slane %v4574, 0
        %v4578 = vadd.f32 %v4572, %v4576
        %v4579 = vadd.f32 %v4573, %v4576
        %4580 = vst [vmem:[#allocation2] sm:$0xff] %v4578
        %4581 = vst [vmem:[#allocation2 + $0x8] sm:$0xff] %v4579
        %p4582 = scmp.eq.s32.totalorder %s53, 5
        // Predicated region
        $region169: #{dummy_gpt_forward.3} parent=123 // pred_check
          %p4583 = pneg %p4582
        $region170: #{dummy_gpt_forward.3} parent=123 // pred_check_branch
          %4585 = sbr.rel (%p4583) target = $region172
        $region171: #{dummy_gpt_forward.3} parent=123 // pred_region
          %4586 = vadd.xlane.f32.xlu0 %v4578
          %v4587 = vpop.xlane.xlu0 %4586
          %4588 = vadd.xlane.f32.xlu0 %v4579
          %v4589 = vpop.xlane.xlu0 %4588
          %v4590 = vmul.f32 %v4587, %v1700
          %v4591 = vmul.f32 %v4589, %v1700
          %v4592 = vsub.f32 %v4578, %v4590
          %v4593 = vsub.f32 %v4579, %v4591
          %v4594 = vmul.f32 %v4592, %v4592
          %v4595 = vmul.f32 %v4593, %v4593
          %4596 = vadd.xlane.f32.xlu0 %v4594
          %v4597 = vpop.xlane.xlu0 %4596
          %4598 = vadd.xlane.f32.xlu0 %v4595
          %v4599 = vpop.xlane.xlu0 %4598
          %v4600 = vmul.f32 %v4597, %v1700
          %v4601 = vmul.f32 %v4599, %v1700
          %v4602 = vadd.f32 %v4600, 1e-05
          %v4603 = vadd.f32 %v4601, 1e-05
          %v4604 = vrsqrt.pop %v4602
          %v4605 = vmul.f32 %v4604, %v4602
          %v4606 = vmul.f32 %v4605, %v4604
          %v4607 = vmul.f32 0.5, %v4606
          %v4608 = vsub.f32 1.5, %v4607
          %v4609 = vmul.f32 %v4604, %v4608
          %vm4610 = vweird.f32 %v4602
          %vm4611 = vweird.f32 %v4604
          %vm4612 = vmor %vm4610, %vm4611
          %v4613 = vsel %vm4612, %v4604, %v4609
          %v4614 = vrsqrt.pop %v4603
          %v4615 = vmul.f32 %v4614, %v4603
          %v4616 = vmul.f32 %v4615, %v4614
          %v4617 = vmul.f32 0.5, %v4616
          %v4618 = vsub.f32 1.5, %v4617
          %v4619 = vmul.f32 %v4614, %v4618
          %vm4620 = vweird.f32 %v4603
          %vm4621 = vweird.f32 %v4614
          %vm4622 = vmor %vm4620, %vm4621
          %v4623 = vsel %vm4622, %v4614, %v4619
          %v4624 = vmul.f32 %v4592, %v4613
          %v4625 = vmul.f32 %v4593, %v4623
          %v4626 = vld [vmem:[%s22] sm:$0x1]
          %v4628 = vperm.slane %v4626, 0
          %v4630 = vmul.f32 %v4624, %v4628
          %v4631 = vmul.f32 %v4625, %v4628
          %v4632 = vld [vmem:[%s23] sm:$0x1]
          %v4634 = vperm.slane %v4632, 0
          %v4636 = vadd.f32 %v4630, %v4634
          %v4637 = vadd.f32 %v4631, %v4634
          %v4638 = vpack.c.bf16 %v4637, %v4636
          %v4639 = vld [vmem:[#allocation16] sm:$0xf]
          %v4640 = vld [vmem:[#allocation16 + $0x4] sm:$0xf]
          %v4641 = vld [vmem:[#allocation16 + $0x8] sm:$0xf]
          %v4642 = vld [vmem:[#allocation16 + $0xc] sm:$0xf]
          %v4643 = vld [vmem:[#allocation16 + $0x10] sm:$0xf]
          %v4644 = vld [vmem:[#allocation16 + $0x14] sm:$0xf]
          %v4645 = vld [vmem:[#allocation16 + $0x18] sm:$0xf]
          %v4646 = vld [vmem:[#allocation16 + $0x1c] sm:$0xf]
          %v4647 = vld [vmem:[#allocation16 + $0x20] sm:$0xf]
          %v4648 = vld [vmem:[#allocation16 + $0x24] sm:$0xf]
          %v4649 = vld [vmem:[#allocation16 + $0x28] sm:$0xf]
          %v4650 = vld [vmem:[#allocation16 + $0x2c] sm:$0xf]
          %v4651 = vld [vmem:[#allocation16 + $0x30] sm:$0xf]
          %v4652 = vld [vmem:[#allocation16 + $0x34] sm:$0xf]
          %v4653 = vld [vmem:[#allocation16 + $0x38] sm:$0xf]
          %v4654 = vld [vmem:[#allocation16 + $0x3c] sm:$0xf]
          %v4655 = vld [vmem:[#allocation17] sm:$0x1]
          %v4657 = vperm.slane %v4655, 0
          %v4675 = vunpack.c.l.b16 %v4639
          %v4676 = vunpack.c.l.b16 %v4640
          %v4677 = vunpack.c.l.b16 %v4641
          %v4678 = vunpack.c.l.b16 %v4642
          %v4679 = vunpack.c.l.b16 %v4643
          %v4680 = vunpack.c.l.b16 %v4644
          %v4681 = vunpack.c.l.b16 %v4645
          %v4682 = vunpack.c.l.b16 %v4646
          %v4683 = vunpack.c.l.b16 %v4647
          %v4684 = vunpack.c.l.b16 %v4648
          %v4685 = vunpack.c.l.b16 %v4649
          %v4686 = vunpack.c.l.b16 %v4650
          %v4687 = vunpack.c.l.b16 %v4651
          %v4688 = vunpack.c.l.b16 %v4652
          %v4689 = vunpack.c.l.b16 %v4653
          %v4690 = vunpack.c.l.b16 %v4654
          %v4691 = vpack.c.b16 %v4676, %v4675
          %v4692 = vpack.c.b16 %v4678, %v4677
          %v4693 = vpack.c.b16 %v4680, %v4679
          %v4694 = vpack.c.b16 %v4682, %v4681
          %v4695 = vpack.c.b16 %v4684, %v4683
          %v4696 = vpack.c.b16 %v4686, %v4685
          %v4697 = vpack.c.b16 %v4688, %v4687
          %v4698 = vpack.c.b16 %v4690, %v4689
          %4707 = vmatpush.bf16.msra.mxu0 %v4698
          %4708 = vmatpush.bf16.msra.mxu0 %v4697
          %4709 = vmatpush.bf16.msra.mxu0 %v4696
          %4710 = vmatpush.bf16.msra.mxu0 %v4695
          %4711 = vmatpush.bf16.msra.mxu0 %v4694
          %4712 = vmatpush.bf16.msra.mxu0 %v4693
          %4713 = vmatpush.bf16.msra.mxu0 %v4692
          %4714 = vmatpush.bf16.msra.mxu0 %v4691
          %4715 = vmatmul.bf16.gmra.mxu0 %v4638
          %v4716 = vpop.f32.mrf.mxu0
          %v4717 = vadd.f32 %v4657, %v4716
          %v4718 = vpop.f32.mrf.mxu0
          %v4719 = vadd.f32 %v4657, %v4718
          %4720 = vdwg.mxu0
          %4721 = vst [vmem:[%s26] sm:$0xff] %v4717
          %4722 = vst [vmem:[%s26 + $0x8] sm:$0xff] %v4719
        $region172: #{dummy_gpt_forward.3} parent=123 // pred_fallthru
          _
        // Predicated region
        $region173: #{dummy_gpt_forward.3} parent=123 // pred_check
          %p4723 = pneg %p712
        $region174: #{dummy_gpt_forward.3} parent=123 // pred_check_branch
          %4725 = sbr.rel (%p4723) target = $region176
        $region175: #{dummy_gpt_forward.3} parent=123 // pred_region
          _
        $region176: #{dummy_gpt_forward.3} parent=123 // pred_fallthru
          _
        // Predicated region
        $region177: #{dummy_gpt_forward.3} parent=123 // pred_check
          %p4726 = pneg %p712
        $region178: #{dummy_gpt_forward.3} parent=123 // pred_check_branch
          %4728 = sbr.rel (%p4726) target = $region180
        $region179: #{dummy_gpt_forward.3} parent=123 // pred_region
          _
        $region180: #{dummy_gpt_forward.3} parent=123 // pred_fallthru
          _
      $region124: #{dummy_gpt_forward.3} parent=5 // pred_fallthru
        _
      %p4729 = scmp.le.s32.totalorder 2, %s48
      // Predicated region
      $region181: #{dummy_gpt_forward.3} parent=5 // pred_check
        %p4730 = pneg %p4729
      $region182: #{dummy_gpt_forward.3} parent=5 // pred_check_branch
        %4732 = sbr.rel (%p4730) target = $region184
      $region183: #{dummy_gpt_forward.3} parent=5 // pred_region
        %s4733 = ssub.s32 %s48, 2
      $region184: #{dummy_gpt_forward.3} parent=5 // pred_fallthru
        _
    $region6: #{dummy_gpt_forward.3} parent=1 // loop_footer
      %s52 = sadd.s32 1, %s48
    $region7: #{dummy_gpt_forward.3} parent=1 // loop_footer_branch
      %47 = sbr.rel target = $region3
    $region8: #{dummy_gpt_forward.3} parent=1 // loop_exit
      _
    %4734 = vsyncpa [#allocation4], 1
    %s4735 = scalar_lea.sflag [#allocation4], 1
    %4736 = vsyncpa %s4735, 1
    %4737 = vsyncpa [#allocation6], 1
    %s4738 = scalar_lea.sflag [#allocation6], 1
    %4739 = vsyncpa %s4738, 1
    %4740 = vsyncpa [#allocation9], 1
    %s4741 = scalar_lea.sflag [#allocation9], 1
    %4742 = vsyncpa %s4741, 1
    %4743 = vsyncpa [#allocation12], 1
    %s4744 = scalar_lea.sflag [#allocation12], 1
    %4745 = vsyncpa %s4744, 1
    %4746 = vsyncpa [#allocation15], 1
    %s4747 = scalar_lea.sflag [#allocation15], 1
    %4748 = vsyncpa %s4747, 1
    %4749 = vsyncpa [#allocation18], 1

// kernel: dummy_gpt_forward.2
$region0: #{dummy_gpt_forward.2}
  #allocation0 [shape = 'u32[]', space=smem, size = 0x4, offset = 0x4, fixed_abs, tag = 'smem constant byte address 0x4 - core index']
  #allocation1 [shape = 'u32[72,128]{1,0:T(1,128)}', space=vmem, size = 0x9000, scoped, tag = 'internal scratch']
  #allocation2 [shape = 'f32[2,8,128]{2,1,0:T(8,128)}', space=vmem, size = 0x2000, scoped, tag = 'scratch operand']
  %s0 = inlined_call_operand.vmem [shape: f32[2,8,128], index: 0, kind: input, shape index: {}]
  %s1 = inlined_call_operand.hbm [shape: bf16[6,128,384], index: 1, kind: input, shape index: {}]
  %s2 = inlined_call_operand.hbm [shape: f32[6,1,384], index: 2, kind: input, shape index: {}]
  %s3 = inlined_call_operand.hbm [shape: bf16[6,128,128], index: 3, kind: input, shape index: {}]
  %s4 = inlined_call_operand.hbm [shape: f32[6,1,128], index: 4, kind: input, shape index: {}]
  %s5 = inlined_call_operand.hbm [shape: f32[6,1,128], index: 5, kind: input, shape index: {}]
  %s6 = inlined_call_operand.hbm [shape: f32[6,1,128], index: 6, kind: input, shape index: {}]
  %s7 = inlined_call_operand.hbm [shape: bf16[6,128,2048], index: 7, kind: input, shape index: {}]
  %s8 = inlined_call_operand.hbm [shape: f32[6,1,2048], index: 8, kind: input, shape index: {}]
  %s9 = inlined_call_operand.hbm [shape: bf16[6,2048,128], index: 9, kind: input, shape index: {}]
  %s10 = inlined_call_operand.hbm [shape: f32[6,1,128], index: 10, kind: input, shape index: {}]
  %s11 = inlined_call_operand.hbm [shape: f32[6,1,128], index: 11, kind: input, shape index: {}]
  %s12 = inlined_call_operand.hbm [shape: f32[6,1,128], index: 12, kind: input, shape index: {}]
  %s13 = inlined_call_operand.hbm [shape: f32[1,128], index: 13, kind: input, shape index: {}]
  %s14 = inlined_call_operand.hbm [shape: f32[1,128], index: 14, kind: input, shape index: {}]
  %s15 = inlined_call_operand.vmem [shape: f32[2,8,128], index: 15, kind: output, shape index: {}]
  %s16 = sld [smem:[#allocation0]]
  $region157: #{dummy_gpt_forward.2} parent=0
    _
  %s18 = ssub.s32 1, %s16
  %s19 = scalar_select 0, %s18, %s16
  $region1: #{dummy_gpt_forward.2} parent=0
    #allocation3 [shape = 'u8[196608]{0}', space=vmem, size = 0x30000, scoped, tag = 'input window, operand 1']
    #allocation4 [shape = 's32[2]{0}', space=sflag, size = 0x8, scoped, tag = 'scoped memory for dummy_gpt_forward.2']
    #allocation5 [shape = 'u8[3072]{0}', space=vmem, size = 0xc00, scoped, tag = 'input window, operand 2']
    #allocation6 [shape = 's32[2]{0}', space=sflag, size = 0x8, scoped, tag = 'scoped memory for dummy_gpt_forward.2']
    #allocation7 [shape = 'u8[65536]{0}', space=vmem, size = 0x10000, scoped, tag = 'input window, operand 3']
    #allocation8 [shape = 'u8[1024]{0}', space=vmem, size = 0x400, scoped, tag = 'input window, operand 4']
    #allocation9 [shape = 's32[2]{0}', space=sflag, size = 0x8, scoped, tag = 'scoped memory for dummy_gpt_forward.2']
    #allocation10 [shape = 'u8[1024]{0}', space=vmem, size = 0x400, scoped, tag = 'input window, operand 5']
    #allocation11 [shape = 'u8[1024]{0}', space=vmem, size = 0x400, scoped, tag = 'input window, operand 6']
    #allocation12 [shape = 's32[2]{0}', space=sflag, size = 0x8, scoped, tag = 'scoped memory for dummy_gpt_forward.2']
    #allocation13 [shape = 'u8[1048576]{0}', space=vmem, size = 0x100000, scoped, tag = 'input window, operand 7']
    #allocation14 [shape = 'u8[16384]{0}', space=vmem, size = 0x4000, scoped, tag = 'input window, operand 8']
    #allocation15 [shape = 's32[2]{0}', space=sflag, size = 0x8, scoped, tag = 'scoped memory for dummy_gpt_forward.2']
    #allocation16 [shape = 'u8[1048576]{0}', space=vmem, size = 0x100000, scoped, tag = 'input window, operand 9']
    #allocation17 [shape = 'u8[1024]{0}', space=vmem, size = 0x400, scoped, tag = 'input window, operand 10']
    #allocation18 [shape = 's32[2]{0}', space=sflag, size = 0x8, scoped, tag = 'scoped memory for dummy_gpt_forward.2']
    #allocation19 [shape = 'u8[1024]{0}', space=vmem, size = 0x400, scoped, tag = 'input window, operand 11']
    #allocation20 [shape = 'u8[1024]{0}', space=vmem, size = 0x400, scoped, tag = 'input window, operand 12']
    #allocation21 [shape = 's32[2]{0}', space=sflag, size = 0x8, scoped, tag = 'scoped memory for dummy_gpt_forward.2']
    #allocation22 [shape = 'u8[512]{0}', space=vmem, size = 0x400, scoped, tag = 'input window, operand 13, single buffered']
    #allocation23 [shape = 'u8[512]{0}', space=vmem, size = 0x400, scoped, tag = 'input window, operand 14, single buffered']
    #allocation24 [shape = 's32[1]{0}', space=sflag, size = 0x4, scoped, tag = 'scoped memory for dummy_gpt_forward.2']
    %20 = vsyncpa [#allocation4], 0
    %s21 = scalar_lea.sflag [#allocation4], 1
    %22 = vsyncpa %s21, 0
    %23 = vsyncpa [#allocation6], 0
    %s24 = scalar_lea.sflag [#allocation6], 1
    %25 = vsyncpa %s24, 0
    %26 = vsyncpa [#allocation9], 0
    %s27 = scalar_lea.sflag [#allocation9], 1
    %28 = vsyncpa %s27, 0
    %29 = vsyncpa [#allocation12], 0
    %s30 = scalar_lea.sflag [#allocation12], 1
    %31 = vsyncpa %s30, 0
    %32 = vsyncpa [#allocation15], 0
    %s33 = scalar_lea.sflag [#allocation15], 1
    %34 = vsyncpa %s33, 0
    %35 = vsyncpa [#allocation18], 0
    %s36 = scalar_lea.sflag [#allocation18], 1
    %37 = vsyncpa %s36, 0
    %38 = vsyncpa [#allocation21], 0
    %s39 = scalar_lea.sflag [#allocation21], 1
    %40 = vsyncpa %s39, 0
    %41 = vsyncpa [#allocation24], 0
    loop: start=0, step=1, limit=8
    $region2: #{dummy_gpt_forward.2} parent=1 // loop_pre_header
      _
    $region3: #{dummy_gpt_forward.2} parent=1 // loop_header
      %s43 = sphi 0, %s47
      %p44 = scmp.ge.s32.totalorder %s43, 8
      %s51 = sphi 0, %s51
      %s53 = sphi 0, %s51
      %s54 = sphi 0, %s53
      %s68 = sphi 0, %s54
      %s74 = sphi 0, %s76
      %s77 = sphi 0, %s74
      %s78 = sphi 0, %s77
      %s94 = sphi 0, %s78
      %s100 = sphi 0, %s102
      %s103 = sphi 0, %s100
      %s104 = sphi 0, %s103
      %s120 = sphi 0, %s104
      %s126 = sphi 0, %s128
      %s129 = sphi 0, %s126
      %s130 = sphi 0, %s129
      %s146 = sphi 0, %s130
      %s152 = sphi 0, %s154
      %s155 = sphi 0, %s152
      %s156 = sphi 0, %s155
      %s172 = sphi 0, %s156
      %s178 = sphi 0, %s180
      %s181 = sphi 0, %s178
      %s182 = sphi 0, %s181
      %s198 = sphi 0, %s182
      %s204 = sphi 0, %s206
      %s207 = sphi 0, %s204
      %s208 = sphi 0, %s207
      %s224 = sphi 0, %s208
      %s230 = sphi 0, %s232
      %s233 = sphi 0, %s230
      %s234 = sphi 0, %s233
      %s250 = sphi 0, %s234
      %s256 = sphi 0, %s258
      %s259 = sphi 0, %s256
      %s260 = sphi 0, %s259
      %s276 = sphi 0, %s260
      %s282 = sphi 0, %s284
      %s285 = sphi 0, %s282
      %s286 = sphi 0, %s285
      %s302 = sphi 0, %s286
      %s308 = sphi 0, %s310
      %s311 = sphi 0, %s308
      %s312 = sphi 0, %s311
      %s328 = sphi 0, %s312
      %s334 = sphi 0, %s336
      %s337 = sphi 0, %s334
      %s338 = sphi 0, %s337
      %s354 = sphi 0, %s338
      %s360 = sphi 0, %s362
      %s363 = sphi 0, %s360
      %s364 = sphi 0, %s363
      %s380 = sphi 0, %s364
      %s384 = sphi 0, %s384
      %s386 = sphi 0, %s384
      %s387 = sphi 0, %s386
      %s401 = sphi 0, %s387
      %s405 = sphi 0, %s405
      %s407 = sphi 0, %s405
      %s408 = sphi 0, %s407
      %s422 = sphi 0, %s408
      %s426 = sphi 0, %s426
      %s428 = sphi 0, %s426
      %s429 = sphi 0, %s428
      %s443 = sphi 0, %s429
    $region4: #{dummy_gpt_forward.2} parent=1 // loop_header_branch
      %46 = sbr.rel (%p44) target = $region8
    $region5: #{dummy_gpt_forward.2} parent=1 // loop_body
      %s48 = ssub.s32 %s43, 1
      %s49 = ssub.s32 %s43, 2
      %s50 = sadd.s32 %s43, 1
      %s52 = sadd.s32 %s51, 1
      %p55 = scmp.eq.s32.totalorder %s43, 5
      %p56 = scmp.ne.s32.totalorder %s51, %s53
      %p57 = scmp.eq.s32.totalorder %s43, 0
      %p58 = por %p56, %p57
      %p59 = scmp.ne.s32.totalorder %s51, %s53
      %p60 = scmp.eq.s32.totalorder %s48, 5
      %p61 = por %p59, %p60
      %p62 = scmp.ne.s32.totalorder %s53, %s54
      %p63 = scmp.eq.s32.totalorder %s48, 0
      %p64 = por %p62, %p63
      %p65 = scmp.ne.s32.totalorder %s53, %s54
      %p66 = scmp.eq.s32.totalorder %s49, 5
      %p67 = por %p65, %p66
      %p69 = scmp.ne.s32.totalorder %s54, %s68
      %p70 = scmp.eq.s32.totalorder %s49, 0
      %p71 = por %p69, %p70
      %s72 = ssub.s32 %s43, %s50
      %p73 = scmp.eq.s32.totalorder %s72, 0
      %s75 = sadd.s32 %s74, 1
      %s76 = scalar_select %p73, %s74, %s75
      %p79 = pneg %p73
      %p80 = scmp.eq.s32.totalorder %s43, 5
      %p81 = por %p79, %p80
      %p82 = scmp.ne.s32.totalorder %s74, %s77
      %p83 = scmp.eq.s32.totalorder %s43, 0
      %p84 = por %p82, %p83
      %p85 = scmp.ne.s32.totalorder %s74, %s77
      %p86 = scmp.eq.s32.totalorder %s48, 5
      %p87 = por %p85, %p86
      %p88 = scmp.ne.s32.totalorder %s77, %s78
      %p89 = scmp.eq.s32.totalorder %s48, 0
      %p90 = por %p88, %p89
      %p91 = scmp.ne.s32.totalorder %s77, %s78
      %p92 = scmp.eq.s32.totalorder %s49, 5
      %p93 = por %p91, %p92
      %p95 = scmp.ne.s32.totalorder %s78, %s94
      %p96 = scmp.eq.s32.totalorder %s49, 0
      %p97 = por %p95, %p96
      %s98 = ssub.s32 %s43, %s50
      %p99 = scmp.eq.s32.totalorder %s98, 0
      %s101 = sadd.s32 %s100, 1
      %s102 = scalar_select %p99, %s100, %s101
      %p105 = pneg %p99
      %p106 = scmp.eq.s32.totalorder %s43, 5
      %p107 = por %p105, %p106
      %p108 = scmp.ne.s32.totalorder %s100, %s103
      %p109 = scmp.eq.s32.totalorder %s43, 0
      %p110 = por %p108, %p109
      %p111 = scmp.ne.s32.totalorder %s100, %s103
      %p112 = scmp.eq.s32.totalorder %s48, 5
      %p113 = por %p111, %p112
      %p114 = scmp.ne.s32.totalorder %s103, %s104
      %p115 = scmp.eq.s32.totalorder %s48, 0
      %p116 = por %p114, %p115
      %p117 = scmp.ne.s32.totalorder %s103, %s104
      %p118 = scmp.eq.s32.totalorder %s49, 5
      %p119 = por %p117, %p118
      %p121 = scmp.ne.s32.totalorder %s104, %s120
      %p122 = scmp.eq.s32.totalorder %s49, 0
      %p123 = por %p121, %p122
      %s124 = ssub.s32 %s43, %s50
      %p125 = scmp.eq.s32.totalorder %s124, 0
      %s127 = sadd.s32 %s126, 1
      %s128 = scalar_select %p125, %s126, %s127
      %p131 = pneg %p125
      %p132 = scmp.eq.s32.totalorder %s43, 5
      %p133 = por %p131, %p132
      %p134 = scmp.ne.s32.totalorder %s126, %s129
      %p135 = scmp.eq.s32.totalorder %s43, 0
      %p136 = por %p134, %p135
      %p137 = scmp.ne.s32.totalorder %s126, %s129
      %p138 = scmp.eq.s32.totalorder %s48, 5
      %p139 = por %p137, %p138
      %p140 = scmp.ne.s32.totalorder %s129, %s130
      %p141 = scmp.eq.s32.totalorder %s48, 0
      %p142 = por %p140, %p141
      %p143 = scmp.ne.s32.totalorder %s129, %s130
      %p144 = scmp.eq.s32.totalorder %s49, 5
      %p145 = por %p143, %p144
      %p147 = scmp.ne.s32.totalorder %s130, %s146
      %p148 = scmp.eq.s32.totalorder %s49, 0
      %p149 = por %p147, %p148
      %s150 = ssub.s32 %s43, %s50
      %p151 = scmp.eq.s32.totalorder %s150, 0
      %s153 = sadd.s32 %s152, 1
      %s154 = scalar_select %p151, %s152, %s153
      %p157 = pneg %p151
      %p158 = scmp.eq.s32.totalorder %s43, 5
      %p159 = por %p157, %p158
      %p160 = scmp.ne.s32.totalorder %s152, %s155
      %p161 = scmp.eq.s32.totalorder %s43, 0
      %p162 = por %p160, %p161
      %p163 = scmp.ne.s32.totalorder %s152, %s155
      %p164 = scmp.eq.s32.totalorder %s48, 5
      %p165 = por %p163, %p164
      %p166 = scmp.ne.s32.totalorder %s155, %s156
      %p167 = scmp.eq.s32.totalorder %s48, 0
      %p168 = por %p166, %p167
      %p169 = scmp.ne.s32.totalorder %s155, %s156
      %p170 = scmp.eq.s32.totalorder %s49, 5
      %p171 = por %p169, %p170
      %p173 = scmp.ne.s32.totalorder %s156, %s172
      %p174 = scmp.eq.s32.totalorder %s49, 0
      %p175 = por %p173, %p174
      %s176 = ssub.s32 %s43, %s50
      %p177 = scmp.eq.s32.totalorder %s176, 0
      %s179 = sadd.s32 %s178, 1
      %s180 = scalar_select %p177, %s178, %s179
      %p183 = pneg %p177
      %p184 = scmp.eq.s32.totalorder %s43, 5
      %p185 = por %p183, %p184
      %p186 = scmp.ne.s32.totalorder %s178, %s181
      %p187 = scmp.eq.s32.totalorder %s43, 0
      %p188 = por %p186, %p187
      %p189 = scmp.ne.s32.totalorder %s178, %s181
      %p190 = scmp.eq.s32.totalorder %s48, 5
      %p191 = por %p189, %p190
      %p192 = scmp.ne.s32.totalorder %s181, %s182
      %p193 = scmp.eq.s32.totalorder %s48, 0
      %p194 = por %p192, %p193
      %p195 = scmp.ne.s32.totalorder %s181, %s182
      %p196 = scmp.eq.s32.totalorder %s49, 5
      %p197 = por %p195, %p196
      %p199 = scmp.ne.s32.totalorder %s182, %s198
      %p200 = scmp.eq.s32.totalorder %s49, 0
      %p201 = por %p199, %p200
      %s202 = ssub.s32 %s43, %s50
      %p203 = scmp.eq.s32.totalorder %s202, 0
      %s205 = sadd.s32 %s204, 1
      %s206 = scalar_select %p203, %s204, %s205
      %p209 = pneg %p203
      %p210 = scmp.eq.s32.totalorder %s43, 5
      %p211 = por %p209, %p210
      %p212 = scmp.ne.s32.totalorder %s204, %s207
      %p213 = scmp.eq.s32.totalorder %s43, 0
      %p214 = por %p212, %p213
      %p215 = scmp.ne.s32.totalorder %s204, %s207
      %p216 = scmp.eq.s32.totalorder %s48, 5
      %p217 = por %p215, %p216
      %p218 = scmp.ne.s32.totalorder %s207, %s208
      %p219 = scmp.eq.s32.totalorder %s48, 0
      %p220 = por %p218, %p219
      %p221 = scmp.ne.s32.totalorder %s207, %s208
      %p222 = scmp.eq.s32.totalorder %s49, 5
      %p223 = por %p221, %p222
      %p225 = scmp.ne.s32.totalorder %s208, %s224
      %p226 = scmp.eq.s32.totalorder %s49, 0
      %p227 = por %p225, %p226
      %s228 = ssub.s32 %s43, %s50
      %p229 = scmp.eq.s32.totalorder %s228, 0
      %s231 = sadd.s32 %s230, 1
      %s232 = scalar_select %p229, %s230, %s231
      %p235 = pneg %p229
      %p236 = scmp.eq.s32.totalorder %s43, 5
      %p237 = por %p235, %p236
      %p238 = scmp.ne.s32.totalorder %s230, %s233
      %p239 = scmp.eq.s32.totalorder %s43, 0
      %p240 = por %p238, %p239
      %p241 = scmp.ne.s32.totalorder %s230, %s233
      %p242 = scmp.eq.s32.totalorder %s48, 5
      %p243 = por %p241, %p242
      %p244 = scmp.ne.s32.totalorder %s233, %s234
      %p245 = scmp.eq.s32.totalorder %s48, 0
      %p246 = por %p244, %p245
      %p247 = scmp.ne.s32.totalorder %s233, %s234
      %p248 = scmp.eq.s32.totalorder %s49, 5
      %p249 = por %p247, %p248
      %p251 = scmp.ne.s32.totalorder %s234, %s250
      %p252 = scmp.eq.s32.totalorder %s49, 0
      %p253 = por %p251, %p252
      %s254 = ssub.s32 %s43, %s50
      %p255 = scmp.eq.s32.totalorder %s254, 0
      %s257 = sadd.s32 %s256, 1
      %s258 = scalar_select %p255, %s256, %s257
      %p261 = pneg %p255
      %p262 = scmp.eq.s32.totalorder %s43, 5
      %p263 = por %p261, %p262
      %p264 = scmp.ne.s32.totalorder %s256, %s259
      %p265 = scmp.eq.s32.totalorder %s43, 0
      %p266 = por %p264, %p265
      %p267 = scmp.ne.s32.totalorder %s256, %s259
      %p268 = scmp.eq.s32.totalorder %s48, 5
      %p269 = por %p267, %p268
      %p270 = scmp.ne.s32.totalorder %s259, %s260
      %p271 = scmp.eq.s32.totalorder %s48, 0
      %p272 = por %p270, %p271
      %p273 = scmp.ne.s32.totalorder %s259, %s260
      %p274 = scmp.eq.s32.totalorder %s49, 5
      %p275 = por %p273, %p274
      %p277 = scmp.ne.s32.totalorder %s260, %s276
      %p278 = scmp.eq.s32.totalorder %s49, 0
      %p279 = por %p277, %p278
      %s280 = ssub.s32 %s43, %s50
      %p281 = scmp.eq.s32.totalorder %s280, 0
      %s283 = sadd.s32 %s282, 1
      %s284 = scalar_select %p281, %s282, %s283
      %p287 = pneg %p281
      %p288 = scmp.eq.s32.totalorder %s43, 5
      %p289 = por %p287, %p288
      %p290 = scmp.ne.s32.totalorder %s282, %s285
      %p291 = scmp.eq.s32.totalorder %s43, 0
      %p292 = por %p290, %p291
      %p293 = scmp.ne.s32.totalorder %s282, %s285
      %p294 = scmp.eq.s32.totalorder %s48, 5
      %p295 = por %p293, %p294
      %p296 = scmp.ne.s32.totalorder %s285, %s286
      %p297 = scmp.eq.s32.totalorder %s48, 0
      %p298 = por %p296, %p297
      %p299 = scmp.ne.s32.totalorder %s285, %s286
      %p300 = scmp.eq.s32.totalorder %s49, 5
      %p301 = por %p299, %p300
      %p303 = scmp.ne.s32.totalorder %s286, %s302
      %p304 = scmp.eq.s32.totalorder %s49, 0
      %p305 = por %p303, %p304
      %s306 = ssub.s32 %s43, %s50
      %p307 = scmp.eq.s32.totalorder %s306, 0
      %s309 = sadd.s32 %s308, 1
      %s310 = scalar_select %p307, %s308, %s309
      %p313 = pneg %p307
      %p314 = scmp.eq.s32.totalorder %s43, 5
      %p315 = por %p313, %p314
      %p316 = scmp.ne.s32.totalorder %s308, %s311
      %p317 = scmp.eq.s32.totalorder %s43, 0
      %p318 = por %p316, %p317
      %p319 = scmp.ne.s32.totalorder %s308, %s311
      %p320 = scmp.eq.s32.totalorder %s48, 5
      %p321 = por %p319, %p320
      %p322 = scmp.ne.s32.totalorder %s311, %s312
      %p323 = scmp.eq.s32.totalorder %s48, 0
      %p324 = por %p322, %p323
      %p325 = scmp.ne.s32.totalorder %s311, %s312
      %p326 = scmp.eq.s32.totalorder %s49, 5
      %p327 = por %p325, %p326
      %p329 = scmp.ne.s32.totalorder %s312, %s328
      %p330 = scmp.eq.s32.totalorder %s49, 0
      %p331 = por %p329, %p330
      %s332 = ssub.s32 %s43, %s50
      %p333 = scmp.eq.s32.totalorder %s332, 0
      %s335 = sadd.s32 %s334, 1
      %s336 = scalar_select %p333, %s334, %s335
      %p339 = pneg %p333
      %p340 = scmp.eq.s32.totalorder %s43, 5
      %p341 = por %p339, %p340
      %p342 = scmp.ne.s32.totalorder %s334, %s337
      %p343 = scmp.eq.s32.totalorder %s43, 0
      %p344 = por %p342, %p343
      %p345 = scmp.ne.s32.totalorder %s334, %s337
      %p346 = scmp.eq.s32.totalorder %s48, 5
      %p347 = por %p345, %p346
      %p348 = scmp.ne.s32.totalorder %s337, %s338
      %p349 = scmp.eq.s32.totalorder %s48, 0
      %p350 = por %p348, %p349
      %p351 = scmp.ne.s32.totalorder %s337, %s338
      %p352 = scmp.eq.s32.totalorder %s49, 5
      %p353 = por %p351, %p352
      %p355 = scmp.ne.s32.totalorder %s338, %s354
      %p356 = scmp.eq.s32.totalorder %s49, 0
      %p357 = por %p355, %p356
      %s358 = ssub.s32 %s43, %s50
      %p359 = scmp.eq.s32.totalorder %s358, 0
      %s361 = sadd.s32 %s360, 1
      %s362 = scalar_select %p359, %s360, %s361
      %p365 = pneg %p359
      %p366 = scmp.eq.s32.totalorder %s43, 5
      %p367 = por %p365, %p366
      %p368 = scmp.ne.s32.totalorder %s360, %s363
      %p369 = scmp.eq.s32.totalorder %s43, 0
      %p370 = por %p368, %p369
      %p371 = scmp.ne.s32.totalorder %s360, %s363
      %p372 = scmp.eq.s32.totalorder %s48, 5
      %p373 = por %p371, %p372
      %p374 = scmp.ne.s32.totalorder %s363, %s364
      %p375 = scmp.eq.s32.totalorder %s48, 0
      %p376 = por %p374, %p375
      %p377 = scmp.ne.s32.totalorder %s363, %s364
      %p378 = scmp.eq.s32.totalorder %s49, 5
      %p379 = por %p377, %p378
      %p381 = scmp.ne.s32.totalorder %s364, %s380
      %p382 = scmp.eq.s32.totalorder %s49, 0
      %p383 = por %p381, %p382
      %s385 = sadd.s32 %s384, 1
      %p388 = scmp.eq.s32.totalorder %s43, 5
      %p389 = scmp.ne.s32.totalorder %s384, %s386
      %p390 = scmp.eq.s32.totalorder %s43, 0
      %p391 = por %p389, %p390
      %p392 = scmp.ne.s32.totalorder %s384, %s386
      %p393 = scmp.eq.s32.totalorder %s48, 5
      %p394 = por %p392, %p393
      %p395 = scmp.ne.s32.totalorder %s386, %s387
      %p396 = scmp.eq.s32.totalorder %s48, 0
      %p397 = por %p395, %p396
      %p398 = scmp.ne.s32.totalorder %s386, %s387
      %p399 = scmp.eq.s32.totalorder %s49, 5
      %p400 = por %p398, %p399
      %p402 = scmp.ne.s32.totalorder %s387, %s401
      %p403 = scmp.eq.s32.totalorder %s49, 0
      %p404 = por %p402, %p403
      %s406 = sadd.s32 %s405, 1
      %p409 = scmp.eq.s32.totalorder %s43, 5
      %p410 = scmp.ne.s32.totalorder %s405, %s407
      %p411 = scmp.eq.s32.totalorder %s43, 0
      %p412 = por %p410, %p411
      %p413 = scmp.ne.s32.totalorder %s405, %s407
      %p414 = scmp.eq.s32.totalorder %s48, 5
      %p415 = por %p413, %p414
      %p416 = scmp.ne.s32.totalorder %s407, %s408
      %p417 = scmp.eq.s32.totalorder %s48, 0
      %p418 = por %p416, %p417
      %p419 = scmp.ne.s32.totalorder %s407, %s408
      %p420 = scmp.eq.s32.totalorder %s49, 5
      %p421 = por %p419, %p420
      %p423 = scmp.ne.s32.totalorder %s408, %s422
      %p424 = scmp.eq.s32.totalorder %s49, 0
      %p425 = por %p423, %p424
      %s427 = sadd.s32 %s426, 1
      %p430 = scmp.eq.s32.totalorder %s43, 5
      %p431 = scmp.ne.s32.totalorder %s426, %s428
      %p432 = scmp.eq.s32.totalorder %s43, 0
      %p433 = por %p431, %p432
      %p434 = scmp.ne.s32.totalorder %s426, %s428
      %p435 = scmp.eq.s32.totalorder %s48, 5
      %p436 = por %p434, %p435
      %p437 = scmp.ne.s32.totalorder %s428, %s429
      %p438 = scmp.eq.s32.totalorder %s48, 0
      %p439 = por %p437, %p438
      %p440 = scmp.ne.s32.totalorder %s428, %s429
      %p441 = scmp.eq.s32.totalorder %s49, 5
      %p442 = por %p440, %p441
      %p444 = scmp.ne.s32.totalorder %s429, %s443
      %p445 = scmp.eq.s32.totalorder %s49, 0
      %p446 = por %p444, %p445
      %p447 = scmp.le.s32.totalorder 1, %s43
      %p448 = scmp.lt.s32.totalorder %s43, 7
      %p449 = pnand %p447, %p448
      %p450 = pneg %p449
      // Predicated region
      $region9: #{dummy_gpt_forward.2} parent=5 // pred_check
        _
      $region10: #{dummy_gpt_forward.2} parent=5 // pred_check_branch
        %452 = sbr.rel (%p449) target = $region12
      $region11: #{dummy_gpt_forward.2} parent=5 // pred_region
        %s453 = ssub.s32 %s43, 1
        // Predicated region
        $region13: #{dummy_gpt_forward.2} parent=11 // pred_check
          %p454 = pneg %p64
        $region14: #{dummy_gpt_forward.2} parent=11 // pred_check_branch
          %456 = sbr.rel (%p454) target = $region16
        $region15: #{dummy_gpt_forward.2} parent=11 // pred_region
          _
        $region16: #{dummy_gpt_forward.2} parent=11 // pred_fallthru
          _
        // Predicated region
        $region17: #{dummy_gpt_forward.2} parent=11 // pred_check
          %p457 = pneg %p397
        $region18: #{dummy_gpt_forward.2} parent=11 // pred_check_branch
          %459 = sbr.rel (%p457) target = $region20
        $region19: #{dummy_gpt_forward.2} parent=11 // pred_region
          %461 = vsyncadd [#allocation21], 0
          %s463 = sshll.u32 %s13, 4
          %s464 = int_to_ptr.hbm [resolvable:$true] %s463
          %s465 = sshll.u32 [#allocation22], 4
          %s466 = int_to_ptr.vmem [resolvable:$true] %s465
          %468 = dma.hbm_to_vmem [thread:$0]  %s464, 16, %s466, [#allocation21]
        $region20: #{dummy_gpt_forward.2} parent=11 // pred_fallthru
          _
        // Predicated region
        $region21: #{dummy_gpt_forward.2} parent=11 // pred_check
          %p469 = pneg %p418
        $region22: #{dummy_gpt_forward.2} parent=11 // pred_check_branch
          %471 = sbr.rel (%p469) target = $region24
        $region23: #{dummy_gpt_forward.2} parent=11 // pred_region
          %473 = vsyncadd [#allocation24], 0
          %s475 = sshll.u32 %s14, 4
          %s476 = int_to_ptr.hbm [resolvable:$true] %s475
          %s477 = sshll.u32 [#allocation23], 4
          %s478 = int_to_ptr.vmem [resolvable:$true] %s477
          %480 = dma.hbm_to_vmem [thread:$0]  %s476, 16, %s478, [#allocation24]
        $region24: #{dummy_gpt_forward.2} parent=11 // pred_fallthru
          _
      $region12: #{dummy_gpt_forward.2} parent=5 // pred_fallthru
        _
      %p481 = scmp.lt.s32.totalorder %s43, 6
      // Predicated region
      $region25: #{dummy_gpt_forward.2} parent=5 // pred_check
        %p482 = pneg %p481
      $region26: #{dummy_gpt_forward.2} parent=5 // pred_check_branch
        %484 = sbr.rel (%p482) target = $region28
      $region27: #{dummy_gpt_forward.2} parent=5 // pred_region
        // Predicated region
        $region29: #{dummy_gpt_forward.2} parent=27 // pred_check
          %p485 = pneg %p84
        $region30: #{dummy_gpt_forward.2} parent=27 // pred_check_branch
          %487 = sbr.rel (%p485) target = $region32
        $region31: #{dummy_gpt_forward.2} parent=27 // pred_region
          %s488 = sand.u32 %s74, 1
          %s489 = scalar_lea.sflag [#allocation4], %s488
          %s490 = sand.u32 %s74, 1
          %s491 = smul.addr %s490, 192
          %s492 = scalar_lea.vmem [#allocation3], %s491
          %494 = vsyncadd %s489, 0
          %s495 = smul.addr %s43, 48
          %s496 = smul.addr %s495, 4
          %s497 = scalar_lea.hbm %s1, %s496
          %s498 = sshll.u32 %s497, 4
          %s499 = int_to_ptr.hbm [resolvable:$true] %s498
          %s500 = sshll.u32 %s492, 4
          %s501 = int_to_ptr.vmem [resolvable:$true] %s500
          %506 = dma.hbm_to_vmem [thread:$0]  %s499, 3072, %s501, %s489, 192, 192, 12
        $region32: #{dummy_gpt_forward.2} parent=27 // pred_fallthru
          _
        // Predicated region
        $region33: #{dummy_gpt_forward.2} parent=27 // pred_check
          %p507 = pneg %p110
        $region34: #{dummy_gpt_forward.2} parent=27 // pred_check_branch
          %509 = sbr.rel (%p507) target = $region36
        $region35: #{dummy_gpt_forward.2} parent=27 // pred_region
          %s510 = sand.u32 %s43, 1
          %s511 = scalar_lea.sflag [#allocation6], %s510
          %s512 = sand.u32 %s100, 1
          %s513 = smul.addr %s512, 3
          %s514 = scalar_lea.vmem [#allocation5], %s513
          %516 = vsyncadd %s511, 0
          %s517 = smul.addr %s43, 3
          %s518 = scalar_lea.hbm %s2, %s517
          %s520 = sshll.u32 %s518, 4
          %s521 = int_to_ptr.hbm [resolvable:$true] %s520
          %s522 = sshll.u32 %s514, 4
          %s523 = int_to_ptr.vmem [resolvable:$true] %s522
          %525 = dma.hbm_to_vmem [thread:$0]  %s521, 48, %s523, %s511
        $region36: #{dummy_gpt_forward.2} parent=27 // pred_fallthru
          _
        // Predicated region
        $region37: #{dummy_gpt_forward.2} parent=27 // pred_check
          %p526 = pneg %p136
        $region38: #{dummy_gpt_forward.2} parent=27 // pred_check_branch
          %528 = sbr.rel (%p526) target = $region40
        $region39: #{dummy_gpt_forward.2} parent=27 // pred_region
          %s529 = sand.u32 %s43, 1
          %s530 = scalar_lea.sflag [#allocation6], %s529
          %s531 = sand.u32 %s126, 1
          %s532 = smul.addr %s531, 64
          %s533 = scalar_lea.vmem [#allocation7], %s532
          %535 = vsyncadd %s530, 0
          %s536 = smul.addr %s43, 16
          %s537 = smul.addr %s536, 4
          %s538 = scalar_lea.hbm %s3, %s537
          %s539 = sshll.u32 %s538, 4
          %s540 = int_to_ptr.hbm [resolvable:$true] %s539
          %s541 = sshll.u32 %s533, 4
          %s542 = int_to_ptr.vmem [resolvable:$true] %s541
          %547 = dma.hbm_to_vmem [thread:$0]  %s540, 1024, %s542, %s530, 64, 64, 4
        $region40: #{dummy_gpt_forward.2} parent=27 // pred_fallthru
          _
        // Predicated region
        $region41: #{dummy_gpt_forward.2} parent=27 // pred_check
          %p548 = pneg %p162
        $region42: #{dummy_gpt_forward.2} parent=27 // pred_check_branch
          %550 = sbr.rel (%p548) target = $region44
        $region43: #{dummy_gpt_forward.2} parent=27 // pred_region
          %s551 = sand.u32 %s43, 1
          %s552 = scalar_lea.sflag [#allocation9], %s551
          %s553 = sand.u32 %s152, 1
          %s554 = scalar_lea.vmem [#allocation8], %s553
          %556 = vsyncadd %s552, 0
          %s557 = scalar_lea.hbm %s4, %s43
          %s559 = sshll.u32 %s557, 4
          %s560 = int_to_ptr.hbm [resolvable:$true] %s559
          %s561 = sshll.u32 %s554, 4
          %s562 = int_to_ptr.vmem [resolvable:$true] %s561
          %564 = dma.hbm_to_vmem [thread:$0]  %s560, 16, %s562, %s552
        $region44: #{dummy_gpt_forward.2} parent=27 // pred_fallthru
          _
        // Predicated region
        $region45: #{dummy_gpt_forward.2} parent=27 // pred_check
          %p565 = pneg %p188
        $region46: #{dummy_gpt_forward.2} parent=27 // pred_check_branch
          %567 = sbr.rel (%p565) target = $region48
        $region47: #{dummy_gpt_forward.2} parent=27 // pred_region
          %s568 = sand.u32 %s43, 1
          %s569 = scalar_lea.sflag [#allocation9], %s568
          %s570 = sand.u32 %s178, 1
          %s571 = scalar_lea.vmem [#allocation10], %s570
          %573 = vsyncadd %s569, 0
          %s574 = scalar_lea.hbm %s5, %s43
          %s576 = sshll.u32 %s574, 4
          %s577 = int_to_ptr.hbm [resolvable:$true] %s576
          %s578 = sshll.u32 %s571, 4
          %s579 = int_to_ptr.vmem [resolvable:$true] %s578
          %581 = dma.hbm_to_vmem [thread:$0]  %s577, 16, %s579, %s569
        $region48: #{dummy_gpt_forward.2} parent=27 // pred_fallthru
          _
        // Predicated region
        $region49: #{dummy_gpt_forward.2} parent=27 // pred_check
          %p582 = pneg %p214
        $region50: #{dummy_gpt_forward.2} parent=27 // pred_check_branch
          %584 = sbr.rel (%p582) target = $region52
        $region51: #{dummy_gpt_forward.2} parent=27 // pred_region
          %s585 = sand.u32 %s43, 1
          %s586 = scalar_lea.sflag [#allocation12], %s585
          %s587 = sand.u32 %s204, 1
          %s588 = scalar_lea.vmem [#allocation11], %s587
          %590 = vsyncadd %s586, 0
          %s591 = scalar_lea.hbm %s6, %s43
          %s593 = sshll.u32 %s591, 4
          %s594 = int_to_ptr.hbm [resolvable:$true] %s593
          %s595 = sshll.u32 %s588, 4
          %s596 = int_to_ptr.vmem [resolvable:$true] %s595
          %598 = dma.hbm_to_vmem [thread:$0]  %s594, 16, %s596, %s586
        $region52: #{dummy_gpt_forward.2} parent=27 // pred_fallthru
          _
        // Predicated region
        $region53: #{dummy_gpt_forward.2} parent=27 // pred_check
          %p599 = pneg %p240
        $region54: #{dummy_gpt_forward.2} parent=27 // pred_check_branch
          %601 = sbr.rel (%p599) target = $region56
        $region55: #{dummy_gpt_forward.2} parent=27 // pred_region
          %s602 = sand.u32 %s43, 1
          %s603 = scalar_lea.sflag [#allocation12], %s602
          %s604 = sand.u32 %s230, 1
          %s605 = smul.addr %s604, 1024
          %s606 = scalar_lea.vmem [#allocation13], %s605
          %608 = vsyncadd %s603, 0
          %s609 = smul.addr %s43, 256
          %s610 = smul.addr %s609, 4
          %s611 = scalar_lea.hbm %s7, %s610
          %s612 = sshll.u32 %s611, 4
          %s613 = int_to_ptr.hbm [resolvable:$true] %s612
          %s614 = sshll.u32 %s606, 4
          %s615 = int_to_ptr.vmem [resolvable:$true] %s614
          %620 = dma.hbm_to_vmem [thread:$0]  %s613, 16384, %s615, %s603, 1024, 1024, 64
        $region56: #{dummy_gpt_forward.2} parent=27 // pred_fallthru
          _
        // Predicated region
        $region57: #{dummy_gpt_forward.2} parent=27 // pred_check
          %p621 = pneg %p266
        $region58: #{dummy_gpt_forward.2} parent=27 // pred_check_branch
          %623 = sbr.rel (%p621) target = $region60
        $region59: #{dummy_gpt_forward.2} parent=27 // pred_region
          %s624 = sand.u32 %s43, 1
          %s625 = scalar_lea.sflag [#allocation15], %s624
          %s626 = sand.u32 %s256, 1
          %s627 = smul.addr %s626, 16
          %s628 = scalar_lea.vmem [#allocation14], %s627
          %630 = vsyncadd %s625, 0
          %s631 = smul.addr %s43, 16
          %s632 = scalar_lea.hbm %s8, %s631
          %s634 = sshll.u32 %s632, 4
          %s635 = int_to_ptr.hbm [resolvable:$true] %s634
          %s636 = sshll.u32 %s628, 4
          %s637 = int_to_ptr.vmem [resolvable:$true] %s636
          %639 = dma.hbm_to_vmem [thread:$0]  %s635, 256, %s637, %s625
        $region60: #{dummy_gpt_forward.2} parent=27 // pred_fallthru
          _
        // Predicated region
        $region61: #{dummy_gpt_forward.2} parent=27 // pred_check
          %p640 = pneg %p292
        $region62: #{dummy_gpt_forward.2} parent=27 // pred_check_branch
          %642 = sbr.rel (%p640) target = $region64
        $region63: #{dummy_gpt_forward.2} parent=27 // pred_region
          %s643 = sand.u32 %s43, 1
          %s644 = scalar_lea.sflag [#allocation15], %s643
          %s645 = sand.u32 %s282, 1
          %s646 = smul.addr %s645, 1024
          %s647 = scalar_lea.vmem [#allocation16], %s646
          %649 = vsyncadd %s644, 0
          %s650 = smul.addr %s43, 256
          %s651 = smul.addr %s650, 4
          %s652 = scalar_lea.hbm %s9, %s651
          %s653 = sshll.u32 %s652, 4
          %s654 = int_to_ptr.hbm [resolvable:$true] %s653
          %s655 = sshll.u32 %s647, 4
          %s656 = int_to_ptr.vmem [resolvable:$true] %s655
          %661 = dma.hbm_to_vmem [thread:$0]  %s654, 16384, %s656, %s644, 64, 64, 4
        $region64: #{dummy_gpt_forward.2} parent=27 // pred_fallthru
          _
        // Predicated region
        $region65: #{dummy_gpt_forward.2} parent=27 // pred_check
          %p662 = pneg %p318
        $region66: #{dummy_gpt_forward.2} parent=27 // pred_check_branch
          %664 = sbr.rel (%p662) target = $region68
        $region67: #{dummy_gpt_forward.2} parent=27 // pred_region
          %s665 = sand.u32 %s43, 1
          %s666 = scalar_lea.sflag [#allocation18], %s665
          %s667 = sand.u32 %s308, 1
          %s668 = scalar_lea.vmem [#allocation17], %s667
          %670 = vsyncadd %s666, 0
          %s671 = scalar_lea.hbm %s10, %s43
          %s673 = sshll.u32 %s671, 4
          %s674 = int_to_ptr.hbm [resolvable:$true] %s673
          %s675 = sshll.u32 %s668, 4
          %s676 = int_to_ptr.vmem [resolvable:$true] %s675
          %678 = dma.hbm_to_vmem [thread:$0]  %s674, 16, %s676, %s666
        $region68: #{dummy_gpt_forward.2} parent=27 // pred_fallthru
          _
        // Predicated region
        $region69: #{dummy_gpt_forward.2} parent=27 // pred_check
          %p679 = pneg %p344
        $region70: #{dummy_gpt_forward.2} parent=27 // pred_check_branch
          %681 = sbr.rel (%p679) target = $region72
        $region71: #{dummy_gpt_forward.2} parent=27 // pred_region
          %s682 = sand.u32 %s43, 1
          %s683 = scalar_lea.sflag [#allocation18], %s682
          %s684 = sand.u32 %s334, 1
          %s685 = scalar_lea.vmem [#allocation19], %s684
          %687 = vsyncadd %s683, 0
          %s688 = scalar_lea.hbm %s11, %s43
          %s690 = sshll.u32 %s688, 4
          %s691 = int_to_ptr.hbm [resolvable:$true] %s690
          %s692 = sshll.u32 %s685, 4
          %s693 = int_to_ptr.vmem [resolvable:$true] %s692
          %695 = dma.hbm_to_vmem [thread:$0]  %s691, 16, %s693, %s683
        $region72: #{dummy_gpt_forward.2} parent=27 // pred_fallthru
          _
        // Predicated region
        $region73: #{dummy_gpt_forward.2} parent=27 // pred_check
          %p696 = pneg %p370
        $region74: #{dummy_gpt_forward.2} parent=27 // pred_check_branch
          %698 = sbr.rel (%p696) target = $region76
        $region75: #{dummy_gpt_forward.2} parent=27 // pred_region
          %s699 = sand.u32 %s43, 1
          %s700 = scalar_lea.sflag [#allocation21], %s699
          %s701 = sand.u32 %s360, 1
          %s702 = scalar_lea.vmem [#allocation20], %s701
          %704 = vsyncadd %s700, 0
          %s705 = scalar_lea.hbm %s12, %s43
          %s707 = sshll.u32 %s705, 4
          %s708 = int_to_ptr.hbm [resolvable:$true] %s707
          %s709 = sshll.u32 %s702, 4
          %s710 = int_to_ptr.vmem [resolvable:$true] %s709
          %712 = dma.hbm_to_vmem [thread:$0]  %s708, 16, %s710, %s700
        $region76: #{dummy_gpt_forward.2} parent=27 // pred_fallthru
          _
      $region28: #{dummy_gpt_forward.2} parent=5 // pred_fallthru
        _
      %p713 = scmp.le.s32.totalorder 1, %s43
      %p714 = scmp.lt.s32.totalorder %s43, 7
      %p715 = pnand %p713, %p714
      %p716 = pneg %p715
      // Predicated region
      $region77: #{dummy_gpt_forward.2} parent=5 // pred_check
        _
      $region78: #{dummy_gpt_forward.2} parent=5 // pred_check_branch
        %718 = sbr.rel (%p715) target = $region80
      $region79: #{dummy_gpt_forward.2} parent=5 // pred_region
        %s719 = ssub.s32 %s43, 1
        %s720 = sand.u32 %s77, 1
        %s721 = scalar_lea.sflag [#allocation4], %s720
        %s722 = sand.u32 %s77, 1
        %s723 = smul.addr %s722, 192
        %s724 = scalar_lea.vmem [#allocation3], %s723
        // Predicated region
        $region81: #{dummy_gpt_forward.2} parent=79 // pred_check
          %p725 = pneg %p90
        $region82: #{dummy_gpt_forward.2} parent=79 // pred_check_branch
          %727 = sbr.rel (%p725) target = $region84
        $region83: #{dummy_gpt_forward.2} parent=79 // pred_region
          %729 = dma.done %s721, 3072
        $region84: #{dummy_gpt_forward.2} parent=79 // pred_fallthru
          _
        %s730 = sand.u32 %s48, 1
        %s731 = scalar_lea.sflag [#allocation6], %s730
        %s732 = sand.u32 %s103, 1
        %s733 = smul.addr %s732, 3
        %s734 = scalar_lea.vmem [#allocation5], %s733
        // Predicated region
        $region85: #{dummy_gpt_forward.2} parent=79 // pred_check
          %p735 = pneg %p116
        $region86: #{dummy_gpt_forward.2} parent=79 // pred_check_branch
          %737 = sbr.rel (%p735) target = $region88
        $region87: #{dummy_gpt_forward.2} parent=79 // pred_region
          %739 = dma.done %s731, 48
        $region88: #{dummy_gpt_forward.2} parent=79 // pred_fallthru
          _
        %s740 = sand.u32 %s48, 1
        %s741 = scalar_lea.sflag [#allocation6], %s740
        %s742 = sand.u32 %s129, 1
        %s743 = smul.addr %s742, 64
        %s744 = scalar_lea.vmem [#allocation7], %s743
        // Predicated region
        $region89: #{dummy_gpt_forward.2} parent=79 // pred_check
          %p745 = pneg %p142
        $region90: #{dummy_gpt_forward.2} parent=79 // pred_check_branch
          %747 = sbr.rel (%p745) target = $region92
        $region91: #{dummy_gpt_forward.2} parent=79 // pred_region
          %749 = dma.done %s741, 1024
        $region92: #{dummy_gpt_forward.2} parent=79 // pred_fallthru
          _
        %s750 = sand.u32 %s48, 1
        %s751 = scalar_lea.sflag [#allocation9], %s750
        %s752 = sand.u32 %s155, 1
        %s753 = scalar_lea.vmem [#allocation8], %s752
        // Predicated region
        $region93: #{dummy_gpt_forward.2} parent=79 // pred_check
          %p754 = pneg %p168
        $region94: #{dummy_gpt_forward.2} parent=79 // pred_check_branch
          %756 = sbr.rel (%p754) target = $region96
        $region95: #{dummy_gpt_forward.2} parent=79 // pred_region
          %758 = dma.done %s751, 16
        $region96: #{dummy_gpt_forward.2} parent=79 // pred_fallthru
          _
        %s759 = sand.u32 %s48, 1
        %s760 = scalar_lea.sflag [#allocation9], %s759
        %s761 = sand.u32 %s181, 1
        %s762 = scalar_lea.vmem [#allocation10], %s761
        // Predicated region
        $region97: #{dummy_gpt_forward.2} parent=79 // pred_check
          %p763 = pneg %p194
        $region98: #{dummy_gpt_forward.2} parent=79 // pred_check_branch
          %765 = sbr.rel (%p763) target = $region100
        $region99: #{dummy_gpt_forward.2} parent=79 // pred_region
          %767 = dma.done %s760, 16
        $region100: #{dummy_gpt_forward.2} parent=79 // pred_fallthru
          _
        %s768 = sand.u32 %s48, 1
        %s769 = scalar_lea.sflag [#allocation12], %s768
        %s770 = sand.u32 %s207, 1
        %s771 = scalar_lea.vmem [#allocation11], %s770
        // Predicated region
        $region101: #{dummy_gpt_forward.2} parent=79 // pred_check
          %p772 = pneg %p220
        $region102: #{dummy_gpt_forward.2} parent=79 // pred_check_branch
          %774 = sbr.rel (%p772) target = $region104
        $region103: #{dummy_gpt_forward.2} parent=79 // pred_region
          %776 = dma.done %s769, 16
        $region104: #{dummy_gpt_forward.2} parent=79 // pred_fallthru
          _
        %s777 = sand.u32 %s48, 1
        %s778 = scalar_lea.sflag [#allocation12], %s777
        %s779 = sand.u32 %s233, 1
        %s780 = smul.addr %s779, 1024
        %s781 = scalar_lea.vmem [#allocation13], %s780
        // Predicated region
        $region105: #{dummy_gpt_forward.2} parent=79 // pred_check
          %p782 = pneg %p246
        $region106: #{dummy_gpt_forward.2} parent=79 // pred_check_branch
          %784 = sbr.rel (%p782) target = $region108
        $region107: #{dummy_gpt_forward.2} parent=79 // pred_region
          %786 = dma.done %s778, 16384
        $region108: #{dummy_gpt_forward.2} parent=79 // pred_fallthru
          _
        %s787 = sand.u32 %s48, 1
        %s788 = scalar_lea.sflag [#allocation15], %s787
        %s789 = sand.u32 %s259, 1
        %s790 = smul.addr %s789, 16
        %s791 = scalar_lea.vmem [#allocation14], %s790
        // Predicated region
        $region109: #{dummy_gpt_forward.2} parent=79 // pred_check
          %p792 = pneg %p272
        $region110: #{dummy_gpt_forward.2} parent=79 // pred_check_branch
          %794 = sbr.rel (%p792) target = $region112
        $region111: #{dummy_gpt_forward.2} parent=79 // pred_region
          %796 = dma.done %s788, 256
        $region112: #{dummy_gpt_forward.2} parent=79 // pred_fallthru
          _
        %s797 = sand.u32 %s48, 1
        %s798 = scalar_lea.sflag [#allocation15], %s797
        %s799 = sand.u32 %s285, 1
        %s800 = smul.addr %s799, 1024
        %s801 = scalar_lea.vmem [#allocation16], %s800
        // Predicated region
        $region113: #{dummy_gpt_forward.2} parent=79 // pred_check
          %p802 = pneg %p298
        $region114: #{dummy_gpt_forward.2} parent=79 // pred_check_branch
          %804 = sbr.rel (%p802) target = $region116
        $region115: #{dummy_gpt_forward.2} parent=79 // pred_region
          %806 = dma.done %s798, 16384
        $region116: #{dummy_gpt_forward.2} parent=79 // pred_fallthru
          _
        %s807 = sand.u32 %s48, 1
        %s808 = scalar_lea.sflag [#allocation18], %s807
        %s809 = sand.u32 %s311, 1
        %s810 = scalar_lea.vmem [#allocation17], %s809
        // Predicated region
        $region117: #{dummy_gpt_forward.2} parent=79 // pred_check
          %p811 = pneg %p324
        $region118: #{dummy_gpt_forward.2} parent=79 // pred_check_branch
          %813 = sbr.rel (%p811) target = $region120
        $region119: #{dummy_gpt_forward.2} parent=79 // pred_region
          %815 = dma.done %s808, 16
        $region120: #{dummy_gpt_forward.2} parent=79 // pred_fallthru
          _
        %s816 = sand.u32 %s48, 1
        %s817 = scalar_lea.sflag [#allocation18], %s816
        %s818 = sand.u32 %s337, 1
        %s819 = scalar_lea.vmem [#allocation19], %s818
        // Predicated region
        $region121: #{dummy_gpt_forward.2} parent=79 // pred_check
          %p820 = pneg %p350
        $region122: #{dummy_gpt_forward.2} parent=79 // pred_check_branch
          %822 = sbr.rel (%p820) target = $region124
        $region123: #{dummy_gpt_forward.2} parent=79 // pred_region
          %824 = dma.done %s817, 16
        $region124: #{dummy_gpt_forward.2} parent=79 // pred_fallthru
          _
        %s825 = sand.u32 %s48, 1
        %s826 = scalar_lea.sflag [#allocation21], %s825
        %s827 = sand.u32 %s363, 1
        %s828 = scalar_lea.vmem [#allocation20], %s827
        // Predicated region
        $region125: #{dummy_gpt_forward.2} parent=79 // pred_check
          %p829 = pneg %p376
        $region126: #{dummy_gpt_forward.2} parent=79 // pred_check_branch
          %831 = sbr.rel (%p829) target = $region128
        $region127: #{dummy_gpt_forward.2} parent=79 // pred_region
          %833 = dma.done %s826, 16
        $region128: #{dummy_gpt_forward.2} parent=79 // pred_fallthru
          _
        // Predicated region
        $region129: #{dummy_gpt_forward.2} parent=79 // pred_check
          %p834 = pneg %p397
        $region130: #{dummy_gpt_forward.2} parent=79 // pred_check_branch
          %836 = sbr.rel (%p834) target = $region132
        $region131: #{dummy_gpt_forward.2} parent=79 // pred_region
          %838 = dma.done [#allocation21], 16
        $region132: #{dummy_gpt_forward.2} parent=79 // pred_fallthru
          _
        // Predicated region
        $region133: #{dummy_gpt_forward.2} parent=79 // pred_check
          %p839 = pneg %p418
        $region134: #{dummy_gpt_forward.2} parent=79 // pred_check_branch
          %841 = sbr.rel (%p839) target = $region136
        $region135: #{dummy_gpt_forward.2} parent=79 // pred_region
          %843 = dma.done [#allocation24], 16
        $region136: #{dummy_gpt_forward.2} parent=79 // pred_fallthru
          _
        %p844 = pneg %p64
        %p845 = pneg %p61
        %s846 = sand.u32 %s77, 1
        %s847 = scalar_lea.sflag [#allocation4], %s846
        %s848 = sand.u32 %s77, 1
        %s849 = smul.addr %s848, 192
        %s850 = scalar_lea.vmem [#allocation3], %s849
        %p851 = pneg %p90
        %p852 = pneg %p87
        %s853 = sand.u32 %s48, 1
        %s854 = scalar_lea.sflag [#allocation6], %s853
        %s855 = sand.u32 %s103, 1
        %s856 = smul.addr %s855, 3
        %s857 = scalar_lea.vmem [#allocation5], %s856
        %p858 = pneg %p116
        %p859 = pneg %p113
        %s860 = sand.u32 %s48, 1
        %s861 = scalar_lea.sflag [#allocation6], %s860
        %s862 = sand.u32 %s129, 1
        %s863 = smul.addr %s862, 64
        %s864 = scalar_lea.vmem [#allocation7], %s863
        %p865 = pneg %p142
        %p866 = pneg %p139
        %s867 = sand.u32 %s48, 1
        %s868 = scalar_lea.sflag [#allocation9], %s867
        %s869 = sand.u32 %s155, 1
        %s870 = scalar_lea.vmem [#allocation8], %s869
        %p871 = pneg %p168
        %p872 = pneg %p165
        %s873 = sand.u32 %s48, 1
        %s874 = scalar_lea.sflag [#allocation9], %s873
        %s875 = sand.u32 %s181, 1
        %s876 = scalar_lea.vmem [#allocation10], %s875
        %p877 = pneg %p194
        %p878 = pneg %p191
        %s879 = sand.u32 %s48, 1
        %s880 = scalar_lea.sflag [#allocation12], %s879
        %s881 = sand.u32 %s207, 1
        %s882 = scalar_lea.vmem [#allocation11], %s881
        %p883 = pneg %p220
        %p884 = pneg %p217
        %s885 = sand.u32 %s48, 1
        %s886 = scalar_lea.sflag [#allocation12], %s885
        %s887 = sand.u32 %s233, 1
        %s888 = smul.addr %s887, 1024
        %s889 = scalar_lea.vmem [#allocation13], %s888
        %p890 = pneg %p246
        %p891 = pneg %p243
        %s892 = sand.u32 %s48, 1
        %s893 = scalar_lea.sflag [#allocation15], %s892
        %s894 = sand.u32 %s259, 1
        %s895 = smul.addr %s894, 16
        %s896 = scalar_lea.vmem [#allocation14], %s895
        %p897 = pneg %p272
        %p898 = pneg %p269
        %s899 = sand.u32 %s48, 1
        %s900 = scalar_lea.sflag [#allocation15], %s899
        %s901 = sand.u32 %s285, 1
        %s902 = smul.addr %s901, 1024
        %s903 = scalar_lea.vmem [#allocation16], %s902
        %p904 = pneg %p298
        %p905 = pneg %p295
        %s906 = sand.u32 %s48, 1
        %s907 = scalar_lea.sflag [#allocation18], %s906
        %s908 = sand.u32 %s311, 1
        %s909 = scalar_lea.vmem [#allocation17], %s908
        %p910 = pneg %p324
        %p911 = pneg %p321
        %s912 = sand.u32 %s48, 1
        %s913 = scalar_lea.sflag [#allocation18], %s912
        %s914 = sand.u32 %s337, 1
        %s915 = scalar_lea.vmem [#allocation19], %s914
        %p916 = pneg %p350
        %p917 = pneg %p347
        %s918 = sand.u32 %s48, 1
        %s919 = scalar_lea.sflag [#allocation21], %s918
        %s920 = sand.u32 %s363, 1
        %s921 = scalar_lea.vmem [#allocation20], %s920
        %p922 = pneg %p376
        %p923 = pneg %p373
        %p924 = pneg %p397
        %p925 = pneg %p394
        %p926 = pneg %p418
        %p927 = pneg %p415
        %p928 = pneg %p439
        %p929 = pneg %p436
        %p931 = scmp.eq.s32.totalorder %s48, 0
        // Predicated region
        $region137: #{dummy_gpt_forward.2} parent=79 // pred_check
          %p932 = pneg %p931
        $region138: #{dummy_gpt_forward.2} parent=79 // pred_check_branch
          %934 = sbr.rel (%p932) target = $region140
        $region139: #{dummy_gpt_forward.2} parent=79 // pred_region
          %v935 = vld [vmem:[%s0] sm:$0xff]
          %v936 = vld [vmem:[%s0 + $0x8] sm:$0xff]
          %937 = vst [vmem:[#allocation2] sm:$0xff] %v935
          %938 = vst [vmem:[#allocation2 + $0x8] sm:$0xff] %v936
        $region140: #{dummy_gpt_forward.2} parent=79 // pred_fallthru
          _
        %v939 = vld [vmem:[#allocation2] sm:$0xff]
        %v940 = vld [vmem:[#allocation2 + $0x8] sm:$0xff]
        %v941 = vpack.c.bf16 %v940, %v939
        %v942 = vld [vmem:[%s724] sm:$0xff]
        %v943 = vld [vmem:[%s724 + $0x8] sm:$0xf]
        %v944 = vld [vmem:[%s724 + $0xc] sm:$0xff]
        %v945 = vld [vmem:[%s724 + $0x14] sm:$0xf]
        %v946 = vld [vmem:[%s724 + $0x18] sm:$0xff]
        %v947 = vld [vmem:[%s724 + $0x20] sm:$0xf]
        %v948 = vld [vmem:[%s724 + $0x24] sm:$0xff]
        %v949 = vld [vmem:[%s724 + $0x2c] sm:$0xf]
        %v950 = vld [vmem:[%s724 + $0x30] sm:$0xff]
        %v951 = vld [vmem:[%s724 + $0x38] sm:$0xf]
        %v952 = vld [vmem:[%s724 + $0x3c] sm:$0xff]
        %v953 = vld [vmem:[%s724 + $0x44] sm:$0xf]
        %v954 = vld [vmem:[%s724 + $0x48] sm:$0xff]
        %v955 = vld [vmem:[%s724 + $0x50] sm:$0xf]
        %v956 = vld [vmem:[%s724 + $0x54] sm:$0xff]
        %v957 = vld [vmem:[%s724 + $0x5c] sm:$0xf]
        %v958 = vld [vmem:[%s724 + $0x60] sm:$0xff]
        %v959 = vld [vmem:[%s724 + $0x68] sm:$0xf]
        %v960 = vld [vmem:[%s724 + $0x6c] sm:$0xff]
        %v961 = vld [vmem:[%s724 + $0x74] sm:$0xf]
        %v962 = vld [vmem:[%s724 + $0x78] sm:$0xff]
        %v963 = vld [vmem:[%s724 + $0x80] sm:$0xf]
        %v964 = vld [vmem:[%s724 + $0x84] sm:$0xff]
        %v965 = vld [vmem:[%s724 + $0x8c] sm:$0xf]
        %v966 = vld [vmem:[%s724 + $0x90] sm:$0xff]
        %v967 = vld [vmem:[%s724 + $0x98] sm:$0xf]
        %v968 = vld [vmem:[%s724 + $0x9c] sm:$0xff]
        %v969 = vld [vmem:[%s724 + $0xa4] sm:$0xf]
        %v970 = vld [vmem:[%s724 + $0xa8] sm:$0xff]
        %v971 = vld [vmem:[%s724 + $0xb0] sm:$0xf]
        %v972 = vld [vmem:[%s724 + $0xb4] sm:$0xff]
        %v973 = vld [vmem:[%s724 + $0xbc] sm:$0xf]
        %v974 = vld [vmem:[%s734] sm:$0x7]
        %v976 = vperm.slane %v974, 0
        %v977 = vperm.slane %v974, 1
        %v978 = vperm.slane %v974, 2
        %v1014 = vunpack.c.l.b16 %v942
        %v1015 = vunpack.c.h.b16 %v942
        %v1016 = vunpack.c.l.b16 %v943
        %v1017 = vunpack.c.l.b16 %v944
        %v1018 = vunpack.c.h.b16 %v944
        %v1019 = vunpack.c.l.b16 %v945
        %v1020 = vunpack.c.l.b16 %v946
        %v1021 = vunpack.c.h.b16 %v946
        %v1022 = vunpack.c.l.b16 %v947
        %v1023 = vunpack.c.l.b16 %v948
        %v1024 = vunpack.c.h.b16 %v948
        %v1025 = vunpack.c.l.b16 %v949
        %v1026 = vunpack.c.l.b16 %v950
        %v1027 = vunpack.c.h.b16 %v950
        %v1028 = vunpack.c.l.b16 %v951
        %v1029 = vunpack.c.l.b16 %v952
        %v1030 = vunpack.c.h.b16 %v952
        %v1031 = vunpack.c.l.b16 %v953
        %v1032 = vunpack.c.l.b16 %v954
        %v1033 = vunpack.c.h.b16 %v954
        %v1034 = vunpack.c.l.b16 %v955
        %v1035 = vunpack.c.l.b16 %v956
        %v1036 = vunpack.c.h.b16 %v956
        %v1037 = vunpack.c.l.b16 %v957
        %v1038 = vunpack.c.l.b16 %v958
        %v1039 = vunpack.c.h.b16 %v958
        %v1040 = vunpack.c.l.b16 %v959
        %v1041 = vunpack.c.l.b16 %v960
        %v1042 = vunpack.c.h.b16 %v960
        %v1043 = vunpack.c.l.b16 %v961
        %v1044 = vunpack.c.l.b16 %v962
        %v1045 = vunpack.c.h.b16 %v962
        %v1046 = vunpack.c.l.b16 %v963
        %v1047 = vunpack.c.l.b16 %v964
        %v1048 = vunpack.c.h.b16 %v964
        %v1049 = vunpack.c.l.b16 %v965
        %v1050 = vunpack.c.l.b16 %v966
        %v1051 = vunpack.c.h.b16 %v966
        %v1052 = vunpack.c.l.b16 %v967
        %v1053 = vunpack.c.l.b16 %v968
        %v1054 = vunpack.c.h.b16 %v968
        %v1055 = vunpack.c.l.b16 %v969
        %v1056 = vunpack.c.l.b16 %v970
        %v1057 = vunpack.c.h.b16 %v970
        %v1058 = vunpack.c.l.b16 %v971
        %v1059 = vunpack.c.l.b16 %v972
        %v1060 = vunpack.c.h.b16 %v972
        %v1061 = vunpack.c.l.b16 %v973
        %v1062 = vpack.c.b16 %v1017, %v1014
        %v1063 = vpack.c.b16 %v1018, %v1015
        %v1064 = vpack.c.b16 %v1019, %v1016
        %v1065 = vpack.c.b16 %v1023, %v1020
        %v1066 = vpack.c.b16 %v1024, %v1021
        %v1067 = vpack.c.b16 %v1025, %v1022
        %v1068 = vpack.c.b16 %v1029, %v1026
        %v1069 = vpack.c.b16 %v1030, %v1027
        %v1070 = vpack.c.b16 %v1031, %v1028
        %v1071 = vpack.c.b16 %v1035, %v1032
        %v1072 = vpack.c.b16 %v1036, %v1033
        %v1073 = vpack.c.b16 %v1037, %v1034
        %v1074 = vpack.c.b16 %v1041, %v1038
        %v1075 = vpack.c.b16 %v1042, %v1039
        %v1076 = vpack.c.b16 %v1043, %v1040
        %v1077 = vpack.c.b16 %v1047, %v1044
        %v1078 = vpack.c.b16 %v1048, %v1045
        %v1079 = vpack.c.b16 %v1049, %v1046
        %v1080 = vpack.c.b16 %v1053, %v1050
        %v1081 = vpack.c.b16 %v1054, %v1051
        %v1082 = vpack.c.b16 %v1055, %v1052
        %v1083 = vpack.c.b16 %v1059, %v1056
        %v1084 = vpack.c.b16 %v1060, %v1057
        %v1085 = vpack.c.b16 %v1061, %v1058
        %1110 = vmatpush.bf16.msra.mxu0 %v1083
        %1111 = vmatpush.bf16.msra.mxu0 %v1080
        %1112 = vmatpush.bf16.msra.mxu0 %v1077
        %1113 = vmatpush.bf16.msra.mxu0 %v1074
        %1114 = vmatpush.bf16.msra.mxu0 %v1071
        %1115 = vmatpush.bf16.msra.mxu0 %v1068
        %1116 = vmatpush.bf16.msra.mxu0 %v1065
        %1117 = vmatpush.bf16.msra.mxu0 %v1062
        %1118 = vmatmul.bf16.gmra.mxu0 %v941
        %v1119 = vpop.f32.mrf.mxu0
        %v1120 = vadd.f32 %v976, %v1119
        %v1121 = vpop.f32.mrf.mxu0
        %v1122 = vadd.f32 %v976, %v1121
        %1123 = vdwg.mxu0
        %1124 = vmatpush.bf16.msra.mxu0 %v1084
        %1125 = vmatpush.bf16.msra.mxu0 %v1081
        %1126 = vmatpush.bf16.msra.mxu0 %v1078
        %1127 = vmatpush.bf16.msra.mxu0 %v1075
        %1128 = vmatpush.bf16.msra.mxu0 %v1072
        %1129 = vmatpush.bf16.msra.mxu0 %v1069
        %1130 = vmatpush.bf16.msra.mxu0 %v1066
        %1131 = vmatpush.bf16.msra.mxu0 %v1063
        %1132 = vmatmul.bf16.gmra.mxu0 %v941
        %v1133 = vpop.f32.mrf.mxu0
        %v1134 = vadd.f32 %v977, %v1133
        %v1135 = vpop.f32.mrf.mxu0
        %v1136 = vadd.f32 %v977, %v1135
        %1137 = vdwg.mxu0
        %1138 = vmatpush.bf16.msra.mxu0 %v1085
        %1139 = vmatpush.bf16.msra.mxu0 %v1082
        %1140 = vmatpush.bf16.msra.mxu0 %v1079
        %1141 = vmatpush.bf16.msra.mxu0 %v1076
        %1142 = vmatpush.bf16.msra.mxu0 %v1073
        %1143 = vmatpush.bf16.msra.mxu0 %v1070
        %1144 = vmatpush.bf16.msra.mxu0 %v1067
        %1145 = vmatpush.bf16.msra.mxu0 %v1064
        %1146 = vmatmul.bf16.gmra.mxu0 %v941
        %v1147 = vpop.f32.mrf.mxu0
        %v1148 = vadd.f32 %v978, %v1147
        %v1149 = vpop.f32.mrf.mxu0
        %v1150 = vadd.f32 %v978, %v1149
        %1151 = vdwg.mxu0
        %v1152 = vpack.c.bf16 %v1120, %v1120
        %v1153 = vpack.c.bf16 %v1122, %v1122
        %v1154 = vpack.c.bf16 %v1134, %v1134
        %v1155 = vpack.c.bf16 %v1136, %v1136
        %1156 = vmatpush.bf16.xpose.msra.mxu0 0
        %1157 = vmatpush.bf16.xpose.msra.mxu0 0
        %1158 = vmatpush.bf16.xpose.msra.mxu0 0
        %1159 = vmatpush.bf16.xpose.msra.mxu0 0
        %1160 = vmatpush.bf16.xpose.msra.mxu0 0
        %1161 = vmatpush.bf16.xpose.msra.mxu0 0
        %1162 = vmatpush.bf16.xpose.msra.mxu0 0
        %1163 = vmatpush.bf16.xpose.msra.mxu0 %v1154
        %1164 = vmatmul.bf16.gmra.mxu0 %v1152
        %v1165 = vpop.f32.mrf.mxu0
        %v1166 = vadd.f32 0.0, %v1165
        %v1167 = vpop.f32.mrf.mxu0
        %1168 = vdwg.mxu0
        %1169 = vmatpush.bf16.xpose.msra.mxu0 0
        %1170 = vmatpush.bf16.xpose.msra.mxu0 0
        %1171 = vmatpush.bf16.xpose.msra.mxu0 0
        %1172 = vmatpush.bf16.xpose.msra.mxu0 0
        %1173 = vmatpush.bf16.xpose.msra.mxu0 0
        %1174 = vmatpush.bf16.xpose.msra.mxu0 0
        %1175 = vmatpush.bf16.xpose.msra.mxu0 0
        %1176 = vmatpush.bf16.xpose.msra.mxu0 %v1155
        %1177 = vmatmul.bf16.gmra.mxu0 %v1153
        %v1178 = vpop.f32.mrf.mxu0
        %v1179 = vadd.f32 0.0, %v1178
        %v1180 = vpop.f32.mrf.mxu0
        %1181 = vdwg.mxu0
        %vm1182 = vcmask 64512
        %v1183 = vsel %vm1182, %v1166, -inf
        %1184 = vmax.xlane.f32.xlu0 %v1183
        %v1185 = vpop.xlane.xlu0 %1184
        %v1186 = vsel %vm1182, %v1179, -inf
        %1187 = vmax.xlane.f32.xlu0 %v1186
        %v1188 = vpop.xlane.xlu0 %1187
        %v1189 = vsub.f32 %v1166, %v1185
        %v1190 = vsub.f32 %v1179, %v1188
        %v1191 = vmul.f32 %v1189, 1.442695
        %v1192 = vpow.pop %v1191
        %v1193 = vmul.f32 %v1190, 1.442695
        %v1194 = vpow.pop %v1193
        %v1195 = vsel %vm1182, %v1192, 0.0
        %1196 = vadd.xlane.f32.xlu0 %v1195
        %v1197 = vpop.xlane.xlu0 %1196
        %v1198 = vsel %vm1182, %v1194, 0.0
        %1199 = vadd.xlane.f32.xlu0 %v1198
        %v1200 = vpop.xlane.xlu0 %1199
        %v1201 = vrcp.pop %v1197
        %v1202 = vrcp.pop %v1200
        %v1203 = vmul.f32 %v1192, %v1201
        %v1204 = vmul.f32 %v1194, %v1202
        %v1206 = vsel %vm1182, %v1203, 0
        %1208 = vmatpush.msra.mxu0 0.0
        %1209 = vmatpush.msra.mxu0 0.0
        %1210 = vmatpush.msra.mxu0 0.0
        %1211 = vmatpush.msra.mxu0 0.0
        %1212 = vmatpush.msra.mxu0 0.0
        %1213 = vmatpush.msra.mxu0 0.0
        %1214 = vmatpush.msra.mxu0 0.0
        %1215 = vmatpush.msra.mxu0 0.0
        %1216 = vmatpush.msra.mxu0 0.0
        %1217 = vmatpush.msra.mxu0 0.0
        %1218 = vmatpush.msra.mxu0 0.0
        %1219 = vmatpush.msra.mxu0 0.0
        %1220 = vmatpush.msra.mxu0 0.0
        %1221 = vmatpush.msra.mxu0 0.0
        %1222 = vmatpush.msra.mxu0 0.0
        %1223 = vmatpush.msra.mxu0 %v1148
        %1224 = vmatmul.f32.gmra.mxu0 %v1206
        %v1225 = vpop.f32.mrf.mxu0
        %v1226 = vadd.f32 0.0, %v1225
        %1227 = vdwg.mxu0
        %v1229 = vsel %vm1182, %v1204, 0
        %1231 = vmatpush.msra.mxu0 0.0
        %1232 = vmatpush.msra.mxu0 0.0
        %1233 = vmatpush.msra.mxu0 0.0
        %1234 = vmatpush.msra.mxu0 0.0
        %1235 = vmatpush.msra.mxu0 0.0
        %1236 = vmatpush.msra.mxu0 0.0
        %1237 = vmatpush.msra.mxu0 0.0
        %1238 = vmatpush.msra.mxu0 0.0
        %1239 = vmatpush.msra.mxu0 0.0
        %1240 = vmatpush.msra.mxu0 0.0
        %1241 = vmatpush.msra.mxu0 0.0
        %1242 = vmatpush.msra.mxu0 0.0
        %1243 = vmatpush.msra.mxu0 0.0
        %1244 = vmatpush.msra.mxu0 0.0
        %1245 = vmatpush.msra.mxu0 0.0
        %1246 = vmatpush.msra.mxu0 %v1150
        %1247 = vmatmul.f32.gmra.mxu0 %v1229
        %v1248 = vpop.f32.mrf.mxu0
        %v1249 = vadd.f32 0.0, %v1248
        %1250 = vdwg.mxu0
        %v1251 = vpack.c.bf16 %v1249, %v1226
        %v1252 = vld [vmem:[%s744] sm:$0xf]
        %v1253 = vld [vmem:[%s744 + $0x4] sm:$0xf]
        %v1254 = vld [vmem:[%s744 + $0x8] sm:$0xf]
        %v1255 = vld [vmem:[%s744 + $0xc] sm:$0xf]
        %v1256 = vld [vmem:[%s744 + $0x10] sm:$0xf]
        %v1257 = vld [vmem:[%s744 + $0x14] sm:$0xf]
        %v1258 = vld [vmem:[%s744 + $0x18] sm:$0xf]
        %v1259 = vld [vmem:[%s744 + $0x1c] sm:$0xf]
        %v1260 = vld [vmem:[%s744 + $0x20] sm:$0xf]
        %v1261 = vld [vmem:[%s744 + $0x24] sm:$0xf]
        %v1262 = vld [vmem:[%s744 + $0x28] sm:$0xf]
        %v1263 = vld [vmem:[%s744 + $0x2c] sm:$0xf]
        %v1264 = vld [vmem:[%s744 + $0x30] sm:$0xf]
        %v1265 = vld [vmem:[%s744 + $0x34] sm:$0xf]
        %v1266 = vld [vmem:[%s744 + $0x38] sm:$0xf]
        %v1267 = vld [vmem:[%s744 + $0x3c] sm:$0xf]
        %v1268 = vld [vmem:[%s753] sm:$0x1]
        %v1270 = vperm.slane %v1268, 0
        %v1288 = vunpack.c.l.b16 %v1252
        %v1289 = vunpack.c.l.b16 %v1253
        %v1290 = vunpack.c.l.b16 %v1254
        %v1291 = vunpack.c.l.b16 %v1255
        %v1292 = vunpack.c.l.b16 %v1256
        %v1293 = vunpack.c.l.b16 %v1257
        %v1294 = vunpack.c.l.b16 %v1258
        %v1295 = vunpack.c.l.b16 %v1259
        %v1296 = vunpack.c.l.b16 %v1260
        %v1297 = vunpack.c.l.b16 %v1261
        %v1298 = vunpack.c.l.b16 %v1262
        %v1299 = vunpack.c.l.b16 %v1263
        %v1300 = vunpack.c.l.b16 %v1264
        %v1301 = vunpack.c.l.b16 %v1265
        %v1302 = vunpack.c.l.b16 %v1266
        %v1303 = vunpack.c.l.b16 %v1267
        %v1304 = vpack.c.b16 %v1289, %v1288
        %v1305 = vpack.c.b16 %v1291, %v1290
        %v1306 = vpack.c.b16 %v1293, %v1292
        %v1307 = vpack.c.b16 %v1295, %v1294
        %v1308 = vpack.c.b16 %v1297, %v1296
        %v1309 = vpack.c.b16 %v1299, %v1298
        %v1310 = vpack.c.b16 %v1301, %v1300
        %v1311 = vpack.c.b16 %v1303, %v1302
        %1320 = vmatpush.bf16.msra.mxu0 %v1311
        %1321 = vmatpush.bf16.msra.mxu0 %v1310
        %1322 = vmatpush.bf16.msra.mxu0 %v1309
        %1323 = vmatpush.bf16.msra.mxu0 %v1308
        %1324 = vmatpush.bf16.msra.mxu0 %v1307
        %1325 = vmatpush.bf16.msra.mxu0 %v1306
        %1326 = vmatpush.bf16.msra.mxu0 %v1305
        %1327 = vmatpush.bf16.msra.mxu0 %v1304
        %1328 = vmatmul.bf16.gmra.mxu0 %v1251
        %v1329 = vpop.f32.mrf.mxu0
        %v1330 = vadd.f32 %v1270, %v1329
        %v1331 = vpop.f32.mrf.mxu0
        %v1332 = vadd.f32 %v1270, %v1331
        %1333 = vdwg.mxu0
        %v1334 = vadd.f32 %v939, %v1330
        %v1335 = vadd.f32 %v940, %v1332
        %1336 = vadd.xlane.f32.xlu0 %v1334
        %v1337 = vpop.xlane.xlu0 %1336
        %1338 = vadd.xlane.f32.xlu0 %v1335
        %v1339 = vpop.xlane.xlu0 %1338
        %v1340 = vrcp.pop 128.0
        %v1341 = vmul.f32 128.0, %v1340
        %v1342 = vsub.f32 1.0, %v1341
        %v1343 = vmul.f32 %v1340, %v1342
        %v1344 = vadd.f32 %v1340, %v1343
        %vm1345 = vweird.f32 %v1340
        %v1346 = vsel %vm1345, %v1340, %v1344
        %v1347 = vmul.f32 %v1337, %v1346
        %v1348 = vmul.f32 %v1339, %v1346
        %v1349 = vsub.f32 %v1334, %v1347
        %v1350 = vsub.f32 %v1335, %v1348
        %v1351 = vmul.f32 %v1349, %v1349
        %v1352 = vmul.f32 %v1350, %v1350
        %1353 = vadd.xlane.f32.xlu0 %v1351
        %v1354 = vpop.xlane.xlu0 %1353
        %1355 = vadd.xlane.f32.xlu0 %v1352
        %v1356 = vpop.xlane.xlu0 %1355
        %v1357 = vmul.f32 %v1354, %v1346
        %v1358 = vmul.f32 %v1356, %v1346
        %v1359 = vadd.f32 %v1357, 1e-05
        %v1360 = vadd.f32 %v1358, 1e-05
        %v1361 = vrsqrt.pop %v1359
        %v1362 = vmul.f32 %v1361, %v1359
        %v1363 = vmul.f32 %v1362, %v1361
        %v1364 = vmul.f32 0.5, %v1363
        %v1365 = vsub.f32 1.5, %v1364
        %v1366 = vmul.f32 %v1361, %v1365
        %vm1367 = vweird.f32 %v1359
        %vm1368 = vweird.f32 %v1361
        %vm1369 = vmor %vm1367, %vm1368
        %v1370 = vsel %vm1369, %v1361, %v1366
        %v1371 = vrsqrt.pop %v1360
        %v1372 = vmul.f32 %v1371, %v1360
        %v1373 = vmul.f32 %v1372, %v1371
        %v1374 = vmul.f32 0.5, %v1373
        %v1375 = vsub.f32 1.5, %v1374
        %v1376 = vmul.f32 %v1371, %v1375
        %vm1377 = vweird.f32 %v1360
        %vm1378 = vweird.f32 %v1371
        %vm1379 = vmor %vm1377, %vm1378
        %v1380 = vsel %vm1379, %v1371, %v1376
        %v1381 = vmul.f32 %v1349, %v1370
        %v1382 = vmul.f32 %v1350, %v1380
        %v1383 = vld [vmem:[%s762] sm:$0x1]
        %v1385 = vperm.slane %v1383, 0
        %v1387 = vmul.f32 %v1381, %v1385
        %v1388 = vmul.f32 %v1382, %v1385
        %v1389 = vld [vmem:[%s771] sm:$0x1]
        %v1391 = vperm.slane %v1389, 0
        %v1393 = vadd.f32 %v1387, %v1391
        %v1394 = vadd.f32 %v1388, %v1391
        %v1395 = vpack.c.bf16 %v1394, %v1393
        %v1396 = vld [vmem:[%s781] sm:$0xff]
        %v1397 = vld [vmem:[%s781 + $0x8] sm:$0xff]
        %v1398 = vld [vmem:[%s781 + $0x10] sm:$0xff]
        %v1399 = vld [vmem:[%s781 + $0x18] sm:$0xff]
        %v1400 = vld [vmem:[%s781 + $0x20] sm:$0xff]
        %v1401 = vld [vmem:[%s781 + $0x28] sm:$0xff]
        %v1402 = vld [vmem:[%s781 + $0x30] sm:$0xff]
        %v1403 = vld [vmem:[%s781 + $0x38] sm:$0xff]
        %v1404 = vld [vmem:[%s781 + $0x40] sm:$0xff]
        %v1405 = vld [vmem:[%s781 + $0x48] sm:$0xff]
        %v1406 = vld [vmem:[%s781 + $0x50] sm:$0xff]
        %v1407 = vld [vmem:[%s781 + $0x58] sm:$0xff]
        %v1408 = vld [vmem:[%s781 + $0x60] sm:$0xff]
        %v1409 = vld [vmem:[%s781 + $0x68] sm:$0xff]
        %v1410 = vld [vmem:[%s781 + $0x70] sm:$0xff]
        %v1411 = vld [vmem:[%s781 + $0x78] sm:$0xff]
        %v1412 = vld [vmem:[%s781 + $0x80] sm:$0xff]
        %v1413 = vld [vmem:[%s781 + $0x88] sm:$0xff]
        %v1414 = vld [vmem:[%s781 + $0x90] sm:$0xff]
        %v1415 = vld [vmem:[%s781 + $0x98] sm:$0xff]
        %v1416 = vld [vmem:[%s781 + $0xa0] sm:$0xff]
        %v1417 = vld [vmem:[%s781 + $0xa8] sm:$0xff]
        %v1418 = vld [vmem:[%s781 + $0xb0] sm:$0xff]
        %v1419 = vld [vmem:[%s781 + $0xb8] sm:$0xff]
        %v1420 = vld [vmem:[%s781 + $0xc0] sm:$0xff]
        %v1421 = vld [vmem:[%s781 + $0xc8] sm:$0xff]
        %v1422 = vld [vmem:[%s781 + $0xd0] sm:$0xff]
        %v1423 = vld [vmem:[%s781 + $0xd8] sm:$0xff]
        %v1424 = vld [vmem:[%s781 + $0xe0] sm:$0xff]
        %v1425 = vld [vmem:[%s781 + $0xe8] sm:$0xff]
        %v1426 = vld [vmem:[%s781 + $0xf0] sm:$0xff]
        %v1427 = vld [vmem:[%s781 + $0xf8] sm:$0xff]
        %v1428 = vld [vmem:[%s781 + $0x100] sm:$0xff]
        %v1429 = vld [vmem:[%s781 + $0x108] sm:$0xff]
        %v1430 = vld [vmem:[%s781 + $0x110] sm:$0xff]
        %v1431 = vld [vmem:[%s781 + $0x118] sm:$0xff]
        %v1432 = vld [vmem:[%s781 + $0x120] sm:$0xff]
        %v1433 = vld [vmem:[%s781 + $0x128] sm:$0xff]
        %v1434 = vld [vmem:[%s781 + $0x130] sm:$0xff]
        %v1435 = vld [vmem:[%s781 + $0x138] sm:$0xff]
        %v1436 = vld [vmem:[%s781 + $0x140] sm:$0xff]
        %v1437 = vld [vmem:[%s781 + $0x148] sm:$0xff]
        %v1438 = vld [vmem:[%s781 + $0x150] sm:$0xff]
        %v1439 = vld [vmem:[%s781 + $0x158] sm:$0xff]
        %v1440 = vld [vmem:[%s781 + $0x160] sm:$0xff]
        %v1441 = vld [vmem:[%s781 + $0x168] sm:$0xff]
        %v1442 = vld [vmem:[%s781 + $0x170] sm:$0xff]
        %v1443 = vld [vmem:[%s781 + $0x178] sm:$0xff]
        %v1444 = vld [vmem:[%s781 + $0x180] sm:$0xff]
        %v1445 = vld [vmem:[%s781 + $0x188] sm:$0xff]
        %v1446 = vld [vmem:[%s781 + $0x190] sm:$0xff]
        %v1447 = vld [vmem:[%s781 + $0x198] sm:$0xff]
        %v1448 = vld [vmem:[%s781 + $0x1a0] sm:$0xff]
        %v1449 = vld [vmem:[%s781 + $0x1a8] sm:$0xff]
        %v1450 = vld [vmem:[%s781 + $0x1b0] sm:$0xff]
        %v1451 = vld [vmem:[%s781 + $0x1b8] sm:$0xff]
        %v1452 = vld [vmem:[%s781 + $0x1c0] sm:$0xff]
        %v1453 = vld [vmem:[%s781 + $0x1c8] sm:$0xff]
        %v1454 = vld [vmem:[%s781 + $0x1d0] sm:$0xff]
        %v1455 = vld [vmem:[%s781 + $0x1d8] sm:$0xff]
        %v1456 = vld [vmem:[%s781 + $0x1e0] sm:$0xff]
        %v1457 = vld [vmem:[%s781 + $0x1e8] sm:$0xff]
        %v1458 = vld [vmem:[%s781 + $0x1f0] sm:$0xff]
        %v1459 = vld [vmem:[%s781 + $0x1f8] sm:$0xff]
        %v1460 = vld [vmem:[%s781 + $0x200] sm:$0xff]
        %v1461 = vld [vmem:[%s781 + $0x208] sm:$0xff]
        %v1462 = vld [vmem:[%s781 + $0x210] sm:$0xff]
        %v1463 = vld [vmem:[%s781 + $0x218] sm:$0xff]
        %v1464 = vld [vmem:[%s781 + $0x220] sm:$0xff]
        %v1465 = vld [vmem:[%s781 + $0x228] sm:$0xff]
        %v1466 = vld [vmem:[%s781 + $0x230] sm:$0xff]
        %v1467 = vld [vmem:[%s781 + $0x238] sm:$0xff]
        %v1468 = vld [vmem:[%s781 + $0x240] sm:$0xff]
        %v1469 = vld [vmem:[%s781 + $0x248] sm:$0xff]
        %v1470 = vld [vmem:[%s781 + $0x250] sm:$0xff]
        %v1471 = vld [vmem:[%s781 + $0x258] sm:$0xff]
        %v1472 = vld [vmem:[%s781 + $0x260] sm:$0xff]
        %v1473 = vld [vmem:[%s781 + $0x268] sm:$0xff]
        %v1474 = vld [vmem:[%s781 + $0x270] sm:$0xff]
        %v1475 = vld [vmem:[%s781 + $0x278] sm:$0xff]
        %v1476 = vld [vmem:[%s781 + $0x280] sm:$0xff]
        %v1477 = vld [vmem:[%s781 + $0x288] sm:$0xff]
        %v1478 = vld [vmem:[%s781 + $0x290] sm:$0xff]
        %v1479 = vld [vmem:[%s781 + $0x298] sm:$0xff]
        %v1480 = vld [vmem:[%s781 + $0x2a0] sm:$0xff]
        %v1481 = vld [vmem:[%s781 + $0x2a8] sm:$0xff]
        %v1482 = vld [vmem:[%s781 + $0x2b0] sm:$0xff]
        %v1483 = vld [vmem:[%s781 + $0x2b8] sm:$0xff]
        %v1484 = vld [vmem:[%s781 + $0x2c0] sm:$0xff]
        %v1485 = vld [vmem:[%s781 + $0x2c8] sm:$0xff]
        %v1486 = vld [vmem:[%s781 + $0x2d0] sm:$0xff]
        %v1487 = vld [vmem:[%s781 + $0x2d8] sm:$0xff]
        %v1488 = vld [vmem:[%s781 + $0x2e0] sm:$0xff]
        %v1489 = vld [vmem:[%s781 + $0x2e8] sm:$0xff]
        %v1490 = vld [vmem:[%s781 + $0x2f0] sm:$0xff]
        %v1491 = vld [vmem:[%s781 + $0x2f8] sm:$0xff]
        %v1492 = vld [vmem:[%s781 + $0x300] sm:$0xff]
        %v1493 = vld [vmem:[%s781 + $0x308] sm:$0xff]
        %v1494 = vld [vmem:[%s781 + $0x310] sm:$0xff]
        %v1495 = vld [vmem:[%s781 + $0x318] sm:$0xff]
        %v1496 = vld [vmem:[%s781 + $0x320] sm:$0xff]
        %v1497 = vld [vmem:[%s781 + $0x328] sm:$0xff]
        %v1498 = vld [vmem:[%s781 + $0x330] sm:$0xff]
        %v1499 = vld [vmem:[%s781 + $0x338] sm:$0xff]
        %v1500 = vld [vmem:[%s781 + $0x340] sm:$0xff]
        %v1501 = vld [vmem:[%s781 + $0x348] sm:$0xff]
        %v1502 = vld [vmem:[%s781 + $0x350] sm:$0xff]
        %v1503 = vld [vmem:[%s781 + $0x358] sm:$0xff]
        %v1504 = vld [vmem:[%s781 + $0x360] sm:$0xff]
        %v1505 = vld [vmem:[%s781 + $0x368] sm:$0xff]
        %v1506 = vld [vmem:[%s781 + $0x370] sm:$0xff]
        %v1507 = vld [vmem:[%s781 + $0x378] sm:$0xff]
        %v1508 = vld [vmem:[%s781 + $0x380] sm:$0xff]
        %v1509 = vld [vmem:[%s781 + $0x388] sm:$0xff]
        %v1510 = vld [vmem:[%s781 + $0x390] sm:$0xff]
        %v1511 = vld [vmem:[%s781 + $0x398] sm:$0xff]
        %v1512 = vld [vmem:[%s781 + $0x3a0] sm:$0xff]
        %v1513 = vld [vmem:[%s781 + $0x3a8] sm:$0xff]
        %v1514 = vld [vmem:[%s781 + $0x3b0] sm:$0xff]
        %v1515 = vld [vmem:[%s781 + $0x3b8] sm:$0xff]
        %v1516 = vld [vmem:[%s781 + $0x3c0] sm:$0xff]
        %v1517 = vld [vmem:[%s781 + $0x3c8] sm:$0xff]
        %v1518 = vld [vmem:[%s781 + $0x3d0] sm:$0xff]
        %v1519 = vld [vmem:[%s781 + $0x3d8] sm:$0xff]
        %v1520 = vld [vmem:[%s781 + $0x3e0] sm:$0xff]
        %v1521 = vld [vmem:[%s781 + $0x3e8] sm:$0xff]
        %v1522 = vld [vmem:[%s781 + $0x3f0] sm:$0xff]
        %v1523 = vld [vmem:[%s781 + $0x3f8] sm:$0xff]
        %v1524 = vld [vmem:[%s791] sm:$0xff]
        %v1525 = vld [vmem:[%s791 + $0x8] sm:$0xff]
        %v1528 = vperm.slane %v1524, 0
        %v1529 = vperm.slane %v1524, 1
        %v1530 = vperm.slane %v1524, 2
        %v1531 = vperm.slane %v1524, 3
        %v1532 = vperm.slane %v1524, 4
        %v1533 = vperm.slane %v1524, 5
        %v1534 = vperm.slane %v1524, 6
        %v1535 = vperm.slane %v1524, 7
        %v1536 = vperm.slane %v1525, 0
        %v1537 = vperm.slane %v1525, 1
        %v1538 = vperm.slane %v1525, 2
        %v1539 = vperm.slane %v1525, 3
        %v1540 = vperm.slane %v1525, 4
        %v1541 = vperm.slane %v1525, 5
        %v1542 = vperm.slane %v1525, 6
        %v1543 = vperm.slane %v1525, 7
        %v1688 = vunpack.c.l.b16 %v1396
        %v1689 = vunpack.c.h.b16 %v1396
        %v1690 = vunpack.c.l.b16 %v1397
        %v1691 = vunpack.c.h.b16 %v1397
        %v1692 = vunpack.c.l.b16 %v1398
        %v1693 = vunpack.c.h.b16 %v1398
        %v1694 = vunpack.c.l.b16 %v1399
        %v1695 = vunpack.c.h.b16 %v1399
        %v1696 = vunpack.c.l.b16 %v1400
        %v1697 = vunpack.c.h.b16 %v1400
        %v1698 = vunpack.c.l.b16 %v1401
        %v1699 = vunpack.c.h.b16 %v1401
        %v1700 = vunpack.c.l.b16 %v1402
        %v1701 = vunpack.c.h.b16 %v1402
        %v1702 = vunpack.c.l.b16 %v1403
        %v1703 = vunpack.c.h.b16 %v1403
        %v1704 = vunpack.c.l.b16 %v1404
        %v1705 = vunpack.c.h.b16 %v1404
        %v1706 = vunpack.c.l.b16 %v1405
        %v1707 = vunpack.c.h.b16 %v1405
        %v1708 = vunpack.c.l.b16 %v1406
        %v1709 = vunpack.c.h.b16 %v1406
        %v1710 = vunpack.c.l.b16 %v1407
        %v1711 = vunpack.c.h.b16 %v1407
        %v1712 = vunpack.c.l.b16 %v1408
        %v1713 = vunpack.c.h.b16 %v1408
        %v1714 = vunpack.c.l.b16 %v1409
        %v1715 = vunpack.c.h.b16 %v1409
        %v1716 = vunpack.c.l.b16 %v1410
        %v1717 = vunpack.c.h.b16 %v1410
        %v1718 = vunpack.c.l.b16 %v1411
        %v1719 = vunpack.c.h.b16 %v1411
        %v1720 = vunpack.c.l.b16 %v1412
        %v1721 = vunpack.c.h.b16 %v1412
        %v1722 = vunpack.c.l.b16 %v1413
        %v1723 = vunpack.c.h.b16 %v1413
        %v1724 = vunpack.c.l.b16 %v1414
        %v1725 = vunpack.c.h.b16 %v1414
        %v1726 = vunpack.c.l.b16 %v1415
        %v1727 = vunpack.c.h.b16 %v1415
        %v1728 = vunpack.c.l.b16 %v1416
        %v1729 = vunpack.c.h.b16 %v1416
        %v1730 = vunpack.c.l.b16 %v1417
        %v1731 = vunpack.c.h.b16 %v1417
        %v1732 = vunpack.c.l.b16 %v1418
        %v1733 = vunpack.c.h.b16 %v1418
        %v1734 = vunpack.c.l.b16 %v1419
        %v1735 = vunpack.c.h.b16 %v1419
        %v1736 = vunpack.c.l.b16 %v1420
        %v1737 = vunpack.c.h.b16 %v1420
        %v1738 = vunpack.c.l.b16 %v1421
        %v1739 = vunpack.c.h.b16 %v1421
        %v1740 = vunpack.c.l.b16 %v1422
        %v1741 = vunpack.c.h.b16 %v1422
        %v1742 = vunpack.c.l.b16 %v1423
        %v1743 = vunpack.c.h.b16 %v1423
        %v1744 = vunpack.c.l.b16 %v1424
        %v1745 = vunpack.c.h.b16 %v1424
        %v1746 = vunpack.c.l.b16 %v1425
        %v1747 = vunpack.c.h.b16 %v1425
        %v1748 = vunpack.c.l.b16 %v1426
        %v1749 = vunpack.c.h.b16 %v1426
        %v1750 = vunpack.c.l.b16 %v1427
        %v1751 = vunpack.c.h.b16 %v1427
        %v1752 = vunpack.c.l.b16 %v1428
        %v1753 = vunpack.c.h.b16 %v1428
        %v1754 = vunpack.c.l.b16 %v1429
        %v1755 = vunpack.c.h.b16 %v1429
        %v1756 = vunpack.c.l.b16 %v1430
        %v1757 = vunpack.c.h.b16 %v1430
        %v1758 = vunpack.c.l.b16 %v1431
        %v1759 = vunpack.c.h.b16 %v1431
        %v1760 = vunpack.c.l.b16 %v1432
        %v1761 = vunpack.c.h.b16 %v1432
        %v1762 = vunpack.c.l.b16 %v1433
        %v1763 = vunpack.c.h.b16 %v1433
        %v1764 = vunpack.c.l.b16 %v1434
        %v1765 = vunpack.c.h.b16 %v1434
        %v1766 = vunpack.c.l.b16 %v1435
        %v1767 = vunpack.c.h.b16 %v1435
        %v1768 = vunpack.c.l.b16 %v1436
        %v1769 = vunpack.c.h.b16 %v1436
        %v1770 = vunpack.c.l.b16 %v1437
        %v1771 = vunpack.c.h.b16 %v1437
        %v1772 = vunpack.c.l.b16 %v1438
        %v1773 = vunpack.c.h.b16 %v1438
        %v1774 = vunpack.c.l.b16 %v1439
        %v1775 = vunpack.c.h.b16 %v1439
        %v1776 = vunpack.c.l.b16 %v1440
        %v1777 = vunpack.c.h.b16 %v1440
        %v1778 = vunpack.c.l.b16 %v1441
        %v1779 = vunpack.c.h.b16 %v1441
        %v1780 = vunpack.c.l.b16 %v1442
        %v1781 = vunpack.c.h.b16 %v1442
        %v1782 = vunpack.c.l.b16 %v1443
        %v1783 = vunpack.c.h.b16 %v1443
        %v1784 = vunpack.c.l.b16 %v1444
        %v1785 = vunpack.c.h.b16 %v1444
        %v1786 = vunpack.c.l.b16 %v1445
        %v1787 = vunpack.c.h.b16 %v1445
        %v1788 = vunpack.c.l.b16 %v1446
        %v1789 = vunpack.c.h.b16 %v1446
        %v1790 = vunpack.c.l.b16 %v1447
        %v1791 = vunpack.c.h.b16 %v1447
        %v1792 = vunpack.c.l.b16 %v1448
        %v1793 = vunpack.c.h.b16 %v1448
        %v1794 = vunpack.c.l.b16 %v1449
        %v1795 = vunpack.c.h.b16 %v1449
        %v1796 = vunpack.c.l.b16 %v1450
        %v1797 = vunpack.c.h.b16 %v1450
        %v1798 = vunpack.c.l.b16 %v1451
        %v1799 = vunpack.c.h.b16 %v1451
        %v1800 = vunpack.c.l.b16 %v1452
        %v1801 = vunpack.c.h.b16 %v1452
        %v1802 = vunpack.c.l.b16 %v1453
        %v1803 = vunpack.c.h.b16 %v1453
        %v1804 = vunpack.c.l.b16 %v1454
        %v1805 = vunpack.c.h.b16 %v1454
        %v1806 = vunpack.c.l.b16 %v1455
        %v1807 = vunpack.c.h.b16 %v1455
        %v1808 = vunpack.c.l.b16 %v1456
        %v1809 = vunpack.c.h.b16 %v1456
        %v1810 = vunpack.c.l.b16 %v1457
        %v1811 = vunpack.c.h.b16 %v1457
        %v1812 = vunpack.c.l.b16 %v1458
        %v1813 = vunpack.c.h.b16 %v1458
        %v1814 = vunpack.c.l.b16 %v1459
        %v1815 = vunpack.c.h.b16 %v1459
        %v1816 = vunpack.c.l.b16 %v1460
        %v1817 = vunpack.c.h.b16 %v1460
        %v1818 = vunpack.c.l.b16 %v1461
        %v1819 = vunpack.c.h.b16 %v1461
        %v1820 = vunpack.c.l.b16 %v1462
        %v1821 = vunpack.c.h.b16 %v1462
        %v1822 = vunpack.c.l.b16 %v1463
        %v1823 = vunpack.c.h.b16 %v1463
        %v1824 = vunpack.c.l.b16 %v1464
        %v1825 = vunpack.c.h.b16 %v1464
        %v1826 = vunpack.c.l.b16 %v1465
        %v1827 = vunpack.c.h.b16 %v1465
        %v1828 = vunpack.c.l.b16 %v1466
        %v1829 = vunpack.c.h.b16 %v1466
        %v1830 = vunpack.c.l.b16 %v1467
        %v1831 = vunpack.c.h.b16 %v1467
        %v1832 = vunpack.c.l.b16 %v1468
        %v1833 = vunpack.c.h.b16 %v1468
        %v1834 = vunpack.c.l.b16 %v1469
        %v1835 = vunpack.c.h.b16 %v1469
        %v1836 = vunpack.c.l.b16 %v1470
        %v1837 = vunpack.c.h.b16 %v1470
        %v1838 = vunpack.c.l.b16 %v1471
        %v1839 = vunpack.c.h.b16 %v1471
        %v1840 = vunpack.c.l.b16 %v1472
        %v1841 = vunpack.c.h.b16 %v1472
        %v1842 = vunpack.c.l.b16 %v1473
        %v1843 = vunpack.c.h.b16 %v1473
        %v1844 = vunpack.c.l.b16 %v1474
        %v1845 = vunpack.c.h.b16 %v1474
        %v1846 = vunpack.c.l.b16 %v1475
        %v1847 = vunpack.c.h.b16 %v1475
        %v1848 = vunpack.c.l.b16 %v1476
        %v1849 = vunpack.c.h.b16 %v1476
        %v1850 = vunpack.c.l.b16 %v1477
        %v1851 = vunpack.c.h.b16 %v1477
        %v1852 = vunpack.c.l.b16 %v1478
        %v1853 = vunpack.c.h.b16 %v1478
        %v1854 = vunpack.c.l.b16 %v1479
        %v1855 = vunpack.c.h.b16 %v1479
        %v1856 = vunpack.c.l.b16 %v1480
        %v1857 = vunpack.c.h.b16 %v1480
        %v1858 = vunpack.c.l.b16 %v1481
        %v1859 = vunpack.c.h.b16 %v1481
        %v1860 = vunpack.c.l.b16 %v1482
        %v1861 = vunpack.c.h.b16 %v1482
        %v1862 = vunpack.c.l.b16 %v1483
        %v1863 = vunpack.c.h.b16 %v1483
        %v1864 = vunpack.c.l.b16 %v1484
        %v1865 = vunpack.c.h.b16 %v1484
        %v1866 = vunpack.c.l.b16 %v1485
        %v1867 = vunpack.c.h.b16 %v1485
        %v1868 = vunpack.c.l.b16 %v1486
        %v1869 = vunpack.c.h.b16 %v1486
        %v1870 = vunpack.c.l.b16 %v1487
        %v1871 = vunpack.c.h.b16 %v1487
        %v1872 = vunpack.c.l.b16 %v1488
        %v1873 = vunpack.c.h.b16 %v1488
        %v1874 = vunpack.c.l.b16 %v1489
        %v1875 = vunpack.c.h.b16 %v1489
        %v1876 = vunpack.c.l.b16 %v1490
        %v1877 = vunpack.c.h.b16 %v1490
        %v1878 = vunpack.c.l.b16 %v1491
        %v1879 = vunpack.c.h.b16 %v1491
        %v1880 = vunpack.c.l.b16 %v1492
        %v1881 = vunpack.c.h.b16 %v1492
        %v1882 = vunpack.c.l.b16 %v1493
        %v1883 = vunpack.c.h.b16 %v1493
        %v1884 = vunpack.c.l.b16 %v1494
        %v1885 = vunpack.c.h.b16 %v1494
        %v1886 = vunpack.c.l.b16 %v1495
        %v1887 = vunpack.c.h.b16 %v1495
        %v1888 = vunpack.c.l.b16 %v1496
        %v1889 = vunpack.c.h.b16 %v1496
        %v1890 = vunpack.c.l.b16 %v1497
        %v1891 = vunpack.c.h.b16 %v1497
        %v1892 = vunpack.c.l.b16 %v1498
        %v1893 = vunpack.c.h.b16 %v1498
        %v1894 = vunpack.c.l.b16 %v1499
        %v1895 = vunpack.c.h.b16 %v1499
        %v1896 = vunpack.c.l.b16 %v1500
        %v1897 = vunpack.c.h.b16 %v1500
        %v1898 = vunpack.c.l.b16 %v1501
        %v1899 = vunpack.c.h.b16 %v1501
        %v1900 = vunpack.c.l.b16 %v1502
        %v1901 = vunpack.c.h.b16 %v1502
        %v1902 = vunpack.c.l.b16 %v1503
        %v1903 = vunpack.c.h.b16 %v1503
        %v1904 = vunpack.c.l.b16 %v1504
        %v1905 = vunpack.c.h.b16 %v1504
        %v1906 = vunpack.c.l.b16 %v1505
        %v1907 = vunpack.c.h.b16 %v1505
        %v1908 = vunpack.c.l.b16 %v1506
        %v1909 = vunpack.c.h.b16 %v1506
        %v1910 = vunpack.c.l.b16 %v1507
        %v1911 = vunpack.c.h.b16 %v1507
        %v1912 = vunpack.c.l.b16 %v1508
        %v1913 = vunpack.c.h.b16 %v1508
        %v1914 = vunpack.c.l.b16 %v1509
        %v1915 = vunpack.c.h.b16 %v1509
        %v1916 = vunpack.c.l.b16 %v1510
        %v1917 = vunpack.c.h.b16 %v1510
        %v1918 = vunpack.c.l.b16 %v1511
        %v1919 = vunpack.c.h.b16 %v1511
        %v1920 = vunpack.c.l.b16 %v1512
        %v1921 = vunpack.c.h.b16 %v1512
        %v1922 = vunpack.c.l.b16 %v1513
        %v1923 = vunpack.c.h.b16 %v1513
        %v1924 = vunpack.c.l.b16 %v1514
        %v1925 = vunpack.c.h.b16 %v1514
        %v1926 = vunpack.c.l.b16 %v1515
        %v1927 = vunpack.c.h.b16 %v1515
        %v1928 = vunpack.c.l.b16 %v1516
        %v1929 = vunpack.c.h.b16 %v1516
        %v1930 = vunpack.c.l.b16 %v1517
        %v1931 = vunpack.c.h.b16 %v1517
        %v1932 = vunpack.c.l.b16 %v1518
        %v1933 = vunpack.c.h.b16 %v1518
        %v1934 = vunpack.c.l.b16 %v1519
        %v1935 = vunpack.c.h.b16 %v1519
        %v1936 = vunpack.c.l.b16 %v1520
        %v1937 = vunpack.c.h.b16 %v1520
        %v1938 = vunpack.c.l.b16 %v1521
        %v1939 = vunpack.c.h.b16 %v1521
        %v1940 = vunpack.c.l.b16 %v1522
        %v1941 = vunpack.c.h.b16 %v1522
        %v1942 = vunpack.c.l.b16 %v1523
        %v1943 = vunpack.c.h.b16 %v1523
        %v1944 = vpack.c.b16 %v1704, %v1688
        %v1945 = vpack.c.b16 %v1705, %v1689
        %v1946 = vpack.c.b16 %v1706, %v1690
        %v1947 = vpack.c.b16 %v1707, %v1691
        %v1948 = vpack.c.b16 %v1708, %v1692
        %v1949 = vpack.c.b16 %v1709, %v1693
        %v1950 = vpack.c.b16 %v1710, %v1694
        %v1951 = vpack.c.b16 %v1711, %v1695
        %v1952 = vpack.c.b16 %v1712, %v1696
        %v1953 = vpack.c.b16 %v1713, %v1697
        %v1954 = vpack.c.b16 %v1714, %v1698
        %v1955 = vpack.c.b16 %v1715, %v1699
        %v1956 = vpack.c.b16 %v1716, %v1700
        %v1957 = vpack.c.b16 %v1717, %v1701
        %v1958 = vpack.c.b16 %v1718, %v1702
        %v1959 = vpack.c.b16 %v1719, %v1703
        %v1960 = vpack.c.b16 %v1736, %v1720
        %v1961 = vpack.c.b16 %v1737, %v1721
        %v1962 = vpack.c.b16 %v1738, %v1722
        %v1963 = vpack.c.b16 %v1739, %v1723
        %v1964 = vpack.c.b16 %v1740, %v1724
        %v1965 = vpack.c.b16 %v1741, %v1725
        %v1966 = vpack.c.b16 %v1742, %v1726
        %v1967 = vpack.c.b16 %v1743, %v1727
        %v1968 = vpack.c.b16 %v1744, %v1728
        %v1969 = vpack.c.b16 %v1745, %v1729
        %v1970 = vpack.c.b16 %v1746, %v1730
        %v1971 = vpack.c.b16 %v1747, %v1731
        %v1972 = vpack.c.b16 %v1748, %v1732
        %v1973 = vpack.c.b16 %v1749, %v1733
        %v1974 = vpack.c.b16 %v1750, %v1734
        %v1975 = vpack.c.b16 %v1751, %v1735
        %v1976 = vpack.c.b16 %v1768, %v1752
        %v1977 = vpack.c.b16 %v1769, %v1753
        %v1978 = vpack.c.b16 %v1770, %v1754
        %v1979 = vpack.c.b16 %v1771, %v1755
        %v1980 = vpack.c.b16 %v1772, %v1756
        %v1981 = vpack.c.b16 %v1773, %v1757
        %v1982 = vpack.c.b16 %v1774, %v1758
        %v1983 = vpack.c.b16 %v1775, %v1759
        %v1984 = vpack.c.b16 %v1776, %v1760
        %v1985 = vpack.c.b16 %v1777, %v1761
        %v1986 = vpack.c.b16 %v1778, %v1762
        %v1987 = vpack.c.b16 %v1779, %v1763
        %v1988 = vpack.c.b16 %v1780, %v1764
        %v1989 = vpack.c.b16 %v1781, %v1765
        %v1990 = vpack.c.b16 %v1782, %v1766
        %v1991 = vpack.c.b16 %v1783, %v1767
        %v1992 = vpack.c.b16 %v1800, %v1784
        %v1993 = vpack.c.b16 %v1801, %v1785
        %v1994 = vpack.c.b16 %v1802, %v1786
        %v1995 = vpack.c.b16 %v1803, %v1787
        %v1996 = vpack.c.b16 %v1804, %v1788
        %v1997 = vpack.c.b16 %v1805, %v1789
        %v1998 = vpack.c.b16 %v1806, %v1790
        %v1999 = vpack.c.b16 %v1807, %v1791
        %v2000 = vpack.c.b16 %v1808, %v1792
        %v2001 = vpack.c.b16 %v1809, %v1793
        %v2002 = vpack.c.b16 %v1810, %v1794
        %v2003 = vpack.c.b16 %v1811, %v1795
        %v2004 = vpack.c.b16 %v1812, %v1796
        %v2005 = vpack.c.b16 %v1813, %v1797
        %v2006 = vpack.c.b16 %v1814, %v1798
        %v2007 = vpack.c.b16 %v1815, %v1799
        %v2008 = vpack.c.b16 %v1832, %v1816
        %v2009 = vpack.c.b16 %v1833, %v1817
        %v2010 = vpack.c.b16 %v1834, %v1818
        %v2011 = vpack.c.b16 %v1835, %v1819
        %v2012 = vpack.c.b16 %v1836, %v1820
        %v2013 = vpack.c.b16 %v1837, %v1821
        %v2014 = vpack.c.b16 %v1838, %v1822
        %v2015 = vpack.c.b16 %v1839, %v1823
        %v2016 = vpack.c.b16 %v1840, %v1824
        %v2017 = vpack.c.b16 %v1841, %v1825
        %v2018 = vpack.c.b16 %v1842, %v1826
        %v2019 = vpack.c.b16 %v1843, %v1827
        %v2020 = vpack.c.b16 %v1844, %v1828
        %v2021 = vpack.c.b16 %v1845, %v1829
        %v2022 = vpack.c.b16 %v1846, %v1830
        %v2023 = vpack.c.b16 %v1847, %v1831
        %v2024 = vpack.c.b16 %v1864, %v1848
        %v2025 = vpack.c.b16 %v1865, %v1849
        %v2026 = vpack.c.b16 %v1866, %v1850
        %v2027 = vpack.c.b16 %v1867, %v1851
        %v2028 = vpack.c.b16 %v1868, %v1852
        %v2029 = vpack.c.b16 %v1869, %v1853
        %v2030 = vpack.c.b16 %v1870, %v1854
        %v2031 = vpack.c.b16 %v1871, %v1855
        %v2032 = vpack.c.b16 %v1872, %v1856
        %v2033 = vpack.c.b16 %v1873, %v1857
        %v2034 = vpack.c.b16 %v1874, %v1858
        %v2035 = vpack.c.b16 %v1875, %v1859
        %v2036 = vpack.c.b16 %v1876, %v1860
        %v2037 = vpack.c.b16 %v1877, %v1861
        %v2038 = vpack.c.b16 %v1878, %v1862
        %v2039 = vpack.c.b16 %v1879, %v1863
        %v2040 = vpack.c.b16 %v1896, %v1880
        %v2041 = vpack.c.b16 %v1897, %v1881
        %v2042 = vpack.c.b16 %v1898, %v1882
        %v2043 = vpack.c.b16 %v1899, %v1883
        %v2044 = vpack.c.b16 %v1900, %v1884
        %v2045 = vpack.c.b16 %v1901, %v1885
        %v2046 = vpack.c.b16 %v1902, %v1886
        %v2047 = vpack.c.b16 %v1903, %v1887
        %v2048 = vpack.c.b16 %v1904, %v1888
        %v2049 = vpack.c.b16 %v1905, %v1889
        %v2050 = vpack.c.b16 %v1906, %v1890
        %v2051 = vpack.c.b16 %v1907, %v1891
        %v2052 = vpack.c.b16 %v1908, %v1892
        %v2053 = vpack.c.b16 %v1909, %v1893
        %v2054 = vpack.c.b16 %v1910, %v1894
        %v2055 = vpack.c.b16 %v1911, %v1895
        %v2056 = vpack.c.b16 %v1928, %v1912
        %v2057 = vpack.c.b16 %v1929, %v1913
        %v2058 = vpack.c.b16 %v1930, %v1914
        %v2059 = vpack.c.b16 %v1931, %v1915
        %v2060 = vpack.c.b16 %v1932, %v1916
        %v2061 = vpack.c.b16 %v1933, %v1917
        %v2062 = vpack.c.b16 %v1934, %v1918
        %v2063 = vpack.c.b16 %v1935, %v1919
        %v2064 = vpack.c.b16 %v1936, %v1920
        %v2065 = vpack.c.b16 %v1937, %v1921
        %v2066 = vpack.c.b16 %v1938, %v1922
        %v2067 = vpack.c.b16 %v1939, %v1923
        %v2068 = vpack.c.b16 %v1940, %v1924
        %v2069 = vpack.c.b16 %v1941, %v1925
        %v2070 = vpack.c.b16 %v1942, %v1926
        %v2071 = vpack.c.b16 %v1943, %v1927
        %2200 = vmatpush.bf16.msra.mxu0 %v2056
        %2201 = vmatpush.bf16.msra.mxu0 %v2040
        %2202 = vmatpush.bf16.msra.mxu0 %v2024
        %2203 = vmatpush.bf16.msra.mxu0 %v2008
        %2204 = vmatpush.bf16.msra.mxu0 %v1992
        %2205 = vmatpush.bf16.msra.mxu0 %v1976
        %2206 = vmatpush.bf16.msra.mxu0 %v1960
        %2207 = vmatpush.bf16.msra.mxu0 %v1944
        %2208 = vmatmul.bf16.gmra.mxu0 %v1395
        %v2209 = vpop.f32.mrf.mxu0
        %v2210 = vadd.f32 %v1528, %v2209
        %v2211 = vpop.f32.mrf.mxu0
        %v2212 = vadd.f32 %v1528, %v2211
        %2213 = vdwg.mxu0
        %2214 = vmatpush.bf16.msra.mxu0 %v2057
        %2215 = vmatpush.bf16.msra.mxu0 %v2041
        %2216 = vmatpush.bf16.msra.mxu0 %v2025
        %2217 = vmatpush.bf16.msra.mxu0 %v2009
        %2218 = vmatpush.bf16.msra.mxu0 %v1993
        %2219 = vmatpush.bf16.msra.mxu0 %v1977
        %2220 = vmatpush.bf16.msra.mxu0 %v1961
        %2221 = vmatpush.bf16.msra.mxu0 %v1945
        %2222 = vmatmul.bf16.gmra.mxu0 %v1395
        %v2223 = vpop.f32.mrf.mxu0
        %v2224 = vadd.f32 %v1529, %v2223
        %v2225 = vpop.f32.mrf.mxu0
        %v2226 = vadd.f32 %v1529, %v2225
        %2227 = vdwg.mxu0
        %2228 = vmatpush.bf16.msra.mxu0 %v2058
        %2229 = vmatpush.bf16.msra.mxu0 %v2042
        %2230 = vmatpush.bf16.msra.mxu0 %v2026
        %2231 = vmatpush.bf16.msra.mxu0 %v2010
        %2232 = vmatpush.bf16.msra.mxu0 %v1994
        %2233 = vmatpush.bf16.msra.mxu0 %v1978
        %2234 = vmatpush.bf16.msra.mxu0 %v1962
        %2235 = vmatpush.bf16.msra.mxu0 %v1946
        %2236 = vmatmul.bf16.gmra.mxu0 %v1395
        %v2237 = vpop.f32.mrf.mxu0
        %v2238 = vadd.f32 %v1530, %v2237
        %v2239 = vpop.f32.mrf.mxu0
        %v2240 = vadd.f32 %v1530, %v2239
        %2241 = vdwg.mxu0
        %2242 = vmatpush.bf16.msra.mxu0 %v2059
        %2243 = vmatpush.bf16.msra.mxu0 %v2043
        %2244 = vmatpush.bf16.msra.mxu0 %v2027
        %2245 = vmatpush.bf16.msra.mxu0 %v2011
        %2246 = vmatpush.bf16.msra.mxu0 %v1995
        %2247 = vmatpush.bf16.msra.mxu0 %v1979
        %2248 = vmatpush.bf16.msra.mxu0 %v1963
        %2249 = vmatpush.bf16.msra.mxu0 %v1947
        %2250 = vmatmul.bf16.gmra.mxu0 %v1395
        %v2251 = vpop.f32.mrf.mxu0
        %v2252 = vadd.f32 %v1531, %v2251
        %v2253 = vpop.f32.mrf.mxu0
        %v2254 = vadd.f32 %v1531, %v2253
        %2255 = vdwg.mxu0
        %2256 = vmatpush.bf16.msra.mxu0 %v2060
        %2257 = vmatpush.bf16.msra.mxu0 %v2044
        %2258 = vmatpush.bf16.msra.mxu0 %v2028
        %2259 = vmatpush.bf16.msra.mxu0 %v2012
        %2260 = vmatpush.bf16.msra.mxu0 %v1996
        %2261 = vmatpush.bf16.msra.mxu0 %v1980
        %2262 = vmatpush.bf16.msra.mxu0 %v1964
        %2263 = vmatpush.bf16.msra.mxu0 %v1948
        %2264 = vmatmul.bf16.gmra.mxu0 %v1395
        %v2265 = vpop.f32.mrf.mxu0
        %v2266 = vadd.f32 %v1532, %v2265
        %v2267 = vpop.f32.mrf.mxu0
        %v2268 = vadd.f32 %v1532, %v2267
        %2269 = vdwg.mxu0
        %2270 = vmatpush.bf16.msra.mxu0 %v2061
        %2271 = vmatpush.bf16.msra.mxu0 %v2045
        %2272 = vmatpush.bf16.msra.mxu0 %v2029
        %2273 = vmatpush.bf16.msra.mxu0 %v2013
        %2274 = vmatpush.bf16.msra.mxu0 %v1997
        %2275 = vmatpush.bf16.msra.mxu0 %v1981
        %2276 = vmatpush.bf16.msra.mxu0 %v1965
        %2277 = vmatpush.bf16.msra.mxu0 %v1949
        %2278 = vmatmul.bf16.gmra.mxu0 %v1395
        %v2279 = vpop.f32.mrf.mxu0
        %v2280 = vadd.f32 %v1533, %v2279
        %v2281 = vpop.f32.mrf.mxu0
        %v2282 = vadd.f32 %v1533, %v2281
        %2283 = vdwg.mxu0
        %2284 = vmatpush.bf16.msra.mxu0 %v2062
        %2285 = vmatpush.bf16.msra.mxu0 %v2046
        %2286 = vmatpush.bf16.msra.mxu0 %v2030
        %2287 = vmatpush.bf16.msra.mxu0 %v2014
        %2288 = vmatpush.bf16.msra.mxu0 %v1998
        %2289 = vmatpush.bf16.msra.mxu0 %v1982
        %2290 = vmatpush.bf16.msra.mxu0 %v1966
        %2291 = vmatpush.bf16.msra.mxu0 %v1950
        %2292 = vmatmul.bf16.gmra.mxu0 %v1395
        %v2293 = vpop.f32.mrf.mxu0
        %v2294 = vadd.f32 %v1534, %v2293
        %v2295 = vpop.f32.mrf.mxu0
        %v2296 = vadd.f32 %v1534, %v2295
        %2297 = vdwg.mxu0
        %2298 = vmatpush.bf16.msra.mxu0 %v2063
        %2299 = vmatpush.bf16.msra.mxu0 %v2047
        %2300 = vmatpush.bf16.msra.mxu0 %v2031
        %2301 = vmatpush.bf16.msra.mxu0 %v2015
        %2302 = vmatpush.bf16.msra.mxu0 %v1999
        %2303 = vmatpush.bf16.msra.mxu0 %v1983
        %2304 = vmatpush.bf16.msra.mxu0 %v1967
        %2305 = vmatpush.bf16.msra.mxu0 %v1951
        %2306 = vmatmul.bf16.gmra.mxu0 %v1395
        %v2307 = vpop.f32.mrf.mxu0
        %v2308 = vadd.f32 %v1535, %v2307
        %v2309 = vpop.f32.mrf.mxu0
        %v2310 = vadd.f32 %v1535, %v2309
        %2311 = vdwg.mxu0
        %2312 = vmatpush.bf16.msra.mxu0 %v2064
        %2313 = vmatpush.bf16.msra.mxu0 %v2048
        %2314 = vmatpush.bf16.msra.mxu0 %v2032
        %2315 = vmatpush.bf16.msra.mxu0 %v2016
        %2316 = vmatpush.bf16.msra.mxu0 %v2000
        %2317 = vmatpush.bf16.msra.mxu0 %v1984
        %2318 = vmatpush.bf16.msra.mxu0 %v1968
        %2319 = vmatpush.bf16.msra.mxu0 %v1952
        %2320 = vmatmul.bf16.gmra.mxu0 %v1395
        %v2321 = vpop.f32.mrf.mxu0
        %v2322 = vadd.f32 %v1536, %v2321
        %v2323 = vpop.f32.mrf.mxu0
        %v2324 = vadd.f32 %v1536, %v2323
        %2325 = vdwg.mxu0
        %2326 = vmatpush.bf16.msra.mxu0 %v2065
        %2327 = vmatpush.bf16.msra.mxu0 %v2049
        %2328 = vmatpush.bf16.msra.mxu0 %v2033
        %2329 = vmatpush.bf16.msra.mxu0 %v2017
        %2330 = vmatpush.bf16.msra.mxu0 %v2001
        %2331 = vmatpush.bf16.msra.mxu0 %v1985
        %2332 = vmatpush.bf16.msra.mxu0 %v1969
        %2333 = vmatpush.bf16.msra.mxu0 %v1953
        %2334 = vmatmul.bf16.gmra.mxu0 %v1395
        %v2335 = vpop.f32.mrf.mxu0
        %v2336 = vadd.f32 %v1537, %v2335
        %v2337 = vpop.f32.mrf.mxu0
        %v2338 = vadd.f32 %v1537, %v2337
        %2339 = vdwg.mxu0
        %2340 = vmatpush.bf16.msra.mxu0 %v2066
        %2341 = vmatpush.bf16.msra.mxu0 %v2050
        %2342 = vmatpush.bf16.msra.mxu0 %v2034
        %2343 = vmatpush.bf16.msra.mxu0 %v2018
        %2344 = vmatpush.bf16.msra.mxu0 %v2002
        %2345 = vmatpush.bf16.msra.mxu0 %v1986
        %2346 = vmatpush.bf16.msra.mxu0 %v1970
        %2347 = vmatpush.bf16.msra.mxu0 %v1954
        %2348 = vmatmul.bf16.gmra.mxu0 %v1395
        %v2349 = vpop.f32.mrf.mxu0
        %v2350 = vadd.f32 %v1538, %v2349
        %v2351 = vpop.f32.mrf.mxu0
        %v2352 = vadd.f32 %v1538, %v2351
        %2353 = vdwg.mxu0
        %2354 = vmatpush.bf16.msra.mxu0 %v2067
        %2355 = vmatpush.bf16.msra.mxu0 %v2051
        %2356 = vmatpush.bf16.msra.mxu0 %v2035
        %2357 = vmatpush.bf16.msra.mxu0 %v2019
        %2358 = vmatpush.bf16.msra.mxu0 %v2003
        %2359 = vmatpush.bf16.msra.mxu0 %v1987
        %2360 = vmatpush.bf16.msra.mxu0 %v1971
        %2361 = vmatpush.bf16.msra.mxu0 %v1955
        %2362 = vmatmul.bf16.gmra.mxu0 %v1395
        %v2363 = vpop.f32.mrf.mxu0
        %v2364 = vadd.f32 %v1539, %v2363
        %v2365 = vpop.f32.mrf.mxu0
        %v2366 = vadd.f32 %v1539, %v2365
        %2367 = vdwg.mxu0
        %2368 = vmatpush.bf16.msra.mxu0 %v2068
        %2369 = vmatpush.bf16.msra.mxu0 %v2052
        %2370 = vmatpush.bf16.msra.mxu0 %v2036
        %2371 = vmatpush.bf16.msra.mxu0 %v2020
        %2372 = vmatpush.bf16.msra.mxu0 %v2004
        %2373 = vmatpush.bf16.msra.mxu0 %v1988
        %2374 = vmatpush.bf16.msra.mxu0 %v1972
        %2375 = vmatpush.bf16.msra.mxu0 %v1956
        %2376 = vmatmul.bf16.gmra.mxu0 %v1395
        %v2377 = vpop.f32.mrf.mxu0
        %v2378 = vadd.f32 %v1540, %v2377
        %v2379 = vpop.f32.mrf.mxu0
        %v2380 = vadd.f32 %v1540, %v2379
        %2381 = vdwg.mxu0
        %2382 = vmatpush.bf16.msra.mxu0 %v2069
        %2383 = vmatpush.bf16.msra.mxu0 %v2053
        %2384 = vmatpush.bf16.msra.mxu0 %v2037
        %2385 = vmatpush.bf16.msra.mxu0 %v2021
        %2386 = vmatpush.bf16.msra.mxu0 %v2005
        %2387 = vmatpush.bf16.msra.mxu0 %v1989
        %2388 = vmatpush.bf16.msra.mxu0 %v1973
        %2389 = vmatpush.bf16.msra.mxu0 %v1957
        %2390 = vmatmul.bf16.gmra.mxu0 %v1395
        %v2391 = vpop.f32.mrf.mxu0
        %v2392 = vadd.f32 %v1541, %v2391
        %v2393 = vpop.f32.mrf.mxu0
        %v2394 = vadd.f32 %v1541, %v2393
        %2395 = vdwg.mxu0
        %2396 = vmatpush.bf16.msra.mxu0 %v2070
        %2397 = vmatpush.bf16.msra.mxu0 %v2054
        %2398 = vmatpush.bf16.msra.mxu0 %v2038
        %2399 = vmatpush.bf16.msra.mxu0 %v2022
        %2400 = vmatpush.bf16.msra.mxu0 %v2006
        %2401 = vmatpush.bf16.msra.mxu0 %v1990
        %2402 = vmatpush.bf16.msra.mxu0 %v1974
        %2403 = vmatpush.bf16.msra.mxu0 %v1958
        %2404 = vmatmul.bf16.gmra.mxu0 %v1395
        %v2405 = vpop.f32.mrf.mxu0
        %v2406 = vadd.f32 %v1542, %v2405
        %v2407 = vpop.f32.mrf.mxu0
        %v2408 = vadd.f32 %v1542, %v2407
        %2409 = vdwg.mxu0
        %2410 = vmatpush.bf16.msra.mxu0 %v2071
        %2411 = vmatpush.bf16.msra.mxu0 %v2055
        %2412 = vmatpush.bf16.msra.mxu0 %v2039
        %2413 = vmatpush.bf16.msra.mxu0 %v2023
        %2414 = vmatpush.bf16.msra.mxu0 %v2007
        %2415 = vmatpush.bf16.msra.mxu0 %v1991
        %2416 = vmatpush.bf16.msra.mxu0 %v1975
        %2417 = vmatpush.bf16.msra.mxu0 %v1959
        %2418 = vmatmul.bf16.gmra.mxu0 %v1395
        %v2419 = vpop.f32.mrf.mxu0
        %v2420 = vadd.f32 %v1543, %v2419
        %v2421 = vpop.f32.mrf.mxu0
        %v2422 = vadd.f32 %v1543, %v2421
        %2423 = vdwg.mxu0
        %v2424 = vmax.f32 %v2210, 0.0
        %v2425 = vmax.f32 %v2224, 0.0
        %v2426 = vmax.f32 %v2238, 0.0
        %v2427 = vmax.f32 %v2252, 0.0
        %v2428 = vmax.f32 %v2266, 0.0
        %v2429 = vmax.f32 %v2280, 0.0
        %v2430 = vmax.f32 %v2294, 0.0
        %v2431 = vmax.f32 %v2308, 0.0
        %v2432 = vmax.f32 %v2322, 0.0
        %v2433 = vmax.f32 %v2336, 0.0
        %v2434 = vmax.f32 %v2350, 0.0
        %v2435 = vmax.f32 %v2364, 0.0
        %v2436 = vmax.f32 %v2378, 0.0
        %v2437 = vmax.f32 %v2392, 0.0
        %v2438 = vmax.f32 %v2406, 0.0
        %v2439 = vmax.f32 %v2420, 0.0
        %v2440 = vmax.f32 %v2212, 0.0
        %v2441 = vmax.f32 %v2226, 0.0
        %v2442 = vmax.f32 %v2240, 0.0
        %v2443 = vmax.f32 %v2254, 0.0
        %v2444 = vmax.f32 %v2268, 0.0
        %v2445 = vmax.f32 %v2282, 0.0
        %v2446 = vmax.f32 %v2296, 0.0
        %v2447 = vmax.f32 %v2310, 0.0
        %v2448 = vmax.f32 %v2324, 0.0
        %v2449 = vmax.f32 %v2338, 0.0
        %v2450 = vmax.f32 %v2352, 0.0
        %v2451 = vmax.f32 %v2366, 0.0
        %v2452 = vmax.f32 %v2380, 0.0
        %v2453 = vmax.f32 %v2394, 0.0
        %v2454 = vmax.f32 %v2408, 0.0
        %v2455 = vmax.f32 %v2422, 0.0
        %v2456 = vpack.c.bf16 %v2440, %v2424
        %v2457 = vpack.c.bf16 %v2441, %v2425
        %v2458 = vpack.c.bf16 %v2442, %v2426
        %v2459 = vpack.c.bf16 %v2443, %v2427
        %v2460 = vpack.c.bf16 %v2444, %v2428
        %v2461 = vpack.c.bf16 %v2445, %v2429
        %v2462 = vpack.c.bf16 %v2446, %v2430
        %v2463 = vpack.c.bf16 %v2447, %v2431
        %v2464 = vpack.c.bf16 %v2448, %v2432
        %v2465 = vpack.c.bf16 %v2449, %v2433
        %v2466 = vpack.c.bf16 %v2450, %v2434
        %v2467 = vpack.c.bf16 %v2451, %v2435
        %v2468 = vpack.c.bf16 %v2452, %v2436
        %v2469 = vpack.c.bf16 %v2453, %v2437
        %v2470 = vpack.c.bf16 %v2454, %v2438
        %v2471 = vpack.c.bf16 %v2455, %v2439
        %v2472 = vld [vmem:[%s801] sm:$0xf]
        %v2473 = vld [vmem:[%s801 + $0x4] sm:$0xf]
        %v2474 = vld [vmem:[%s801 + $0x8] sm:$0xf]
        %v2475 = vld [vmem:[%s801 + $0xc] sm:$0xf]
        %v2476 = vld [vmem:[%s801 + $0x10] sm:$0xf]
        %v2477 = vld [vmem:[%s801 + $0x14] sm:$0xf]
        %v2478 = vld [vmem:[%s801 + $0x18] sm:$0xf]
        %v2479 = vld [vmem:[%s801 + $0x1c] sm:$0xf]
        %v2480 = vld [vmem:[%s801 + $0x20] sm:$0xf]
        %v2481 = vld [vmem:[%s801 + $0x24] sm:$0xf]
        %v2482 = vld [vmem:[%s801 + $0x28] sm:$0xf]
        %v2483 = vld [vmem:[%s801 + $0x2c] sm:$0xf]
        %v2484 = vld [vmem:[%s801 + $0x30] sm:$0xf]
        %v2485 = vld [vmem:[%s801 + $0x34] sm:$0xf]
        %v2486 = vld [vmem:[%s801 + $0x38] sm:$0xf]
        %v2487 = vld [vmem:[%s801 + $0x3c] sm:$0xf]
        %v2488 = vld [vmem:[%s801 + $0x40] sm:$0xf]
        %v2489 = vld [vmem:[%s801 + $0x44] sm:$0xf]
        %v2490 = vld [vmem:[%s801 + $0x48] sm:$0xf]
        %v2491 = vld [vmem:[%s801 + $0x4c] sm:$0xf]
        %v2492 = vld [vmem:[%s801 + $0x50] sm:$0xf]
        %v2493 = vld [vmem:[%s801 + $0x54] sm:$0xf]
        %v2494 = vld [vmem:[%s801 + $0x58] sm:$0xf]
        %v2495 = vld [vmem:[%s801 + $0x5c] sm:$0xf]
        %v2496 = vld [vmem:[%s801 + $0x60] sm:$0xf]
        %v2497 = vld [vmem:[%s801 + $0x64] sm:$0xf]
        %v2498 = vld [vmem:[%s801 + $0x68] sm:$0xf]
        %v2499 = vld [vmem:[%s801 + $0x6c] sm:$0xf]
        %v2500 = vld [vmem:[%s801 + $0x70] sm:$0xf]
        %v2501 = vld [vmem:[%s801 + $0x74] sm:$0xf]
        %v2502 = vld [vmem:[%s801 + $0x78] sm:$0xf]
        %v2503 = vld [vmem:[%s801 + $0x7c] sm:$0xf]
        %v2504 = vld [vmem:[%s801 + $0x80] sm:$0xf]
        %v2505 = vld [vmem:[%s801 + $0x84] sm:$0xf]
        %v2506 = vld [vmem:[%s801 + $0x88] sm:$0xf]
        %v2507 = vld [vmem:[%s801 + $0x8c] sm:$0xf]
        %v2508 = vld [vmem:[%s801 + $0x90] sm:$0xf]
        %v2509 = vld [vmem:[%s801 + $0x94] sm:$0xf]
        %v2510 = vld [vmem:[%s801 + $0x98] sm:$0xf]
        %v2511 = vld [vmem:[%s801 + $0x9c] sm:$0xf]
        %v2512 = vld [vmem:[%s801 + $0xa0] sm:$0xf]
        %v2513 = vld [vmem:[%s801 + $0xa4] sm:$0xf]
        %v2514 = vld [vmem:[%s801 + $0xa8] sm:$0xf]
        %v2515 = vld [vmem:[%s801 + $0xac] sm:$0xf]
        %v2516 = vld [vmem:[%s801 + $0xb0] sm:$0xf]
        %v2517 = vld [vmem:[%s801 + $0xb4] sm:$0xf]
        %v2518 = vld [vmem:[%s801 + $0xb8] sm:$0xf]
        %v2519 = vld [vmem:[%s801 + $0xbc] sm:$0xf]
        %v2520 = vld [vmem:[%s801 + $0xc0] sm:$0xf]
        %v2521 = vld [vmem:[%s801 + $0xc4] sm:$0xf]
        %v2522 = vld [vmem:[%s801 + $0xc8] sm:$0xf]
        %v2523 = vld [vmem:[%s801 + $0xcc] sm:$0xf]
        %v2524 = vld [vmem:[%s801 + $0xd0] sm:$0xf]
        %v2525 = vld [vmem:[%s801 + $0xd4] sm:$0xf]
        %v2526 = vld [vmem:[%s801 + $0xd8] sm:$0xf]
        %v2527 = vld [vmem:[%s801 + $0xdc] sm:$0xf]
        %v2528 = vld [vmem:[%s801 + $0xe0] sm:$0xf]
        %v2529 = vld [vmem:[%s801 + $0xe4] sm:$0xf]
        %v2530 = vld [vmem:[%s801 + $0xe8] sm:$0xf]
        %v2531 = vld [vmem:[%s801 + $0xec] sm:$0xf]
        %v2532 = vld [vmem:[%s801 + $0xf0] sm:$0xf]
        %v2533 = vld [vmem:[%s801 + $0xf4] sm:$0xf]
        %v2534 = vld [vmem:[%s801 + $0xf8] sm:$0xf]
        %v2535 = vld [vmem:[%s801 + $0xfc] sm:$0xf]
        %v2536 = vld [vmem:[%s801 + $0x100] sm:$0xf]
        %v2537 = vld [vmem:[%s801 + $0x104] sm:$0xf]
        %v2538 = vld [vmem:[%s801 + $0x108] sm:$0xf]
        %v2539 = vld [vmem:[%s801 + $0x10c] sm:$0xf]
        %v2540 = vld [vmem:[%s801 + $0x110] sm:$0xf]
        %v2541 = vld [vmem:[%s801 + $0x114] sm:$0xf]
        %v2542 = vld [vmem:[%s801 + $0x118] sm:$0xf]
        %v2543 = vld [vmem:[%s801 + $0x11c] sm:$0xf]
        %v2544 = vld [vmem:[%s801 + $0x120] sm:$0xf]
        %v2545 = vld [vmem:[%s801 + $0x124] sm:$0xf]
        %v2546 = vld [vmem:[%s801 + $0x128] sm:$0xf]
        %v2547 = vld [vmem:[%s801 + $0x12c] sm:$0xf]
        %v2548 = vld [vmem:[%s801 + $0x130] sm:$0xf]
        %v2549 = vld [vmem:[%s801 + $0x134] sm:$0xf]
        %v2550 = vld [vmem:[%s801 + $0x138] sm:$0xf]
        %v2551 = vld [vmem:[%s801 + $0x13c] sm:$0xf]
        %v2552 = vld [vmem:[%s801 + $0x140] sm:$0xf]
        %v2553 = vld [vmem:[%s801 + $0x144] sm:$0xf]
        %v2554 = vld [vmem:[%s801 + $0x148] sm:$0xf]
        %v2555 = vld [vmem:[%s801 + $0x14c] sm:$0xf]
        %v2556 = vld [vmem:[%s801 + $0x150] sm:$0xf]
        %v2557 = vld [vmem:[%s801 + $0x154] sm:$0xf]
        %v2558 = vld [vmem:[%s801 + $0x158] sm:$0xf]
        %v2559 = vld [vmem:[%s801 + $0x15c] sm:$0xf]
        %v2560 = vld [vmem:[%s801 + $0x160] sm:$0xf]
        %v2561 = vld [vmem:[%s801 + $0x164] sm:$0xf]
        %v2562 = vld [vmem:[%s801 + $0x168] sm:$0xf]
        %v2563 = vld [vmem:[%s801 + $0x16c] sm:$0xf]
        %v2564 = vld [vmem:[%s801 + $0x170] sm:$0xf]
        %v2565 = vld [vmem:[%s801 + $0x174] sm:$0xf]
        %v2566 = vld [vmem:[%s801 + $0x178] sm:$0xf]
        %v2567 = vld [vmem:[%s801 + $0x17c] sm:$0xf]
        %v2568 = vld [vmem:[%s801 + $0x180] sm:$0xf]
        %v2569 = vld [vmem:[%s801 + $0x184] sm:$0xf]
        %v2570 = vld [vmem:[%s801 + $0x188] sm:$0xf]
        %v2571 = vld [vmem:[%s801 + $0x18c] sm:$0xf]
        %v2572 = vld [vmem:[%s801 + $0x190] sm:$0xf]
        %v2573 = vld [vmem:[%s801 + $0x194] sm:$0xf]
        %v2574 = vld [vmem:[%s801 + $0x198] sm:$0xf]
        %v2575 = vld [vmem:[%s801 + $0x19c] sm:$0xf]
        %v2576 = vld [vmem:[%s801 + $0x1a0] sm:$0xf]
        %v2577 = vld [vmem:[%s801 + $0x1a4] sm:$0xf]
        %v2578 = vld [vmem:[%s801 + $0x1a8] sm:$0xf]
        %v2579 = vld [vmem:[%s801 + $0x1ac] sm:$0xf]
        %v2580 = vld [vmem:[%s801 + $0x1b0] sm:$0xf]
        %v2581 = vld [vmem:[%s801 + $0x1b4] sm:$0xf]
        %v2582 = vld [vmem:[%s801 + $0x1b8] sm:$0xf]
        %v2583 = vld [vmem:[%s801 + $0x1bc] sm:$0xf]
        %v2584 = vld [vmem:[%s801 + $0x1c0] sm:$0xf]
        %v2585 = vld [vmem:[%s801 + $0x1c4] sm:$0xf]
        %v2586 = vld [vmem:[%s801 + $0x1c8] sm:$0xf]
        %v2587 = vld [vmem:[%s801 + $0x1cc] sm:$0xf]
        %v2588 = vld [vmem:[%s801 + $0x1d0] sm:$0xf]
        %v2589 = vld [vmem:[%s801 + $0x1d4] sm:$0xf]
        %v2590 = vld [vmem:[%s801 + $0x1d8] sm:$0xf]
        %v2591 = vld [vmem:[%s801 + $0x1dc] sm:$0xf]
        %v2592 = vld [vmem:[%s801 + $0x1e0] sm:$0xf]
        %v2593 = vld [vmem:[%s801 + $0x1e4] sm:$0xf]
        %v2594 = vld [vmem:[%s801 + $0x1e8] sm:$0xf]
        %v2595 = vld [vmem:[%s801 + $0x1ec] sm:$0xf]
        %v2596 = vld [vmem:[%s801 + $0x1f0] sm:$0xf]
        %v2597 = vld [vmem:[%s801 + $0x1f4] sm:$0xf]
        %v2598 = vld [vmem:[%s801 + $0x1f8] sm:$0xf]
        %v2599 = vld [vmem:[%s801 + $0x1fc] sm:$0xf]
        %v2600 = vld [vmem:[%s801 + $0x200] sm:$0xf]
        %v2601 = vld [vmem:[%s801 + $0x204] sm:$0xf]
        %v2602 = vld [vmem:[%s801 + $0x208] sm:$0xf]
        %v2603 = vld [vmem:[%s801 + $0x20c] sm:$0xf]
        %v2604 = vld [vmem:[%s801 + $0x210] sm:$0xf]
        %v2605 = vld [vmem:[%s801 + $0x214] sm:$0xf]
        %v2606 = vld [vmem:[%s801 + $0x218] sm:$0xf]
        %v2607 = vld [vmem:[%s801 + $0x21c] sm:$0xf]
        %v2608 = vld [vmem:[%s801 + $0x220] sm:$0xf]
        %v2609 = vld [vmem:[%s801 + $0x224] sm:$0xf]
        %v2610 = vld [vmem:[%s801 + $0x228] sm:$0xf]
        %v2611 = vld [vmem:[%s801 + $0x22c] sm:$0xf]
        %v2612 = vld [vmem:[%s801 + $0x230] sm:$0xf]
        %v2613 = vld [vmem:[%s801 + $0x234] sm:$0xf]
        %v2614 = vld [vmem:[%s801 + $0x238] sm:$0xf]
        %v2615 = vld [vmem:[%s801 + $0x23c] sm:$0xf]
        %v2616 = vld [vmem:[%s801 + $0x240] sm:$0xf]
        %v2617 = vld [vmem:[%s801 + $0x244] sm:$0xf]
        %v2618 = vld [vmem:[%s801 + $0x248] sm:$0xf]
        %v2619 = vld [vmem:[%s801 + $0x24c] sm:$0xf]
        %v2620 = vld [vmem:[%s801 + $0x250] sm:$0xf]
        %v2621 = vld [vmem:[%s801 + $0x254] sm:$0xf]
        %v2622 = vld [vmem:[%s801 + $0x258] sm:$0xf]
        %v2623 = vld [vmem:[%s801 + $0x25c] sm:$0xf]
        %v2624 = vld [vmem:[%s801 + $0x260] sm:$0xf]
        %v2625 = vld [vmem:[%s801 + $0x264] sm:$0xf]
        %v2626 = vld [vmem:[%s801 + $0x268] sm:$0xf]
        %v2627 = vld [vmem:[%s801 + $0x26c] sm:$0xf]
        %v2628 = vld [vmem:[%s801 + $0x270] sm:$0xf]
        %v2629 = vld [vmem:[%s801 + $0x274] sm:$0xf]
        %v2630 = vld [vmem:[%s801 + $0x278] sm:$0xf]
        %v2631 = vld [vmem:[%s801 + $0x27c] sm:$0xf]
        %v2632 = vld [vmem:[%s801 + $0x280] sm:$0xf]
        %v2633 = vld [vmem:[%s801 + $0x284] sm:$0xf]
        %v2634 = vld [vmem:[%s801 + $0x288] sm:$0xf]
        %v2635 = vld [vmem:[%s801 + $0x28c] sm:$0xf]
        %v2636 = vld [vmem:[%s801 + $0x290] sm:$0xf]
        %v2637 = vld [vmem:[%s801 + $0x294] sm:$0xf]
        %v2638 = vld [vmem:[%s801 + $0x298] sm:$0xf]
        %v2639 = vld [vmem:[%s801 + $0x29c] sm:$0xf]
        %v2640 = vld [vmem:[%s801 + $0x2a0] sm:$0xf]
        %v2641 = vld [vmem:[%s801 + $0x2a4] sm:$0xf]
        %v2642 = vld [vmem:[%s801 + $0x2a8] sm:$0xf]
        %v2643 = vld [vmem:[%s801 + $0x2ac] sm:$0xf]
        %v2644 = vld [vmem:[%s801 + $0x2b0] sm:$0xf]
        %v2645 = vld [vmem:[%s801 + $0x2b4] sm:$0xf]
        %v2646 = vld [vmem:[%s801 + $0x2b8] sm:$0xf]
        %v2647 = vld [vmem:[%s801 + $0x2bc] sm:$0xf]
        %v2648 = vld [vmem:[%s801 + $0x2c0] sm:$0xf]
        %v2649 = vld [vmem:[%s801 + $0x2c4] sm:$0xf]
        %v2650 = vld [vmem:[%s801 + $0x2c8] sm:$0xf]
        %v2651 = vld [vmem:[%s801 + $0x2cc] sm:$0xf]
        %v2652 = vld [vmem:[%s801 + $0x2d0] sm:$0xf]
        %v2653 = vld [vmem:[%s801 + $0x2d4] sm:$0xf]
        %v2654 = vld [vmem:[%s801 + $0x2d8] sm:$0xf]
        %v2655 = vld [vmem:[%s801 + $0x2dc] sm:$0xf]
        %v2656 = vld [vmem:[%s801 + $0x2e0] sm:$0xf]
        %v2657 = vld [vmem:[%s801 + $0x2e4] sm:$0xf]
        %v2658 = vld [vmem:[%s801 + $0x2e8] sm:$0xf]
        %v2659 = vld [vmem:[%s801 + $0x2ec] sm:$0xf]
        %v2660 = vld [vmem:[%s801 + $0x2f0] sm:$0xf]
        %v2661 = vld [vmem:[%s801 + $0x2f4] sm:$0xf]
        %v2662 = vld [vmem:[%s801 + $0x2f8] sm:$0xf]
        %v2663 = vld [vmem:[%s801 + $0x2fc] sm:$0xf]
        %v2664 = vld [vmem:[%s801 + $0x300] sm:$0xf]
        %v2665 = vld [vmem:[%s801 + $0x304] sm:$0xf]
        %v2666 = vld [vmem:[%s801 + $0x308] sm:$0xf]
        %v2667 = vld [vmem:[%s801 + $0x30c] sm:$0xf]
        %v2668 = vld [vmem:[%s801 + $0x310] sm:$0xf]
        %v2669 = vld [vmem:[%s801 + $0x314] sm:$0xf]
        %v2670 = vld [vmem:[%s801 + $0x318] sm:$0xf]
        %v2671 = vld [vmem:[%s801 + $0x31c] sm:$0xf]
        %v2672 = vld [vmem:[%s801 + $0x320] sm:$0xf]
        %v2673 = vld [vmem:[%s801 + $0x324] sm:$0xf]
        %v2674 = vld [vmem:[%s801 + $0x328] sm:$0xf]
        %v2675 = vld [vmem:[%s801 + $0x32c] sm:$0xf]
        %v2676 = vld [vmem:[%s801 + $0x330] sm:$0xf]
        %v2677 = vld [vmem:[%s801 + $0x334] sm:$0xf]
        %v2678 = vld [vmem:[%s801 + $0x338] sm:$0xf]
        %v2679 = vld [vmem:[%s801 + $0x33c] sm:$0xf]
        %v2680 = vld [vmem:[%s801 + $0x340] sm:$0xf]
        %v2681 = vld [vmem:[%s801 + $0x344] sm:$0xf]
        %v2682 = vld [vmem:[%s801 + $0x348] sm:$0xf]
        %v2683 = vld [vmem:[%s801 + $0x34c] sm:$0xf]
        %v2684 = vld [vmem:[%s801 + $0x350] sm:$0xf]
        %v2685 = vld [vmem:[%s801 + $0x354] sm:$0xf]
        %v2686 = vld [vmem:[%s801 + $0x358] sm:$0xf]
        %v2687 = vld [vmem:[%s801 + $0x35c] sm:$0xf]
        %v2688 = vld [vmem:[%s801 + $0x360] sm:$0xf]
        %v2689 = vld [vmem:[%s801 + $0x364] sm:$0xf]
        %v2690 = vld [vmem:[%s801 + $0x368] sm:$0xf]
        %v2691 = vld [vmem:[%s801 + $0x36c] sm:$0xf]
        %v2692 = vld [vmem:[%s801 + $0x370] sm:$0xf]
        %v2693 = vld [vmem:[%s801 + $0x374] sm:$0xf]
        %v2694 = vld [vmem:[%s801 + $0x378] sm:$0xf]
        %v2695 = vld [vmem:[%s801 + $0x37c] sm:$0xf]
        %v2696 = vld [vmem:[%s801 + $0x380] sm:$0xf]
        %v2697 = vld [vmem:[%s801 + $0x384] sm:$0xf]
        %v2698 = vld [vmem:[%s801 + $0x388] sm:$0xf]
        %v2699 = vld [vmem:[%s801 + $0x38c] sm:$0xf]
        %v2700 = vld [vmem:[%s801 + $0x390] sm:$0xf]
        %v2701 = vld [vmem:[%s801 + $0x394] sm:$0xf]
        %v2702 = vld [vmem:[%s801 + $0x398] sm:$0xf]
        %v2703 = vld [vmem:[%s801 + $0x39c] sm:$0xf]
        %v2704 = vld [vmem:[%s801 + $0x3a0] sm:$0xf]
        %v2705 = vld [vmem:[%s801 + $0x3a4] sm:$0xf]
        %v2706 = vld [vmem:[%s801 + $0x3a8] sm:$0xf]
        %v2707 = vld [vmem:[%s801 + $0x3ac] sm:$0xf]
        %v2708 = vld [vmem:[%s801 + $0x3b0] sm:$0xf]
        %v2709 = vld [vmem:[%s801 + $0x3b4] sm:$0xf]
        %v2710 = vld [vmem:[%s801 + $0x3b8] sm:$0xf]
        %v2711 = vld [vmem:[%s801 + $0x3bc] sm:$0xf]
        %v2712 = vld [vmem:[%s801 + $0x3c0] sm:$0xf]
        %v2713 = vld [vmem:[%s801 + $0x3c4] sm:$0xf]
        %v2714 = vld [vmem:[%s801 + $0x3c8] sm:$0xf]
        %v2715 = vld [vmem:[%s801 + $0x3cc] sm:$0xf]
        %v2716 = vld [vmem:[%s801 + $0x3d0] sm:$0xf]
        %v2717 = vld [vmem:[%s801 + $0x3d4] sm:$0xf]
        %v2718 = vld [vmem:[%s801 + $0x3d8] sm:$0xf]
        %v2719 = vld [vmem:[%s801 + $0x3dc] sm:$0xf]
        %v2720 = vld [vmem:[%s801 + $0x3e0] sm:$0xf]
        %v2721 = vld [vmem:[%s801 + $0x3e4] sm:$0xf]
        %v2722 = vld [vmem:[%s801 + $0x3e8] sm:$0xf]
        %v2723 = vld [vmem:[%s801 + $0x3ec] sm:$0xf]
        %v2724 = vld [vmem:[%s801 + $0x3f0] sm:$0xf]
        %v2725 = vld [vmem:[%s801 + $0x3f4] sm:$0xf]
        %v2726 = vld [vmem:[%s801 + $0x3f8] sm:$0xf]
        %v2727 = vld [vmem:[%s801 + $0x3fc] sm:$0xf]
        %v2728 = vld [vmem:[%s810] sm:$0x1]
        %v2730 = vperm.slane %v2728, 0
        %v2988 = vunpack.c.l.b16 %v2472
        %v2989 = vunpack.c.l.b16 %v2473
        %v2990 = vunpack.c.l.b16 %v2474
        %v2991 = vunpack.c.l.b16 %v2475
        %v2992 = vunpack.c.l.b16 %v2476
        %v2993 = vunpack.c.l.b16 %v2477
        %v2994 = vunpack.c.l.b16 %v2478
        %v2995 = vunpack.c.l.b16 %v2479
        %v2996 = vunpack.c.l.b16 %v2480
        %v2997 = vunpack.c.l.b16 %v2481
        %v2998 = vunpack.c.l.b16 %v2482
        %v2999 = vunpack.c.l.b16 %v2483
        %v3000 = vunpack.c.l.b16 %v2484
        %v3001 = vunpack.c.l.b16 %v2485
        %v3002 = vunpack.c.l.b16 %v2486
        %v3003 = vunpack.c.l.b16 %v2487
        %v3004 = vunpack.c.l.b16 %v2488
        %v3005 = vunpack.c.l.b16 %v2489
        %v3006 = vunpack.c.l.b16 %v2490
        %v3007 = vunpack.c.l.b16 %v2491
        %v3008 = vunpack.c.l.b16 %v2492
        %v3009 = vunpack.c.l.b16 %v2493
        %v3010 = vunpack.c.l.b16 %v2494
        %v3011 = vunpack.c.l.b16 %v2495
        %v3012 = vunpack.c.l.b16 %v2496
        %v3013 = vunpack.c.l.b16 %v2497
        %v3014 = vunpack.c.l.b16 %v2498
        %v3015 = vunpack.c.l.b16 %v2499
        %v3016 = vunpack.c.l.b16 %v2500
        %v3017 = vunpack.c.l.b16 %v2501
        %v3018 = vunpack.c.l.b16 %v2502
        %v3019 = vunpack.c.l.b16 %v2503
        %v3020 = vunpack.c.l.b16 %v2504
        %v3021 = vunpack.c.l.b16 %v2505
        %v3022 = vunpack.c.l.b16 %v2506
        %v3023 = vunpack.c.l.b16 %v2507
        %v3024 = vunpack.c.l.b16 %v2508
        %v3025 = vunpack.c.l.b16 %v2509
        %v3026 = vunpack.c.l.b16 %v2510
        %v3027 = vunpack.c.l.b16 %v2511
        %v3028 = vunpack.c.l.b16 %v2512
        %v3029 = vunpack.c.l.b16 %v2513
        %v3030 = vunpack.c.l.b16 %v2514
        %v3031 = vunpack.c.l.b16 %v2515
        %v3032 = vunpack.c.l.b16 %v2516
        %v3033 = vunpack.c.l.b16 %v2517
        %v3034 = vunpack.c.l.b16 %v2518
        %v3035 = vunpack.c.l.b16 %v2519
        %v3036 = vunpack.c.l.b16 %v2520
        %v3037 = vunpack.c.l.b16 %v2521
        %v3038 = vunpack.c.l.b16 %v2522
        %v3039 = vunpack.c.l.b16 %v2523
        %v3040 = vunpack.c.l.b16 %v2524
        %v3041 = vunpack.c.l.b16 %v2525
        %v3042 = vunpack.c.l.b16 %v2526
        %v3043 = vunpack.c.l.b16 %v2527
        %v3044 = vunpack.c.l.b16 %v2528
        %v3045 = vunpack.c.l.b16 %v2529
        %v3046 = vunpack.c.l.b16 %v2530
        %v3047 = vunpack.c.l.b16 %v2531
        %v3048 = vunpack.c.l.b16 %v2532
        %v3049 = vunpack.c.l.b16 %v2533
        %v3050 = vunpack.c.l.b16 %v2534
        %v3051 = vunpack.c.l.b16 %v2535
        %v3052 = vunpack.c.l.b16 %v2536
        %v3053 = vunpack.c.l.b16 %v2537
        %v3054 = vunpack.c.l.b16 %v2538
        %v3055 = vunpack.c.l.b16 %v2539
        %v3056 = vunpack.c.l.b16 %v2540
        %v3057 = vunpack.c.l.b16 %v2541
        %v3058 = vunpack.c.l.b16 %v2542
        %v3059 = vunpack.c.l.b16 %v2543
        %v3060 = vunpack.c.l.b16 %v2544
        %v3061 = vunpack.c.l.b16 %v2545
        %v3062 = vunpack.c.l.b16 %v2546
        %v3063 = vunpack.c.l.b16 %v2547
        %v3064 = vunpack.c.l.b16 %v2548
        %v3065 = vunpack.c.l.b16 %v2549
        %v3066 = vunpack.c.l.b16 %v2550
        %v3067 = vunpack.c.l.b16 %v2551
        %v3068 = vunpack.c.l.b16 %v2552
        %v3069 = vunpack.c.l.b16 %v2553
        %v3070 = vunpack.c.l.b16 %v2554
        %v3071 = vunpack.c.l.b16 %v2555
        %v3072 = vunpack.c.l.b16 %v2556
        %v3073 = vunpack.c.l.b16 %v2557
        %v3074 = vunpack.c.l.b16 %v2558
        %v3075 = vunpack.c.l.b16 %v2559
        %v3076 = vunpack.c.l.b16 %v2560
        %v3077 = vunpack.c.l.b16 %v2561
        %v3078 = vunpack.c.l.b16 %v2562
        %v3079 = vunpack.c.l.b16 %v2563
        %v3080 = vunpack.c.l.b16 %v2564
        %v3081 = vunpack.c.l.b16 %v2565
        %v3082 = vunpack.c.l.b16 %v2566
        %v3083 = vunpack.c.l.b16 %v2567
        %v3084 = vunpack.c.l.b16 %v2568
        %v3085 = vunpack.c.l.b16 %v2569
        %v3086 = vunpack.c.l.b16 %v2570
        %v3087 = vunpack.c.l.b16 %v2571
        %v3088 = vunpack.c.l.b16 %v2572
        %v3089 = vunpack.c.l.b16 %v2573
        %v3090 = vunpack.c.l.b16 %v2574
        %v3091 = vunpack.c.l.b16 %v2575
        %v3092 = vunpack.c.l.b16 %v2576
        %v3093 = vunpack.c.l.b16 %v2577
        %v3094 = vunpack.c.l.b16 %v2578
        %v3095 = vunpack.c.l.b16 %v2579
        %v3096 = vunpack.c.l.b16 %v2580
        %v3097 = vunpack.c.l.b16 %v2581
        %v3098 = vunpack.c.l.b16 %v2582
        %v3099 = vunpack.c.l.b16 %v2583
        %v3100 = vunpack.c.l.b16 %v2584
        %v3101 = vunpack.c.l.b16 %v2585
        %v3102 = vunpack.c.l.b16 %v2586
        %v3103 = vunpack.c.l.b16 %v2587
        %v3104 = vunpack.c.l.b16 %v2588
        %v3105 = vunpack.c.l.b16 %v2589
        %v3106 = vunpack.c.l.b16 %v2590
        %v3107 = vunpack.c.l.b16 %v2591
        %v3108 = vunpack.c.l.b16 %v2592
        %v3109 = vunpack.c.l.b16 %v2593
        %v3110 = vunpack.c.l.b16 %v2594
        %v3111 = vunpack.c.l.b16 %v2595
        %v3112 = vunpack.c.l.b16 %v2596
        %v3113 = vunpack.c.l.b16 %v2597
        %v3114 = vunpack.c.l.b16 %v2598
        %v3115 = vunpack.c.l.b16 %v2599
        %v3116 = vunpack.c.l.b16 %v2600
        %v3117 = vunpack.c.l.b16 %v2601
        %v3118 = vunpack.c.l.b16 %v2602
        %v3119 = vunpack.c.l.b16 %v2603
        %v3120 = vunpack.c.l.b16 %v2604
        %v3121 = vunpack.c.l.b16 %v2605
        %v3122 = vunpack.c.l.b16 %v2606
        %v3123 = vunpack.c.l.b16 %v2607
        %v3124 = vunpack.c.l.b16 %v2608
        %v3125 = vunpack.c.l.b16 %v2609
        %v3126 = vunpack.c.l.b16 %v2610
        %v3127 = vunpack.c.l.b16 %v2611
        %v3128 = vunpack.c.l.b16 %v2612
        %v3129 = vunpack.c.l.b16 %v2613
        %v3130 = vunpack.c.l.b16 %v2614
        %v3131 = vunpack.c.l.b16 %v2615
        %v3132 = vunpack.c.l.b16 %v2616
        %v3133 = vunpack.c.l.b16 %v2617
        %v3134 = vunpack.c.l.b16 %v2618
        %v3135 = vunpack.c.l.b16 %v2619
        %v3136 = vunpack.c.l.b16 %v2620
        %v3137 = vunpack.c.l.b16 %v2621
        %v3138 = vunpack.c.l.b16 %v2622
        %v3139 = vunpack.c.l.b16 %v2623
        %v3140 = vunpack.c.l.b16 %v2624
        %v3141 = vunpack.c.l.b16 %v2625
        %v3142 = vunpack.c.l.b16 %v2626
        %v3143 = vunpack.c.l.b16 %v2627
        %v3144 = vunpack.c.l.b16 %v2628
        %v3145 = vunpack.c.l.b16 %v2629
        %v3146 = vunpack.c.l.b16 %v2630
        %v3147 = vunpack.c.l.b16 %v2631
        %v3148 = vunpack.c.l.b16 %v2632
        %v3149 = vunpack.c.l.b16 %v2633
        %v3150 = vunpack.c.l.b16 %v2634
        %v3151 = vunpack.c.l.b16 %v2635
        %v3152 = vunpack.c.l.b16 %v2636
        %v3153 = vunpack.c.l.b16 %v2637
        %v3154 = vunpack.c.l.b16 %v2638
        %v3155 = vunpack.c.l.b16 %v2639
        %v3156 = vunpack.c.l.b16 %v2640
        %v3157 = vunpack.c.l.b16 %v2641
        %v3158 = vunpack.c.l.b16 %v2642
        %v3159 = vunpack.c.l.b16 %v2643
        %v3160 = vunpack.c.l.b16 %v2644
        %v3161 = vunpack.c.l.b16 %v2645
        %v3162 = vunpack.c.l.b16 %v2646
        %v3163 = vunpack.c.l.b16 %v2647
        %v3164 = vunpack.c.l.b16 %v2648
        %v3165 = vunpack.c.l.b16 %v2649
        %v3166 = vunpack.c.l.b16 %v2650
        %v3167 = vunpack.c.l.b16 %v2651
        %v3168 = vunpack.c.l.b16 %v2652
        %v3169 = vunpack.c.l.b16 %v2653
        %v3170 = vunpack.c.l.b16 %v2654
        %v3171 = vunpack.c.l.b16 %v2655
        %v3172 = vunpack.c.l.b16 %v2656
        %v3173 = vunpack.c.l.b16 %v2657
        %v3174 = vunpack.c.l.b16 %v2658
        %v3175 = vunpack.c.l.b16 %v2659
        %v3176 = vunpack.c.l.b16 %v2660
        %v3177 = vunpack.c.l.b16 %v2661
        %v3178 = vunpack.c.l.b16 %v2662
        %v3179 = vunpack.c.l.b16 %v2663
        %v3180 = vunpack.c.l.b16 %v2664
        %v3181 = vunpack.c.l.b16 %v2665
        %v3182 = vunpack.c.l.b16 %v2666
        %v3183 = vunpack.c.l.b16 %v2667
        %v3184 = vunpack.c.l.b16 %v2668
        %v3185 = vunpack.c.l.b16 %v2669
        %v3186 = vunpack.c.l.b16 %v2670
        %v3187 = vunpack.c.l.b16 %v2671
        %v3188 = vunpack.c.l.b16 %v2672
        %v3189 = vunpack.c.l.b16 %v2673
        %v3190 = vunpack.c.l.b16 %v2674
        %v3191 = vunpack.c.l.b16 %v2675
        %v3192 = vunpack.c.l.b16 %v2676
        %v3193 = vunpack.c.l.b16 %v2677
        %v3194 = vunpack.c.l.b16 %v2678
        %v3195 = vunpack.c.l.b16 %v2679
        %v3196 = vunpack.c.l.b16 %v2680
        %v3197 = vunpack.c.l.b16 %v2681
        %v3198 = vunpack.c.l.b16 %v2682
        %v3199 = vunpack.c.l.b16 %v2683
        %v3200 = vunpack.c.l.b16 %v2684
        %v3201 = vunpack.c.l.b16 %v2685
        %v3202 = vunpack.c.l.b16 %v2686
        %v3203 = vunpack.c.l.b16 %v2687
        %v3204 = vunpack.c.l.b16 %v2688
        %v3205 = vunpack.c.l.b16 %v2689
        %v3206 = vunpack.c.l.b16 %v2690
        %v3207 = vunpack.c.l.b16 %v2691
        %v3208 = vunpack.c.l.b16 %v2692
        %v3209 = vunpack.c.l.b16 %v2693
        %v3210 = vunpack.c.l.b16 %v2694
        %v3211 = vunpack.c.l.b16 %v2695
        %v3212 = vunpack.c.l.b16 %v2696
        %v3213 = vunpack.c.l.b16 %v2697
        %v3214 = vunpack.c.l.b16 %v2698
        %v3215 = vunpack.c.l.b16 %v2699
        %v3216 = vunpack.c.l.b16 %v2700
        %v3217 = vunpack.c.l.b16 %v2701
        %v3218 = vunpack.c.l.b16 %v2702
        %v3219 = vunpack.c.l.b16 %v2703
        %v3220 = vunpack.c.l.b16 %v2704
        %v3221 = vunpack.c.l.b16 %v2705
        %v3222 = vunpack.c.l.b16 %v2706
        %v3223 = vunpack.c.l.b16 %v2707
        %v3224 = vunpack.c.l.b16 %v2708
        %v3225 = vunpack.c.l.b16 %v2709
        %v3226 = vunpack.c.l.b16 %v2710
        %v3227 = vunpack.c.l.b16 %v2711
        %v3228 = vunpack.c.l.b16 %v2712
        %v3229 = vunpack.c.l.b16 %v2713
        %v3230 = vunpack.c.l.b16 %v2714
        %v3231 = vunpack.c.l.b16 %v2715
        %v3232 = vunpack.c.l.b16 %v2716
        %v3233 = vunpack.c.l.b16 %v2717
        %v3234 = vunpack.c.l.b16 %v2718
        %v3235 = vunpack.c.l.b16 %v2719
        %v3236 = vunpack.c.l.b16 %v2720
        %v3237 = vunpack.c.l.b16 %v2721
        %v3238 = vunpack.c.l.b16 %v2722
        %v3239 = vunpack.c.l.b16 %v2723
        %v3240 = vunpack.c.l.b16 %v2724
        %v3241 = vunpack.c.l.b16 %v2725
        %v3242 = vunpack.c.l.b16 %v2726
        %v3243 = vunpack.c.l.b16 %v2727
        %v3244 = vpack.c.b16 %v2989, %v2988
        %v3245 = vpack.c.b16 %v2991, %v2990
        %v3246 = vpack.c.b16 %v2993, %v2992
        %v3247 = vpack.c.b16 %v2995, %v2994
        %v3248 = vpack.c.b16 %v2997, %v2996
        %v3249 = vpack.c.b16 %v2999, %v2998
        %v3250 = vpack.c.b16 %v3001, %v3000
        %v3251 = vpack.c.b16 %v3003, %v3002
        %v3252 = vpack.c.b16 %v3005, %v3004
        %v3253 = vpack.c.b16 %v3007, %v3006
        %v3254 = vpack.c.b16 %v3009, %v3008
        %v3255 = vpack.c.b16 %v3011, %v3010
        %v3256 = vpack.c.b16 %v3013, %v3012
        %v3257 = vpack.c.b16 %v3015, %v3014
        %v3258 = vpack.c.b16 %v3017, %v3016
        %v3259 = vpack.c.b16 %v3019, %v3018
        %v3260 = vpack.c.b16 %v3021, %v3020
        %v3261 = vpack.c.b16 %v3023, %v3022
        %v3262 = vpack.c.b16 %v3025, %v3024
        %v3263 = vpack.c.b16 %v3027, %v3026
        %v3264 = vpack.c.b16 %v3029, %v3028
        %v3265 = vpack.c.b16 %v3031, %v3030
        %v3266 = vpack.c.b16 %v3033, %v3032
        %v3267 = vpack.c.b16 %v3035, %v3034
        %v3268 = vpack.c.b16 %v3037, %v3036
        %v3269 = vpack.c.b16 %v3039, %v3038
        %v3270 = vpack.c.b16 %v3041, %v3040
        %v3271 = vpack.c.b16 %v3043, %v3042
        %v3272 = vpack.c.b16 %v3045, %v3044
        %v3273 = vpack.c.b16 %v3047, %v3046
        %v3274 = vpack.c.b16 %v3049, %v3048
        %v3275 = vpack.c.b16 %v3051, %v3050
        %v3276 = vpack.c.b16 %v3053, %v3052
        %v3277 = vpack.c.b16 %v3055, %v3054
        %v3278 = vpack.c.b16 %v3057, %v3056
        %v3279 = vpack.c.b16 %v3059, %v3058
        %v3280 = vpack.c.b16 %v3061, %v3060
        %v3281 = vpack.c.b16 %v3063, %v3062
        %v3282 = vpack.c.b16 %v3065, %v3064
        %v3283 = vpack.c.b16 %v3067, %v3066
        %v3284 = vpack.c.b16 %v3069, %v3068
        %v3285 = vpack.c.b16 %v3071, %v3070
        %v3286 = vpack.c.b16 %v3073, %v3072
        %v3287 = vpack.c.b16 %v3075, %v3074
        %v3288 = vpack.c.b16 %v3077, %v3076
        %v3289 = vpack.c.b16 %v3079, %v3078
        %v3290 = vpack.c.b16 %v3081, %v3080
        %v3291 = vpack.c.b16 %v3083, %v3082
        %v3292 = vpack.c.b16 %v3085, %v3084
        %v3293 = vpack.c.b16 %v3087, %v3086
        %v3294 = vpack.c.b16 %v3089, %v3088
        %v3295 = vpack.c.b16 %v3091, %v3090
        %v3296 = vpack.c.b16 %v3093, %v3092
        %v3297 = vpack.c.b16 %v3095, %v3094
        %v3298 = vpack.c.b16 %v3097, %v3096
        %v3299 = vpack.c.b16 %v3099, %v3098
        %v3300 = vpack.c.b16 %v3101, %v3100
        %v3301 = vpack.c.b16 %v3103, %v3102
        %v3302 = vpack.c.b16 %v3105, %v3104
        %v3303 = vpack.c.b16 %v3107, %v3106
        %v3304 = vpack.c.b16 %v3109, %v3108
        %v3305 = vpack.c.b16 %v3111, %v3110
        %v3306 = vpack.c.b16 %v3113, %v3112
        %v3307 = vpack.c.b16 %v3115, %v3114
        %v3308 = vpack.c.b16 %v3117, %v3116
        %v3309 = vpack.c.b16 %v3119, %v3118
        %v3310 = vpack.c.b16 %v3121, %v3120
        %v3311 = vpack.c.b16 %v3123, %v3122
        %v3312 = vpack.c.b16 %v3125, %v3124
        %v3313 = vpack.c.b16 %v3127, %v3126
        %v3314 = vpack.c.b16 %v3129, %v3128
        %v3315 = vpack.c.b16 %v3131, %v3130
        %v3316 = vpack.c.b16 %v3133, %v3132
        %v3317 = vpack.c.b16 %v3135, %v3134
        %v3318 = vpack.c.b16 %v3137, %v3136
        %v3319 = vpack.c.b16 %v3139, %v3138
        %v3320 = vpack.c.b16 %v3141, %v3140
        %v3321 = vpack.c.b16 %v3143, %v3142
        %v3322 = vpack.c.b16 %v3145, %v3144
        %v3323 = vpack.c.b16 %v3147, %v3146
        %v3324 = vpack.c.b16 %v3149, %v3148
        %v3325 = vpack.c.b16 %v3151, %v3150
        %v3326 = vpack.c.b16 %v3153, %v3152
        %v3327 = vpack.c.b16 %v3155, %v3154
        %v3328 = vpack.c.b16 %v3157, %v3156
        %v3329 = vpack.c.b16 %v3159, %v3158
        %v3330 = vpack.c.b16 %v3161, %v3160
        %v3331 = vpack.c.b16 %v3163, %v3162
        %v3332 = vpack.c.b16 %v3165, %v3164
        %v3333 = vpack.c.b16 %v3167, %v3166
        %v3334 = vpack.c.b16 %v3169, %v3168
        %v3335 = vpack.c.b16 %v3171, %v3170
        %v3336 = vpack.c.b16 %v3173, %v3172
        %v3337 = vpack.c.b16 %v3175, %v3174
        %v3338 = vpack.c.b16 %v3177, %v3176
        %v3339 = vpack.c.b16 %v3179, %v3178
        %v3340 = vpack.c.b16 %v3181, %v3180
        %v3341 = vpack.c.b16 %v3183, %v3182
        %v3342 = vpack.c.b16 %v3185, %v3184
        %v3343 = vpack.c.b16 %v3187, %v3186
        %v3344 = vpack.c.b16 %v3189, %v3188
        %v3345 = vpack.c.b16 %v3191, %v3190
        %v3346 = vpack.c.b16 %v3193, %v3192
        %v3347 = vpack.c.b16 %v3195, %v3194
        %v3348 = vpack.c.b16 %v3197, %v3196
        %v3349 = vpack.c.b16 %v3199, %v3198
        %v3350 = vpack.c.b16 %v3201, %v3200
        %v3351 = vpack.c.b16 %v3203, %v3202
        %v3352 = vpack.c.b16 %v3205, %v3204
        %v3353 = vpack.c.b16 %v3207, %v3206
        %v3354 = vpack.c.b16 %v3209, %v3208
        %v3355 = vpack.c.b16 %v3211, %v3210
        %v3356 = vpack.c.b16 %v3213, %v3212
        %v3357 = vpack.c.b16 %v3215, %v3214
        %v3358 = vpack.c.b16 %v3217, %v3216
        %v3359 = vpack.c.b16 %v3219, %v3218
        %v3360 = vpack.c.b16 %v3221, %v3220
        %v3361 = vpack.c.b16 %v3223, %v3222
        %v3362 = vpack.c.b16 %v3225, %v3224
        %v3363 = vpack.c.b16 %v3227, %v3226
        %v3364 = vpack.c.b16 %v3229, %v3228
        %v3365 = vpack.c.b16 %v3231, %v3230
        %v3366 = vpack.c.b16 %v3233, %v3232
        %v3367 = vpack.c.b16 %v3235, %v3234
        %v3368 = vpack.c.b16 %v3237, %v3236
        %v3369 = vpack.c.b16 %v3239, %v3238
        %v3370 = vpack.c.b16 %v3241, %v3240
        %v3371 = vpack.c.b16 %v3243, %v3242
        %3500 = vmatpush.bf16.msra.mxu0 %v3251
        %3501 = vmatpush.bf16.msra.mxu0 %v3250
        %3502 = vmatpush.bf16.msra.mxu0 %v3249
        %3503 = vmatpush.bf16.msra.mxu0 %v3248
        %3504 = vmatpush.bf16.msra.mxu0 %v3247
        %3505 = vmatpush.bf16.msra.mxu0 %v3246
        %3506 = vmatpush.bf16.msra.mxu0 %v3245
        %3507 = vmatpush.bf16.msra.mxu0 %v3244
        %3508 = vmatmul.bf16.gmra.mxu0 %v2456
        %v3509 = vpop.f32.mrf.mxu0
        %v3510 = vadd.f32 %v2730, %v3509
        %v3511 = vpop.f32.mrf.mxu0
        %v3512 = vadd.f32 %v2730, %v3511
        %3513 = vdwg.mxu0
        %3514 = vmatpush.bf16.msra.mxu0 %v3259
        %3515 = vmatpush.bf16.msra.mxu0 %v3258
        %3516 = vmatpush.bf16.msra.mxu0 %v3257
        %3517 = vmatpush.bf16.msra.mxu0 %v3256
        %3518 = vmatpush.bf16.msra.mxu0 %v3255
        %3519 = vmatpush.bf16.msra.mxu0 %v3254
        %3520 = vmatpush.bf16.msra.mxu0 %v3253
        %3521 = vmatpush.bf16.msra.mxu0 %v3252
        %3522 = vmatmul.bf16.gmra.mxu0 %v2457
        %v3523 = vpop.f32.mrf.mxu0
        %v3524 = vadd.f32 %v3510, %v3523
        %v3525 = vpop.f32.mrf.mxu0
        %v3526 = vadd.f32 %v3512, %v3525
        %3527 = vdwg.mxu0
        %3528 = vmatpush.bf16.msra.mxu0 %v3267
        %3529 = vmatpush.bf16.msra.mxu0 %v3266
        %3530 = vmatpush.bf16.msra.mxu0 %v3265
        %3531 = vmatpush.bf16.msra.mxu0 %v3264
        %3532 = vmatpush.bf16.msra.mxu0 %v3263
        %3533 = vmatpush.bf16.msra.mxu0 %v3262
        %3534 = vmatpush.bf16.msra.mxu0 %v3261
        %3535 = vmatpush.bf16.msra.mxu0 %v3260
        %3536 = vmatmul.bf16.gmra.mxu0 %v2458
        %v3537 = vpop.f32.mrf.mxu0
        %v3538 = vadd.f32 %v3524, %v3537
        %v3539 = vpop.f32.mrf.mxu0
        %v3540 = vadd.f32 %v3526, %v3539
        %3541 = vdwg.mxu0
        %3542 = vmatpush.bf16.msra.mxu0 %v3275
        %3543 = vmatpush.bf16.msra.mxu0 %v3274
        %3544 = vmatpush.bf16.msra.mxu0 %v3273
        %3545 = vmatpush.bf16.msra.mxu0 %v3272
        %3546 = vmatpush.bf16.msra.mxu0 %v3271
        %3547 = vmatpush.bf16.msra.mxu0 %v3270
        %3548 = vmatpush.bf16.msra.mxu0 %v3269
        %3549 = vmatpush.bf16.msra.mxu0 %v3268
        %3550 = vmatmul.bf16.gmra.mxu0 %v2459
        %v3551 = vpop.f32.mrf.mxu0
        %v3552 = vadd.f32 %v3538, %v3551
        %v3553 = vpop.f32.mrf.mxu0
        %v3554 = vadd.f32 %v3540, %v3553
        %3555 = vdwg.mxu0
        %3556 = vmatpush.bf16.msra.mxu0 %v3283
        %3557 = vmatpush.bf16.msra.mxu0 %v3282
        %3558 = vmatpush.bf16.msra.mxu0 %v3281
        %3559 = vmatpush.bf16.msra.mxu0 %v3280
        %3560 = vmatpush.bf16.msra.mxu0 %v3279
        %3561 = vmatpush.bf16.msra.mxu0 %v3278
        %3562 = vmatpush.bf16.msra.mxu0 %v3277
        %3563 = vmatpush.bf16.msra.mxu0 %v3276
        %3564 = vmatmul.bf16.gmra.mxu0 %v2460
        %v3565 = vpop.f32.mrf.mxu0
        %v3566 = vadd.f32 %v3552, %v3565
        %v3567 = vpop.f32.mrf.mxu0
        %v3568 = vadd.f32 %v3554, %v3567
        %3569 = vdwg.mxu0
        %3570 = vmatpush.bf16.msra.mxu0 %v3291
        %3571 = vmatpush.bf16.msra.mxu0 %v3290
        %3572 = vmatpush.bf16.msra.mxu0 %v3289
        %3573 = vmatpush.bf16.msra.mxu0 %v3288
        %3574 = vmatpush.bf16.msra.mxu0 %v3287
        %3575 = vmatpush.bf16.msra.mxu0 %v3286
        %3576 = vmatpush.bf16.msra.mxu0 %v3285
        %3577 = vmatpush.bf16.msra.mxu0 %v3284
        %3578 = vmatmul.bf16.gmra.mxu0 %v2461
        %v3579 = vpop.f32.mrf.mxu0
        %v3580 = vadd.f32 %v3566, %v3579
        %v3581 = vpop.f32.mrf.mxu0
        %v3582 = vadd.f32 %v3568, %v3581
        %3583 = vdwg.mxu0
        %3584 = vmatpush.bf16.msra.mxu0 %v3299
        %3585 = vmatpush.bf16.msra.mxu0 %v3298
        %3586 = vmatpush.bf16.msra.mxu0 %v3297
        %3587 = vmatpush.bf16.msra.mxu0 %v3296
        %3588 = vmatpush.bf16.msra.mxu0 %v3295
        %3589 = vmatpush.bf16.msra.mxu0 %v3294
        %3590 = vmatpush.bf16.msra.mxu0 %v3293
        %3591 = vmatpush.bf16.msra.mxu0 %v3292
        %3592 = vmatmul.bf16.gmra.mxu0 %v2462
        %v3593 = vpop.f32.mrf.mxu0
        %v3594 = vadd.f32 %v3580, %v3593
        %v3595 = vpop.f32.mrf.mxu0
        %v3596 = vadd.f32 %v3582, %v3595
        %3597 = vdwg.mxu0
        %3598 = vmatpush.bf16.msra.mxu0 %v3307
        %3599 = vmatpush.bf16.msra.mxu0 %v3306
        %3600 = vmatpush.bf16.msra.mxu0 %v3305
        %3601 = vmatpush.bf16.msra.mxu0 %v3304
        %3602 = vmatpush.bf16.msra.mxu0 %v3303
        %3603 = vmatpush.bf16.msra.mxu0 %v3302
        %3604 = vmatpush.bf16.msra.mxu0 %v3301
        %3605 = vmatpush.bf16.msra.mxu0 %v3300
        %3606 = vmatmul.bf16.gmra.mxu0 %v2463
        %v3607 = vpop.f32.mrf.mxu0
        %v3608 = vadd.f32 %v3594, %v3607
        %v3609 = vpop.f32.mrf.mxu0
        %v3610 = vadd.f32 %v3596, %v3609
        %3611 = vdwg.mxu0
        %3612 = vmatpush.bf16.msra.mxu0 %v3315
        %3613 = vmatpush.bf16.msra.mxu0 %v3314
        %3614 = vmatpush.bf16.msra.mxu0 %v3313
        %3615 = vmatpush.bf16.msra.mxu0 %v3312
        %3616 = vmatpush.bf16.msra.mxu0 %v3311
        %3617 = vmatpush.bf16.msra.mxu0 %v3310
        %3618 = vmatpush.bf16.msra.mxu0 %v3309
        %3619 = vmatpush.bf16.msra.mxu0 %v3308
        %3620 = vmatmul.bf16.gmra.mxu0 %v2464
        %v3621 = vpop.f32.mrf.mxu0
        %v3622 = vadd.f32 %v3608, %v3621
        %v3623 = vpop.f32.mrf.mxu0
        %v3624 = vadd.f32 %v3610, %v3623
        %3625 = vdwg.mxu0
        %3626 = vmatpush.bf16.msra.mxu0 %v3323
        %3627 = vmatpush.bf16.msra.mxu0 %v3322
        %3628 = vmatpush.bf16.msra.mxu0 %v3321
        %3629 = vmatpush.bf16.msra.mxu0 %v3320
        %3630 = vmatpush.bf16.msra.mxu0 %v3319
        %3631 = vmatpush.bf16.msra.mxu0 %v3318
        %3632 = vmatpush.bf16.msra.mxu0 %v3317
        %3633 = vmatpush.bf16.msra.mxu0 %v3316
        %3634 = vmatmul.bf16.gmra.mxu0 %v2465
        %v3635 = vpop.f32.mrf.mxu0
        %v3636 = vadd.f32 %v3622, %v3635
        %v3637 = vpop.f32.mrf.mxu0
        %v3638 = vadd.f32 %v3624, %v3637
        %3639 = vdwg.mxu0
        %3640 = vmatpush.bf16.msra.mxu0 %v3331
        %3641 = vmatpush.bf16.msra.mxu0 %v3330
        %3642 = vmatpush.bf16.msra.mxu0 %v3329
        %3643 = vmatpush.bf16.msra.mxu0 %v3328
        %3644 = vmatpush.bf16.msra.mxu0 %v3327
        %3645 = vmatpush.bf16.msra.mxu0 %v3326
        %3646 = vmatpush.bf16.msra.mxu0 %v3325
        %3647 = vmatpush.bf16.msra.mxu0 %v3324
        %3648 = vmatmul.bf16.gmra.mxu0 %v2466
        %v3649 = vpop.f32.mrf.mxu0
        %v3650 = vadd.f32 %v3636, %v3649
        %v3651 = vpop.f32.mrf.mxu0
        %v3652 = vadd.f32 %v3638, %v3651
        %3653 = vdwg.mxu0
        %3654 = vmatpush.bf16.msra.mxu0 %v3339
        %3655 = vmatpush.bf16.msra.mxu0 %v3338
        %3656 = vmatpush.bf16.msra.mxu0 %v3337
        %3657 = vmatpush.bf16.msra.mxu0 %v3336
        %3658 = vmatpush.bf16.msra.mxu0 %v3335
        %3659 = vmatpush.bf16.msra.mxu0 %v3334
        %3660 = vmatpush.bf16.msra.mxu0 %v3333
        %3661 = vmatpush.bf16.msra.mxu0 %v3332
        %3662 = vmatmul.bf16.gmra.mxu0 %v2467
        %v3663 = vpop.f32.mrf.mxu0
        %v3664 = vadd.f32 %v3650, %v3663
        %v3665 = vpop.f32.mrf.mxu0
        %v3666 = vadd.f32 %v3652, %v3665
        %3667 = vdwg.mxu0
        %3668 = vmatpush.bf16.msra.mxu0 %v3347
        %3669 = vmatpush.bf16.msra.mxu0 %v3346
        %3670 = vmatpush.bf16.msra.mxu0 %v3345
        %3671 = vmatpush.bf16.msra.mxu0 %v3344
        %3672 = vmatpush.bf16.msra.mxu0 %v3343
        %3673 = vmatpush.bf16.msra.mxu0 %v3342
        %3674 = vmatpush.bf16.msra.mxu0 %v3341
        %3675 = vmatpush.bf16.msra.mxu0 %v3340
        %3676 = vmatmul.bf16.gmra.mxu0 %v2468
        %v3677 = vpop.f32.mrf.mxu0
        %v3678 = vadd.f32 %v3664, %v3677
        %v3679 = vpop.f32.mrf.mxu0
        %v3680 = vadd.f32 %v3666, %v3679
        %3681 = vdwg.mxu0
        %3682 = vmatpush.bf16.msra.mxu0 %v3355
        %3683 = vmatpush.bf16.msra.mxu0 %v3354
        %3684 = vmatpush.bf16.msra.mxu0 %v3353
        %3685 = vmatpush.bf16.msra.mxu0 %v3352
        %3686 = vmatpush.bf16.msra.mxu0 %v3351
        %3687 = vmatpush.bf16.msra.mxu0 %v3350
        %3688 = vmatpush.bf16.msra.mxu0 %v3349
        %3689 = vmatpush.bf16.msra.mxu0 %v3348
        %3690 = vmatmul.bf16.gmra.mxu0 %v2469
        %v3691 = vpop.f32.mrf.mxu0
        %v3692 = vadd.f32 %v3678, %v3691
        %v3693 = vpop.f32.mrf.mxu0
        %v3694 = vadd.f32 %v3680, %v3693
        %3695 = vdwg.mxu0
        %3696 = vmatpush.bf16.msra.mxu0 %v3363
        %3697 = vmatpush.bf16.msra.mxu0 %v3362
        %3698 = vmatpush.bf16.msra.mxu0 %v3361
        %3699 = vmatpush.bf16.msra.mxu0 %v3360
        %3700 = vmatpush.bf16.msra.mxu0 %v3359
        %3701 = vmatpush.bf16.msra.mxu0 %v3358
        %3702 = vmatpush.bf16.msra.mxu0 %v3357
        %3703 = vmatpush.bf16.msra.mxu0 %v3356
        %3704 = vmatmul.bf16.gmra.mxu0 %v2470
        %v3705 = vpop.f32.mrf.mxu0
        %v3706 = vadd.f32 %v3692, %v3705
        %v3707 = vpop.f32.mrf.mxu0
        %v3708 = vadd.f32 %v3694, %v3707
        %3709 = vdwg.mxu0
        %3710 = vmatpush.bf16.msra.mxu0 %v3371
        %3711 = vmatpush.bf16.msra.mxu0 %v3370
        %3712 = vmatpush.bf16.msra.mxu0 %v3369
        %3713 = vmatpush.bf16.msra.mxu0 %v3368
        %3714 = vmatpush.bf16.msra.mxu0 %v3367
        %3715 = vmatpush.bf16.msra.mxu0 %v3366
        %3716 = vmatpush.bf16.msra.mxu0 %v3365
        %3717 = vmatpush.bf16.msra.mxu0 %v3364
        %3718 = vmatmul.bf16.gmra.mxu0 %v2471
        %v3719 = vpop.f32.mrf.mxu0
        %v3720 = vadd.f32 %v3706, %v3719
        %v3721 = vpop.f32.mrf.mxu0
        %v3722 = vadd.f32 %v3708, %v3721
        %3723 = vdwg.mxu0
        %v3724 = vadd.f32 %v1393, %v3720
        %v3725 = vadd.f32 %v1394, %v3722
        %3726 = vadd.xlane.f32.xlu0 %v3724
        %v3727 = vpop.xlane.xlu0 %3726
        %3728 = vadd.xlane.f32.xlu0 %v3725
        %v3729 = vpop.xlane.xlu0 %3728
        %v3730 = vmul.f32 %v3727, %v1346
        %v3731 = vmul.f32 %v3729, %v1346
        %v3732 = vsub.f32 %v3724, %v3730
        %v3733 = vsub.f32 %v3725, %v3731
        %v3734 = vmul.f32 %v3732, %v3732
        %v3735 = vmul.f32 %v3733, %v3733
        %3736 = vadd.xlane.f32.xlu0 %v3734
        %v3737 = vpop.xlane.xlu0 %3736
        %3738 = vadd.xlane.f32.xlu0 %v3735
        %v3739 = vpop.xlane.xlu0 %3738
        %v3740 = vmul.f32 %v3737, %v1346
        %v3741 = vmul.f32 %v3739, %v1346
        %v3742 = vadd.f32 %v3740, 1e-05
        %v3743 = vadd.f32 %v3741, 1e-05
        %v3744 = vrsqrt.pop %v3742
        %v3745 = vmul.f32 %v3744, %v3742
        %v3746 = vmul.f32 %v3745, %v3744
        %v3747 = vmul.f32 0.5, %v3746
        %v3748 = vsub.f32 1.5, %v3747
        %v3749 = vmul.f32 %v3744, %v3748
        %vm3750 = vweird.f32 %v3742
        %vm3751 = vweird.f32 %v3744
        %vm3752 = vmor %vm3750, %vm3751
        %v3753 = vsel %vm3752, %v3744, %v3749
        %v3754 = vrsqrt.pop %v3743
        %v3755 = vmul.f32 %v3754, %v3743
        %v3756 = vmul.f32 %v3755, %v3754
        %v3757 = vmul.f32 0.5, %v3756
        %v3758 = vsub.f32 1.5, %v3757
        %v3759 = vmul.f32 %v3754, %v3758
        %vm3760 = vweird.f32 %v3743
        %vm3761 = vweird.f32 %v3754
        %vm3762 = vmor %vm3760, %vm3761
        %v3763 = vsel %vm3762, %v3754, %v3759
        %v3764 = vmul.f32 %v3732, %v3753
        %v3765 = vmul.f32 %v3733, %v3763
        %v3766 = vld [vmem:[%s819] sm:$0x1]
        %v3768 = vperm.slane %v3766, 0
        %v3770 = vmul.f32 %v3764, %v3768
        %v3771 = vmul.f32 %v3765, %v3768
        %v3772 = vld [vmem:[%s828] sm:$0x1]
        %v3774 = vperm.slane %v3772, 0
        %v3776 = vadd.f32 %v3770, %v3774
        %v3777 = vadd.f32 %v3771, %v3774
        %3778 = vst [vmem:[#allocation2] sm:$0xff] %v3776
        %3779 = vst [vmem:[#allocation2 + $0x8] sm:$0xff] %v3777
        %p3780 = scmp.eq.s32.totalorder %s48, 5
        // Predicated region
        $region141: #{dummy_gpt_forward.2} parent=79 // pred_check
          %p3781 = pneg %p3780
        $region142: #{dummy_gpt_forward.2} parent=79 // pred_check_branch
          %3783 = sbr.rel (%p3781) target = $region144
        $region143: #{dummy_gpt_forward.2} parent=79 // pred_region
          %3784 = vadd.xlane.f32.xlu0 %v3776
          %v3785 = vpop.xlane.xlu0 %3784
          %3786 = vadd.xlane.f32.xlu0 %v3777
          %v3787 = vpop.xlane.xlu0 %3786
          %v3788 = vmul.f32 %v3785, %v1346
          %v3789 = vmul.f32 %v3787, %v1346
          %v3790 = vsub.f32 %v3776, %v3788
          %v3791 = vsub.f32 %v3777, %v3789
          %v3792 = vmul.f32 %v3790, %v3790
          %v3793 = vmul.f32 %v3791, %v3791
          %3794 = vadd.xlane.f32.xlu0 %v3792
          %v3795 = vpop.xlane.xlu0 %3794
          %3796 = vadd.xlane.f32.xlu0 %v3793
          %v3797 = vpop.xlane.xlu0 %3796
          %v3798 = vmul.f32 %v3795, %v1346
          %v3799 = vmul.f32 %v3797, %v1346
          %v3800 = vadd.f32 %v3798, 1e-05
          %v3801 = vadd.f32 %v3799, 1e-05
          %v3802 = vrsqrt.pop %v3800
          %v3803 = vmul.f32 %v3802, %v3800
          %v3804 = vmul.f32 %v3803, %v3802
          %v3805 = vmul.f32 0.5, %v3804
          %v3806 = vsub.f32 1.5, %v3805
          %v3807 = vmul.f32 %v3802, %v3806
          %vm3808 = vweird.f32 %v3800
          %vm3809 = vweird.f32 %v3802
          %vm3810 = vmor %vm3808, %vm3809
          %v3811 = vsel %vm3810, %v3802, %v3807
          %v3812 = vrsqrt.pop %v3801
          %v3813 = vmul.f32 %v3812, %v3801
          %v3814 = vmul.f32 %v3813, %v3812
          %v3815 = vmul.f32 0.5, %v3814
          %v3816 = vsub.f32 1.5, %v3815
          %v3817 = vmul.f32 %v3812, %v3816
          %vm3818 = vweird.f32 %v3801
          %vm3819 = vweird.f32 %v3812
          %vm3820 = vmor %vm3818, %vm3819
          %v3821 = vsel %vm3820, %v3812, %v3817
          %v3822 = vmul.f32 %v3790, %v3811
          %v3823 = vmul.f32 %v3791, %v3821
          %v3824 = vld [vmem:[#allocation22] sm:$0x1]
          %v3826 = vperm.slane %v3824, 0
          %v3828 = vmul.f32 %v3822, %v3826
          %v3829 = vmul.f32 %v3823, %v3826
          %v3830 = vld [vmem:[#allocation23] sm:$0x1]
          %v3832 = vperm.slane %v3830, 0
          %v3834 = vadd.f32 %v3828, %v3832
          %v3835 = vadd.f32 %v3829, %v3832
          %3836 = vst [vmem:[%s15] sm:$0xff] %v3834
          %3837 = vst [vmem:[%s15 + $0x8] sm:$0xff] %v3835
        $region144: #{dummy_gpt_forward.2} parent=79 // pred_fallthru
          _
        // Predicated region
        $region145: #{dummy_gpt_forward.2} parent=79 // pred_check
          %p3838 = pneg %p436
        $region146: #{dummy_gpt_forward.2} parent=79 // pred_check_branch
          %3840 = sbr.rel (%p3838) target = $region148
        $region147: #{dummy_gpt_forward.2} parent=79 // pred_region
          _
        $region148: #{dummy_gpt_forward.2} parent=79 // pred_fallthru
          _
        // Predicated region
        $region149: #{dummy_gpt_forward.2} parent=79 // pred_check
          %p3841 = pneg %p436
        $region150: #{dummy_gpt_forward.2} parent=79 // pred_check_branch
          %3843 = sbr.rel (%p3841) target = $region152
        $region151: #{dummy_gpt_forward.2} parent=79 // pred_region
          _
        $region152: #{dummy_gpt_forward.2} parent=79 // pred_fallthru
          _
      $region80: #{dummy_gpt_forward.2} parent=5 // pred_fallthru
        _
      %p3844 = scmp.le.s32.totalorder 2, %s43
      // Predicated region
      $region153: #{dummy_gpt_forward.2} parent=5 // pred_check
        %p3845 = pneg %p3844
      $region154: #{dummy_gpt_forward.2} parent=5 // pred_check_branch
        %3847 = sbr.rel (%p3845) target = $region156
      $region155: #{dummy_gpt_forward.2} parent=5 // pred_region
        %s3848 = ssub.s32 %s43, 2
      $region156: #{dummy_gpt_forward.2} parent=5 // pred_fallthru
        _
    $region6: #{dummy_gpt_forward.2} parent=1 // loop_footer
      %s47 = sadd.s32 1, %s43
    $region7: #{dummy_gpt_forward.2} parent=1 // loop_footer_branch
      %42 = sbr.rel target = $region3
    $region8: #{dummy_gpt_forward.2} parent=1 // loop_exit
      _
    %3849 = vsyncpa [#allocation4], 1
    %s3850 = scalar_lea.sflag [#allocation4], 1
    %3851 = vsyncpa %s3850, 1
    %3852 = vsyncpa [#allocation6], 1
    %s3853 = scalar_lea.sflag [#allocation6], 1
    %3854 = vsyncpa %s3853, 1
    %3855 = vsyncpa [#allocation9], 1
    %s3856 = scalar_lea.sflag [#allocation9], 1
    %3857 = vsyncpa %s3856, 1
    %3858 = vsyncpa [#allocation12], 1
    %s3859 = scalar_lea.sflag [#allocation12], 1
    %3860 = vsyncpa %s3859, 1
    %3861 = vsyncpa [#allocation15], 1
    %s3862 = scalar_lea.sflag [#allocation15], 1
    %3863 = vsyncpa %s3862, 1
    %3864 = vsyncpa [#allocation18], 1
    %s3865 = scalar_lea.sflag [#allocation18], 1
    %3866 = vsyncpa %s3865, 1
    %3867 = vsyncpa [#allocation21], 1
    %s3868 = scalar_lea.sflag [#allocation21], 1
    %3869 = vsyncpa %s3868, 1
    %3870 = vsyncpa [#allocation24], 1

</llo_original>
